<compile_context>
chip_gen: v6e
topology: v6e:2x2x1
jax: 0.10.0
libtpu: 0.0.40
codegen_flags: <defaults>
</compile_context>

<pallas_src>
import functools
import math

import jax
import jax.numpy as jnp
from jax import lax
from jax.experimental import pallas as pl
from jax.experimental.pallas import tpu as pltpu

_LN_EPS = 1e-5                      # torch.nn.LayerNorm default
_SQRT2 = 1.4142135623730951
_PRECISION = lax.Precision.HIGHEST  # keep kernel and pure-JAX reference bit-comparable


def _round_up(n, m):
    return ((n + m - 1) // m) * m


# ----------------------------------------------------------------------------
# In-kernel math helpers
# ----------------------------------------------------------------------------
def _gelu_exact(x):
    # torch.nn.GELU() default = exact erf formulation
    return 0.5 * x * (1.0 + lax.erf(x / _SQRT2))


def _layer_norm_truewidth(x, gamma, beta, true_width):
    """LayerNorm over a lane-padded activation using true-width statistics.

    Requires: padded lanes of `x` are exactly 0 and gamma/beta are 0 there,
    so padded lanes stay exactly 0 on output.
    """
    pad_w = x.shape[-1]
    inv_n = 1.0 / float(true_width)
    mean = jnp.sum(x, axis=-1, keepdims=True) * inv_n        # padded lanes add 0
    xc = x - mean
    if pad_w != true_width:
        mask = (lax.broadcasted_iota(jnp.int32, (1, pad_w), 1) < true_width
                ).astype(x.dtype)
        xc = xc * mask                                        # re-zero padded lanes
    var = jnp.sum(xc * xc, axis=-1, keepdims=True) * inv_n
    return xc * lax.rsqrt(var + _LN_EPS) * gamma + beta


def _linear_block(x, w, bgb, true_width):
    # LinearBlock: Linear -> GELU(exact) -> LayerNorm.  bgb = [bias; gamma; beta].
    y = jnp.dot(x, w, preferred_element_type=jnp.float32, precision=_PRECISION)
    y = y + bgb[0:1, :]
    y = _gelu_exact(y)
    return _layer_norm_truewidth(y, bgb[1:2, :], bgb[2:3, :], true_width)


# ----------------------------------------------------------------------------
# Fused forward kernel (one-hot + time embedding + whole network, one call)
# ----------------------------------------------------------------------------
def fused_forward_kernel(
    tok_ref, t_ref,                         # per-batch-tile runtime inputs
    r_ref, cls_ref,                         # one-hot helper constants
    ew_ref, ebgb_ref,                       # embedding LinearBlock
    l0w_ref, l0bgb_ref,                     # layers[0]
    l1w_ref, l1bgb_ref,                     # layers[1]
    tws_ref, twc_ref, tpb_ref,              # merged time projection (sin/cos split)
    w1_ref, bgb1_ref, w2_ref, bgb2_ref,     # stacked res-block LinearBlocks
    ow_ref, ob_ref,                         # output Linear (lane-padded)
    o_ref,
    *, width, width5, time_half, time_base, n_res,
):
    wp = l1w_ref.shape[1]                   # lane-padded hidden width (128-multiple)

    # ---- fused one-hot: tokens -> one-hot (tile_b, input_dim_pad) --------------
    # tok_rep[r, c] = tok[r, c // num_classes] + 2 for valid columns, 0 elsewhere,
    # obtained with a tiny exact matmul; compare against the per-column class id.
    tok_f = tok_ref[...].astype(jnp.float32) + 2.0
    tok_rep = jnp.dot(tok_f, r_ref[...], preferred_element_type=jnp.float32,
                      precision=_PRECISION)
    one_hot = jnp.where(tok_rep == cls_ref[...], 1.0, 0.0)

    # ---- embedding -> layers[0] -> layers[1] -----------------------------------
    x = _linear_block(one_hot, ew_ref[...], ebgb_ref[...], width5)
    x = _linear_block(x, l0w_ref[...], l0bgb_ref[...], width)
    x = _linear_block(x, l1w_ref[...], l1bgb_ref[...], width)

    # ---- fused sinusoidal time embedding + ONE merged time-projection matmul ---
    hp = tws_ref.shape[0]
    emb_scale = math.log(time_base) / max(time_half - 1, 1)
    k = lax.broadcasted_iota(jnp.int32, (1, hp), 1).astype(jnp.float32)
    freqs = jnp.exp(k * (-emb_scale))                   # padded freq lanes hit zero weights
    ang = t_ref[...] * freqs                            # (tile_b, hp)
    tp_all = (
        jnp.dot(jnp.sin(ang), tws_ref[...], preferred_element_type=jnp.float32,
                precision=_PRECISION)
        + jnp.dot(jnp.cos(ang), twc_ref[...], preferred_element_type=jnp.float32,
                  precision=_PRECISION)
        + tpb_ref[...]
    )                                                   # (tile_b, 2*n_res*wp)

    # ---- residual blocks (small static count -> unrolled) ----------------------
    for i in range(n_res):
        scale = tp_all[:, (2 * i) * wp:(2 * i + 1) * wp]      # 128-lane aligned slices
        shift = tp_all[:, (2 * i + 1) * wp:(2 * i + 2) * wp]
        h = x * (scale + 1.0) + shift
        h = _linear_block(h, w1_ref[i], bgb1_ref[i], width)
        h = _linear_block(h, w2_ref[i], bgb2_ref[i], width)
        x = h + x

    # ---- output Linear + ExpAct (exp/tanh land on the idle EUP slot) -----------
    y = jnp.dot(x, ow_ref[...], preferred_element_type=jnp.float32,
                precision=_PRECISION) + ob_ref[...]
    o_ref[...] = jnp.exp(5.0 * jnp.tanh(y * 0.2))


# ----------------------------------------------------------------------------
# One-time parameter preparation (pad / pack / stack / merge) — done at init
# ----------------------------------------------------------------------------
def prepare_params(params, *, num_classes, input_dim, time_dim, time_base=1000):
    width = params["layer1"][0].shape[1]
    width5 = params["layer0"][0].shape[0]          # 5 * width
    output_dim = params["output"][0].shape[1]
    n_res = len(params["res_blocks"])
    n_tok = input_dim // num_classes
    half = time_dim // 2

    ip_pad = _round_up(input_dim, 128)
    fw_pad = _round_up(width5, 128)
    wp = _round_up(width, 128)
    out_pad = _round_up(output_dim, 128)
    nt_pad = _round_up(max(n_tok, 1), 8)
    hp = _round_up(max(half, 1), 8)

    def pad2(a, rows, cols):
        return jnp.pad(a, ((0, rows - a.shape[0]), (0, cols - a.shape[1])))

    def pack_lb(lb, in_pad, out_pad_):
        w, b, g, bt = lb
        bgb = pad2(jnp.concatenate([b, g, bt], axis=0), 3, out_pad_)
        return pad2(w, in_pad, out_pad_), bgb

    # One-hot helper constants: token-repeat matrix R and per-column class targets.
    cols = jnp.arange(ip_pad)
    valid = cols < input_dim
    slot = jnp.where(valid, cols // num_classes, -1)
    r_mat = (jnp.arange(nt_pad)[:, None] == slot[None, :]).astype(jnp.float32)
    cls = jnp.where(valid, cols % num_classes, -1).astype(jnp.float32)[None, :]

    ew, ebgb = pack_lb(params["embedding"], ip_pad, fw_pad)
    l0w, l0bgb = pack_lb(params["layer0"], fw_pad, wp)
    l1w, l1bgb = pack_lb(params["layer1"], wp, wp)

    # Merge all time projections: sin-rows / cos-rows split, [scale|shift] per block.
    tws_p, twc_p, tpb_p = [], [], []
    w1_l, bgb1_l, w2_l, bgb2_l = [], [], [], []
    for (tpw, tpb), lb1, lb2 in params["res_blocks"]:
        for sl in (slice(0, width), slice(width, 2 * width)):   # scale then shift
            tws_p.append(pad2(tpw[:half, sl], hp, wp))
            twc_p.append(pad2(tpw[half:, sl], hp, wp))
            tpb_p.append(pad2(tpb[:, sl], 1, wp))
        w, bgb = pack_lb(lb1, wp, wp); w1_l.append(w); bgb1_l.append(bgb)
        w, bgb = pack_lb(lb2, wp, wp); w2_l.append(w); bgb2_l.append(bgb)

    ow, ob = params["output"]
    arrays = dict(
        r_mat=r_mat, cls=cls,
        ew=ew, ebgb=ebgb, l0w=l0w, l0bgb=l0bgb, l1w=l1w, l1bgb=l1bgb,
        tws=jnp.concatenate(tws_p, axis=1),
        twc=jnp.concatenate(twc_p, axis=1),
        tpb=jnp.concatenate(tpb_p, axis=1),
        w1=jnp.stack(w1_l), bgb1=jnp.stack(bgb1_l),
        w2=jnp.stack(w2_l), bgb2=jnp.stack(bgb2_l),
        ow=pad2(ow, wp, out_pad), ob=pad2(ob, 1, out_pad),
    )
    config = dict(
        num_classes=num_classes, input_dim=input_dim, n_tok=n_tok, nt_pad=nt_pad,
        width=width, width5=width5, half=half, time_base=time_base, n_res=n_res,
        wp=wp, out_pad=out_pad, output_dim=output_dim, ip_pad=ip_pad,
    )
    return {"arrays": arrays, "config": config}


_WEIGHT_ORDER = ("r_mat", "cls", "ew", "ebgb", "l0w", "l0bgb", "l1w", "l1bgb",
                 "tws", "twc", "tpb", "w1", "bgb1", "w2", "bgb2", "ow", "ob")


# ----------------------------------------------------------------------------
# Forward: raw int tokens + t in, scores out (single pallas_call, batch grid)
# ----------------------------------------------------------------------------
def fused_model_ac(arrays, tokens, t, *, config):
    cfg = config
    B, n_tok = tokens.shape

    b_pad = _round_up(max(B, 8), 8)
    if b_pad > 256:
        b_pad = _round_up(b_pad, 256)
        tile_b = 256
    else:
        tile_b = b_pad
    grid = (b_pad // tile_b,)

    tok = tokens.astype(jnp.int32)
    if tok.shape != (b_pad, cfg["nt_pad"]):
        tok = jnp.pad(tok, ((0, b_pad - B), (0, cfg["nt_pad"] - n_tok)))
    t_col = t.astype(jnp.float32).reshape(-1, 1)
    if t_col.shape[0] != b_pad:
        t_col = jnp.pad(t_col, ((0, b_pad - B), (0, 0)))

    weights = [arrays[name] for name in _WEIGHT_ORDER]

    def act_spec(cols):
        return pl.BlockSpec((tile_b, cols), lambda i: (i, 0))

    def weight_spec(a):                       # VMEM-resident, constant block index
        nd = a.ndim
        return pl.BlockSpec(a.shape, lambda i, _nd=nd: (0,) * _nd)

    kernel = functools.partial(
        fused_forward_kernel,
        width=cfg["width"], width5=cfg["width5"], time_half=cfg["half"],
        time_base=cfg["time_base"], n_res=cfg["n_res"],
    )

    out = pl.pallas_call(
        kernel,
        grid=grid,
        out_shape=jax.ShapeDtypeStruct((b_pad, cfg["out_pad"]), jnp.float32),
        in_specs=[act_spec(cfg["nt_pad"]), act_spec(1)]
                 + [weight_spec(a) for a in weights],
        out_specs=pl.BlockSpec((tile_b, cfg["out_pad"]), lambda i: (i, 0)),
        compiler_params=pltpu.CompilerParams(dimension_semantics=("parallel",)),
    )(tok, t_col, *weights)
    return out[:B, :cfg["output_dim"]]


# ----------------------------------------------------------------------------
# Parameter init (natural torch-like shapes) + pure-JAX reference for validation
# ----------------------------------------------------------------------------
def _init_linear(key, fan_in, fan_out):
    kw, kb = jax.random.split(key)
    bound = 1.0 / math.sqrt(fan_in)
    w = jax.random.uniform(kw, (fan_in, fan_out), jnp.float32, -bound, bound)
    b = jax.random.uniform(kb, (1, fan_out), jnp.float32, -bound, bound)
    return w, b


def _init_linear_block(key, fan_in, fan_out):
    w, b = _init_linear(key, fan_in, fan_out)
    return (w, b, jnp.ones((1, fan_out), jnp.float32), jnp.zeros((1, fan_out), jnp.float32))


def init_model(key, input_dim, width, time_dim, output_dim, n_res):
    keys = jax.random.split(key, 4 + 3 * n_res)
    params = {
        "embedding": _init_linear_block(keys[0], input_dim, 5 * width),
        "layer0": _init_linear_block(keys[1], 5 * width, width),
        "layer1": _init_linear_block(keys[2], width, width),
        "res_blocks": [],
        "output": _init_linear(keys[3], width, output_dim),
    }
    for i in range(n_res):
        k_tp, k_l1, k_l2 = keys[4 + 3 * i: 7 + 3 * i]
        params["res_blocks"].append((
            _init_linear(k_tp, time_dim, 2 * width),
            _init_linear_block(k_l1, width, width),
            _init_linear_block(k_l2, width, width),
        ))
    return params


def sinusoidal_position_embedding(t, dim, base=1000):
    half = dim // 2
    emb = math.log(base) / max(half - 1, 1)
    freqs = jnp.exp(jnp.arange(half, dtype=jnp.float32) * -emb)
    ang = t.astype(jnp.float32)[:, None] * freqs[None, :]
    return jnp.concatenate([jnp.sin(ang), jnp.cos(ang)], axis=1)


def _ref_linear_block(x, w, b, g, bt):
    y = jnp.dot(x, w, precision=_PRECISION) + b
    y = _gelu_exact(y)
    mean = jnp.mean(y, axis=-1, keepdims=True)
    var = jnp.mean(jnp.square(y - mean), axis=-1, keepdims=True)
    return (y - mean) * lax.rsqrt(var + _LN_EPS) * g + bt


def model_ac_reference(params, tokens, t, *, num_classes, input_dim, time_dim):
    x = jax.nn.one_hot(tokens.astype(jnp.int32) + 2, num_classes, dtype=jnp.float32)
    x = x.reshape(-1, input_dim)
    x = _ref_linear_block(x, *params["embedding"])
    x = _ref_linear_block(x, *params["layer0"])
    x = _ref_linear_block(x, *params["layer1"])
    t_emb = sinusoidal_position_embedding(t, time_dim)
    width = x.shape[-1]
    for (tpw, tpb), lb1, lb2 in params["res_blocks"]:
        tp = jnp.dot(t_emb, tpw, precision=_PRECISION) + tpb
        scale, shift = tp[:, :width], tp[:, width:]
        h = x * (scale + 1.0) + shift
        h = _ref_linear_block(h, *lb1)
        h = _ref_linear_block(h, *lb2)
        x = h + x
    w, b = params["output"]
    y = jnp.dot(x, w, precision=_PRECISION) + b
    return jnp.exp(5.0 * jnp.tanh(y / 5.0))


# ----------------------------------------------------------------------------
if __name__ == "__main__":
    B = 4
    NUM_CLASSES = 6
    INPUT_DIM = 24            # 24 / 6 = 4 integer tokens per sample
    WIDTH = 32                # embedding produces 5 * WIDTH = 160 features
    TIME_DIM = 16
    OUTPUT_DIM = 8
    N_RES = 2

    key = jax.random.PRNGKey(0)
    pkey, ikey, tkey = jax.random.split(key, 3)

    params = init_model(pkey, INPUT_DIM, WIDTH, TIME_DIM, OUTPUT_DIM, N_RES)
    prepped = prepare_params(params, num_classes=NUM_CLASSES, input_dim=INPUT_DIM,
                             time_dim=TIME_DIM, time_base=1000)

    # integer tokens in [-2, 3] so tokens + 2 lies in [0, num_classes)
    tokens = jax.random.randint(ikey, (B, INPUT_DIM // NUM_CLASSES),
                                minval=-2, maxval=4, dtype=jnp.int32)
    t = jax.random.uniform(tkey, (B,), jnp.float32, 0.0, 1000.0)

    fwd = jax.jit(functools.partial(fused_model_ac, config=prepped["config"]))
    out = jax.block_until_ready(fwd(prepped["arrays"], tokens, t))

    ref = model_ac_reference(params, tokens, t, num_classes=NUM_CLASSES,
                             input_dim=INPUT_DIM, time_dim=TIME_DIM)

    assert out.shape == (B, OUTPUT_DIM)
    assert bool(jnp.all(jnp.isfinite(out)))
    assert jnp.allclose(out, ref, rtol=1e-4, atol=1e-4), "Pallas output mismatch"

    print("KERNEL_OK")
</pallas_src>

<mosaic_0001>
module attributes {stable_mosaic.version = 11 : i64} {
  func.func @fused_forward_kernel(%arg0: i32, %arg1: memref<8x8xi32, #tpu.memory_space<vmem>>, %arg2: memref<8x1xf32, #tpu.memory_space<vmem>>, %arg3: memref<8x128xf32, #tpu.memory_space<vmem>>, %arg4: memref<1x128xf32, #tpu.memory_space<vmem>>, %arg5: memref<128x256xf32, #tpu.memory_space<vmem>>, %arg6: memref<3x256xf32, #tpu.memory_space<vmem>>, %arg7: memref<256x128xf32, #tpu.memory_space<vmem>>, %arg8: memref<3x128xf32, #tpu.memory_space<vmem>>, %arg9: memref<128x128xf32, #tpu.memory_space<vmem>>, %arg10: memref<3x128xf32, #tpu.memory_space<vmem>>, %arg11: memref<8x512xf32, #tpu.memory_space<vmem>>, %arg12: memref<8x512xf32, #tpu.memory_space<vmem>>, %arg13: memref<1x512xf32, #tpu.memory_space<vmem>>, %arg14: memref<2x128x128xf32, #tpu.memory_space<vmem>>, %arg15: memref<2x3x128xf32, #tpu.memory_space<vmem>>, %arg16: memref<2x128x128xf32, #tpu.memory_space<vmem>>, %arg17: memref<2x3x128xf32, #tpu.memory_space<vmem>>, %arg18: memref<128x128xf32, #tpu.memory_space<vmem>>, %arg19: memref<1x128xf32, #tpu.memory_space<vmem>>, %arg20: memref<8x128xf32, #tpu.memory_space<vmem>>) attributes {dimension_semantics = [#tpu.dimension_semantics<parallel>], iteration_bounds = array<i64: 1>, scalar_prefetch = 0 : i64, scratch_operands = 0 : i64, tpu.core_type = #tpu.core_type<tc>, window_params = [{transform_indices = @transform_0, window_bounds = array<i64: 8, 8>}, {transform_indices = @transform_1, window_bounds = array<i64: 8, 1>}, {pipeline_mode = #tpu.pipeline_mode<synchronous>, transform_indices = @transform_2, window_bounds = array<i64: 8, 128>}, {pipeline_mode = #tpu.pipeline_mode<synchronous>, transform_indices = @transform_3, window_bounds = array<i64: 1, 128>}, {pipeline_mode = #tpu.pipeline_mode<synchronous>, transform_indices = @transform_4, window_bounds = array<i64: 128, 256>}, {pipeline_mode = #tpu.pipeline_mode<synchronous>, transform_indices = @transform_5, window_bounds = array<i64: 3, 256>}, {pipeline_mode = #tpu.pipeline_mode<synchronous>, transform_indices = @transform_6, window_bounds = array<i64: 256, 128>}, {pipeline_mode = #tpu.pipeline_mode<synchronous>, transform_indices = @transform_7, window_bounds = array<i64: 3, 128>}, {pipeline_mode = #tpu.pipeline_mode<synchronous>, transform_indices = @transform_8, window_bounds = array<i64: 128, 128>}, {pipeline_mode = #tpu.pipeline_mode<synchronous>, transform_indices = @transform_9, window_bounds = array<i64: 3, 128>}, {pipeline_mode = #tpu.pipeline_mode<synchronous>, transform_indices = @transform_10, window_bounds = array<i64: 8, 512>}, {pipeline_mode = #tpu.pipeline_mode<synchronous>, transform_indices = @transform_11, window_bounds = array<i64: 8, 512>}, {pipeline_mode = #tpu.pipeline_mode<synchronous>, transform_indices = @transform_12, window_bounds = array<i64: 1, 512>}, {pipeline_mode = #tpu.pipeline_mode<synchronous>, transform_indices = @transform_13, window_bounds = array<i64: 2, 128, 128>}, {pipeline_mode = #tpu.pipeline_mode<synchronous>, transform_indices = @transform_14, window_bounds = array<i64: 2, 3, 128>}, {pipeline_mode = #tpu.pipeline_mode<synchronous>, transform_indices = @transform_15, window_bounds = array<i64: 2, 128, 128>}, {pipeline_mode = #tpu.pipeline_mode<synchronous>, transform_indices = @transform_16, window_bounds = array<i64: 2, 3, 128>}, {pipeline_mode = #tpu.pipeline_mode<synchronous>, transform_indices = @transform_17, window_bounds = array<i64: 128, 128>}, {pipeline_mode = #tpu.pipeline_mode<synchronous>, transform_indices = @transform_18, window_bounds = array<i64: 1, 128>}, {transform_indices = @transform_19, window_bounds = array<i64: 8, 128>}]} {
    %c0 = arith.constant 0 : index
    %c0_0 = arith.constant 0 : index
    %0 = vector.load %arg1[%c0, %c0_0] : memref<8x8xi32, #tpu.memory_space<vmem>>, vector<8x8xi32>
    %1 = arith.sitofp %0 : vector<8x8xi32> to vector<8x8xf32>
    %cst = arith.constant 2.000000e+00 : f32
    %2 = vector.broadcast %cst : f32 to vector<8x8xf32>
    %3 = arith.addf %1, %2 : vector<8x8xf32>
    %c0_1 = arith.constant 0 : index
    %c0_2 = arith.constant 0 : index
    %4 = vector.load %arg3[%c0_1, %c0_2] : memref<8x128xf32, #tpu.memory_space<vmem>>, vector<8x128xf32>
    %cst_3 = arith.constant dense<0.000000e+00> : vector<8x128xf32>
    %5 = tpu.matmul %3, %4, %cst_3 {dimension_numbers = #tpu.dot_dimension_numbers<[1], [0], [0], [1], [0, 0, 1, 1], [], []>, precision = #tpu.contract_precision<fp32>} : vector<8x8xf32>, vector<8x128xf32>, vector<8x128xf32> -> vector<8x128xf32>
    %c0_4 = arith.constant 0 : index
    %c0_5 = arith.constant 0 : index
    %6 = vector.load %arg4[%c0_4, %c0_5] : memref<1x128xf32, #tpu.memory_space<vmem>>, vector<1x128xf32>
    %7 = vector.broadcast %6 : vector<1x128xf32> to vector<8x128xf32>
    %8 = arith.cmpf oeq, %5, %7 : vector<8x128xf32>
    %cst_6 = arith.constant 1.000000e+00 : f32
    %cst_7 = arith.constant 0.000000e+00 : f32
    %9 = vector.broadcast %cst_6 : f32 to vector<8x128xf32>
    %10 = vector.broadcast %cst_7 : f32 to vector<8x128xf32>
    %11 = arith.select %8, %9, %10 : vector<8x128xi1>, vector<8x128xf32>
    %c0_8 = arith.constant 0 : index
    %c0_9 = arith.constant 0 : index
    %12 = vector.load %arg5[%c0_8, %c0_9] : memref<128x256xf32, #tpu.memory_space<vmem>>, vector<128x256xf32>
    %c0_10 = arith.constant 0 : index
    %c0_11 = arith.constant 0 : index
    %13 = vector.load %arg6[%c0_10, %c0_11] : memref<3x256xf32, #tpu.memory_space<vmem>>, vector<3x256xf32>
    %cst_12 = arith.constant dense<0.000000e+00> : vector<8x256xf32>
    %14 = tpu.matmul %11, %12, %cst_12 {dimension_numbers = #tpu.dot_dimension_numbers<[1], [0], [0], [1], [0, 0, 1, 1], [], []>, precision = #tpu.contract_precision<fp32>} : vector<8x128xf32>, vector<128x256xf32>, vector<8x256xf32> -> vector<8x256xf32>
    %15 = vector.extract_strided_slice %13 {offsets = [0, 0], sizes = [1, 256], strides = [1, 1]} : vector<3x256xf32> to vector<1x256xf32>
    %16 = vector.broadcast %15 : vector<1x256xf32> to vector<8x256xf32>
    %17 = arith.addf %14, %16 : vector<8x256xf32>
    %cst_13 = arith.constant 5.000000e-01 : f32
    %18 = vector.broadcast %cst_13 : f32 to vector<8x256xf32>
    %19 = arith.mulf %18, %17 : vector<8x256xf32>
    %cst_14 = arith.constant 1.41421354 : f32
    %20 = vector.broadcast %cst_14 : f32 to vector<8x256xf32>
    %21 = arith.divf %17, %20 : vector<8x256xf32>
    %22 = math.erf %21 : vector<8x256xf32>
    %cst_15 = arith.constant 1.000000e+00 : f32
    %23 = vector.broadcast %cst_15 : f32 to vector<8x256xf32>
    %24 = arith.addf %23, %22 : vector<8x256xf32>
    %25 = arith.mulf %19, %24 : vector<8x256xf32>
    %26 = vector.extract_strided_slice %13 {offsets = [1, 0], sizes = [1, 256], strides = [1, 1]} : vector<3x256xf32> to vector<1x256xf32>
    %27 = vector.extract_strided_slice %13 {offsets = [2, 0], sizes = [1, 256], strides = [1, 1]} : vector<3x256xf32> to vector<1x256xf32>
    %cst_16 = arith.constant dense<0.000000e+00> : vector<8xf32>
    %28 = vector.multi_reduction <add>, %25, %cst_16 [1] : vector<8x256xf32> to vector<8xf32>
    %29 = vector.shape_cast %28 : vector<8xf32> to vector<8x1xf32>
    %cst_17 = arith.constant 6.250000e-03 : f32
    %30 = vector.broadcast %cst_17 : f32 to vector<8x1xf32>
    %31 = arith.mulf %29, %30 : vector<8x1xf32>
    %32 = vector.broadcast %31 : vector<8x1xf32> to vector<8x256xf32>
    %33 = arith.subf %25, %32 : vector<8x256xf32>
    %34 = tpu.iota {dimensions = array<i32: 1>} : vector<1x256xi32>
    %c160_i32 = arith.constant 160 : i32
    %35 = vector.broadcast %c160_i32 : i32 to vector<1x256xi32>
    %36 = arith.cmpi slt, %34, %35 : vector<1x256xi32>
    %37 = arith.extui %36 : vector<1x256xi1> to vector<1x256xi32>
    %38 = arith.sitofp %37 : vector<1x256xi32> to vector<1x256xf32>
    %39 = vector.broadcast %38 : vector<1x256xf32> to vector<8x256xf32>
    %40 = arith.mulf %33, %39 : vector<8x256xf32>
    %41 = arith.mulf %40, %40 : vector<8x256xf32>
    %cst_18 = arith.constant dense<0.000000e+00> : vector<8xf32>
    %42 = vector.multi_reduction <add>, %41, %cst_18 [1] : vector<8x256xf32> to vector<8xf32>
    %43 = vector.shape_cast %42 : vector<8xf32> to vector<8x1xf32>
    %cst_19 = arith.constant 6.250000e-03 : f32
    %44 = vector.broadcast %cst_19 : f32 to vector<8x1xf32>
    %45 = arith.mulf %43, %44 : vector<8x1xf32>
    %cst_20 = arith.constant 9.99999974E-6 : f32
    %46 = vector.broadcast %cst_20 : f32 to vector<8x1xf32>
    %47 = arith.addf %45, %46 : vector<8x1xf32>
    %48 = math.rsqrt %47 : vector<8x1xf32>
    %49 = vector.broadcast %48 : vector<8x1xf32> to vector<8x256xf32>
    %50 = arith.mulf %40, %49 : vector<8x256xf32>
    %51 = vector.broadcast %26 : vector<1x256xf32> to vector<8x256xf32>
    %52 = arith.mulf %50, %51 : vector<8x256xf32>
    %53 = vector.broadcast %27 : vector<1x256xf32> to vector<8x256xf32>
    %54 = arith.addf %52, %53 : vector<8x256xf32>
    %c0_21 = arith.constant 0 : index
    %c0_22 = arith.constant 0 : index
    %55 = vector.load %arg7[%c0_21, %c0_22] : memref<256x128xf32, #tpu.memory_space<vmem>>, vector<256x128xf32>
    %c0_23 = arith.constant 0 : index
    %c0_24 = arith.constant 0 : index
    %56 = vector.load %arg8[%c0_23, %c0_24] : memref<3x128xf32, #tpu.memory_space<vmem>>, vector<3x128xf32>
    %cst_25 = arith.constant dense<0.000000e+00> : vector<8x128xf32>
    %57 = tpu.matmul %54, %55, %cst_25 {dimension_numbers = #tpu.dot_dimension_numbers<[1], [0], [0], [1], [0, 0, 1, 1], [], []>, precision = #tpu.contract_precision<fp32>} : vector<8x256xf32>, vector<256x128xf32>, vector<8x128xf32> -> vector<8x128xf32>
    %58 = vector.extract_strided_slice %56 {offsets = [0, 0], sizes = [1, 128], strides = [1, 1]} : vector<3x128xf32> to vector<1x128xf32>
    %59 = vector.broadcast %58 : vector<1x128xf32> to vector<8x128xf32>
    %60 = arith.addf %57, %59 : vector<8x128xf32>
    %cst_26 = arith.constant 5.000000e-01 : f32
    %61 = vector.broadcast %cst_26 : f32 to vector<8x128xf32>
    %62 = arith.mulf %61, %60 : vector<8x128xf32>
    %cst_27 = arith.constant 1.41421354 : f32
    %63 = vector.broadcast %cst_27 : f32 to vector<8x128xf32>
    %64 = arith.divf %60, %63 : vector<8x128xf32>
    %65 = math.erf %64 : vector<8x128xf32>
    %cst_28 = arith.constant 1.000000e+00 : f32
    %66 = vector.broadcast %cst_28 : f32 to vector<8x128xf32>
    %67 = arith.addf %66, %65 : vector<8x128xf32>
    %68 = arith.mulf %62, %67 : vector<8x128xf32>
    %69 = vector.extract_strided_slice %56 {offsets = [1, 0], sizes = [1, 128], strides = [1, 1]} : vector<3x128xf32> to vector<1x128xf32>
    %70 = vector.extract_strided_slice %56 {offsets = [2, 0], sizes = [1, 128], strides = [1, 1]} : vector<3x128xf32> to vector<1x128xf32>
    %cst_29 = arith.constant dense<0.000000e+00> : vector<8xf32>
    %71 = vector.multi_reduction <add>, %68, %cst_29 [1] : vector<8x128xf32> to vector<8xf32>
    %72 = vector.shape_cast %71 : vector<8xf32> to vector<8x1xf32>
    %cst_30 = arith.constant 3.125000e-02 : f32
    %73 = vector.broadcast %cst_30 : f32 to vector<8x1xf32>
    %74 = arith.mulf %72, %73 : vector<8x1xf32>
    %75 = vector.broadcast %74 : vector<8x1xf32> to vector<8x128xf32>
    %76 = arith.subf %68, %75 : vector<8x128xf32>
    %77 = tpu.iota {dimensions = array<i32: 1>} : vector<1x128xi32>
    %c32_i32 = arith.constant 32 : i32
    %78 = vector.broadcast %c32_i32 : i32 to vector<1x128xi32>
    %79 = arith.cmpi slt, %77, %78 : vector<1x128xi32>
    %80 = arith.extui %79 : vector<1x128xi1> to vector<1x128xi32>
    %81 = arith.sitofp %80 : vector<1x128xi32> to vector<1x128xf32>
    %82 = vector.broadcast %81 : vector<1x128xf32> to vector<8x128xf32>
    %83 = arith.mulf %76, %82 : vector<8x128xf32>
    %84 = arith.mulf %83, %83 : vector<8x128xf32>
    %cst_31 = arith.constant dense<0.000000e+00> : vector<8xf32>
    %85 = vector.multi_reduction <add>, %84, %cst_31 [1] : vector<8x128xf32> to vector<8xf32>
    %86 = vector.shape_cast %85 : vector<8xf32> to vector<8x1xf32>
    %cst_32 = arith.constant 3.125000e-02 : f32
    %87 = vector.broadcast %cst_32 : f32 to vector<8x1xf32>
    %88 = arith.mulf %86, %87 : vector<8x1xf32>
    %cst_33 = arith.constant 9.99999974E-6 : f32
    %89 = vector.broadcast %cst_33 : f32 to vector<8x1xf32>
    %90 = arith.addf %88, %89 : vector<8x1xf32>
    %91 = math.rsqrt %90 : vector<8x1xf32>
    %92 = vector.broadcast %91 : vector<8x1xf32> to vector<8x128xf32>
    %93 = arith.mulf %83, %92 : vector<8x128xf32>
    %94 = vector.broadcast %69 : vector<1x128xf32> to vector<8x128xf32>
    %95 = arith.mulf %93, %94 : vector<8x128xf32>
    %96 = vector.broadcast %70 : vector<1x128xf32> to vector<8x128xf32>
    %97 = arith.addf %95, %96 : vector<8x128xf32>
    %c0_34 = arith.constant 0 : index
    %c0_35 = arith.constant 0 : index
    %98 = vector.load %arg9[%c0_34, %c0_35] : memref<128x128xf32, #tpu.memory_space<vmem>>, vector<128x128xf32>
    %c0_36 = arith.constant 0 : index
    %c0_37 = arith.constant 0 : index
    %99 = vector.load %arg10[%c0_36, %c0_37] : memref<3x128xf32, #tpu.memory_space<vmem>>, vector<3x128xf32>
    %cst_38 = arith.constant dense<0.000000e+00> : vector<8x128xf32>
    %100 = tpu.matmul %97, %98, %cst_38 {dimension_numbers = #tpu.dot_dimension_numbers<[1], [0], [0], [1], [0, 0, 1, 1], [], []>, precision = #tpu.contract_precision<fp32>} : vector<8x128xf32>, vector<128x128xf32>, vector<8x128xf32> -> vector<8x128xf32>
    %101 = vector.extract_strided_slice %99 {offsets = [0, 0], sizes = [1, 128], strides = [1, 1]} : vector<3x128xf32> to vector<1x128xf32>
    %102 = vector.broadcast %101 : vector<1x128xf32> to vector<8x128xf32>
    %103 = arith.addf %100, %102 : vector<8x128xf32>
    %cst_39 = arith.constant 5.000000e-01 : f32
    %104 = vector.broadcast %cst_39 : f32 to vector<8x128xf32>
    %105 = arith.mulf %104, %103 : vector<8x128xf32>
    %cst_40 = arith.constant 1.41421354 : f32
    %106 = vector.broadcast %cst_40 : f32 to vector<8x128xf32>
    %107 = arith.divf %103, %106 : vector<8x128xf32>
    %108 = math.erf %107 : vector<8x128xf32>
    %cst_41 = arith.constant 1.000000e+00 : f32
    %109 = vector.broadcast %cst_41 : f32 to vector<8x128xf32>
    %110 = arith.addf %109, %108 : vector<8x128xf32>
    %111 = arith.mulf %105, %110 : vector<8x128xf32>
    %112 = vector.extract_strided_slice %99 {offsets = [1, 0], sizes = [1, 128], strides = [1, 1]} : vector<3x128xf32> to vector<1x128xf32>
    %113 = vector.extract_strided_slice %99 {offsets = [2, 0], sizes = [1, 128], strides = [1, 1]} : vector<3x128xf32> to vector<1x128xf32>
    %cst_42 = arith.constant dense<0.000000e+00> : vector<8xf32>
    %114 = vector.multi_reduction <add>, %111, %cst_42 [1] : vector<8x128xf32> to vector<8xf32>
    %115 = vector.shape_cast %114 : vector<8xf32> to vector<8x1xf32>
    %cst_43 = arith.constant 3.125000e-02 : f32
    %116 = vector.broadcast %cst_43 : f32 to vector<8x1xf32>
    %117 = arith.mulf %115, %116 : vector<8x1xf32>
    %118 = vector.broadcast %117 : vector<8x1xf32> to vector<8x128xf32>
    %119 = arith.subf %111, %118 : vector<8x128xf32>
    %120 = tpu.iota {dimensions = array<i32: 1>} : vector<1x128xi32>
    %c32_i32_44 = arith.constant 32 : i32
    %121 = vector.broadcast %c32_i32_44 : i32 to vector<1x128xi32>
    %122 = arith.cmpi slt, %120, %121 : vector<1x128xi32>
    %123 = arith.extui %122 : vector<1x128xi1> to vector<1x128xi32>
    %124 = arith.sitofp %123 : vector<1x128xi32> to vector<1x128xf32>
    %125 = vector.broadcast %124 : vector<1x128xf32> to vector<8x128xf32>
    %126 = arith.mulf %119, %125 : vector<8x128xf32>
    %127 = arith.mulf %126, %126 : vector<8x128xf32>
    %cst_45 = arith.constant dense<0.000000e+00> : vector<8xf32>
    %128 = vector.multi_reduction <add>, %127, %cst_45 [1] : vector<8x128xf32> to vector<8xf32>
    %129 = vector.shape_cast %128 : vector<8xf32> to vector<8x1xf32>
    %cst_46 = arith.constant 3.125000e-02 : f32
    %130 = vector.broadcast %cst_46 : f32 to vector<8x1xf32>
    %131 = arith.mulf %129, %130 : vector<8x1xf32>
    %cst_47 = arith.constant 9.99999974E-6 : f32
    %132 = vector.broadcast %cst_47 : f32 to vector<8x1xf32>
    %133 = arith.addf %131, %132 : vector<8x1xf32>
    %134 = math.rsqrt %133 : vector<8x1xf32>
    %135 = vector.broadcast %134 : vector<8x1xf32> to vector<8x128xf32>
    %136 = arith.mulf %126, %135 : vector<8x128xf32>
    %137 = vector.broadcast %112 : vector<1x128xf32> to vector<8x128xf32>
    %138 = arith.mulf %136, %137 : vector<8x128xf32>
    %139 = vector.broadcast %113 : vector<1x128xf32> to vector<8x128xf32>
    %140 = arith.addf %138, %139 : vector<8x128xf32>
    %141 = tpu.iota {dimensions = array<i32: 1>} : vector<1x8xi32>
    %142 = arith.sitofp %141 : vector<1x8xi32> to vector<1x8xf32>
    %cst_48 = arith.constant -0.986822187 : f32
    %143 = vector.broadcast %cst_48 : f32 to vector<1x8xf32>
    %144 = arith.mulf %142, %143 : vector<1x8xf32>
    %145 = math.exp %144 : vector<1x8xf32>
    %c0_49 = arith.constant 0 : index
    %c0_50 = arith.constant 0 : index
    %146 = vector.load %arg2[%c0_49, %c0_50] : memref<8x1xf32, #tpu.memory_space<vmem>>, vector<8x1xf32>
    %147 = vector.broadcast %146 : vector<8x1xf32> to vector<8x8xf32>
    %148 = vector.broadcast %145 : vector<1x8xf32> to vector<8x8xf32>
    %149 = arith.mulf %147, %148 : vector<8x8xf32>
    %150 = math.sin %149 : vector<8x8xf32>
    %c0_51 = arith.constant 0 : index
    %c0_52 = arith.constant 0 : index
    %151 = vector.load %arg11[%c0_51, %c0_52] : memref<8x512xf32, #tpu.memory_space<vmem>>, vector<8x512xf32>
    %cst_53 = arith.constant dense<0.000000e+00> : vector<8x512xf32>
    %152 = tpu.matmul %150, %151, %cst_53 {dimension_numbers = #tpu.dot_dimension_numbers<[1], [0], [0], [1], [0, 0, 1, 1], [], []>, precision = #tpu.contract_precision<fp32>} : vector<8x8xf32>, vector<8x512xf32>, vector<8x512xf32> -> vector<8x512xf32>
    %153 = math.cos %149 : vector<8x8xf32>
    %c0_54 = arith.constant 0 : index
    %c0_55 = arith.constant 0 : index
    %154 = vector.load %arg12[%c0_54, %c0_55] : memref<8x512xf32, #tpu.memory_space<vmem>>, vector<8x512xf32>
    %cst_56 = arith.constant dense<0.000000e+00> : vector<8x512xf32>
    %155 = tpu.matmul %153, %154, %cst_56 {dimension_numbers = #tpu.dot_dimension_numbers<[1], [0], [0], [1], [0, 0, 1, 1], [], []>, precision = #tpu.contract_precision<fp32>} : vector<8x8xf32>, vector<8x512xf32>, vector<8x512xf32> -> vector<8x512xf32>
    %156 = arith.addf %152, %155 : vector<8x512xf32>
    %c0_57 = arith.constant 0 : index
    %c0_58 = arith.constant 0 : index
    %157 = vector.load %arg13[%c0_57, %c0_58] : memref<1x512xf32, #tpu.memory_space<vmem>>, vector<1x512xf32>
    %158 = vector.broadcast %157 : vector<1x512xf32> to vector<8x512xf32>
    %159 = arith.addf %156, %158 : vector<8x512xf32>
    %160 = vector.extract_strided_slice %159 {offsets = [0, 0], sizes = [8, 128], strides = [1, 1]} : vector<8x512xf32> to vector<8x128xf32>
    %161 = vector.extract_strided_slice %159 {offsets = [0, 128], sizes = [8, 128], strides = [1, 1]} : vector<8x512xf32> to vector<8x128xf32>
    %cst_59 = arith.constant 1.000000e+00 : f32
    %162 = vector.broadcast %cst_59 : f32 to vector<8x128xf32>
    %163 = arith.addf %160, %162 : vector<8x128xf32>
    %164 = arith.mulf %140, %163 : vector<8x128xf32>
    %165 = arith.addf %164, %161 : vector<8x128xf32>
    %c0_60 = arith.constant 0 : index
    %c0_61 = arith.constant 0 : index
    %c0_62 = arith.constant 0 : index
    %166 = vector.load %arg14[%c0_60, %c0_61, %c0_62] : memref<2x128x128xf32, #tpu.memory_space<vmem>>, vector<1x128x128xf32>
    %167 = vector.shape_cast %166 : vector<1x128x128xf32> to vector<128x128xf32>
    %c0_63 = arith.constant 0 : index
    %c0_64 = arith.constant 0 : index
    %c0_65 = arith.constant 0 : index
    %168 = vector.load %arg15[%c0_63, %c0_64, %c0_65] : memref<2x3x128xf32, #tpu.memory_space<vmem>>, vector<1x3x128xf32>
    %169 = vector.shape_cast %168 : vector<1x3x128xf32> to vector<3x128xf32>
    %cst_66 = arith.constant dense<0.000000e+00> : vector<8x128xf32>
    %170 = tpu.matmul %165, %167, %cst_66 {dimension_numbers = #tpu.dot_dimension_numbers<[1], [0], [0], [1], [0, 0, 1, 1], [], []>, precision = #tpu.contract_precision<fp32>} : vector<8x128xf32>, vector<128x128xf32>, vector<8x128xf32> -> vector<8x128xf32>
    %171 = vector.extract_strided_slice %169 {offsets = [0, 0], sizes = [1, 128], strides = [1, 1]} : vector<3x128xf32> to vector<1x128xf32>
    %172 = vector.broadcast %171 : vector<1x128xf32> to vector<8x128xf32>
    %173 = arith.addf %170, %172 : vector<8x128xf32>
    %cst_67 = arith.constant 5.000000e-01 : f32
    %174 = vector.broadcast %cst_67 : f32 to vector<8x128xf32>
    %175 = arith.mulf %174, %173 : vector<8x128xf32>
    %cst_68 = arith.constant 1.41421354 : f32
    %176 = vector.broadcast %cst_68 : f32 to vector<8x128xf32>
    %177 = arith.divf %173, %176 : vector<8x128xf32>
    %178 = math.erf %177 : vector<8x128xf32>
    %cst_69 = arith.constant 1.000000e+00 : f32
    %179 = vector.broadcast %cst_69 : f32 to vector<8x128xf32>
    %180 = arith.addf %179, %178 : vector<8x128xf32>
    %181 = arith.mulf %175, %180 : vector<8x128xf32>
    %182 = vector.extract_strided_slice %169 {offsets = [1, 0], sizes = [1, 128], strides = [1, 1]} : vector<3x128xf32> to vector<1x128xf32>
    %183 = vector.extract_strided_slice %169 {offsets = [2, 0], sizes = [1, 128], strides = [1, 1]} : vector<3x128xf32> to vector<1x128xf32>
    %cst_70 = arith.constant dense<0.000000e+00> : vector<8xf32>
    %184 = vector.multi_reduction <add>, %181, %cst_70 [1] : vector<8x128xf32> to vector<8xf32>
    %185 = vector.shape_cast %184 : vector<8xf32> to vector<8x1xf32>
    %cst_71 = arith.constant 3.125000e-02 : f32
    %186 = vector.broadcast %cst_71 : f32 to vector<8x1xf32>
    %187 = arith.mulf %185, %186 : vector<8x1xf32>
    %188 = vector.broadcast %187 : vector<8x1xf32> to vector<8x128xf32>
    %189 = arith.subf %181, %188 : vector<8x128xf32>
    %190 = tpu.iota {dimensions = array<i32: 1>} : vector<1x128xi32>
    %c32_i32_72 = arith.constant 32 : i32
    %191 = vector.broadcast %c32_i32_72 : i32 to vector<1x128xi32>
    %192 = arith.cmpi slt, %190, %191 : vector<1x128xi32>
    %193 = arith.extui %192 : vector<1x128xi1> to vector<1x128xi32>
    %194 = arith.sitofp %193 : vector<1x128xi32> to vector<1x128xf32>
    %195 = vector.broadcast %194 : vector<1x128xf32> to vector<8x128xf32>
    %196 = arith.mulf %189, %195 : vector<8x128xf32>
    %197 = arith.mulf %196, %196 : vector<8x128xf32>
    %cst_73 = arith.constant dense<0.000000e+00> : vector<8xf32>
    %198 = vector.multi_reduction <add>, %197, %cst_73 [1] : vector<8x128xf32> to vector<8xf32>
    %199 = vector.shape_cast %198 : vector<8xf32> to vector<8x1xf32>
    %cst_74 = arith.constant 3.125000e-02 : f32
    %200 = vector.broadcast %cst_74 : f32 to vector<8x1xf32>
    %201 = arith.mulf %199, %200 : vector<8x1xf32>
    %cst_75 = arith.constant 9.99999974E-6 : f32
    %202 = vector.broadcast %cst_75 : f32 to vector<8x1xf32>
    %203 = arith.addf %201, %202 : vector<8x1xf32>
    %204 = math.rsqrt %203 : vector<8x1xf32>
    %205 = vector.broadcast %204 : vector<8x1xf32> to vector<8x128xf32>
    %206 = arith.mulf %196, %205 : vector<8x128xf32>
    %207 = vector.broadcast %182 : vector<1x128xf32> to vector<8x128xf32>
    %208 = arith.mulf %206, %207 : vector<8x128xf32>
    %209 = vector.broadcast %183 : vector<1x128xf32> to vector<8x128xf32>
    %210 = arith.addf %208, %209 : vector<8x128xf32>
    %c0_76 = arith.constant 0 : index
    %c0_77 = arith.constant 0 : index
    %c0_78 = arith.constant 0 : index
    %211 = vector.load %arg16[%c0_76, %c0_77, %c0_78] : memref<2x128x128xf32, #tpu.memory_space<vmem>>, vector<1x128x128xf32>
    %212 = vector.shape_cast %211 : vector<1x128x128xf32> to vector<128x128xf32>
    %c0_79 = arith.constant 0 : index
    %c0_80 = arith.constant 0 : index
    %c0_81 = arith.constant 0 : index
    %213 = vector.load %arg17[%c0_79, %c0_80, %c0_81] : memref<2x3x128xf32, #tpu.memory_space<vmem>>, vector<1x3x128xf32>
    %214 = vector.shape_cast %213 : vector<1x3x128xf32> to vector<3x128xf32>
    %cst_82 = arith.constant dense<0.000000e+00> : vector<8x128xf32>
    %215 = tpu.matmul %210, %212, %cst_82 {dimension_numbers = #tpu.dot_dimension_numbers<[1], [0], [0], [1], [0, 0, 1, 1], [], []>, precision = #tpu.contract_precision<fp32>} : vector<8x128xf32>, vector<128x128xf32>, vector<8x128xf32> -> vector<8x128xf32>
    %216 = vector.extract_strided_slice %214 {offsets = [0, 0], sizes = [1, 128], strides = [1, 1]} : vector<3x128xf32> to vector<1x128xf32>
    %217 = vector.broadcast %216 : vector<1x128xf32> to vector<8x128xf32>
    %218 = arith.addf %215, %217 : vector<8x128xf32>
    %cst_83 = arith.constant 5.000000e-01 : f32
    %219 = vector.broadcast %cst_83 : f32 to vector<8x128xf32>
    %220 = arith.mulf %219, %218 : vector<8x128xf32>
    %cst_84 = arith.constant 1.41421354 : f32
    %221 = vector.broadcast %cst_84 : f32 to vector<8x128xf32>
    %222 = arith.divf %218, %221 : vector<8x128xf32>
    %223 = math.erf %222 : vector<8x128xf32>
    %cst_85 = arith.constant 1.000000e+00 : f32
    %224 = vector.broadcast %cst_85 : f32 to vector<8x128xf32>
    %225 = arith.addf %224, %223 : vector<8x128xf32>
    %226 = arith.mulf %220, %225 : vector<8x128xf32>
    %227 = vector.extract_strided_slice %214 {offsets = [1, 0], sizes = [1, 128], strides = [1, 1]} : vector<3x128xf32> to vector<1x128xf32>
    %228 = vector.extract_strided_slice %214 {offsets = [2, 0], sizes = [1, 128], strides = [1, 1]} : vector<3x128xf32> to vector<1x128xf32>
    %cst_86 = arith.constant dense<0.000000e+00> : vector<8xf32>
    %229 = vector.multi_reduction <add>, %226, %cst_86 [1] : vector<8x128xf32> to vector<8xf32>
    %230 = vector.shape_cast %229 : vector<8xf32> to vector<8x1xf32>
    %cst_87 = arith.constant 3.125000e-02 : f32
    %231 = vector.broadcast %cst_87 : f32 to vector<8x1xf32>
    %232 = arith.mulf %230, %231 : vector<8x1xf32>
    %233 = vector.broadcast %232 : vector<8x1xf32> to vector<8x128xf32>
    %234 = arith.subf %226, %233 : vector<8x128xf32>
    %235 = tpu.iota {dimensions = array<i32: 1>} : vector<1x128xi32>
    %c32_i32_88 = arith.constant 32 : i32
    %236 = vector.broadcast %c32_i32_88 : i32 to vector<1x128xi32>
    %237 = arith.cmpi slt, %235, %236 : vector<1x128xi32>
    %238 = arith.extui %237 : vector<1x128xi1> to vector<1x128xi32>
    %239 = arith.sitofp %238 : vector<1x128xi32> to vector<1x128xf32>
    %240 = vector.broadcast %239 : vector<1x128xf32> to vector<8x128xf32>
    %241 = arith.mulf %234, %240 : vector<8x128xf32>
    %242 = arith.mulf %241, %241 : vector<8x128xf32>
    %cst_89 = arith.constant dense<0.000000e+00> : vector<8xf32>
    %243 = vector.multi_reduction <add>, %242, %cst_89 [1] : vector<8x128xf32> to vector<8xf32>
    %244 = vector.shape_cast %243 : vector<8xf32> to vector<8x1xf32>
    %cst_90 = arith.constant 3.125000e-02 : f32
    %245 = vector.broadcast %cst_90 : f32 to vector<8x1xf32>
    %246 = arith.mulf %244, %245 : vector<8x1xf32>
    %cst_91 = arith.constant 9.99999974E-6 : f32
    %247 = vector.broadcast %cst_91 : f32 to vector<8x1xf32>
    %248 = arith.addf %246, %247 : vector<8x1xf32>
    %249 = math.rsqrt %248 : vector<8x1xf32>
    %250 = vector.broadcast %249 : vector<8x1xf32> to vector<8x128xf32>
    %251 = arith.mulf %241, %250 : vector<8x128xf32>
    %252 = vector.broadcast %227 : vector<1x128xf32> to vector<8x128xf32>
    %253 = arith.mulf %251, %252 : vector<8x128xf32>
    %254 = vector.broadcast %228 : vector<1x128xf32> to vector<8x128xf32>
    %255 = arith.addf %253, %254 : vector<8x128xf32>
    %256 = arith.addf %255, %140 : vector<8x128xf32>
    %257 = vector.extract_strided_slice %159 {offsets = [0, 256], sizes = [8, 128], strides = [1, 1]} : vector<8x512xf32> to vector<8x128xf32>
    %258 = vector.extract_strided_slice %159 {offsets = [0, 384], sizes = [8, 128], strides = [1, 1]} : vector<8x512xf32> to vector<8x128xf32>
    %cst_92 = arith.constant 1.000000e+00 : f32
    %259 = vector.broadcast %cst_92 : f32 to vector<8x128xf32>
    %260 = arith.addf %257, %259 : vector<8x128xf32>
    %261 = arith.mulf %256, %260 : vector<8x128xf32>
    %262 = arith.addf %261, %258 : vector<8x128xf32>
    %c1 = arith.constant 1 : index
    %c0_93 = arith.constant 0 : index
    %c0_94 = arith.constant 0 : index
    %263 = vector.load %arg14[%c1, %c0_93, %c0_94] : memref<2x128x128xf32, #tpu.memory_space<vmem>>, vector<1x128x128xf32>
    %264 = vector.shape_cast %263 : vector<1x128x128xf32> to vector<128x128xf32>
    %c1_95 = arith.constant 1 : index
    %c0_96 = arith.constant 0 : index
    %c0_97 = arith.constant 0 : index
    %265 = vector.load %arg15[%c1_95, %c0_96, %c0_97] : memref<2x3x128xf32, #tpu.memory_space<vmem>>, vector<1x3x128xf32>
    %266 = vector.shape_cast %265 : vector<1x3x128xf32> to vector<3x128xf32>
    %cst_98 = arith.constant dense<0.000000e+00> : vector<8x128xf32>
    %267 = tpu.matmul %262, %264, %cst_98 {dimension_numbers = #tpu.dot_dimension_numbers<[1], [0], [0], [1], [0, 0, 1, 1], [], []>, precision = #tpu.contract_precision<fp32>} : vector<8x128xf32>, vector<128x128xf32>, vector<8x128xf32> -> vector<8x128xf32>
    %268 = vector.extract_strided_slice %266 {offsets = [0, 0], sizes = [1, 128], strides = [1, 1]} : vector<3x128xf32> to vector<1x128xf32>
    %269 = vector.broadcast %268 : vector<1x128xf32> to vector<8x128xf32>
    %270 = arith.addf %267, %269 : vector<8x128xf32>
    %cst_99 = arith.constant 5.000000e-01 : f32
    %271 = vector.broadcast %cst_99 : f32 to vector<8x128xf32>
    %272 = arith.mulf %271, %270 : vector<8x128xf32>
    %cst_100 = arith.constant 1.41421354 : f32
    %273 = vector.broadcast %cst_100 : f32 to vector<8x128xf32>
    %274 = arith.divf %270, %273 : vector<8x128xf32>
    %275 = math.erf %274 : vector<8x128xf32>
    %cst_101 = arith.constant 1.000000e+00 : f32
    %276 = vector.broadcast %cst_101 : f32 to vector<8x128xf32>
    %277 = arith.addf %276, %275 : vector<8x128xf32>
    %278 = arith.mulf %272, %277 : vector<8x128xf32>
    %279 = vector.extract_strided_slice %266 {offsets = [1, 0], sizes = [1, 128], strides = [1, 1]} : vector<3x128xf32> to vector<1x128xf32>
    %280 = vector.extract_strided_slice %266 {offsets = [2, 0], sizes = [1, 128], strides = [1, 1]} : vector<3x128xf32> to vector<1x128xf32>
    %cst_102 = arith.constant dense<0.000000e+00> : vector<8xf32>
    %281 = vector.multi_reduction <add>, %278, %cst_102 [1] : vector<8x128xf32> to vector<8xf32>
    %282 = vector.shape_cast %281 : vector<8xf32> to vector<8x1xf32>
    %cst_103 = arith.constant 3.125000e-02 : f32
    %283 = vector.broadcast %cst_103 : f32 to vector<8x1xf32>
    %284 = arith.mulf %282, %283 : vector<8x1xf32>
    %285 = vector.broadcast %284 : vector<8x1xf32> to vector<8x128xf32>
    %286 = arith.subf %278, %285 : vector<8x128xf32>
    %287 = tpu.iota {dimensions = array<i32: 1>} : vector<1x128xi32>
    %c32_i32_104 = arith.constant 32 : i32
    %288 = vector.broadcast %c32_i32_104 : i32 to vector<1x128xi32>
    %289 = arith.cmpi slt, %287, %288 : vector<1x128xi32>
    %290 = arith.extui %289 : vector<1x128xi1> to vector<1x128xi32>
    %291 = arith.sitofp %290 : vector<1x128xi32> to vector<1x128xf32>
    %292 = vector.broadcast %291 : vector<1x128xf32> to vector<8x128xf32>
    %293 = arith.mulf %286, %292 : vector<8x128xf32>
    %294 = arith.mulf %293, %293 : vector<8x128xf32>
    %cst_105 = arith.constant dense<0.000000e+00> : vector<8xf32>
    %295 = vector.multi_reduction <add>, %294, %cst_105 [1] : vector<8x128xf32> to vector<8xf32>
    %296 = vector.shape_cast %295 : vector<8xf32> to vector<8x1xf32>
    %cst_106 = arith.constant 3.125000e-02 : f32
    %297 = vector.broadcast %cst_106 : f32 to vector<8x1xf32>
    %298 = arith.mulf %296, %297 : vector<8x1xf32>
    %cst_107 = arith.constant 9.99999974E-6 : f32
    %299 = vector.broadcast %cst_107 : f32 to vector<8x1xf32>
    %300 = arith.addf %298, %299 : vector<8x1xf32>
    %301 = math.rsqrt %300 : vector<8x1xf32>
    %302 = vector.broadcast %301 : vector<8x1xf32> to vector<8x128xf32>
    %303 = arith.mulf %293, %302 : vector<8x128xf32>
    %304 = vector.broadcast %279 : vector<1x128xf32> to vector<8x128xf32>
    %305 = arith.mulf %303, %304 : vector<8x128xf32>
    %306 = vector.broadcast %280 : vector<1x128xf32> to vector<8x128xf32>
    %307 = arith.addf %305, %306 : vector<8x128xf32>
    %c1_108 = arith.constant 1 : index
    %c0_109 = arith.constant 0 : index
    %c0_110 = arith.constant 0 : index
    %308 = vector.load %arg16[%c1_108, %c0_109, %c0_110] : memref<2x128x128xf32, #tpu.memory_space<vmem>>, vector<1x128x128xf32>
    %309 = vector.shape_cast %308 : vector<1x128x128xf32> to vector<128x128xf32>
    %c1_111 = arith.constant 1 : index
    %c0_112 = arith.constant 0 : index
    %c0_113 = arith.constant 0 : index
    %310 = vector.load %arg17[%c1_111, %c0_112, %c0_113] : memref<2x3x128xf32, #tpu.memory_space<vmem>>, vector<1x3x128xf32>
    %311 = vector.shape_cast %310 : vector<1x3x128xf32> to vector<3x128xf32>
    %cst_114 = arith.constant dense<0.000000e+00> : vector<8x128xf32>
    %312 = tpu.matmul %307, %309, %cst_114 {dimension_numbers = #tpu.dot_dimension_numbers<[1], [0], [0], [1], [0, 0, 1, 1], [], []>, precision = #tpu.contract_precision<fp32>} : vector<8x128xf32>, vector<128x128xf32>, vector<8x128xf32> -> vector<8x128xf32>
    %313 = vector.extract_strided_slice %311 {offsets = [0, 0], sizes = [1, 128], strides = [1, 1]} : vector<3x128xf32> to vector<1x128xf32>
    %314 = vector.broadcast %313 : vector<1x128xf32> to vector<8x128xf32>
    %315 = arith.addf %312, %314 : vector<8x128xf32>
    %cst_115 = arith.constant 5.000000e-01 : f32
    %316 = vector.broadcast %cst_115 : f32 to vector<8x128xf32>
    %317 = arith.mulf %316, %315 : vector<8x128xf32>
    %cst_116 = arith.constant 1.41421354 : f32
    %318 = vector.broadcast %cst_116 : f32 to vector<8x128xf32>
    %319 = arith.divf %315, %318 : vector<8x128xf32>
    %320 = math.erf %319 : vector<8x128xf32>
    %cst_117 = arith.constant 1.000000e+00 : f32
    %321 = vector.broadcast %cst_117 : f32 to vector<8x128xf32>
    %322 = arith.addf %321, %320 : vector<8x128xf32>
    %323 = arith.mulf %317, %322 : vector<8x128xf32>
    %324 = vector.extract_strided_slice %311 {offsets = [1, 0], sizes = [1, 128], strides = [1, 1]} : vector<3x128xf32> to vector<1x128xf32>
    %325 = vector.extract_strided_slice %311 {offsets = [2, 0], sizes = [1, 128], strides = [1, 1]} : vector<3x128xf32> to vector<1x128xf32>
    %cst_118 = arith.constant dense<0.000000e+00> : vector<8xf32>
    %326 = vector.multi_reduction <add>, %323, %cst_118 [1] : vector<8x128xf32> to vector<8xf32>
    %327 = vector.shape_cast %326 : vector<8xf32> to vector<8x1xf32>
    %cst_119 = arith.constant 3.125000e-02 : f32
    %328 = vector.broadcast %cst_119 : f32 to vector<8x1xf32>
    %329 = arith.mulf %327, %328 : vector<8x1xf32>
    %330 = vector.broadcast %329 : vector<8x1xf32> to vector<8x128xf32>
    %331 = arith.subf %323, %330 : vector<8x128xf32>
    %332 = tpu.iota {dimensions = array<i32: 1>} : vector<1x128xi32>
    %c32_i32_120 = arith.constant 32 : i32
    %333 = vector.broadcast %c32_i32_120 : i32 to vector<1x128xi32>
    %334 = arith.cmpi slt, %332, %333 : vector<1x128xi32>
    %335 = arith.extui %334 : vector<1x128xi1> to vector<1x128xi32>
    %336 = arith.sitofp %335 : vector<1x128xi32> to vector<1x128xf32>
    %337 = vector.broadcast %336 : vector<1x128xf32> to vector<8x128xf32>
    %338 = arith.mulf %331, %337 : vector<8x128xf32>
    %339 = arith.mulf %338, %338 : vector<8x128xf32>
    %cst_121 = arith.constant dense<0.000000e+00> : vector<8xf32>
    %340 = vector.multi_reduction <add>, %339, %cst_121 [1] : vector<8x128xf32> to vector<8xf32>
    %341 = vector.shape_cast %340 : vector<8xf32> to vector<8x1xf32>
    %cst_122 = arith.constant 3.125000e-02 : f32
    %342 = vector.broadcast %cst_122 : f32 to vector<8x1xf32>
    %343 = arith.mulf %341, %342 : vector<8x1xf32>
    %cst_123 = arith.constant 9.99999974E-6 : f32
    %344 = vector.broadcast %cst_123 : f32 to vector<8x1xf32>
    %345 = arith.addf %343, %344 : vector<8x1xf32>
    %346 = math.rsqrt %345 : vector<8x1xf32>
    %347 = vector.broadcast %346 : vector<8x1xf32> to vector<8x128xf32>
    %348 = arith.mulf %338, %347 : vector<8x128xf32>
    %349 = vector.broadcast %324 : vector<1x128xf32> to vector<8x128xf32>
    %350 = arith.mulf %348, %349 : vector<8x128xf32>
    %351 = vector.broadcast %325 : vector<1x128xf32> to vector<8x128xf32>
    %352 = arith.addf %350, %351 : vector<8x128xf32>
    %353 = arith.addf %352, %256 : vector<8x128xf32>
    %c0_124 = arith.constant 0 : index
    %c0_125 = arith.constant 0 : index
    %354 = vector.load %arg18[%c0_124, %c0_125] : memref<128x128xf32, #tpu.memory_space<vmem>>, vector<128x128xf32>
    %cst_126 = arith.constant dense<0.000000e+00> : vector<8x128xf32>
    %355 = tpu.matmul %353, %354, %cst_126 {dimension_numbers = #tpu.dot_dimension_numbers<[1], [0], [0], [1], [0, 0, 1, 1], [], []>, precision = #tpu.contract_precision<fp32>} : vector<8x128xf32>, vector<128x128xf32>, vector<8x128xf32> -> vector<8x128xf32>
    %c0_127 = arith.constant 0 : index
    %c0_128 = arith.constant 0 : index
    %356 = vector.load %arg19[%c0_127, %c0_128] : memref<1x128xf32, #tpu.memory_space<vmem>>, vector<1x128xf32>
    %357 = vector.broadcast %356 : vector<1x128xf32> to vector<8x128xf32>
    %358 = arith.addf %355, %357 : vector<8x128xf32>
    %cst_129 = arith.constant 2.000000e-01 : f32
    %359 = vector.broadcast %cst_129 : f32 to vector<8x128xf32>
    %360 = arith.mulf %358, %359 : vector<8x128xf32>
    %361 = math.tanh %360 : vector<8x128xf32>
    %cst_130 = arith.constant 5.000000e+00 : f32
    %362 = vector.broadcast %cst_130 : f32 to vector<8x128xf32>
    %363 = arith.mulf %362, %361 : vector<8x128xf32>
    %364 = math.exp %363 : vector<8x128xf32>
    %c0_131 = arith.constant 0 : index
    %c0_132 = arith.constant 0 : index
    %365 = vector.load %arg20[%c0_131, %c0_132] : memref<8x128xf32, #tpu.memory_space<vmem>>, vector<8x128xf32>
    tpu.vector_store %arg20[%c0_131, %c0_132], %364 {strides = array<i32>} : memref<8x128xf32, #tpu.memory_space<vmem>>, vector<8x128xf32>,
    return
  }
  func.func @transform_0(%arg0: i32) -> (i32, i32) {
    %c0_i32 = arith.constant 0 : i32
    %c0_i32_0 = arith.constant 0 : i32
    return %arg0, %c0_i32 : i32, i32
  }
  func.func @transform_1(%arg0: i32) -> (i32, i32) {
    %c0_i32 = arith.constant 0 : i32
    %c0_i32_0 = arith.constant 0 : i32
    return %arg0, %c0_i32 : i32, i32
  }
  func.func @transform_2(%arg0: i32) -> (i32, i32) {
    %c0_i32 = arith.constant 0 : i32
    %c0_i32_0 = arith.constant 0 : i32
    %c0_i32_1 = arith.constant 0 : i32
    return %c0_i32, %c0_i32_0 : i32, i32
  }
  func.func @transform_3(%arg0: i32) -> (i32, i32) {
    %c0_i32 = arith.constant 0 : i32
    %c0_i32_0 = arith.constant 0 : i32
    %c0_i32_1 = arith.constant 0 : i32
    return %c0_i32, %c0_i32_0 : i32, i32
  }
  func.func @transform_4(%arg0: i32) -> (i32, i32) {
    %c0_i32 = arith.constant 0 : i32
    %c0_i32_0 = arith.constant 0 : i32
    %c0_i32_1 = arith.constant 0 : i32
    return %c0_i32, %c0_i32_0 : i32, i32
  }
  func.func @transform_5(%arg0: i32) -> (i32, i32) {
    %c0_i32 = arith.constant 0 : i32
    %c0_i32_0 = arith.constant 0 : i32
    %c0_i32_1 = arith.constant 0 : i32
    return %c0_i32, %c0_i32_0 : i32, i32
  }
  func.func @transform_6(%arg0: i32) -> (i32, i32) {
    %c0_i32 = arith.constant 0 : i32
    %c0_i32_0 = arith.constant 0 : i32
    %c0_i32_1 = arith.constant 0 : i32
    return %c0_i32, %c0_i32_0 : i32, i32
  }
  func.func @transform_7(%arg0: i32) -> (i32, i32) {
    %c0_i32 = arith.constant 0 : i32
    %c0_i32_0 = arith.constant 0 : i32
    %c0_i32_1 = arith.constant 0 : i32
    return %c0_i32, %c0_i32_0 : i32, i32
  }
  func.func @transform_8(%arg0: i32) -> (i32, i32) {
    %c0_i32 = arith.constant 0 : i32
    %c0_i32_0 = arith.constant 0 : i32
    %c0_i32_1 = arith.constant 0 : i32
    return %c0_i32, %c0_i32_0 : i32, i32
  }
  func.func @transform_9(%arg0: i32) -> (i32, i32) {
    %c0_i32 = arith.constant 0 : i32
    %c0_i32_0 = arith.constant 0 : i32
    %c0_i32_1 = arith.constant 0 : i32
    return %c0_i32, %c0_i32_0 : i32, i32
  }
  func.func @transform_10(%arg0: i32) -> (i32, i32) {
    %c0_i32 = arith.constant 0 : i32
    %c0_i32_0 = arith.constant 0 : i32
    %c0_i32_1 = arith.constant 0 : i32
    return %c0_i32, %c0_i32_0 : i32, i32
  }
  func.func @transform_11(%arg0: i32) -> (i32, i32) {
    %c0_i32 = arith.constant 0 : i32
    %c0_i32_0 = arith.constant 0 : i32
    %c0_i32_1 = arith.constant 0 : i32
    return %c0_i32, %c0_i32_0 : i32, i32
  }
  func.func @transform_12(%arg0: i32) -> (i32, i32) {
    %c0_i32 = arith.constant 0 : i32
    %c0_i32_0 = arith.constant 0 : i32
    %c0_i32_1 = arith.constant 0 : i32
    return %c0_i32, %c0_i32_0 : i32, i32
  }
  func.func @transform_13(%arg0: i32) -> (i32, i32, i32) {
    %c0_i32 = arith.constant 0 : i32
    %c0_i32_0 = arith.constant 0 : i32
    %c0_i32_1 = arith.constant 0 : i32
    %c0_i32_2 = arith.constant 0 : i32
    return %c0_i32, %c0_i32_0, %c0_i32_1 : i32, i32, i32
  }
  func.func @transform_14(%arg0: i32) -> (i32, i32, i32) {
    %c0_i32 = arith.constant 0 : i32
    %c0_i32_0 = arith.constant 0 : i32
    %c0_i32_1 = arith.constant 0 : i32
    %c0_i32_2 = arith.constant 0 : i32
    return %c0_i32, %c0_i32_0, %c0_i32_1 : i32, i32, i32
  }
  func.func @transform_15(%arg0: i32) -> (i32, i32, i32) {
    %c0_i32 = arith.constant 0 : i32
    %c0_i32_0 = arith.constant 0 : i32
    %c0_i32_1 = arith.constant 0 : i32
    %c0_i32_2 = arith.constant 0 : i32
    return %c0_i32, %c0_i32_0, %c0_i32_1 : i32, i32, i32
  }
  func.func @transform_16(%arg0: i32) -> (i32, i32, i32) {
    %c0_i32 = arith.constant 0 : i32
    %c0_i32_0 = arith.constant 0 : i32
    %c0_i32_1 = arith.constant 0 : i32
    %c0_i32_2 = arith.constant 0 : i32
    return %c0_i32, %c0_i32_0, %c0_i32_1 : i32, i32, i32
  }
  func.func @transform_17(%arg0: i32) -> (i32, i32) {
    %c0_i32 = arith.constant 0 : i32
    %c0_i32_0 = arith.constant 0 : i32
    %c0_i32_1 = arith.constant 0 : i32
    return %c0_i32, %c0_i32_0 : i32, i32
  }
  func.func @transform_18(%arg0: i32) -> (i32, i32) {
    %c0_i32 = arith.constant 0 : i32
    %c0_i32_0 = arith.constant 0 : i32
    %c0_i32_1 = arith.constant 0 : i32
    return %c0_i32, %c0_i32_0 : i32, i32
  }
  func.func @transform_19(%arg0: i32) -> (i32, i32) {
    %c0_i32 = arith.constant 0 : i32
    %c0_i32_0 = arith.constant 0 : i32
    return %arg0, %c0_i32 : i32, i32
  }
}

</mosaic_0001>

<llo_original>
// kernel: fused_model_ac.1
$region0: #{fused_model_ac.1}
  #allocation0 [shape = 'u32[]', space=smem, size = 0x4, offset = 0x4, fixed_abs, tag = 'smem constant byte address 0x4 - core index']
  #allocation1 [shape = 'u32[144,128]{1,0:T(1,128)}', space=vmem, size = 0x12000, scoped, tag = 'internal scratch']
  %s0 = inlined_call_operand.vmem [shape: s32[8,8], index: 0, kind: input, shape index: {}]
  %s1 = inlined_call_operand.vmem [shape: f32[8,1], index: 1, kind: input, shape index: {}]
  %s2 = inlined_call_operand.vmem [shape: f32[8,128], index: 2, kind: input, shape index: {}]
  %s3 = inlined_call_operand.hbm [shape: f32[1,128], index: 3, kind: input, shape index: {}]
  %s4 = inlined_call_operand.hbm [shape: f32[128,256], index: 4, kind: input, shape index: {}]
  %s5 = inlined_call_operand.hbm [shape: f32[3,256], index: 5, kind: input, shape index: {}]
  %s6 = inlined_call_operand.hbm [shape: f32[256,128], index: 6, kind: input, shape index: {}]
  %s7 = inlined_call_operand.hbm [shape: f32[3,128], index: 7, kind: input, shape index: {}]
  %s8 = inlined_call_operand.hbm [shape: f32[128,128], index: 8, kind: input, shape index: {}]
  %s9 = inlined_call_operand.hbm [shape: f32[3,128], index: 9, kind: input, shape index: {}]
  %s10 = inlined_call_operand.vmem [shape: f32[8,512], index: 10, kind: input, shape index: {}]
  %s11 = inlined_call_operand.vmem [shape: f32[8,512], index: 11, kind: input, shape index: {}]
  %s12 = inlined_call_operand.vmem [shape: f32[1,512], index: 12, kind: input, shape index: {}]
  %s13 = inlined_call_operand.hbm [shape: f32[2,128,128], index: 13, kind: input, shape index: {}]
  %s14 = inlined_call_operand.vmem [shape: f32[2,3,128], index: 14, kind: input, shape index: {}]
  %s15 = inlined_call_operand.hbm [shape: f32[2,128,128], index: 15, kind: input, shape index: {}]
  %s16 = inlined_call_operand.vmem [shape: f32[2,3,128], index: 16, kind: input, shape index: {}]
  %s17 = inlined_call_operand.hbm [shape: f32[128,128], index: 17, kind: input, shape index: {}]
  %s18 = inlined_call_operand.hbm [shape: f32[1,128], index: 18, kind: input, shape index: {}]
  %s19 = inlined_call_operand.vmem [shape: f32[8,128], index: 19, kind: output, shape index: {}]
  %s20 = sld [smem:[#allocation0]]
  $region130: #{fused_model_ac.1} parent=0
    _
  %s22 = ssub.s32 1, %s20
  %s23 = scalar_select 0, %s22, %s20
  $region1: #{fused_model_ac.1} parent=0
    #allocation2 [shape = 'u8[512]{0}', space=vmem, size = 0x400, scoped, tag = 'input window, operand 3, single buffered']
    #allocation3 [shape = 's32[1]{0}', space=sflag, size = 0x4, scoped, tag = 'scoped memory for fused_model_ac.1']
    #allocation4 [shape = 'u8[131072]{0}', space=vmem, size = 0x20000, scoped, tag = 'input window, operand 4, single buffered']
    #allocation5 [shape = 's32[1]{0}', space=sflag, size = 0x4, scoped, tag = 'scoped memory for fused_model_ac.1']
    #allocation6 [shape = 'u8[4096]{0}', space=vmem, size = 0x1000, scoped, tag = 'input window, operand 5, single buffered']
    #allocation7 [shape = 'u8[131072]{0}', space=vmem, size = 0x20000, scoped, tag = 'input window, operand 6, single buffered']
    #allocation8 [shape = 's32[1]{0}', space=sflag, size = 0x4, scoped, tag = 'scoped memory for fused_model_ac.1']
    #allocation9 [shape = 'u8[2048]{0}', space=vmem, size = 0x800, scoped, tag = 'input window, operand 7, single buffered']
    #allocation10 [shape = 'u8[65536]{0}', space=vmem, size = 0x10000, scoped, tag = 'input window, operand 8, single buffered']
    #allocation11 [shape = 's32[1]{0}', space=sflag, size = 0x4, scoped, tag = 'scoped memory for fused_model_ac.1']
    #allocation12 [shape = 'u8[2048]{0}', space=vmem, size = 0x800, scoped, tag = 'input window, operand 9, single buffered']
    #allocation13 [shape = 'u8[131072]{0}', space=vmem, size = 0x20000, scoped, tag = 'input window, operand 13, single buffered']
    #allocation14 [shape = 's32[1]{0}', space=sflag, size = 0x4, scoped, tag = 'scoped memory for fused_model_ac.1']
    #allocation15 [shape = 'u8[131072]{0}', space=vmem, size = 0x20000, scoped, tag = 'input window, operand 15, single buffered']
    #allocation16 [shape = 'u8[65536]{0}', space=vmem, size = 0x10000, scoped, tag = 'input window, operand 17, single buffered']
    #allocation17 [shape = 's32[1]{0}', space=sflag, size = 0x4, scoped, tag = 'scoped memory for fused_model_ac.1']
    #allocation18 [shape = 'u8[512]{0}', space=vmem, size = 0x400, scoped, tag = 'input window, operand 18, single buffered']
    %24 = vsyncpa [#allocation3], 0
    %25 = vsyncpa [#allocation5], 0
    %26 = vsyncpa [#allocation8], 0
    %27 = vsyncpa [#allocation11], 0
    %28 = vsyncpa [#allocation14], 0
    %29 = vsyncpa [#allocation17], 0
    // Predicated region
    $region2: #{fused_model_ac.1} parent=1 // pred_check
      _
    $region3: #{fused_model_ac.1} parent=1 // pred_check_branch
      %31 = sbr.rel (0) target = $region5
    $region4: #{fused_model_ac.1} parent=1 // pred_region
      _
    $region5: #{fused_model_ac.1} parent=1 // pred_fallthru
      _
    // Predicated region
    $region6: #{fused_model_ac.1} parent=1 // pred_check
      _
    $region7: #{fused_model_ac.1} parent=1 // pred_check_branch
      %33 = sbr.rel (0) target = $region9
    $region8: #{fused_model_ac.1} parent=1 // pred_region
      _
    $region9: #{fused_model_ac.1} parent=1 // pred_fallthru
      _
    // Predicated region
    $region10: #{fused_model_ac.1} parent=1 // pred_check
      _
    $region11: #{fused_model_ac.1} parent=1 // pred_check_branch
      %35 = sbr.rel (0) target = $region13
    $region12: #{fused_model_ac.1} parent=1 // pred_region
      _
    $region13: #{fused_model_ac.1} parent=1 // pred_fallthru
      _
    // Predicated region
    $region14: #{fused_model_ac.1} parent=1 // pred_check
      _
    $region15: #{fused_model_ac.1} parent=1 // pred_check_branch
      %37 = sbr.rel (0) target = $region17
    $region16: #{fused_model_ac.1} parent=1 // pred_region
      %s39 = ssub.s32 16, 16
      %40 = vsyncadd [#allocation3], %s39
      %s42 = sshll.u32 [#allocation2], 4
      %s43 = int_to_ptr.vmem [resolvable:$true] %s42
      %45 = dma.hbm_to_vmem [thread:$0]  %s3, 16, %s43, [#allocation3]
    $region17: #{fused_model_ac.1} parent=1 // pred_fallthru
      _
    // Predicated region
    $region18: #{fused_model_ac.1} parent=1 // pred_check
      _
    $region19: #{fused_model_ac.1} parent=1 // pred_check_branch
      %47 = sbr.rel (0) target = $region21
    $region20: #{fused_model_ac.1} parent=1 // pred_region
      %s49 = ssub.s32 4096, 4096
      %50 = vsyncadd [#allocation5], %s49
      %s51 = sshll.u32 [#allocation4], 4
      %s52 = int_to_ptr.vmem [resolvable:$true] %s51
      %57 = dma.hbm_to_vmem [thread:$0]  %s4, 4096, %s52, [#allocation5], 256, 256, 16
    $region21: #{fused_model_ac.1} parent=1 // pred_fallthru
      _
    // Predicated region
    $region22: #{fused_model_ac.1} parent=1 // pred_check
      _
    $region23: #{fused_model_ac.1} parent=1 // pred_check_branch
      %59 = sbr.rel (0) target = $region25
    $region24: #{fused_model_ac.1} parent=1 // pred_region
      %s61 = ssub.s32 128, 128
      %62 = vsyncadd [#allocation5], %s61
      %s64 = sshll.u32 [#allocation6], 4
      %s65 = int_to_ptr.vmem [resolvable:$true] %s64
      %67 = dma.hbm_to_vmem [thread:$0]  %s5, 128, %s65, [#allocation5]
    $region25: #{fused_model_ac.1} parent=1 // pred_fallthru
      _
    // Predicated region
    $region26: #{fused_model_ac.1} parent=1 // pred_check
      _
    $region27: #{fused_model_ac.1} parent=1 // pred_check_branch
      %69 = sbr.rel (0) target = $region29
    $region28: #{fused_model_ac.1} parent=1 // pred_region
      %s71 = ssub.s32 4096, 4096
      %72 = vsyncadd [#allocation8], %s71
      %s73 = sshll.u32 [#allocation7], 4
      %s74 = int_to_ptr.vmem [resolvable:$true] %s73
      %79 = dma.hbm_to_vmem [thread:$0]  %s6, 4096, %s74, [#allocation8], 128, 128, 8
    $region29: #{fused_model_ac.1} parent=1 // pred_fallthru
      _
    // Predicated region
    $region30: #{fused_model_ac.1} parent=1 // pred_check
      _
    $region31: #{fused_model_ac.1} parent=1 // pred_check_branch
      %81 = sbr.rel (0) target = $region33
    $region32: #{fused_model_ac.1} parent=1 // pred_region
      %s83 = ssub.s32 64, 64
      %84 = vsyncadd [#allocation8], %s83
      %s86 = sshll.u32 [#allocation9], 4
      %s87 = int_to_ptr.vmem [resolvable:$true] %s86
      %89 = dma.hbm_to_vmem [thread:$0]  %s7, 64, %s87, [#allocation8]
    $region33: #{fused_model_ac.1} parent=1 // pred_fallthru
      _
    // Predicated region
    $region34: #{fused_model_ac.1} parent=1 // pred_check
      _
    $region35: #{fused_model_ac.1} parent=1 // pred_check_branch
      %91 = sbr.rel (0) target = $region37
    $region36: #{fused_model_ac.1} parent=1 // pred_region
      %s93 = ssub.s32 2048, 2048
      %94 = vsyncadd [#allocation11], %s93
      %s95 = sshll.u32 [#allocation10], 4
      %s96 = int_to_ptr.vmem [resolvable:$true] %s95
      %101 = dma.hbm_to_vmem [thread:$0]  %s8, 2048, %s96, [#allocation11], 128, 128, 8
    $region37: #{fused_model_ac.1} parent=1 // pred_fallthru
      _
    // Predicated region
    $region38: #{fused_model_ac.1} parent=1 // pred_check
      _
    $region39: #{fused_model_ac.1} parent=1 // pred_check_branch
      %103 = sbr.rel (0) target = $region41
    $region40: #{fused_model_ac.1} parent=1 // pred_region
      %s105 = ssub.s32 64, 64
      %106 = vsyncadd [#allocation11], %s105
      %s108 = sshll.u32 [#allocation12], 4
      %s109 = int_to_ptr.vmem [resolvable:$true] %s108
      %111 = dma.hbm_to_vmem [thread:$0]  %s9, 64, %s109, [#allocation11]
    $region41: #{fused_model_ac.1} parent=1 // pred_fallthru
      _
    // Predicated region
    $region42: #{fused_model_ac.1} parent=1 // pred_check
      _
    $region43: #{fused_model_ac.1} parent=1 // pred_check_branch
      %113 = sbr.rel (0) target = $region45
    $region44: #{fused_model_ac.1} parent=1 // pred_region
      _
    $region45: #{fused_model_ac.1} parent=1 // pred_fallthru
      _
    // Predicated region
    $region46: #{fused_model_ac.1} parent=1 // pred_check
      _
    $region47: #{fused_model_ac.1} parent=1 // pred_check_branch
      %115 = sbr.rel (0) target = $region49
    $region48: #{fused_model_ac.1} parent=1 // pred_region
      _
    $region49: #{fused_model_ac.1} parent=1 // pred_fallthru
      _
    // Predicated region
    $region50: #{fused_model_ac.1} parent=1 // pred_check
      _
    $region51: #{fused_model_ac.1} parent=1 // pred_check_branch
      %117 = sbr.rel (0) target = $region53
    $region52: #{fused_model_ac.1} parent=1 // pred_region
      _
    $region53: #{fused_model_ac.1} parent=1 // pred_fallthru
      _
    // Predicated region
    $region54: #{fused_model_ac.1} parent=1 // pred_check
      _
    $region55: #{fused_model_ac.1} parent=1 // pred_check_branch
      %119 = sbr.rel (0) target = $region57
    $region56: #{fused_model_ac.1} parent=1 // pred_region
      %s121 = ssub.s32 4096, 4096
      %122 = vsyncadd [#allocation14], %s121
      %s123 = sshll.u32 [#allocation13], 4
      %s124 = int_to_ptr.vmem [resolvable:$true] %s123
      %129 = dma.hbm_to_vmem [thread:$0]  %s13, 4096, %s124, [#allocation14], 128, 128, 8
    $region57: #{fused_model_ac.1} parent=1 // pred_fallthru
      _
    // Predicated region
    $region58: #{fused_model_ac.1} parent=1 // pred_check
      _
    $region59: #{fused_model_ac.1} parent=1 // pred_check_branch
      %131 = sbr.rel (0) target = $region61
    $region60: #{fused_model_ac.1} parent=1 // pred_region
      _
    $region61: #{fused_model_ac.1} parent=1 // pred_fallthru
      _
    // Predicated region
    $region62: #{fused_model_ac.1} parent=1 // pred_check
      _
    $region63: #{fused_model_ac.1} parent=1 // pred_check_branch
      %133 = sbr.rel (0) target = $region65
    $region64: #{fused_model_ac.1} parent=1 // pred_region
      %s135 = ssub.s32 4096, 4096
      %136 = vsyncadd [#allocation14], %s135
      %s137 = sshll.u32 [#allocation15], 4
      %s138 = int_to_ptr.vmem [resolvable:$true] %s137
      %143 = dma.hbm_to_vmem [thread:$0]  %s15, 4096, %s138, [#allocation14], 128, 128, 8
    $region65: #{fused_model_ac.1} parent=1 // pred_fallthru
      _
    // Predicated region
    $region66: #{fused_model_ac.1} parent=1 // pred_check
      _
    $region67: #{fused_model_ac.1} parent=1 // pred_check_branch
      %145 = sbr.rel (0) target = $region69
    $region68: #{fused_model_ac.1} parent=1 // pred_region
      _
    $region69: #{fused_model_ac.1} parent=1 // pred_fallthru
      _
    // Predicated region
    $region70: #{fused_model_ac.1} parent=1 // pred_check
      _
    $region71: #{fused_model_ac.1} parent=1 // pred_check_branch
      %147 = sbr.rel (0) target = $region73
    $region72: #{fused_model_ac.1} parent=1 // pred_region
      %s149 = ssub.s32 2048, 2048
      %150 = vsyncadd [#allocation17], %s149
      %s151 = sshll.u32 [#allocation16], 4
      %s152 = int_to_ptr.vmem [resolvable:$true] %s151
      %157 = dma.hbm_to_vmem [thread:$0]  %s17, 2048, %s152, [#allocation17], 128, 128, 8
    $region73: #{fused_model_ac.1} parent=1 // pred_fallthru
      _
    // Predicated region
    $region74: #{fused_model_ac.1} parent=1 // pred_check
      _
    $region75: #{fused_model_ac.1} parent=1 // pred_check_branch
      %159 = sbr.rel (0) target = $region77
    $region76: #{fused_model_ac.1} parent=1 // pred_region
      %s161 = ssub.s32 16, 16
      %162 = vsyncadd [#allocation17], %s161
      %s164 = sshll.u32 [#allocation18], 4
      %s165 = int_to_ptr.vmem [resolvable:$true] %s164
      %167 = dma.hbm_to_vmem [thread:$0]  %s18, 16, %s165, [#allocation17]
    $region77: #{fused_model_ac.1} parent=1 // pred_fallthru
      _
    // Predicated region
    $region78: #{fused_model_ac.1} parent=1 // pred_check
      _
    $region79: #{fused_model_ac.1} parent=1 // pred_check_branch
      %169 = sbr.rel (0) target = $region81
    $region80: #{fused_model_ac.1} parent=1 // pred_region
      %170 = dma.done [#allocation3], 16
    $region81: #{fused_model_ac.1} parent=1 // pred_fallthru
      _
    // Predicated region
    $region82: #{fused_model_ac.1} parent=1 // pred_check
      _
    $region83: #{fused_model_ac.1} parent=1 // pred_check_branch
      %172 = sbr.rel (0) target = $region85
    $region84: #{fused_model_ac.1} parent=1 // pred_region
      %173 = dma.done [#allocation5], 4096
    $region85: #{fused_model_ac.1} parent=1 // pred_fallthru
      _
    // Predicated region
    $region86: #{fused_model_ac.1} parent=1 // pred_check
      _
    $region87: #{fused_model_ac.1} parent=1 // pred_check_branch
      %175 = sbr.rel (0) target = $region89
    $region88: #{fused_model_ac.1} parent=1 // pred_region
      %176 = dma.done [#allocation5], 128
    $region89: #{fused_model_ac.1} parent=1 // pred_fallthru
      _
    // Predicated region
    $region90: #{fused_model_ac.1} parent=1 // pred_check
      _
    $region91: #{fused_model_ac.1} parent=1 // pred_check_branch
      %178 = sbr.rel (0) target = $region93
    $region92: #{fused_model_ac.1} parent=1 // pred_region
      %179 = dma.done [#allocation8], 4096
    $region93: #{fused_model_ac.1} parent=1 // pred_fallthru
      _
    // Predicated region
    $region94: #{fused_model_ac.1} parent=1 // pred_check
      _
    $region95: #{fused_model_ac.1} parent=1 // pred_check_branch
      %181 = sbr.rel (0) target = $region97
    $region96: #{fused_model_ac.1} parent=1 // pred_region
      %182 = dma.done [#allocation8], 64
    $region97: #{fused_model_ac.1} parent=1 // pred_fallthru
      _
    // Predicated region
    $region98: #{fused_model_ac.1} parent=1 // pred_check
      _
    $region99: #{fused_model_ac.1} parent=1 // pred_check_branch
      %184 = sbr.rel (0) target = $region101
    $region100: #{fused_model_ac.1} parent=1 // pred_region
      %185 = dma.done [#allocation11], 2048
    $region101: #{fused_model_ac.1} parent=1 // pred_fallthru
      _
    // Predicated region
    $region102: #{fused_model_ac.1} parent=1 // pred_check
      _
    $region103: #{fused_model_ac.1} parent=1 // pred_check_branch
      %187 = sbr.rel (0) target = $region105
    $region104: #{fused_model_ac.1} parent=1 // pred_region
      %188 = dma.done [#allocation11], 64
    $region105: #{fused_model_ac.1} parent=1 // pred_fallthru
      _
    // Predicated region
    $region106: #{fused_model_ac.1} parent=1 // pred_check
      _
    $region107: #{fused_model_ac.1} parent=1 // pred_check_branch
      %190 = sbr.rel (0) target = $region109
    $region108: #{fused_model_ac.1} parent=1 // pred_region
      %191 = dma.done [#allocation14], 4096
    $region109: #{fused_model_ac.1} parent=1 // pred_fallthru
      _
    // Predicated region
    $region110: #{fused_model_ac.1} parent=1 // pred_check
      _
    $region111: #{fused_model_ac.1} parent=1 // pred_check_branch
      %193 = sbr.rel (0) target = $region113
    $region112: #{fused_model_ac.1} parent=1 // pred_region
      %194 = dma.done [#allocation14], 4096
    $region113: #{fused_model_ac.1} parent=1 // pred_fallthru
      _
    // Predicated region
    $region114: #{fused_model_ac.1} parent=1 // pred_check
      _
    $region115: #{fused_model_ac.1} parent=1 // pred_check_branch
      %196 = sbr.rel (0) target = $region117
    $region116: #{fused_model_ac.1} parent=1 // pred_region
      %197 = dma.done [#allocation17], 2048
    $region117: #{fused_model_ac.1} parent=1 // pred_fallthru
      _
    // Predicated region
    $region118: #{fused_model_ac.1} parent=1 // pred_check
      _
    $region119: #{fused_model_ac.1} parent=1 // pred_check_branch
      %199 = sbr.rel (0) target = $region121
    $region120: #{fused_model_ac.1} parent=1 // pred_region
      %200 = dma.done [#allocation17], 16
    $region121: #{fused_model_ac.1} parent=1 // pred_fallthru
      _
    %v201 = vld [vmem:[%s0] sm:$0xff]
    %v202 = vcvt.s32.f32 %v201
    %v203 = vadd.f32 %v202, 2.0
    %v204 = vld [vmem:[%s2] sm:$0xff]
    %vm205 = vcmask 64512
    %v207 = vsel %vm205, %v203, 0
    %209 = vmatprep.subr.mxu0 0.0
    %210 = vmatpush1.msra.mxu0 0.0
    %211 = vmatprep.subr.mxu0 0.0
    %212 = vmatpush1.msra.mxu0 0.0
    %213 = vmatprep.subr.mxu0 0.0
    %214 = vmatpush1.msra.mxu0 0.0
    %215 = vmatprep.subr.mxu0 0.0
    %216 = vmatpush1.msra.mxu0 0.0
    %217 = vmatprep.subr.mxu0 0.0
    %218 = vmatpush1.msra.mxu0 0.0
    %219 = vmatprep.subr.mxu0 0.0
    %220 = vmatpush1.msra.mxu0 0.0
    %221 = vmatprep.subr.mxu0 0.0
    %222 = vmatpush1.msra.mxu0 0.0
    %223 = vmatprep.subr.mxu0 0.0
    %224 = vmatpush1.msra.mxu0 0.0
    %225 = vmatprep.subr.mxu0 0.0
    %226 = vmatpush1.msra.mxu0 0.0
    %227 = vmatprep.subr.mxu0 0.0
    %228 = vmatpush1.msra.mxu0 0.0
    %229 = vmatprep.subr.mxu0 0.0
    %230 = vmatpush1.msra.mxu0 0.0
    %231 = vmatprep.subr.mxu0 0.0
    %232 = vmatpush1.msra.mxu0 0.0
    %233 = vmatprep.subr.mxu0 0.0
    %234 = vmatpush1.msra.mxu0 0.0
    %235 = vmatprep.subr.mxu0 0.0
    %236 = vmatpush1.msra.mxu0 0.0
    %237 = vmatprep.subr.mxu0 0.0
    %238 = vmatpush1.msra.mxu0 0.0
    %239 = vmatprep.subr.mxu0 0.0
    %v240 = vand.u32 %v204, 4294901760
    %241 = vmatpush1.msra.mxu0 %v240
    %242 = vmatprep.subr.mxu0 0.0
    %243 = vmatpush2.msra.mxu0 0.0
    %244 = vmatprep.subr.mxu0 0.0
    %245 = vmatpush2.msra.mxu0 0.0
    %246 = vmatprep.subr.mxu0 0.0
    %247 = vmatpush2.msra.mxu0 0.0
    %248 = vmatprep.subr.mxu0 0.0
    %249 = vmatpush2.msra.mxu0 0.0
    %250 = vmatprep.subr.mxu0 0.0
    %251 = vmatpush2.msra.mxu0 0.0
    %252 = vmatprep.subr.mxu0 0.0
    %253 = vmatpush2.msra.mxu0 0.0
    %254 = vmatprep.subr.mxu0 0.0
    %255 = vmatpush2.msra.mxu0 0.0
    %256 = vmatprep.subr.mxu0 0.0
    %257 = vmatpush2.msra.mxu0 0.0
    %258 = vmatprep.subr.mxu0 0.0
    %259 = vmatpush2.msra.mxu0 0.0
    %260 = vmatprep.subr.mxu0 0.0
    %261 = vmatpush2.msra.mxu0 0.0
    %262 = vmatprep.subr.mxu0 0.0
    %263 = vmatpush2.msra.mxu0 0.0
    %264 = vmatprep.subr.mxu0 0.0
    %265 = vmatpush2.msra.mxu0 0.0
    %266 = vmatprep.subr.mxu0 0.0
    %267 = vmatpush2.msra.mxu0 0.0
    %268 = vmatprep.subr.mxu0 0.0
    %269 = vmatpush2.msra.mxu0 0.0
    %270 = vmatprep.subr.mxu0 0.0
    %271 = vmatpush2.msra.mxu0 0.0
    %272 = vmatprep.subr.mxu0 0.0
    %273 = vmatpush2.msra.mxu0 0.0
    %274 = vmatprep.mubr.f32.mxu0 0.0
    %v275 = vand.u32 %v207, 4294901760
    %v276 = vsub.f32 %v207, %v275
    %v277 = vand.u32 %v276, 4294901760
    %v278 = vsub.f32 %v276, %v277
    %v279 = vand.u32 %v278, 4294901760
    %280 = vmatmul.mubr.f32.gmra.mxu0 %v279
    %v281 = vpop.f32.mrf.mxu0
    %v282 = vadd.f32 0.0, %v281
    %v283 = vpop.f32.mrf.mxu0
    %284 = vdwg.mxu0
    %285 = vmatprep.subr.mxu0 0.0
    %286 = vmatpush1.msra.mxu0 0.0
    %287 = vmatprep.subr.mxu0 0.0
    %288 = vmatpush1.msra.mxu0 0.0
    %289 = vmatprep.subr.mxu0 0.0
    %290 = vmatpush1.msra.mxu0 0.0
    %291 = vmatprep.subr.mxu0 0.0
    %292 = vmatpush1.msra.mxu0 0.0
    %293 = vmatprep.subr.mxu0 0.0
    %294 = vmatpush1.msra.mxu0 0.0
    %295 = vmatprep.subr.mxu0 0.0
    %296 = vmatpush1.msra.mxu0 0.0
    %297 = vmatprep.subr.mxu0 0.0
    %298 = vmatpush1.msra.mxu0 0.0
    %299 = vmatprep.subr.mxu0 0.0
    %300 = vmatpush1.msra.mxu0 0.0
    %301 = vmatprep.subr.mxu0 0.0
    %302 = vmatpush1.msra.mxu0 0.0
    %303 = vmatprep.subr.mxu0 0.0
    %304 = vmatpush1.msra.mxu0 0.0
    %305 = vmatprep.subr.mxu0 0.0
    %306 = vmatpush1.msra.mxu0 0.0
    %307 = vmatprep.subr.mxu0 0.0
    %308 = vmatpush1.msra.mxu0 0.0
    %309 = vmatprep.subr.mxu0 0.0
    %310 = vmatpush1.msra.mxu0 0.0
    %311 = vmatprep.subr.mxu0 0.0
    %312 = vmatpush1.msra.mxu0 0.0
    %313 = vmatprep.subr.mxu0 0.0
    %314 = vmatpush1.msra.mxu0 0.0
    %315 = vmatprep.subr.mxu0 0.0
    %v316 = vand.u32 %v204, 4294901760
    %v317 = vsub.f32 %v204, %v316
    %v318 = vand.u32 %v317, 4294901760
    %v319 = vsub.f32 %v317, %v318
    %v320 = vand.u32 %v319, 4294901760
    %321 = vmatpush1.msra.mxu0 %v320
    %322 = vmatprep.subr.mxu0 0.0
    %323 = vmatpush2.msra.mxu0 0.0
    %324 = vmatprep.subr.mxu0 0.0
    %325 = vmatpush2.msra.mxu0 0.0
    %326 = vmatprep.subr.mxu0 0.0
    %327 = vmatpush2.msra.mxu0 0.0
    %328 = vmatprep.subr.mxu0 0.0
    %329 = vmatpush2.msra.mxu0 0.0
    %330 = vmatprep.subr.mxu0 0.0
    %331 = vmatpush2.msra.mxu0 0.0
    %332 = vmatprep.subr.mxu0 0.0
    %333 = vmatpush2.msra.mxu0 0.0
    %334 = vmatprep.subr.mxu0 0.0
    %335 = vmatpush2.msra.mxu0 0.0
    %336 = vmatprep.subr.mxu0 0.0
    %337 = vmatpush2.msra.mxu0 0.0
    %338 = vmatprep.subr.mxu0 0.0
    %339 = vmatpush2.msra.mxu0 0.0
    %340 = vmatprep.subr.mxu0 0.0
    %341 = vmatpush2.msra.mxu0 0.0
    %342 = vmatprep.subr.mxu0 0.0
    %343 = vmatpush2.msra.mxu0 0.0
    %344 = vmatprep.subr.mxu0 0.0
    %345 = vmatpush2.msra.mxu0 0.0
    %346 = vmatprep.subr.mxu0 0.0
    %347 = vmatpush2.msra.mxu0 0.0
    %348 = vmatprep.subr.mxu0 0.0
    %349 = vmatpush2.msra.mxu0 0.0
    %350 = vmatprep.subr.mxu0 0.0
    %351 = vmatpush2.msra.mxu0 0.0
    %352 = vmatprep.subr.mxu0 0.0
    %353 = vmatpush2.msra.mxu0 0.0
    %354 = vmatprep.mubr.f32.mxu0 0.0
    %v355 = vand.u32 %v207, 4294901760
    %356 = vmatmul.mubr.f32.gmra.mxu0 %v355
    %v357 = vpop.f32.mrf.mxu0
    %v358 = vadd.f32 %v282, %v357
    %v359 = vpop.f32.mrf.mxu0
    %360 = vdwg.mxu0
    %361 = vmatprep.subr.mxu0 0.0
    %362 = vmatpush1.msra.mxu0 0.0
    %363 = vmatprep.subr.mxu0 0.0
    %364 = vmatpush1.msra.mxu0 0.0
    %365 = vmatprep.subr.mxu0 0.0
    %366 = vmatpush1.msra.mxu0 0.0
    %367 = vmatprep.subr.mxu0 0.0
    %368 = vmatpush1.msra.mxu0 0.0
    %369 = vmatprep.subr.mxu0 0.0
    %370 = vmatpush1.msra.mxu0 0.0
    %371 = vmatprep.subr.mxu0 0.0
    %372 = vmatpush1.msra.mxu0 0.0
    %373 = vmatprep.subr.mxu0 0.0
    %374 = vmatpush1.msra.mxu0 0.0
    %375 = vmatprep.subr.mxu0 0.0
    %376 = vmatpush1.msra.mxu0 0.0
    %377 = vmatprep.subr.mxu0 0.0
    %378 = vmatpush1.msra.mxu0 0.0
    %379 = vmatprep.subr.mxu0 0.0
    %380 = vmatpush1.msra.mxu0 0.0
    %381 = vmatprep.subr.mxu0 0.0
    %382 = vmatpush1.msra.mxu0 0.0
    %383 = vmatprep.subr.mxu0 0.0
    %384 = vmatpush1.msra.mxu0 0.0
    %385 = vmatprep.subr.mxu0 0.0
    %386 = vmatpush1.msra.mxu0 0.0
    %387 = vmatprep.subr.mxu0 0.0
    %388 = vmatpush1.msra.mxu0 0.0
    %389 = vmatprep.subr.mxu0 0.0
    %390 = vmatpush1.msra.mxu0 0.0
    %391 = vmatprep.subr.mxu0 0.0
    %v392 = vand.u32 %v204, 4294901760
    %v393 = vsub.f32 %v204, %v392
    %394 = vmatpush1.msra.mxu0 %v393
    %395 = vmatprep.subr.mxu0 0.0
    %396 = vmatpush2.msra.mxu0 0.0
    %397 = vmatprep.subr.mxu0 0.0
    %398 = vmatpush2.msra.mxu0 0.0
    %399 = vmatprep.subr.mxu0 0.0
    %400 = vmatpush2.msra.mxu0 0.0
    %401 = vmatprep.subr.mxu0 0.0
    %402 = vmatpush2.msra.mxu0 0.0
    %403 = vmatprep.subr.mxu0 0.0
    %404 = vmatpush2.msra.mxu0 0.0
    %405 = vmatprep.subr.mxu0 0.0
    %406 = vmatpush2.msra.mxu0 0.0
    %407 = vmatprep.subr.mxu0 0.0
    %408 = vmatpush2.msra.mxu0 0.0
    %409 = vmatprep.subr.mxu0 0.0
    %410 = vmatpush2.msra.mxu0 0.0
    %411 = vmatprep.subr.mxu0 0.0
    %412 = vmatpush2.msra.mxu0 0.0
    %413 = vmatprep.subr.mxu0 0.0
    %414 = vmatpush2.msra.mxu0 0.0
    %415 = vmatprep.subr.mxu0 0.0
    %416 = vmatpush2.msra.mxu0 0.0
    %417 = vmatprep.subr.mxu0 0.0
    %418 = vmatpush2.msra.mxu0 0.0
    %419 = vmatprep.subr.mxu0 0.0
    %420 = vmatpush2.msra.mxu0 0.0
    %421 = vmatprep.subr.mxu0 0.0
    %422 = vmatpush2.msra.mxu0 0.0
    %423 = vmatprep.subr.mxu0 0.0
    %424 = vmatpush2.msra.mxu0 0.0
    %425 = vmatprep.subr.mxu0 0.0
    %426 = vmatpush2.msra.mxu0 0.0
    %427 = vmatprep.mubr.f32.mxu0 0.0
    %v428 = vand.u32 %v207, 4294901760
    %v429 = vsub.f32 %v207, %v428
    %430 = vmatmul.mubr.f32.gmra.mxu0 %v429
    %v431 = vpop.f32.mrf.mxu0
    %v432 = vadd.f32 %v358, %v431
    %v433 = vpop.f32.mrf.mxu0
    %434 = vdwg.mxu0
    %435 = vmatprep.subr.mxu0 0.0
    %436 = vmatpush1.msra.mxu0 0.0
    %437 = vmatprep.subr.mxu0 0.0
    %438 = vmatpush1.msra.mxu0 0.0
    %439 = vmatprep.subr.mxu0 0.0
    %440 = vmatpush1.msra.mxu0 0.0
    %441 = vmatprep.subr.mxu0 0.0
    %442 = vmatpush1.msra.mxu0 0.0
    %443 = vmatprep.subr.mxu0 0.0
    %444 = vmatpush1.msra.mxu0 0.0
    %445 = vmatprep.subr.mxu0 0.0
    %446 = vmatpush1.msra.mxu0 0.0
    %447 = vmatprep.subr.mxu0 0.0
    %448 = vmatpush1.msra.mxu0 0.0
    %449 = vmatprep.subr.mxu0 0.0
    %450 = vmatpush1.msra.mxu0 0.0
    %451 = vmatprep.subr.mxu0 0.0
    %452 = vmatpush1.msra.mxu0 0.0
    %453 = vmatprep.subr.mxu0 0.0
    %454 = vmatpush1.msra.mxu0 0.0
    %455 = vmatprep.subr.mxu0 0.0
    %456 = vmatpush1.msra.mxu0 0.0
    %457 = vmatprep.subr.mxu0 0.0
    %458 = vmatpush1.msra.mxu0 0.0
    %459 = vmatprep.subr.mxu0 0.0
    %460 = vmatpush1.msra.mxu0 0.0
    %461 = vmatprep.subr.mxu0 0.0
    %462 = vmatpush1.msra.mxu0 0.0
    %463 = vmatprep.subr.mxu0 0.0
    %464 = vmatpush1.msra.mxu0 0.0
    %465 = vmatprep.subr.mxu0 0.0
    %v466 = vand.u32 %v204, 4294901760
    %467 = vmatpush1.msra.mxu0 %v466
    %468 = vmatprep.subr.mxu0 0.0
    %469 = vmatpush2.msra.mxu0 0.0
    %470 = vmatprep.subr.mxu0 0.0
    %471 = vmatpush2.msra.mxu0 0.0
    %472 = vmatprep.subr.mxu0 0.0
    %473 = vmatpush2.msra.mxu0 0.0
    %474 = vmatprep.subr.mxu0 0.0
    %475 = vmatpush2.msra.mxu0 0.0
    %476 = vmatprep.subr.mxu0 0.0
    %477 = vmatpush2.msra.mxu0 0.0
    %478 = vmatprep.subr.mxu0 0.0
    %479 = vmatpush2.msra.mxu0 0.0
    %480 = vmatprep.subr.mxu0 0.0
    %481 = vmatpush2.msra.mxu0 0.0
    %482 = vmatprep.subr.mxu0 0.0
    %483 = vmatpush2.msra.mxu0 0.0
    %484 = vmatprep.subr.mxu0 0.0
    %485 = vmatpush2.msra.mxu0 0.0
    %486 = vmatprep.subr.mxu0 0.0
    %487 = vmatpush2.msra.mxu0 0.0
    %488 = vmatprep.subr.mxu0 0.0
    %489 = vmatpush2.msra.mxu0 0.0
    %490 = vmatprep.subr.mxu0 0.0
    %491 = vmatpush2.msra.mxu0 0.0
    %492 = vmatprep.subr.mxu0 0.0
    %493 = vmatpush2.msra.mxu0 0.0
    %494 = vmatprep.subr.mxu0 0.0
    %495 = vmatpush2.msra.mxu0 0.0
    %496 = vmatprep.subr.mxu0 0.0
    %497 = vmatpush2.msra.mxu0 0.0
    %498 = vmatprep.subr.mxu0 0.0
    %499 = vmatpush2.msra.mxu0 0.0
    %500 = vmatprep.mubr.f32.mxu0 0.0
    %v501 = vand.u32 %v207, 4294901760
    %v502 = vsub.f32 %v207, %v501
    %v503 = vand.u32 %v502, 4294901760
    %504 = vmatmul.mubr.f32.gmra.mxu0 %v503
    %v505 = vpop.f32.mrf.mxu0
    %v506 = vadd.f32 %v432, %v505
    %v507 = vpop.f32.mrf.mxu0
    %508 = vdwg.mxu0
    %509 = vmatprep.subr.mxu0 0.0
    %510 = vmatpush1.msra.mxu0 0.0
    %511 = vmatprep.subr.mxu0 0.0
    %512 = vmatpush1.msra.mxu0 0.0
    %513 = vmatprep.subr.mxu0 0.0
    %514 = vmatpush1.msra.mxu0 0.0
    %515 = vmatprep.subr.mxu0 0.0
    %516 = vmatpush1.msra.mxu0 0.0
    %517 = vmatprep.subr.mxu0 0.0
    %518 = vmatpush1.msra.mxu0 0.0
    %519 = vmatprep.subr.mxu0 0.0
    %520 = vmatpush1.msra.mxu0 0.0
    %521 = vmatprep.subr.mxu0 0.0
    %522 = vmatpush1.msra.mxu0 0.0
    %523 = vmatprep.subr.mxu0 0.0
    %524 = vmatpush1.msra.mxu0 0.0
    %525 = vmatprep.subr.mxu0 0.0
    %526 = vmatpush1.msra.mxu0 0.0
    %527 = vmatprep.subr.mxu0 0.0
    %528 = vmatpush1.msra.mxu0 0.0
    %529 = vmatprep.subr.mxu0 0.0
    %530 = vmatpush1.msra.mxu0 0.0
    %531 = vmatprep.subr.mxu0 0.0
    %532 = vmatpush1.msra.mxu0 0.0
    %533 = vmatprep.subr.mxu0 0.0
    %534 = vmatpush1.msra.mxu0 0.0
    %535 = vmatprep.subr.mxu0 0.0
    %536 = vmatpush1.msra.mxu0 0.0
    %537 = vmatprep.subr.mxu0 0.0
    %538 = vmatpush1.msra.mxu0 0.0
    %539 = vmatprep.subr.mxu0 0.0
    %v540 = vand.u32 %v204, 4294901760
    %v541 = vsub.f32 %v204, %v540
    %v542 = vand.u32 %v541, 4294901760
    %543 = vmatpush1.msra.mxu0 %v542
    %544 = vmatprep.subr.mxu0 0.0
    %545 = vmatpush2.msra.mxu0 0.0
    %546 = vmatprep.subr.mxu0 0.0
    %547 = vmatpush2.msra.mxu0 0.0
    %548 = vmatprep.subr.mxu0 0.0
    %549 = vmatpush2.msra.mxu0 0.0
    %550 = vmatprep.subr.mxu0 0.0
    %551 = vmatpush2.msra.mxu0 0.0
    %552 = vmatprep.subr.mxu0 0.0
    %553 = vmatpush2.msra.mxu0 0.0
    %554 = vmatprep.subr.mxu0 0.0
    %555 = vmatpush2.msra.mxu0 0.0
    %556 = vmatprep.subr.mxu0 0.0
    %557 = vmatpush2.msra.mxu0 0.0
    %558 = vmatprep.subr.mxu0 0.0
    %559 = vmatpush2.msra.mxu0 0.0
    %560 = vmatprep.subr.mxu0 0.0
    %561 = vmatpush2.msra.mxu0 0.0
    %562 = vmatprep.subr.mxu0 0.0
    %563 = vmatpush2.msra.mxu0 0.0
    %564 = vmatprep.subr.mxu0 0.0
    %565 = vmatpush2.msra.mxu0 0.0
    %566 = vmatprep.subr.mxu0 0.0
    %567 = vmatpush2.msra.mxu0 0.0
    %568 = vmatprep.subr.mxu0 0.0
    %569 = vmatpush2.msra.mxu0 0.0
    %570 = vmatprep.subr.mxu0 0.0
    %571 = vmatpush2.msra.mxu0 0.0
    %572 = vmatprep.subr.mxu0 0.0
    %573 = vmatpush2.msra.mxu0 0.0
    %574 = vmatprep.subr.mxu0 0.0
    %575 = vmatpush2.msra.mxu0 0.0
    %576 = vmatprep.mubr.f32.mxu0 0.0
    %v577 = vand.u32 %v207, 4294901760
    %578 = vmatmul.mubr.f32.gmra.mxu0 %v577
    %v579 = vpop.f32.mrf.mxu0
    %v580 = vadd.f32 %v506, %v579
    %v581 = vpop.f32.mrf.mxu0
    %582 = vdwg.mxu0
    %583 = vmatprep.subr.mxu0 0.0
    %584 = vmatpush1.msra.mxu0 0.0
    %585 = vmatprep.subr.mxu0 0.0
    %586 = vmatpush1.msra.mxu0 0.0
    %587 = vmatprep.subr.mxu0 0.0
    %588 = vmatpush1.msra.mxu0 0.0
    %589 = vmatprep.subr.mxu0 0.0
    %590 = vmatpush1.msra.mxu0 0.0
    %591 = vmatprep.subr.mxu0 0.0
    %592 = vmatpush1.msra.mxu0 0.0
    %593 = vmatprep.subr.mxu0 0.0
    %594 = vmatpush1.msra.mxu0 0.0
    %595 = vmatprep.subr.mxu0 0.0
    %596 = vmatpush1.msra.mxu0 0.0
    %597 = vmatprep.subr.mxu0 0.0
    %598 = vmatpush1.msra.mxu0 0.0
    %599 = vmatprep.subr.mxu0 0.0
    %600 = vmatpush1.msra.mxu0 0.0
    %601 = vmatprep.subr.mxu0 0.0
    %602 = vmatpush1.msra.mxu0 0.0
    %603 = vmatprep.subr.mxu0 0.0
    %604 = vmatpush1.msra.mxu0 0.0
    %605 = vmatprep.subr.mxu0 0.0
    %606 = vmatpush1.msra.mxu0 0.0
    %607 = vmatprep.subr.mxu0 0.0
    %608 = vmatpush1.msra.mxu0 0.0
    %609 = vmatprep.subr.mxu0 0.0
    %610 = vmatpush1.msra.mxu0 0.0
    %611 = vmatprep.subr.mxu0 0.0
    %612 = vmatpush1.msra.mxu0 0.0
    %613 = vmatprep.subr.mxu0 0.0
    %v614 = vand.u32 %v204, 4294901760
    %615 = vmatpush1.msra.mxu0 %v614
    %616 = vmatprep.subr.mxu0 0.0
    %617 = vmatpush2.msra.mxu0 0.0
    %618 = vmatprep.subr.mxu0 0.0
    %619 = vmatpush2.msra.mxu0 0.0
    %620 = vmatprep.subr.mxu0 0.0
    %621 = vmatpush2.msra.mxu0 0.0
    %622 = vmatprep.subr.mxu0 0.0
    %623 = vmatpush2.msra.mxu0 0.0
    %624 = vmatprep.subr.mxu0 0.0
    %625 = vmatpush2.msra.mxu0 0.0
    %626 = vmatprep.subr.mxu0 0.0
    %627 = vmatpush2.msra.mxu0 0.0
    %628 = vmatprep.subr.mxu0 0.0
    %629 = vmatpush2.msra.mxu0 0.0
    %630 = vmatprep.subr.mxu0 0.0
    %631 = vmatpush2.msra.mxu0 0.0
    %632 = vmatprep.subr.mxu0 0.0
    %633 = vmatpush2.msra.mxu0 0.0
    %634 = vmatprep.subr.mxu0 0.0
    %635 = vmatpush2.msra.mxu0 0.0
    %636 = vmatprep.subr.mxu0 0.0
    %637 = vmatpush2.msra.mxu0 0.0
    %638 = vmatprep.subr.mxu0 0.0
    %639 = vmatpush2.msra.mxu0 0.0
    %640 = vmatprep.subr.mxu0 0.0
    %641 = vmatpush2.msra.mxu0 0.0
    %642 = vmatprep.subr.mxu0 0.0
    %643 = vmatpush2.msra.mxu0 0.0
    %644 = vmatprep.subr.mxu0 0.0
    %645 = vmatpush2.msra.mxu0 0.0
    %646 = vmatprep.subr.mxu0 0.0
    %647 = vmatpush2.msra.mxu0 0.0
    %648 = vmatprep.mubr.f32.mxu0 0.0
    %v649 = vand.u32 %v207, 4294901760
    %650 = vmatmul.mubr.f32.gmra.mxu0 %v649
    %v651 = vpop.f32.mrf.mxu0
    %v652 = vadd.f32 %v580, %v651
    %v653 = vpop.f32.mrf.mxu0
    %654 = vdwg.mxu0
    %v655 = vld [vmem:[#allocation2] sm:$0x1]
    %v657 = vlaneseq
    %v658 = vshrl.u32 %v657, 7
    %v659 = vsub.s32 0, %v658
    %v660 = vrot.slane %v655, %v659
    %vm662 = vcmp.eq.f32.partialorder %v652, %v660
    %v663 = vsel %vm662, 1.0, 0.0
    %v664 = vld [vmem:[#allocation4] sm:$0xff]
    %v665 = vld [vmem:[#allocation4 + $0x8] sm:$0xff]
    %v666 = vld [vmem:[#allocation4 + $0x10] sm:$0xff]
    %v667 = vld [vmem:[#allocation4 + $0x18] sm:$0xff]
    %v668 = vld [vmem:[#allocation4 + $0x20] sm:$0xff]
    %v669 = vld [vmem:[#allocation4 + $0x28] sm:$0xff]
    %v670 = vld [vmem:[#allocation4 + $0x30] sm:$0xff]
    %v671 = vld [vmem:[#allocation4 + $0x38] sm:$0xff]
    %v672 = vld [vmem:[#allocation4 + $0x40] sm:$0xff]
    %v673 = vld [vmem:[#allocation4 + $0x48] sm:$0xff]
    %v674 = vld [vmem:[#allocation4 + $0x50] sm:$0xff]
    %v675 = vld [vmem:[#allocation4 + $0x58] sm:$0xff]
    %v676 = vld [vmem:[#allocation4 + $0x60] sm:$0xff]
    %v677 = vld [vmem:[#allocation4 + $0x68] sm:$0xff]
    %v678 = vld [vmem:[#allocation4 + $0x70] sm:$0xff]
    %v679 = vld [vmem:[#allocation4 + $0x78] sm:$0xff]
    %v680 = vld [vmem:[#allocation4 + $0x80] sm:$0xff]
    %v681 = vld [vmem:[#allocation4 + $0x88] sm:$0xff]
    %v682 = vld [vmem:[#allocation4 + $0x90] sm:$0xff]
    %v683 = vld [vmem:[#allocation4 + $0x98] sm:$0xff]
    %v684 = vld [vmem:[#allocation4 + $0xa0] sm:$0xff]
    %v685 = vld [vmem:[#allocation4 + $0xa8] sm:$0xff]
    %v686 = vld [vmem:[#allocation4 + $0xb0] sm:$0xff]
    %v687 = vld [vmem:[#allocation4 + $0xb8] sm:$0xff]
    %v688 = vld [vmem:[#allocation4 + $0xc0] sm:$0xff]
    %v689 = vld [vmem:[#allocation4 + $0xc8] sm:$0xff]
    %v690 = vld [vmem:[#allocation4 + $0xd0] sm:$0xff]
    %v691 = vld [vmem:[#allocation4 + $0xd8] sm:$0xff]
    %v692 = vld [vmem:[#allocation4 + $0xe0] sm:$0xff]
    %v693 = vld [vmem:[#allocation4 + $0xe8] sm:$0xff]
    %v694 = vld [vmem:[#allocation4 + $0xf0] sm:$0xff]
    %v695 = vld [vmem:[#allocation4 + $0xf8] sm:$0xff]
    %v696 = vld [vmem:[#allocation6] sm:$0x77]
    %v698 = vlaneseq
    %v699 = vshrl.u32 %v698, 7
    %v700 = vsub.s32 0, %v699
    %v701 = vrot.slane %v696, %v700
    %v702 = vlaneseq
    %v703 = vshrl.u32 %v702, 7
    %v704 = vsub.s32 4, %v703
    %v705 = vrot.slane %v696, %v704
    %v708 = vlaneseq
    %v709 = vshrl.u32 %v708, 7
    %v710 = vsub.s32 0, %v709
    %v711 = vrot.slane %v701, %v710
    %v712 = vlaneseq
    %v713 = vshrl.u32 %v712, 7
    %v714 = vsub.s32 0, %v713
    %v715 = vrot.slane %v705, %v714
    %v716 = vand.u32 %v695, 4294901760
    %717 = vmatprep.subr.mxu0 %v716
    %v718 = vand.u32 %v694, 4294901760
    %719 = vmatpush1.msra.mxu0 %v718
    %v720 = vand.u32 %v693, 4294901760
    %721 = vmatprep.subr.mxu0 %v720
    %v722 = vand.u32 %v692, 4294901760
    %723 = vmatpush1.msra.mxu0 %v722
    %v724 = vand.u32 %v691, 4294901760
    %725 = vmatprep.subr.mxu0 %v724
    %v726 = vand.u32 %v690, 4294901760
    %727 = vmatpush1.msra.mxu0 %v726
    %v728 = vand.u32 %v689, 4294901760
    %729 = vmatprep.subr.mxu0 %v728
    %v730 = vand.u32 %v688, 4294901760
    %731 = vmatpush1.msra.mxu0 %v730
    %v732 = vand.u32 %v687, 4294901760
    %733 = vmatprep.subr.mxu0 %v732
    %v734 = vand.u32 %v686, 4294901760
    %735 = vmatpush1.msra.mxu0 %v734
    %v736 = vand.u32 %v685, 4294901760
    %737 = vmatprep.subr.mxu0 %v736
    %v738 = vand.u32 %v684, 4294901760
    %739 = vmatpush1.msra.mxu0 %v738
    %v740 = vand.u32 %v683, 4294901760
    %741 = vmatprep.subr.mxu0 %v740
    %v742 = vand.u32 %v682, 4294901760
    %743 = vmatpush1.msra.mxu0 %v742
    %v744 = vand.u32 %v681, 4294901760
    %745 = vmatprep.subr.mxu0 %v744
    %v746 = vand.u32 %v680, 4294901760
    %747 = vmatpush1.msra.mxu0 %v746
    %v748 = vand.u32 %v679, 4294901760
    %749 = vmatprep.subr.mxu0 %v748
    %v750 = vand.u32 %v678, 4294901760
    %751 = vmatpush1.msra.mxu0 %v750
    %v752 = vand.u32 %v677, 4294901760
    %753 = vmatprep.subr.mxu0 %v752
    %v754 = vand.u32 %v676, 4294901760
    %755 = vmatpush1.msra.mxu0 %v754
    %v756 = vand.u32 %v675, 4294901760
    %757 = vmatprep.subr.mxu0 %v756
    %v758 = vand.u32 %v674, 4294901760
    %759 = vmatpush1.msra.mxu0 %v758
    %v760 = vand.u32 %v673, 4294901760
    %761 = vmatprep.subr.mxu0 %v760
    %v762 = vand.u32 %v672, 4294901760
    %763 = vmatpush1.msra.mxu0 %v762
    %v764 = vand.u32 %v671, 4294901760
    %765 = vmatprep.subr.mxu0 %v764
    %v766 = vand.u32 %v670, 4294901760
    %767 = vmatpush1.msra.mxu0 %v766
    %v768 = vand.u32 %v669, 4294901760
    %769 = vmatprep.subr.mxu0 %v768
    %v770 = vand.u32 %v668, 4294901760
    %771 = vmatpush1.msra.mxu0 %v770
    %v772 = vand.u32 %v667, 4294901760
    %773 = vmatprep.subr.mxu0 %v772
    %v774 = vand.u32 %v666, 4294901760
    %775 = vmatpush1.msra.mxu0 %v774
    %v776 = vand.u32 %v665, 4294901760
    %777 = vmatprep.subr.mxu0 %v776
    %v778 = vand.u32 %v664, 4294901760
    %779 = vmatpush1.msra.mxu0 %v778
    %780 = vmatprep.subr.mxu0 0.0
    %781 = vmatpush2.msra.mxu0 0.0
    %782 = vmatprep.subr.mxu0 0.0
    %783 = vmatpush2.msra.mxu0 0.0
    %784 = vmatprep.subr.mxu0 0.0
    %785 = vmatpush2.msra.mxu0 0.0
    %786 = vmatprep.subr.mxu0 0.0
    %787 = vmatpush2.msra.mxu0 0.0
    %788 = vmatprep.subr.mxu0 0.0
    %789 = vmatpush2.msra.mxu0 0.0
    %790 = vmatprep.subr.mxu0 0.0
    %791 = vmatpush2.msra.mxu0 0.0
    %792 = vmatprep.subr.mxu0 0.0
    %793 = vmatpush2.msra.mxu0 0.0
    %794 = vmatprep.subr.mxu0 0.0
    %795 = vmatpush2.msra.mxu0 0.0
    %796 = vmatprep.subr.mxu0 0.0
    %797 = vmatpush2.msra.mxu0 0.0
    %798 = vmatprep.subr.mxu0 0.0
    %799 = vmatpush2.msra.mxu0 0.0
    %800 = vmatprep.subr.mxu0 0.0
    %801 = vmatpush2.msra.mxu0 0.0
    %802 = vmatprep.subr.mxu0 0.0
    %803 = vmatpush2.msra.mxu0 0.0
    %804 = vmatprep.subr.mxu0 0.0
    %805 = vmatpush2.msra.mxu0 0.0
    %806 = vmatprep.subr.mxu0 0.0
    %807 = vmatpush2.msra.mxu0 0.0
    %808 = vmatprep.subr.mxu0 0.0
    %809 = vmatpush2.msra.mxu0 0.0
    %810 = vmatprep.subr.mxu0 0.0
    %811 = vmatpush2.msra.mxu0 0.0
    %812 = vmatprep.mubr.f32.mxu0 0.0
    %v813 = vsub.f32 %v663, %v663
    %v814 = vand.u32 %v813, 4294901760
    %v815 = vsub.f32 %v813, %v814
    %v816 = vand.u32 %v815, 4294901760
    %817 = vmatmul.mubr.f32.gmra.mxu0 %v816
    %v818 = vpop.f32.mrf.mxu0
    %v819 = vadd.f32 %v711, %v818
    %v820 = vpop.f32.mrf.mxu0
    %v821 = vadd.f32 %v715, %v820
    %822 = vdwg.mxu0
    %v823 = vand.u32 %v695, 4294901760
    %v824 = vsub.f32 %v695, %v823
    %v825 = vand.u32 %v824, 4294901760
    %v826 = vsub.f32 %v824, %v825
    %v827 = vand.u32 %v826, 4294901760
    %828 = vmatprep.subr.mxu0 %v827
    %v829 = vand.u32 %v694, 4294901760
    %v830 = vsub.f32 %v694, %v829
    %v831 = vand.u32 %v830, 4294901760
    %v832 = vsub.f32 %v830, %v831
    %v833 = vand.u32 %v832, 4294901760
    %834 = vmatpush1.msra.mxu0 %v833
    %v835 = vand.u32 %v693, 4294901760
    %v836 = vsub.f32 %v693, %v835
    %v837 = vand.u32 %v836, 4294901760
    %v838 = vsub.f32 %v836, %v837
    %v839 = vand.u32 %v838, 4294901760
    %840 = vmatprep.subr.mxu0 %v839
    %v841 = vand.u32 %v692, 4294901760
    %v842 = vsub.f32 %v692, %v841
    %v843 = vand.u32 %v842, 4294901760
    %v844 = vsub.f32 %v842, %v843
    %v845 = vand.u32 %v844, 4294901760
    %846 = vmatpush1.msra.mxu0 %v845
    %v847 = vand.u32 %v691, 4294901760
    %v848 = vsub.f32 %v691, %v847
    %v849 = vand.u32 %v848, 4294901760
    %v850 = vsub.f32 %v848, %v849
    %v851 = vand.u32 %v850, 4294901760
    %852 = vmatprep.subr.mxu0 %v851
    %v853 = vand.u32 %v690, 4294901760
    %v854 = vsub.f32 %v690, %v853
    %v855 = vand.u32 %v854, 4294901760
    %v856 = vsub.f32 %v854, %v855
    %v857 = vand.u32 %v856, 4294901760
    %858 = vmatpush1.msra.mxu0 %v857
    %v859 = vand.u32 %v689, 4294901760
    %v860 = vsub.f32 %v689, %v859
    %v861 = vand.u32 %v860, 4294901760
    %v862 = vsub.f32 %v860, %v861
    %v863 = vand.u32 %v862, 4294901760
    %864 = vmatprep.subr.mxu0 %v863
    %v865 = vand.u32 %v688, 4294901760
    %v866 = vsub.f32 %v688, %v865
    %v867 = vand.u32 %v866, 4294901760
    %v868 = vsub.f32 %v866, %v867
    %v869 = vand.u32 %v868, 4294901760
    %870 = vmatpush1.msra.mxu0 %v869
    %v871 = vand.u32 %v687, 4294901760
    %v872 = vsub.f32 %v687, %v871
    %v873 = vand.u32 %v872, 4294901760
    %v874 = vsub.f32 %v872, %v873
    %v875 = vand.u32 %v874, 4294901760
    %876 = vmatprep.subr.mxu0 %v875
    %v877 = vand.u32 %v686, 4294901760
    %v878 = vsub.f32 %v686, %v877
    %v879 = vand.u32 %v878, 4294901760
    %v880 = vsub.f32 %v878, %v879
    %v881 = vand.u32 %v880, 4294901760
    %882 = vmatpush1.msra.mxu0 %v881
    %v883 = vand.u32 %v685, 4294901760
    %v884 = vsub.f32 %v685, %v883
    %v885 = vand.u32 %v884, 4294901760
    %v886 = vsub.f32 %v884, %v885
    %v887 = vand.u32 %v886, 4294901760
    %888 = vmatprep.subr.mxu0 %v887
    %v889 = vand.u32 %v684, 4294901760
    %v890 = vsub.f32 %v684, %v889
    %v891 = vand.u32 %v890, 4294901760
    %v892 = vsub.f32 %v890, %v891
    %v893 = vand.u32 %v892, 4294901760
    %894 = vmatpush1.msra.mxu0 %v893
    %v895 = vand.u32 %v683, 4294901760
    %v896 = vsub.f32 %v683, %v895
    %v897 = vand.u32 %v896, 4294901760
    %v898 = vsub.f32 %v896, %v897
    %v899 = vand.u32 %v898, 4294901760
    %900 = vmatprep.subr.mxu0 %v899
    %v901 = vand.u32 %v682, 4294901760
    %v902 = vsub.f32 %v682, %v901
    %v903 = vand.u32 %v902, 4294901760
    %v904 = vsub.f32 %v902, %v903
    %v905 = vand.u32 %v904, 4294901760
    %906 = vmatpush1.msra.mxu0 %v905
    %v907 = vand.u32 %v681, 4294901760
    %v908 = vsub.f32 %v681, %v907
    %v909 = vand.u32 %v908, 4294901760
    %v910 = vsub.f32 %v908, %v909
    %v911 = vand.u32 %v910, 4294901760
    %912 = vmatprep.subr.mxu0 %v911
    %v913 = vand.u32 %v680, 4294901760
    %v914 = vsub.f32 %v680, %v913
    %v915 = vand.u32 %v914, 4294901760
    %v916 = vsub.f32 %v914, %v915
    %v917 = vand.u32 %v916, 4294901760
    %918 = vmatpush1.msra.mxu0 %v917
    %v919 = vand.u32 %v679, 4294901760
    %v920 = vsub.f32 %v679, %v919
    %v921 = vand.u32 %v920, 4294901760
    %v922 = vsub.f32 %v920, %v921
    %v923 = vand.u32 %v922, 4294901760
    %924 = vmatprep.subr.mxu0 %v923
    %v925 = vand.u32 %v678, 4294901760
    %v926 = vsub.f32 %v678, %v925
    %v927 = vand.u32 %v926, 4294901760
    %v928 = vsub.f32 %v926, %v927
    %v929 = vand.u32 %v928, 4294901760
    %930 = vmatpush1.msra.mxu0 %v929
    %v931 = vand.u32 %v677, 4294901760
    %v932 = vsub.f32 %v677, %v931
    %v933 = vand.u32 %v932, 4294901760
    %v934 = vsub.f32 %v932, %v933
    %v935 = vand.u32 %v934, 4294901760
    %936 = vmatprep.subr.mxu0 %v935
    %v937 = vand.u32 %v676, 4294901760
    %v938 = vsub.f32 %v676, %v937
    %v939 = vand.u32 %v938, 4294901760
    %v940 = vsub.f32 %v938, %v939
    %v941 = vand.u32 %v940, 4294901760
    %942 = vmatpush1.msra.mxu0 %v941
    %v943 = vand.u32 %v675, 4294901760
    %v944 = vsub.f32 %v675, %v943
    %v945 = vand.u32 %v944, 4294901760
    %v946 = vsub.f32 %v944, %v945
    %v947 = vand.u32 %v946, 4294901760
    %948 = vmatprep.subr.mxu0 %v947
    %v949 = vand.u32 %v674, 4294901760
    %v950 = vsub.f32 %v674, %v949
    %v951 = vand.u32 %v950, 4294901760
    %v952 = vsub.f32 %v950, %v951
    %v953 = vand.u32 %v952, 4294901760
    %954 = vmatpush1.msra.mxu0 %v953
    %v955 = vand.u32 %v673, 4294901760
    %v956 = vsub.f32 %v673, %v955
    %v957 = vand.u32 %v956, 4294901760
    %v958 = vsub.f32 %v956, %v957
    %v959 = vand.u32 %v958, 4294901760
    %960 = vmatprep.subr.mxu0 %v959
    %v961 = vand.u32 %v672, 4294901760
    %v962 = vsub.f32 %v672, %v961
    %v963 = vand.u32 %v962, 4294901760
    %v964 = vsub.f32 %v962, %v963
    %v965 = vand.u32 %v964, 4294901760
    %966 = vmatpush1.msra.mxu0 %v965
    %v967 = vand.u32 %v671, 4294901760
    %v968 = vsub.f32 %v671, %v967
    %v969 = vand.u32 %v968, 4294901760
    %v970 = vsub.f32 %v968, %v969
    %v971 = vand.u32 %v970, 4294901760
    %972 = vmatprep.subr.mxu0 %v971
    %v973 = vand.u32 %v670, 4294901760
    %v974 = vsub.f32 %v670, %v973
    %v975 = vand.u32 %v974, 4294901760
    %v976 = vsub.f32 %v974, %v975
    %v977 = vand.u32 %v976, 4294901760
    %978 = vmatpush1.msra.mxu0 %v977
    %v979 = vand.u32 %v669, 4294901760
    %v980 = vsub.f32 %v669, %v979
    %v981 = vand.u32 %v980, 4294901760
    %v982 = vsub.f32 %v980, %v981
    %v983 = vand.u32 %v982, 4294901760
    %984 = vmatprep.subr.mxu0 %v983
    %v985 = vand.u32 %v668, 4294901760
    %v986 = vsub.f32 %v668, %v985
    %v987 = vand.u32 %v986, 4294901760
    %v988 = vsub.f32 %v986, %v987
    %v989 = vand.u32 %v988, 4294901760
    %990 = vmatpush1.msra.mxu0 %v989
    %v991 = vand.u32 %v667, 4294901760
    %v992 = vsub.f32 %v667, %v991
    %v993 = vand.u32 %v992, 4294901760
    %v994 = vsub.f32 %v992, %v993
    %v995 = vand.u32 %v994, 4294901760
    %996 = vmatprep.subr.mxu0 %v995
    %v997 = vand.u32 %v666, 4294901760
    %v998 = vsub.f32 %v666, %v997
    %v999 = vand.u32 %v998, 4294901760
    %v1000 = vsub.f32 %v998, %v999
    %v1001 = vand.u32 %v1000, 4294901760
    %1002 = vmatpush1.msra.mxu0 %v1001
    %v1003 = vand.u32 %v665, 4294901760
    %v1004 = vsub.f32 %v665, %v1003
    %v1005 = vand.u32 %v1004, 4294901760
    %v1006 = vsub.f32 %v1004, %v1005
    %v1007 = vand.u32 %v1006, 4294901760
    %1008 = vmatprep.subr.mxu0 %v1007
    %v1009 = vand.u32 %v664, 4294901760
    %v1010 = vsub.f32 %v664, %v1009
    %v1011 = vand.u32 %v1010, 4294901760
    %v1012 = vsub.f32 %v1010, %v1011
    %v1013 = vand.u32 %v1012, 4294901760
    %1014 = vmatpush1.msra.mxu0 %v1013
    %1015 = vmatprep.subr.mxu0 0.0
    %1016 = vmatpush2.msra.mxu0 0.0
    %1017 = vmatprep.subr.mxu0 0.0
    %1018 = vmatpush2.msra.mxu0 0.0
    %1019 = vmatprep.subr.mxu0 0.0
    %1020 = vmatpush2.msra.mxu0 0.0
    %1021 = vmatprep.subr.mxu0 0.0
    %1022 = vmatpush2.msra.mxu0 0.0
    %1023 = vmatprep.subr.mxu0 0.0
    %1024 = vmatpush2.msra.mxu0 0.0
    %1025 = vmatprep.subr.mxu0 0.0
    %1026 = vmatpush2.msra.mxu0 0.0
    %1027 = vmatprep.subr.mxu0 0.0
    %1028 = vmatpush2.msra.mxu0 0.0
    %1029 = vmatprep.subr.mxu0 0.0
    %1030 = vmatpush2.msra.mxu0 0.0
    %1031 = vmatprep.subr.mxu0 0.0
    %1032 = vmatpush2.msra.mxu0 0.0
    %1033 = vmatprep.subr.mxu0 0.0
    %1034 = vmatpush2.msra.mxu0 0.0
    %1035 = vmatprep.subr.mxu0 0.0
    %1036 = vmatpush2.msra.mxu0 0.0
    %1037 = vmatprep.subr.mxu0 0.0
    %1038 = vmatpush2.msra.mxu0 0.0
    %1039 = vmatprep.subr.mxu0 0.0
    %1040 = vmatpush2.msra.mxu0 0.0
    %1041 = vmatprep.subr.mxu0 0.0
    %1042 = vmatpush2.msra.mxu0 0.0
    %1043 = vmatprep.subr.mxu0 0.0
    %1044 = vmatpush2.msra.mxu0 0.0
    %1045 = vmatprep.subr.mxu0 0.0
    %1046 = vmatpush2.msra.mxu0 0.0
    %1047 = vmatprep.mubr.f32.mxu0 0.0
    %1048 = vmatmul.mubr.f32.gmra.mxu0 %v663
    %v1049 = vpop.f32.mrf.mxu0
    %v1050 = vadd.f32 %v819, %v1049
    %v1051 = vpop.f32.mrf.mxu0
    %v1052 = vadd.f32 %v821, %v1051
    %1053 = vdwg.mxu0
    %v1054 = vand.u32 %v695, 4294901760
    %v1055 = vsub.f32 %v695, %v1054
    %1056 = vmatprep.subr.mxu0 %v1055
    %v1057 = vand.u32 %v694, 4294901760
    %v1058 = vsub.f32 %v694, %v1057
    %1059 = vmatpush1.msra.mxu0 %v1058
    %v1060 = vand.u32 %v693, 4294901760
    %v1061 = vsub.f32 %v693, %v1060
    %1062 = vmatprep.subr.mxu0 %v1061
    %v1063 = vand.u32 %v692, 4294901760
    %v1064 = vsub.f32 %v692, %v1063
    %1065 = vmatpush1.msra.mxu0 %v1064
    %v1066 = vand.u32 %v691, 4294901760
    %v1067 = vsub.f32 %v691, %v1066
    %1068 = vmatprep.subr.mxu0 %v1067
    %v1069 = vand.u32 %v690, 4294901760
    %v1070 = vsub.f32 %v690, %v1069
    %1071 = vmatpush1.msra.mxu0 %v1070
    %v1072 = vand.u32 %v689, 4294901760
    %v1073 = vsub.f32 %v689, %v1072
    %1074 = vmatprep.subr.mxu0 %v1073
    %v1075 = vand.u32 %v688, 4294901760
    %v1076 = vsub.f32 %v688, %v1075
    %1077 = vmatpush1.msra.mxu0 %v1076
    %v1078 = vand.u32 %v687, 4294901760
    %v1079 = vsub.f32 %v687, %v1078
    %1080 = vmatprep.subr.mxu0 %v1079
    %v1081 = vand.u32 %v686, 4294901760
    %v1082 = vsub.f32 %v686, %v1081
    %1083 = vmatpush1.msra.mxu0 %v1082
    %v1084 = vand.u32 %v685, 4294901760
    %v1085 = vsub.f32 %v685, %v1084
    %1086 = vmatprep.subr.mxu0 %v1085
    %v1087 = vand.u32 %v684, 4294901760
    %v1088 = vsub.f32 %v684, %v1087
    %1089 = vmatpush1.msra.mxu0 %v1088
    %v1090 = vand.u32 %v683, 4294901760
    %v1091 = vsub.f32 %v683, %v1090
    %1092 = vmatprep.subr.mxu0 %v1091
    %v1093 = vand.u32 %v682, 4294901760
    %v1094 = vsub.f32 %v682, %v1093
    %1095 = vmatpush1.msra.mxu0 %v1094
    %v1096 = vand.u32 %v681, 4294901760
    %v1097 = vsub.f32 %v681, %v1096
    %1098 = vmatprep.subr.mxu0 %v1097
    %v1099 = vand.u32 %v680, 4294901760
    %v1100 = vsub.f32 %v680, %v1099
    %1101 = vmatpush1.msra.mxu0 %v1100
    %v1102 = vand.u32 %v679, 4294901760
    %v1103 = vsub.f32 %v679, %v1102
    %1104 = vmatprep.subr.mxu0 %v1103
    %v1105 = vand.u32 %v678, 4294901760
    %v1106 = vsub.f32 %v678, %v1105
    %1107 = vmatpush1.msra.mxu0 %v1106
    %v1108 = vand.u32 %v677, 4294901760
    %v1109 = vsub.f32 %v677, %v1108
    %1110 = vmatprep.subr.mxu0 %v1109
    %v1111 = vand.u32 %v676, 4294901760
    %v1112 = vsub.f32 %v676, %v1111
    %1113 = vmatpush1.msra.mxu0 %v1112
    %v1114 = vand.u32 %v675, 4294901760
    %v1115 = vsub.f32 %v675, %v1114
    %1116 = vmatprep.subr.mxu0 %v1115
    %v1117 = vand.u32 %v674, 4294901760
    %v1118 = vsub.f32 %v674, %v1117
    %1119 = vmatpush1.msra.mxu0 %v1118
    %v1120 = vand.u32 %v673, 4294901760
    %v1121 = vsub.f32 %v673, %v1120
    %1122 = vmatprep.subr.mxu0 %v1121
    %v1123 = vand.u32 %v672, 4294901760
    %v1124 = vsub.f32 %v672, %v1123
    %1125 = vmatpush1.msra.mxu0 %v1124
    %v1126 = vand.u32 %v671, 4294901760
    %v1127 = vsub.f32 %v671, %v1126
    %1128 = vmatprep.subr.mxu0 %v1127
    %v1129 = vand.u32 %v670, 4294901760
    %v1130 = vsub.f32 %v670, %v1129
    %1131 = vmatpush1.msra.mxu0 %v1130
    %v1132 = vand.u32 %v669, 4294901760
    %v1133 = vsub.f32 %v669, %v1132
    %1134 = vmatprep.subr.mxu0 %v1133
    %v1135 = vand.u32 %v668, 4294901760
    %v1136 = vsub.f32 %v668, %v1135
    %1137 = vmatpush1.msra.mxu0 %v1136
    %v1138 = vand.u32 %v667, 4294901760
    %v1139 = vsub.f32 %v667, %v1138
    %1140 = vmatprep.subr.mxu0 %v1139
    %v1141 = vand.u32 %v666, 4294901760
    %v1142 = vsub.f32 %v666, %v1141
    %1143 = vmatpush1.msra.mxu0 %v1142
    %v1144 = vand.u32 %v665, 4294901760
    %v1145 = vsub.f32 %v665, %v1144
    %1146 = vmatprep.subr.mxu0 %v1145
    %v1147 = vand.u32 %v664, 4294901760
    %v1148 = vsub.f32 %v664, %v1147
    %1149 = vmatpush1.msra.mxu0 %v1148
    %1150 = vmatprep.subr.mxu0 0.0
    %1151 = vmatpush2.msra.mxu0 0.0
    %1152 = vmatprep.subr.mxu0 0.0
    %1153 = vmatpush2.msra.mxu0 0.0
    %1154 = vmatprep.subr.mxu0 0.0
    %1155 = vmatpush2.msra.mxu0 0.0
    %1156 = vmatprep.subr.mxu0 0.0
    %1157 = vmatpush2.msra.mxu0 0.0
    %1158 = vmatprep.subr.mxu0 0.0
    %1159 = vmatpush2.msra.mxu0 0.0
    %1160 = vmatprep.subr.mxu0 0.0
    %1161 = vmatpush2.msra.mxu0 0.0
    %1162 = vmatprep.subr.mxu0 0.0
    %1163 = vmatpush2.msra.mxu0 0.0
    %1164 = vmatprep.subr.mxu0 0.0
    %1165 = vmatpush2.msra.mxu0 0.0
    %1166 = vmatprep.subr.mxu0 0.0
    %1167 = vmatpush2.msra.mxu0 0.0
    %1168 = vmatprep.subr.mxu0 0.0
    %1169 = vmatpush2.msra.mxu0 0.0
    %1170 = vmatprep.subr.mxu0 0.0
    %1171 = vmatpush2.msra.mxu0 0.0
    %1172 = vmatprep.subr.mxu0 0.0
    %1173 = vmatpush2.msra.mxu0 0.0
    %1174 = vmatprep.subr.mxu0 0.0
    %1175 = vmatpush2.msra.mxu0 0.0
    %1176 = vmatprep.subr.mxu0 0.0
    %1177 = vmatpush2.msra.mxu0 0.0
    %1178 = vmatprep.subr.mxu0 0.0
    %1179 = vmatpush2.msra.mxu0 0.0
    %1180 = vmatprep.subr.mxu0 0.0
    %1181 = vmatpush2.msra.mxu0 0.0
    %1182 = vmatprep.mubr.f32.mxu0 0.0
    %v1183 = vsub.f32 %v663, %v663
    %1184 = vmatmul.mubr.f32.gmra.mxu0 %v1183
    %v1185 = vpop.f32.mrf.mxu0
    %v1186 = vadd.f32 %v1050, %v1185
    %v1187 = vpop.f32.mrf.mxu0
    %v1188 = vadd.f32 %v1052, %v1187
    %1189 = vdwg.mxu0
    %v1190 = vand.u32 %v695, 4294901760
    %1191 = vmatprep.subr.mxu0 %v1190
    %v1192 = vand.u32 %v694, 4294901760
    %1193 = vmatpush1.msra.mxu0 %v1192
    %v1194 = vand.u32 %v693, 4294901760
    %1195 = vmatprep.subr.mxu0 %v1194
    %v1196 = vand.u32 %v692, 4294901760
    %1197 = vmatpush1.msra.mxu0 %v1196
    %v1198 = vand.u32 %v691, 4294901760
    %1199 = vmatprep.subr.mxu0 %v1198
    %v1200 = vand.u32 %v690, 4294901760
    %1201 = vmatpush1.msra.mxu0 %v1200
    %v1202 = vand.u32 %v689, 4294901760
    %1203 = vmatprep.subr.mxu0 %v1202
    %v1204 = vand.u32 %v688, 4294901760
    %1205 = vmatpush1.msra.mxu0 %v1204
    %v1206 = vand.u32 %v687, 4294901760
    %1207 = vmatprep.subr.mxu0 %v1206
    %v1208 = vand.u32 %v686, 4294901760
    %1209 = vmatpush1.msra.mxu0 %v1208
    %v1210 = vand.u32 %v685, 4294901760
    %1211 = vmatprep.subr.mxu0 %v1210
    %v1212 = vand.u32 %v684, 4294901760
    %1213 = vmatpush1.msra.mxu0 %v1212
    %v1214 = vand.u32 %v683, 4294901760
    %1215 = vmatprep.subr.mxu0 %v1214
    %v1216 = vand.u32 %v682, 4294901760
    %1217 = vmatpush1.msra.mxu0 %v1216
    %v1218 = vand.u32 %v681, 4294901760
    %1219 = vmatprep.subr.mxu0 %v1218
    %v1220 = vand.u32 %v680, 4294901760
    %1221 = vmatpush1.msra.mxu0 %v1220
    %v1222 = vand.u32 %v679, 4294901760
    %1223 = vmatprep.subr.mxu0 %v1222
    %v1224 = vand.u32 %v678, 4294901760
    %1225 = vmatpush1.msra.mxu0 %v1224
    %v1226 = vand.u32 %v677, 4294901760
    %1227 = vmatprep.subr.mxu0 %v1226
    %v1228 = vand.u32 %v676, 4294901760
    %1229 = vmatpush1.msra.mxu0 %v1228
    %v1230 = vand.u32 %v675, 4294901760
    %1231 = vmatprep.subr.mxu0 %v1230
    %v1232 = vand.u32 %v674, 4294901760
    %1233 = vmatpush1.msra.mxu0 %v1232
    %v1234 = vand.u32 %v673, 4294901760
    %1235 = vmatprep.subr.mxu0 %v1234
    %v1236 = vand.u32 %v672, 4294901760
    %1237 = vmatpush1.msra.mxu0 %v1236
    %v1238 = vand.u32 %v671, 4294901760
    %1239 = vmatprep.subr.mxu0 %v1238
    %v1240 = vand.u32 %v670, 4294901760
    %1241 = vmatpush1.msra.mxu0 %v1240
    %v1242 = vand.u32 %v669, 4294901760
    %1243 = vmatprep.subr.mxu0 %v1242
    %v1244 = vand.u32 %v668, 4294901760
    %1245 = vmatpush1.msra.mxu0 %v1244
    %v1246 = vand.u32 %v667, 4294901760
    %1247 = vmatprep.subr.mxu0 %v1246
    %v1248 = vand.u32 %v666, 4294901760
    %1249 = vmatpush1.msra.mxu0 %v1248
    %v1250 = vand.u32 %v665, 4294901760
    %1251 = vmatprep.subr.mxu0 %v1250
    %v1252 = vand.u32 %v664, 4294901760
    %1253 = vmatpush1.msra.mxu0 %v1252
    %1254 = vmatprep.subr.mxu0 0.0
    %1255 = vmatpush2.msra.mxu0 0.0
    %1256 = vmatprep.subr.mxu0 0.0
    %1257 = vmatpush2.msra.mxu0 0.0
    %1258 = vmatprep.subr.mxu0 0.0
    %1259 = vmatpush2.msra.mxu0 0.0
    %1260 = vmatprep.subr.mxu0 0.0
    %1261 = vmatpush2.msra.mxu0 0.0
    %1262 = vmatprep.subr.mxu0 0.0
    %1263 = vmatpush2.msra.mxu0 0.0
    %1264 = vmatprep.subr.mxu0 0.0
    %1265 = vmatpush2.msra.mxu0 0.0
    %1266 = vmatprep.subr.mxu0 0.0
    %1267 = vmatpush2.msra.mxu0 0.0
    %1268 = vmatprep.subr.mxu0 0.0
    %1269 = vmatpush2.msra.mxu0 0.0
    %1270 = vmatprep.subr.mxu0 0.0
    %1271 = vmatpush2.msra.mxu0 0.0
    %1272 = vmatprep.subr.mxu0 0.0
    %1273 = vmatpush2.msra.mxu0 0.0
    %1274 = vmatprep.subr.mxu0 0.0
    %1275 = vmatpush2.msra.mxu0 0.0
    %1276 = vmatprep.subr.mxu0 0.0
    %1277 = vmatpush2.msra.mxu0 0.0
    %1278 = vmatprep.subr.mxu0 0.0
    %1279 = vmatpush2.msra.mxu0 0.0
    %1280 = vmatprep.subr.mxu0 0.0
    %1281 = vmatpush2.msra.mxu0 0.0
    %1282 = vmatprep.subr.mxu0 0.0
    %1283 = vmatpush2.msra.mxu0 0.0
    %1284 = vmatprep.subr.mxu0 0.0
    %1285 = vmatpush2.msra.mxu0 0.0
    %1286 = vmatprep.mubr.f32.mxu0 0.0
    %v1287 = vsub.f32 %v663, %v663
    %v1288 = vand.u32 %v1287, 4294901760
    %1289 = vmatmul.mubr.f32.gmra.mxu0 %v1288
    %v1290 = vpop.f32.mrf.mxu0
    %v1291 = vadd.f32 %v1186, %v1290
    %v1292 = vpop.f32.mrf.mxu0
    %v1293 = vadd.f32 %v1188, %v1292
    %1294 = vdwg.mxu0
    %v1295 = vand.u32 %v695, 4294901760
    %v1296 = vsub.f32 %v695, %v1295
    %v1297 = vand.u32 %v1296, 4294901760
    %1298 = vmatprep.subr.mxu0 %v1297
    %v1299 = vand.u32 %v694, 4294901760
    %v1300 = vsub.f32 %v694, %v1299
    %v1301 = vand.u32 %v1300, 4294901760
    %1302 = vmatpush1.msra.mxu0 %v1301
    %v1303 = vand.u32 %v693, 4294901760
    %v1304 = vsub.f32 %v693, %v1303
    %v1305 = vand.u32 %v1304, 4294901760
    %1306 = vmatprep.subr.mxu0 %v1305
    %v1307 = vand.u32 %v692, 4294901760
    %v1308 = vsub.f32 %v692, %v1307
    %v1309 = vand.u32 %v1308, 4294901760
    %1310 = vmatpush1.msra.mxu0 %v1309
    %v1311 = vand.u32 %v691, 4294901760
    %v1312 = vsub.f32 %v691, %v1311
    %v1313 = vand.u32 %v1312, 4294901760
    %1314 = vmatprep.subr.mxu0 %v1313
    %v1315 = vand.u32 %v690, 4294901760
    %v1316 = vsub.f32 %v690, %v1315
    %v1317 = vand.u32 %v1316, 4294901760
    %1318 = vmatpush1.msra.mxu0 %v1317
    %v1319 = vand.u32 %v689, 4294901760
    %v1320 = vsub.f32 %v689, %v1319
    %v1321 = vand.u32 %v1320, 4294901760
    %1322 = vmatprep.subr.mxu0 %v1321
    %v1323 = vand.u32 %v688, 4294901760
    %v1324 = vsub.f32 %v688, %v1323
    %v1325 = vand.u32 %v1324, 4294901760
    %1326 = vmatpush1.msra.mxu0 %v1325
    %v1327 = vand.u32 %v687, 4294901760
    %v1328 = vsub.f32 %v687, %v1327
    %v1329 = vand.u32 %v1328, 4294901760
    %1330 = vmatprep.subr.mxu0 %v1329
    %v1331 = vand.u32 %v686, 4294901760
    %v1332 = vsub.f32 %v686, %v1331
    %v1333 = vand.u32 %v1332, 4294901760
    %1334 = vmatpush1.msra.mxu0 %v1333
    %v1335 = vand.u32 %v685, 4294901760
    %v1336 = vsub.f32 %v685, %v1335
    %v1337 = vand.u32 %v1336, 4294901760
    %1338 = vmatprep.subr.mxu0 %v1337
    %v1339 = vand.u32 %v684, 4294901760
    %v1340 = vsub.f32 %v684, %v1339
    %v1341 = vand.u32 %v1340, 4294901760
    %1342 = vmatpush1.msra.mxu0 %v1341
    %v1343 = vand.u32 %v683, 4294901760
    %v1344 = vsub.f32 %v683, %v1343
    %v1345 = vand.u32 %v1344, 4294901760
    %1346 = vmatprep.subr.mxu0 %v1345
    %v1347 = vand.u32 %v682, 4294901760
    %v1348 = vsub.f32 %v682, %v1347
    %v1349 = vand.u32 %v1348, 4294901760
    %1350 = vmatpush1.msra.mxu0 %v1349
    %v1351 = vand.u32 %v681, 4294901760
    %v1352 = vsub.f32 %v681, %v1351
    %v1353 = vand.u32 %v1352, 4294901760
    %1354 = vmatprep.subr.mxu0 %v1353
    %v1355 = vand.u32 %v680, 4294901760
    %v1356 = vsub.f32 %v680, %v1355
    %v1357 = vand.u32 %v1356, 4294901760
    %1358 = vmatpush1.msra.mxu0 %v1357
    %v1359 = vand.u32 %v679, 4294901760
    %v1360 = vsub.f32 %v679, %v1359
    %v1361 = vand.u32 %v1360, 4294901760
    %1362 = vmatprep.subr.mxu0 %v1361
    %v1363 = vand.u32 %v678, 4294901760
    %v1364 = vsub.f32 %v678, %v1363
    %v1365 = vand.u32 %v1364, 4294901760
    %1366 = vmatpush1.msra.mxu0 %v1365
    %v1367 = vand.u32 %v677, 4294901760
    %v1368 = vsub.f32 %v677, %v1367
    %v1369 = vand.u32 %v1368, 4294901760
    %1370 = vmatprep.subr.mxu0 %v1369
    %v1371 = vand.u32 %v676, 4294901760
    %v1372 = vsub.f32 %v676, %v1371
    %v1373 = vand.u32 %v1372, 4294901760
    %1374 = vmatpush1.msra.mxu0 %v1373
    %v1375 = vand.u32 %v675, 4294901760
    %v1376 = vsub.f32 %v675, %v1375
    %v1377 = vand.u32 %v1376, 4294901760
    %1378 = vmatprep.subr.mxu0 %v1377
    %v1379 = vand.u32 %v674, 4294901760
    %v1380 = vsub.f32 %v674, %v1379
    %v1381 = vand.u32 %v1380, 4294901760
    %1382 = vmatpush1.msra.mxu0 %v1381
    %v1383 = vand.u32 %v673, 4294901760
    %v1384 = vsub.f32 %v673, %v1383
    %v1385 = vand.u32 %v1384, 4294901760
    %1386 = vmatprep.subr.mxu0 %v1385
    %v1387 = vand.u32 %v672, 4294901760
    %v1388 = vsub.f32 %v672, %v1387
    %v1389 = vand.u32 %v1388, 4294901760
    %1390 = vmatpush1.msra.mxu0 %v1389
    %v1391 = vand.u32 %v671, 4294901760
    %v1392 = vsub.f32 %v671, %v1391
    %v1393 = vand.u32 %v1392, 4294901760
    %1394 = vmatprep.subr.mxu0 %v1393
    %v1395 = vand.u32 %v670, 4294901760
    %v1396 = vsub.f32 %v670, %v1395
    %v1397 = vand.u32 %v1396, 4294901760
    %1398 = vmatpush1.msra.mxu0 %v1397
    %v1399 = vand.u32 %v669, 4294901760
    %v1400 = vsub.f32 %v669, %v1399
    %v1401 = vand.u32 %v1400, 4294901760
    %1402 = vmatprep.subr.mxu0 %v1401
    %v1403 = vand.u32 %v668, 4294901760
    %v1404 = vsub.f32 %v668, %v1403
    %v1405 = vand.u32 %v1404, 4294901760
    %1406 = vmatpush1.msra.mxu0 %v1405
    %v1407 = vand.u32 %v667, 4294901760
    %v1408 = vsub.f32 %v667, %v1407
    %v1409 = vand.u32 %v1408, 4294901760
    %1410 = vmatprep.subr.mxu0 %v1409
    %v1411 = vand.u32 %v666, 4294901760
    %v1412 = vsub.f32 %v666, %v1411
    %v1413 = vand.u32 %v1412, 4294901760
    %1414 = vmatpush1.msra.mxu0 %v1413
    %v1415 = vand.u32 %v665, 4294901760
    %v1416 = vsub.f32 %v665, %v1415
    %v1417 = vand.u32 %v1416, 4294901760
    %1418 = vmatprep.subr.mxu0 %v1417
    %v1419 = vand.u32 %v664, 4294901760
    %v1420 = vsub.f32 %v664, %v1419
    %v1421 = vand.u32 %v1420, 4294901760
    %1422 = vmatpush1.msra.mxu0 %v1421
    %1423 = vmatprep.subr.mxu0 0.0
    %1424 = vmatpush2.msra.mxu0 0.0
    %1425 = vmatprep.subr.mxu0 0.0
    %1426 = vmatpush2.msra.mxu0 0.0
    %1427 = vmatprep.subr.mxu0 0.0
    %1428 = vmatpush2.msra.mxu0 0.0
    %1429 = vmatprep.subr.mxu0 0.0
    %1430 = vmatpush2.msra.mxu0 0.0
    %1431 = vmatprep.subr.mxu0 0.0
    %1432 = vmatpush2.msra.mxu0 0.0
    %1433 = vmatprep.subr.mxu0 0.0
    %1434 = vmatpush2.msra.mxu0 0.0
    %1435 = vmatprep.subr.mxu0 0.0
    %1436 = vmatpush2.msra.mxu0 0.0
    %1437 = vmatprep.subr.mxu0 0.0
    %1438 = vmatpush2.msra.mxu0 0.0
    %1439 = vmatprep.subr.mxu0 0.0
    %1440 = vmatpush2.msra.mxu0 0.0
    %1441 = vmatprep.subr.mxu0 0.0
    %1442 = vmatpush2.msra.mxu0 0.0
    %1443 = vmatprep.subr.mxu0 0.0
    %1444 = vmatpush2.msra.mxu0 0.0
    %1445 = vmatprep.subr.mxu0 0.0
    %1446 = vmatpush2.msra.mxu0 0.0
    %1447 = vmatprep.subr.mxu0 0.0
    %1448 = vmatpush2.msra.mxu0 0.0
    %1449 = vmatprep.subr.mxu0 0.0
    %1450 = vmatpush2.msra.mxu0 0.0
    %1451 = vmatprep.subr.mxu0 0.0
    %1452 = vmatpush2.msra.mxu0 0.0
    %1453 = vmatprep.subr.mxu0 0.0
    %1454 = vmatpush2.msra.mxu0 0.0
    %1455 = vmatprep.mubr.f32.mxu0 0.0
    %1456 = vmatmul.mubr.f32.gmra.mxu0 %v663
    %v1457 = vpop.f32.mrf.mxu0
    %v1458 = vadd.f32 %v1291, %v1457
    %v1459 = vpop.f32.mrf.mxu0
    %v1460 = vadd.f32 %v1293, %v1459
    %1461 = vdwg.mxu0
    %v1462 = vand.u32 %v695, 4294901760
    %1463 = vmatprep.subr.mxu0 %v1462
    %v1464 = vand.u32 %v694, 4294901760
    %1465 = vmatpush1.msra.mxu0 %v1464
    %v1466 = vand.u32 %v693, 4294901760
    %1467 = vmatprep.subr.mxu0 %v1466
    %v1468 = vand.u32 %v692, 4294901760
    %1469 = vmatpush1.msra.mxu0 %v1468
    %v1470 = vand.u32 %v691, 4294901760
    %1471 = vmatprep.subr.mxu0 %v1470
    %v1472 = vand.u32 %v690, 4294901760
    %1473 = vmatpush1.msra.mxu0 %v1472
    %v1474 = vand.u32 %v689, 4294901760
    %1475 = vmatprep.subr.mxu0 %v1474
    %v1476 = vand.u32 %v688, 4294901760
    %1477 = vmatpush1.msra.mxu0 %v1476
    %v1478 = vand.u32 %v687, 4294901760
    %1479 = vmatprep.subr.mxu0 %v1478
    %v1480 = vand.u32 %v686, 4294901760
    %1481 = vmatpush1.msra.mxu0 %v1480
    %v1482 = vand.u32 %v685, 4294901760
    %1483 = vmatprep.subr.mxu0 %v1482
    %v1484 = vand.u32 %v684, 4294901760
    %1485 = vmatpush1.msra.mxu0 %v1484
    %v1486 = vand.u32 %v683, 4294901760
    %1487 = vmatprep.subr.mxu0 %v1486
    %v1488 = vand.u32 %v682, 4294901760
    %1489 = vmatpush1.msra.mxu0 %v1488
    %v1490 = vand.u32 %v681, 4294901760
    %1491 = vmatprep.subr.mxu0 %v1490
    %v1492 = vand.u32 %v680, 4294901760
    %1493 = vmatpush1.msra.mxu0 %v1492
    %v1494 = vand.u32 %v679, 4294901760
    %1495 = vmatprep.subr.mxu0 %v1494
    %v1496 = vand.u32 %v678, 4294901760
    %1497 = vmatpush1.msra.mxu0 %v1496
    %v1498 = vand.u32 %v677, 4294901760
    %1499 = vmatprep.subr.mxu0 %v1498
    %v1500 = vand.u32 %v676, 4294901760
    %1501 = vmatpush1.msra.mxu0 %v1500
    %v1502 = vand.u32 %v675, 4294901760
    %1503 = vmatprep.subr.mxu0 %v1502
    %v1504 = vand.u32 %v674, 4294901760
    %1505 = vmatpush1.msra.mxu0 %v1504
    %v1506 = vand.u32 %v673, 4294901760
    %1507 = vmatprep.subr.mxu0 %v1506
    %v1508 = vand.u32 %v672, 4294901760
    %1509 = vmatpush1.msra.mxu0 %v1508
    %v1510 = vand.u32 %v671, 4294901760
    %1511 = vmatprep.subr.mxu0 %v1510
    %v1512 = vand.u32 %v670, 4294901760
    %1513 = vmatpush1.msra.mxu0 %v1512
    %v1514 = vand.u32 %v669, 4294901760
    %1515 = vmatprep.subr.mxu0 %v1514
    %v1516 = vand.u32 %v668, 4294901760
    %1517 = vmatpush1.msra.mxu0 %v1516
    %v1518 = vand.u32 %v667, 4294901760
    %1519 = vmatprep.subr.mxu0 %v1518
    %v1520 = vand.u32 %v666, 4294901760
    %1521 = vmatpush1.msra.mxu0 %v1520
    %v1522 = vand.u32 %v665, 4294901760
    %1523 = vmatprep.subr.mxu0 %v1522
    %v1524 = vand.u32 %v664, 4294901760
    %1525 = vmatpush1.msra.mxu0 %v1524
    %1526 = vmatprep.subr.mxu0 0.0
    %1527 = vmatpush2.msra.mxu0 0.0
    %1528 = vmatprep.subr.mxu0 0.0
    %1529 = vmatpush2.msra.mxu0 0.0
    %1530 = vmatprep.subr.mxu0 0.0
    %1531 = vmatpush2.msra.mxu0 0.0
    %1532 = vmatprep.subr.mxu0 0.0
    %1533 = vmatpush2.msra.mxu0 0.0
    %1534 = vmatprep.subr.mxu0 0.0
    %1535 = vmatpush2.msra.mxu0 0.0
    %1536 = vmatprep.subr.mxu0 0.0
    %1537 = vmatpush2.msra.mxu0 0.0
    %1538 = vmatprep.subr.mxu0 0.0
    %1539 = vmatpush2.msra.mxu0 0.0
    %1540 = vmatprep.subr.mxu0 0.0
    %1541 = vmatpush2.msra.mxu0 0.0
    %1542 = vmatprep.subr.mxu0 0.0
    %1543 = vmatpush2.msra.mxu0 0.0
    %1544 = vmatprep.subr.mxu0 0.0
    %1545 = vmatpush2.msra.mxu0 0.0
    %1546 = vmatprep.subr.mxu0 0.0
    %1547 = vmatpush2.msra.mxu0 0.0
    %1548 = vmatprep.subr.mxu0 0.0
    %1549 = vmatpush2.msra.mxu0 0.0
    %1550 = vmatprep.subr.mxu0 0.0
    %1551 = vmatpush2.msra.mxu0 0.0
    %1552 = vmatprep.subr.mxu0 0.0
    %1553 = vmatpush2.msra.mxu0 0.0
    %1554 = vmatprep.subr.mxu0 0.0
    %1555 = vmatpush2.msra.mxu0 0.0
    %1556 = vmatprep.subr.mxu0 0.0
    %1557 = vmatpush2.msra.mxu0 0.0
    %1558 = vmatprep.mubr.f32.mxu0 0.0
    %1559 = vmatmul.mubr.f32.gmra.mxu0 %v663
    %v1560 = vpop.f32.mrf.mxu0
    %v1561 = vadd.f32 %v1458, %v1560
    %v1562 = vpop.f32.mrf.mxu0
    %v1563 = vadd.f32 %v1460, %v1562
    %1564 = vdwg.mxu0
    %v1565 = vmul.f32 %v1561, 0.5
    %v1566 = vmul.f32 %v1563, 0.5
    %v1567 = vrcp.pop 1.4142135
    %v1568 = vmul.f32 %v1561, %v1567
    %v1569 = vmul.f32 %v1563, %v1567
    %v1570 = verf.f32.pop %v1568
    %v1571 = verf.f32.pop %v1569
    %v1572 = vadd.f32 %v1570, 1.0
    %v1573 = vadd.f32 %v1571, 1.0
    %v1574 = vmul.f32 %v1565, %v1572
    %v1575 = vmul.f32 %v1566, %v1573
    %v1576 = vadd.f32 %v1574, %v1575
    %1577 = vadd.xlane.f32.xlu0 %v1576
    %v1578 = vpop.xlane.xlu0 %1577
    %v1579 = vmul.f32 %v1578, 0.00625
    %v1580 = vsub.f32 %v1574, %v1579
    %v1581 = vsub.f32 %v1575, %v1579
    %v1582 = vlaneseq
    %v1583 = vand.u32 %v1582, 127
    %v1584 = vadd.s32 %v1583, 128
    %vm1585 = vcmp.lt.s32.totalorder %v1583, 160
    %vm1586 = vcmp.lt.s32.totalorder %v1584, 160
    %v1587 = vsel %vm1585, 1, 0
    %v1588 = vsel %vm1586, 1, 0
    %v1589 = vcvt.s32.f32 %v1587
    %v1590 = vcvt.s32.f32 %v1588
    %v1591 = vmul.f32 %v1580, %v1589
    %v1592 = vmul.f32 %v1581, %v1590
    %v1593 = vmul.f32 %v1591, %v1591
    %v1594 = vmul.f32 %v1592, %v1592
    %v1595 = vadd.f32 %v1593, %v1594
    %1596 = vadd.xlane.f32.xlu0 %v1595
    %v1597 = vpop.xlane.xlu0 %1596
    %v1598 = vmul.f32 %v1597, 0.00625
    %v1599 = vadd.f32 %v1598, 1e-05
    %v1600 = vrsqrt.pop %v1599
    %v1601 = vmul.f32 %v1591, %v1600
    %v1602 = vmul.f32 %v1592, %v1600
    %v1603 = vlaneseq
    %v1604 = vshrl.u32 %v1603, 7
    %v1605 = vsub.s32 1, %v1604
    %v1606 = vrot.slane %v696, %v1605
    %v1607 = vlaneseq
    %v1608 = vshrl.u32 %v1607, 7
    %v1609 = vsub.s32 5, %v1608
    %v1610 = vrot.slane %v696, %v1609
    %v1613 = vlaneseq
    %v1614 = vshrl.u32 %v1613, 7
    %v1615 = vsub.s32 1, %v1614
    %v1616 = vrot.slane %v1606, %v1615
    %v1617 = vlaneseq
    %v1618 = vshrl.u32 %v1617, 7
    %v1619 = vsub.s32 1, %v1618
    %v1620 = vrot.slane %v1610, %v1619
    %v1621 = vmul.f32 %v1601, %v1616
    %v1622 = vmul.f32 %v1602, %v1620
    %v1623 = vlaneseq
    %v1624 = vshrl.u32 %v1623, 7
    %v1625 = vsub.s32 2, %v1624
    %v1626 = vrot.slane %v696, %v1625
    %v1627 = vlaneseq
    %v1628 = vshrl.u32 %v1627, 7
    %v1629 = vsub.s32 6, %v1628
    %v1630 = vrot.slane %v696, %v1629
    %v1633 = vlaneseq
    %v1634 = vshrl.u32 %v1633, 7
    %v1635 = vsub.s32 2, %v1634
    %v1636 = vrot.slane %v1626, %v1635
    %v1637 = vlaneseq
    %v1638 = vshrl.u32 %v1637, 7
    %v1639 = vsub.s32 2, %v1638
    %v1640 = vrot.slane %v1630, %v1639
    %v1641 = vadd.f32 %v1621, %v1636
    %v1642 = vadd.f32 %v1622, %v1640
    %v1643 = vld [vmem:[#allocation7] sm:$0xff]
    %v1644 = vld [vmem:[#allocation7 + $0x8] sm:$0xff]
    %v1645 = vld [vmem:[#allocation7 + $0x10] sm:$0xff]
    %v1646 = vld [vmem:[#allocation7 + $0x18] sm:$0xff]
    %v1647 = vld [vmem:[#allocation7 + $0x20] sm:$0xff]
    %v1648 = vld [vmem:[#allocation7 + $0x28] sm:$0xff]
    %v1649 = vld [vmem:[#allocation7 + $0x30] sm:$0xff]
    %v1650 = vld [vmem:[#allocation7 + $0x38] sm:$0xff]
    %v1651 = vld [vmem:[#allocation7 + $0x40] sm:$0xff]
    %v1652 = vld [vmem:[#allocation7 + $0x48] sm:$0xff]
    %v1653 = vld [vmem:[#allocation7 + $0x50] sm:$0xff]
    %v1654 = vld [vmem:[#allocation7 + $0x58] sm:$0xff]
    %v1655 = vld [vmem:[#allocation7 + $0x60] sm:$0xff]
    %v1656 = vld [vmem:[#allocation7 + $0x68] sm:$0xff]
    %v1657 = vld [vmem:[#allocation7 + $0x70] sm:$0xff]
    %v1658 = vld [vmem:[#allocation7 + $0x78] sm:$0xff]
    %v1659 = vld [vmem:[#allocation7 + $0x80] sm:$0xff]
    %v1660 = vld [vmem:[#allocation7 + $0x88] sm:$0xff]
    %v1661 = vld [vmem:[#allocation7 + $0x90] sm:$0xff]
    %v1662 = vld [vmem:[#allocation7 + $0x98] sm:$0xff]
    %v1663 = vld [vmem:[#allocation7 + $0xa0] sm:$0xff]
    %v1664 = vld [vmem:[#allocation7 + $0xa8] sm:$0xff]
    %v1665 = vld [vmem:[#allocation7 + $0xb0] sm:$0xff]
    %v1666 = vld [vmem:[#allocation7 + $0xb8] sm:$0xff]
    %v1667 = vld [vmem:[#allocation7 + $0xc0] sm:$0xff]
    %v1668 = vld [vmem:[#allocation7 + $0xc8] sm:$0xff]
    %v1669 = vld [vmem:[#allocation7 + $0xd0] sm:$0xff]
    %v1670 = vld [vmem:[#allocation7 + $0xd8] sm:$0xff]
    %v1671 = vld [vmem:[#allocation7 + $0xe0] sm:$0xff]
    %v1672 = vld [vmem:[#allocation7 + $0xe8] sm:$0xff]
    %v1673 = vld [vmem:[#allocation7 + $0xf0] sm:$0xff]
    %v1674 = vld [vmem:[#allocation7 + $0xf8] sm:$0xff]
    %v1675 = vld [vmem:[#allocation9] sm:$0x7]
    %v1676 = vlaneseq
    %v1677 = vshrl.u32 %v1676, 7
    %v1678 = vsub.s32 0, %v1677
    %v1679 = vrot.slane %v1675, %v1678
    %1680 = vmatprep.subr.mxu0 0.0
    %v1681 = vand.u32 %v1658, 4294901760
    %1682 = vmatpush1.msra.mxu0 %v1681
    %1683 = vmatprep.subr.mxu0 0.0
    %v1684 = vand.u32 %v1657, 4294901760
    %1685 = vmatpush1.msra.mxu0 %v1684
    %1686 = vmatprep.subr.mxu0 0.0
    %v1687 = vand.u32 %v1656, 4294901760
    %1688 = vmatpush1.msra.mxu0 %v1687
    %1689 = vmatprep.subr.mxu0 0.0
    %v1690 = vand.u32 %v1655, 4294901760
    %1691 = vmatpush1.msra.mxu0 %v1690
    %1692 = vmatprep.subr.mxu0 0.0
    %v1693 = vand.u32 %v1654, 4294901760
    %1694 = vmatpush1.msra.mxu0 %v1693
    %1695 = vmatprep.subr.mxu0 0.0
    %v1696 = vand.u32 %v1653, 4294901760
    %1697 = vmatpush1.msra.mxu0 %v1696
    %1698 = vmatprep.subr.mxu0 0.0
    %v1699 = vand.u32 %v1652, 4294901760
    %1700 = vmatpush1.msra.mxu0 %v1699
    %1701 = vmatprep.subr.mxu0 0.0
    %v1702 = vand.u32 %v1651, 4294901760
    %1703 = vmatpush1.msra.mxu0 %v1702
    %1704 = vmatprep.subr.mxu0 0.0
    %v1705 = vand.u32 %v1650, 4294901760
    %1706 = vmatpush1.msra.mxu0 %v1705
    %1707 = vmatprep.subr.mxu0 0.0
    %v1708 = vand.u32 %v1649, 4294901760
    %1709 = vmatpush1.msra.mxu0 %v1708
    %1710 = vmatprep.subr.mxu0 0.0
    %v1711 = vand.u32 %v1648, 4294901760
    %1712 = vmatpush1.msra.mxu0 %v1711
    %1713 = vmatprep.subr.mxu0 0.0
    %v1714 = vand.u32 %v1647, 4294901760
    %1715 = vmatpush1.msra.mxu0 %v1714
    %1716 = vmatprep.subr.mxu0 0.0
    %v1717 = vand.u32 %v1646, 4294901760
    %1718 = vmatpush1.msra.mxu0 %v1717
    %1719 = vmatprep.subr.mxu0 0.0
    %v1720 = vand.u32 %v1645, 4294901760
    %1721 = vmatpush1.msra.mxu0 %v1720
    %1722 = vmatprep.subr.mxu0 0.0
    %v1723 = vand.u32 %v1644, 4294901760
    %1724 = vmatpush1.msra.mxu0 %v1723
    %1725 = vmatprep.subr.mxu0 0.0
    %v1726 = vand.u32 %v1643, 4294901760
    %1727 = vmatpush1.msra.mxu0 %v1726
    %1728 = vmatprep.subr.mxu0 0.0
    %v1729 = vand.u32 %v1674, 4294901760
    %1730 = vmatpush2.msra.mxu0 %v1729
    %1731 = vmatprep.subr.mxu0 0.0
    %v1732 = vand.u32 %v1673, 4294901760
    %1733 = vmatpush2.msra.mxu0 %v1732
    %1734 = vmatprep.subr.mxu0 0.0
    %v1735 = vand.u32 %v1672, 4294901760
    %1736 = vmatpush2.msra.mxu0 %v1735
    %1737 = vmatprep.subr.mxu0 0.0
    %v1738 = vand.u32 %v1671, 4294901760
    %1739 = vmatpush2.msra.mxu0 %v1738
    %1740 = vmatprep.subr.mxu0 0.0
    %v1741 = vand.u32 %v1670, 4294901760
    %1742 = vmatpush2.msra.mxu0 %v1741
    %1743 = vmatprep.subr.mxu0 0.0
    %v1744 = vand.u32 %v1669, 4294901760
    %1745 = vmatpush2.msra.mxu0 %v1744
    %1746 = vmatprep.subr.mxu0 0.0
    %v1747 = vand.u32 %v1668, 4294901760
    %1748 = vmatpush2.msra.mxu0 %v1747
    %1749 = vmatprep.subr.mxu0 0.0
    %v1750 = vand.u32 %v1667, 4294901760
    %1751 = vmatpush2.msra.mxu0 %v1750
    %1752 = vmatprep.subr.mxu0 0.0
    %v1753 = vand.u32 %v1666, 4294901760
    %1754 = vmatpush2.msra.mxu0 %v1753
    %1755 = vmatprep.subr.mxu0 0.0
    %v1756 = vand.u32 %v1665, 4294901760
    %1757 = vmatpush2.msra.mxu0 %v1756
    %1758 = vmatprep.subr.mxu0 0.0
    %v1759 = vand.u32 %v1664, 4294901760
    %1760 = vmatpush2.msra.mxu0 %v1759
    %1761 = vmatprep.subr.mxu0 0.0
    %v1762 = vand.u32 %v1663, 4294901760
    %1763 = vmatpush2.msra.mxu0 %v1762
    %1764 = vmatprep.subr.mxu0 0.0
    %v1765 = vand.u32 %v1662, 4294901760
    %1766 = vmatpush2.msra.mxu0 %v1765
    %1767 = vmatprep.subr.mxu0 0.0
    %v1768 = vand.u32 %v1661, 4294901760
    %1769 = vmatpush2.msra.mxu0 %v1768
    %1770 = vmatprep.subr.mxu0 0.0
    %v1771 = vand.u32 %v1660, 4294901760
    %1772 = vmatpush2.msra.mxu0 %v1771
    %1773 = vmatprep.subr.mxu0 0.0
    %v1774 = vand.u32 %v1659, 4294901760
    %1775 = vmatpush2.msra.mxu0 %v1774
    %v1776 = vand.u32 %v1642, 4294901760
    %v1777 = vsub.f32 %v1642, %v1776
    %v1778 = vand.u32 %v1777, 4294901760
    %v1779 = vsub.f32 %v1777, %v1778
    %v1780 = vand.u32 %v1779, 4294901760
    %1781 = vmatprep.mubr.f32.mxu0 %v1780
    %v1782 = vand.u32 %v1641, 4294901760
    %v1783 = vsub.f32 %v1641, %v1782
    %v1784 = vand.u32 %v1783, 4294901760
    %v1785 = vsub.f32 %v1783, %v1784
    %v1786 = vand.u32 %v1785, 4294901760
    %1787 = vmatmul.mubr.f32.gmra.mxu0 %v1786
    %v1788 = vpop.f32.mrf.mxu0
    %v1789 = vadd.f32 %v1679, %v1788
    %v1790 = vpop.f32.mrf.mxu0
    %1791 = vdwg.mxu0
    %1792 = vmatprep.subr.mxu0 0.0
    %v1793 = vand.u32 %v1658, 4294901760
    %v1794 = vsub.f32 %v1658, %v1793
    %v1795 = vand.u32 %v1794, 4294901760
    %v1796 = vsub.f32 %v1794, %v1795
    %v1797 = vand.u32 %v1796, 4294901760
    %1798 = vmatpush1.msra.mxu0 %v1797
    %1799 = vmatprep.subr.mxu0 0.0
    %v1800 = vand.u32 %v1657, 4294901760
    %v1801 = vsub.f32 %v1657, %v1800
    %v1802 = vand.u32 %v1801, 4294901760
    %v1803 = vsub.f32 %v1801, %v1802
    %v1804 = vand.u32 %v1803, 4294901760
    %1805 = vmatpush1.msra.mxu0 %v1804
    %1806 = vmatprep.subr.mxu0 0.0
    %v1807 = vand.u32 %v1656, 4294901760
    %v1808 = vsub.f32 %v1656, %v1807
    %v1809 = vand.u32 %v1808, 4294901760
    %v1810 = vsub.f32 %v1808, %v1809
    %v1811 = vand.u32 %v1810, 4294901760
    %1812 = vmatpush1.msra.mxu0 %v1811
    %1813 = vmatprep.subr.mxu0 0.0
    %v1814 = vand.u32 %v1655, 4294901760
    %v1815 = vsub.f32 %v1655, %v1814
    %v1816 = vand.u32 %v1815, 4294901760
    %v1817 = vsub.f32 %v1815, %v1816
    %v1818 = vand.u32 %v1817, 4294901760
    %1819 = vmatpush1.msra.mxu0 %v1818
    %1820 = vmatprep.subr.mxu0 0.0
    %v1821 = vand.u32 %v1654, 4294901760
    %v1822 = vsub.f32 %v1654, %v1821
    %v1823 = vand.u32 %v1822, 4294901760
    %v1824 = vsub.f32 %v1822, %v1823
    %v1825 = vand.u32 %v1824, 4294901760
    %1826 = vmatpush1.msra.mxu0 %v1825
    %1827 = vmatprep.subr.mxu0 0.0
    %v1828 = vand.u32 %v1653, 4294901760
    %v1829 = vsub.f32 %v1653, %v1828
    %v1830 = vand.u32 %v1829, 4294901760
    %v1831 = vsub.f32 %v1829, %v1830
    %v1832 = vand.u32 %v1831, 4294901760
    %1833 = vmatpush1.msra.mxu0 %v1832
    %1834 = vmatprep.subr.mxu0 0.0
    %v1835 = vand.u32 %v1652, 4294901760
    %v1836 = vsub.f32 %v1652, %v1835
    %v1837 = vand.u32 %v1836, 4294901760
    %v1838 = vsub.f32 %v1836, %v1837
    %v1839 = vand.u32 %v1838, 4294901760
    %1840 = vmatpush1.msra.mxu0 %v1839
    %1841 = vmatprep.subr.mxu0 0.0
    %v1842 = vand.u32 %v1651, 4294901760
    %v1843 = vsub.f32 %v1651, %v1842
    %v1844 = vand.u32 %v1843, 4294901760
    %v1845 = vsub.f32 %v1843, %v1844
    %v1846 = vand.u32 %v1845, 4294901760
    %1847 = vmatpush1.msra.mxu0 %v1846
    %1848 = vmatprep.subr.mxu0 0.0
    %v1849 = vand.u32 %v1650, 4294901760
    %v1850 = vsub.f32 %v1650, %v1849
    %v1851 = vand.u32 %v1850, 4294901760
    %v1852 = vsub.f32 %v1850, %v1851
    %v1853 = vand.u32 %v1852, 4294901760
    %1854 = vmatpush1.msra.mxu0 %v1853
    %1855 = vmatprep.subr.mxu0 0.0
    %v1856 = vand.u32 %v1649, 4294901760
    %v1857 = vsub.f32 %v1649, %v1856
    %v1858 = vand.u32 %v1857, 4294901760
    %v1859 = vsub.f32 %v1857, %v1858
    %v1860 = vand.u32 %v1859, 4294901760
    %1861 = vmatpush1.msra.mxu0 %v1860
    %1862 = vmatprep.subr.mxu0 0.0
    %v1863 = vand.u32 %v1648, 4294901760
    %v1864 = vsub.f32 %v1648, %v1863
    %v1865 = vand.u32 %v1864, 4294901760
    %v1866 = vsub.f32 %v1864, %v1865
    %v1867 = vand.u32 %v1866, 4294901760
    %1868 = vmatpush1.msra.mxu0 %v1867
    %1869 = vmatprep.subr.mxu0 0.0
    %v1870 = vand.u32 %v1647, 4294901760
    %v1871 = vsub.f32 %v1647, %v1870
    %v1872 = vand.u32 %v1871, 4294901760
    %v1873 = vsub.f32 %v1871, %v1872
    %v1874 = vand.u32 %v1873, 4294901760
    %1875 = vmatpush1.msra.mxu0 %v1874
    %1876 = vmatprep.subr.mxu0 0.0
    %v1877 = vand.u32 %v1646, 4294901760
    %v1878 = vsub.f32 %v1646, %v1877
    %v1879 = vand.u32 %v1878, 4294901760
    %v1880 = vsub.f32 %v1878, %v1879
    %v1881 = vand.u32 %v1880, 4294901760
    %1882 = vmatpush1.msra.mxu0 %v1881
    %1883 = vmatprep.subr.mxu0 0.0
    %v1884 = vand.u32 %v1645, 4294901760
    %v1885 = vsub.f32 %v1645, %v1884
    %v1886 = vand.u32 %v1885, 4294901760
    %v1887 = vsub.f32 %v1885, %v1886
    %v1888 = vand.u32 %v1887, 4294901760
    %1889 = vmatpush1.msra.mxu0 %v1888
    %1890 = vmatprep.subr.mxu0 0.0
    %v1891 = vand.u32 %v1644, 4294901760
    %v1892 = vsub.f32 %v1644, %v1891
    %v1893 = vand.u32 %v1892, 4294901760
    %v1894 = vsub.f32 %v1892, %v1893
    %v1895 = vand.u32 %v1894, 4294901760
    %1896 = vmatpush1.msra.mxu0 %v1895
    %1897 = vmatprep.subr.mxu0 0.0
    %v1898 = vand.u32 %v1643, 4294901760
    %v1899 = vsub.f32 %v1643, %v1898
    %v1900 = vand.u32 %v1899, 4294901760
    %v1901 = vsub.f32 %v1899, %v1900
    %v1902 = vand.u32 %v1901, 4294901760
    %1903 = vmatpush1.msra.mxu0 %v1902
    %1904 = vmatprep.subr.mxu0 0.0
    %v1905 = vand.u32 %v1674, 4294901760
    %v1906 = vsub.f32 %v1674, %v1905
    %v1907 = vand.u32 %v1906, 4294901760
    %v1908 = vsub.f32 %v1906, %v1907
    %v1909 = vand.u32 %v1908, 4294901760
    %1910 = vmatpush2.msra.mxu0 %v1909
    %1911 = vmatprep.subr.mxu0 0.0
    %v1912 = vand.u32 %v1673, 4294901760
    %v1913 = vsub.f32 %v1673, %v1912
    %v1914 = vand.u32 %v1913, 4294901760
    %v1915 = vsub.f32 %v1913, %v1914
    %v1916 = vand.u32 %v1915, 4294901760
    %1917 = vmatpush2.msra.mxu0 %v1916
    %1918 = vmatprep.subr.mxu0 0.0
    %v1919 = vand.u32 %v1672, 4294901760
    %v1920 = vsub.f32 %v1672, %v1919
    %v1921 = vand.u32 %v1920, 4294901760
    %v1922 = vsub.f32 %v1920, %v1921
    %v1923 = vand.u32 %v1922, 4294901760
    %1924 = vmatpush2.msra.mxu0 %v1923
    %1925 = vmatprep.subr.mxu0 0.0
    %v1926 = vand.u32 %v1671, 4294901760
    %v1927 = vsub.f32 %v1671, %v1926
    %v1928 = vand.u32 %v1927, 4294901760
    %v1929 = vsub.f32 %v1927, %v1928
    %v1930 = vand.u32 %v1929, 4294901760
    %1931 = vmatpush2.msra.mxu0 %v1930
    %1932 = vmatprep.subr.mxu0 0.0
    %v1933 = vand.u32 %v1670, 4294901760
    %v1934 = vsub.f32 %v1670, %v1933
    %v1935 = vand.u32 %v1934, 4294901760
    %v1936 = vsub.f32 %v1934, %v1935
    %v1937 = vand.u32 %v1936, 4294901760
    %1938 = vmatpush2.msra.mxu0 %v1937
    %1939 = vmatprep.subr.mxu0 0.0
    %v1940 = vand.u32 %v1669, 4294901760
    %v1941 = vsub.f32 %v1669, %v1940
    %v1942 = vand.u32 %v1941, 4294901760
    %v1943 = vsub.f32 %v1941, %v1942
    %v1944 = vand.u32 %v1943, 4294901760
    %1945 = vmatpush2.msra.mxu0 %v1944
    %1946 = vmatprep.subr.mxu0 0.0
    %v1947 = vand.u32 %v1668, 4294901760
    %v1948 = vsub.f32 %v1668, %v1947
    %v1949 = vand.u32 %v1948, 4294901760
    %v1950 = vsub.f32 %v1948, %v1949
    %v1951 = vand.u32 %v1950, 4294901760
    %1952 = vmatpush2.msra.mxu0 %v1951
    %1953 = vmatprep.subr.mxu0 0.0
    %v1954 = vand.u32 %v1667, 4294901760
    %v1955 = vsub.f32 %v1667, %v1954
    %v1956 = vand.u32 %v1955, 4294901760
    %v1957 = vsub.f32 %v1955, %v1956
    %v1958 = vand.u32 %v1957, 4294901760
    %1959 = vmatpush2.msra.mxu0 %v1958
    %1960 = vmatprep.subr.mxu0 0.0
    %v1961 = vand.u32 %v1666, 4294901760
    %v1962 = vsub.f32 %v1666, %v1961
    %v1963 = vand.u32 %v1962, 4294901760
    %v1964 = vsub.f32 %v1962, %v1963
    %v1965 = vand.u32 %v1964, 4294901760
    %1966 = vmatpush2.msra.mxu0 %v1965
    %1967 = vmatprep.subr.mxu0 0.0
    %v1968 = vand.u32 %v1665, 4294901760
    %v1969 = vsub.f32 %v1665, %v1968
    %v1970 = vand.u32 %v1969, 4294901760
    %v1971 = vsub.f32 %v1969, %v1970
    %v1972 = vand.u32 %v1971, 4294901760
    %1973 = vmatpush2.msra.mxu0 %v1972
    %1974 = vmatprep.subr.mxu0 0.0
    %v1975 = vand.u32 %v1664, 4294901760
    %v1976 = vsub.f32 %v1664, %v1975
    %v1977 = vand.u32 %v1976, 4294901760
    %v1978 = vsub.f32 %v1976, %v1977
    %v1979 = vand.u32 %v1978, 4294901760
    %1980 = vmatpush2.msra.mxu0 %v1979
    %1981 = vmatprep.subr.mxu0 0.0
    %v1982 = vand.u32 %v1663, 4294901760
    %v1983 = vsub.f32 %v1663, %v1982
    %v1984 = vand.u32 %v1983, 4294901760
    %v1985 = vsub.f32 %v1983, %v1984
    %v1986 = vand.u32 %v1985, 4294901760
    %1987 = vmatpush2.msra.mxu0 %v1986
    %1988 = vmatprep.subr.mxu0 0.0
    %v1989 = vand.u32 %v1662, 4294901760
    %v1990 = vsub.f32 %v1662, %v1989
    %v1991 = vand.u32 %v1990, 4294901760
    %v1992 = vsub.f32 %v1990, %v1991
    %v1993 = vand.u32 %v1992, 4294901760
    %1994 = vmatpush2.msra.mxu0 %v1993
    %1995 = vmatprep.subr.mxu0 0.0
    %v1996 = vand.u32 %v1661, 4294901760
    %v1997 = vsub.f32 %v1661, %v1996
    %v1998 = vand.u32 %v1997, 4294901760
    %v1999 = vsub.f32 %v1997, %v1998
    %v2000 = vand.u32 %v1999, 4294901760
    %2001 = vmatpush2.msra.mxu0 %v2000
    %2002 = vmatprep.subr.mxu0 0.0
    %v2003 = vand.u32 %v1660, 4294901760
    %v2004 = vsub.f32 %v1660, %v2003
    %v2005 = vand.u32 %v2004, 4294901760
    %v2006 = vsub.f32 %v2004, %v2005
    %v2007 = vand.u32 %v2006, 4294901760
    %2008 = vmatpush2.msra.mxu0 %v2007
    %2009 = vmatprep.subr.mxu0 0.0
    %v2010 = vand.u32 %v1659, 4294901760
    %v2011 = vsub.f32 %v1659, %v2010
    %v2012 = vand.u32 %v2011, 4294901760
    %v2013 = vsub.f32 %v2011, %v2012
    %v2014 = vand.u32 %v2013, 4294901760
    %2015 = vmatpush2.msra.mxu0 %v2014
    %v2016 = vand.u32 %v1642, 4294901760
    %2017 = vmatprep.mubr.f32.mxu0 %v2016
    %v2018 = vand.u32 %v1641, 4294901760
    %2019 = vmatmul.mubr.f32.gmra.mxu0 %v2018
    %v2020 = vpop.f32.mrf.mxu0
    %v2021 = vadd.f32 %v1789, %v2020
    %v2022 = vpop.f32.mrf.mxu0
    %2023 = vdwg.mxu0
    %2024 = vmatprep.subr.mxu0 0.0
    %v2025 = vand.u32 %v1658, 4294901760
    %v2026 = vsub.f32 %v1658, %v2025
    %2027 = vmatpush1.msra.mxu0 %v2026
    %2028 = vmatprep.subr.mxu0 0.0
    %v2029 = vand.u32 %v1657, 4294901760
    %v2030 = vsub.f32 %v1657, %v2029
    %2031 = vmatpush1.msra.mxu0 %v2030
    %2032 = vmatprep.subr.mxu0 0.0
    %v2033 = vand.u32 %v1656, 4294901760
    %v2034 = vsub.f32 %v1656, %v2033
    %2035 = vmatpush1.msra.mxu0 %v2034
    %2036 = vmatprep.subr.mxu0 0.0
    %v2037 = vand.u32 %v1655, 4294901760
    %v2038 = vsub.f32 %v1655, %v2037
    %2039 = vmatpush1.msra.mxu0 %v2038
    %2040 = vmatprep.subr.mxu0 0.0
    %v2041 = vand.u32 %v1654, 4294901760
    %v2042 = vsub.f32 %v1654, %v2041
    %2043 = vmatpush1.msra.mxu0 %v2042
    %2044 = vmatprep.subr.mxu0 0.0
    %v2045 = vand.u32 %v1653, 4294901760
    %v2046 = vsub.f32 %v1653, %v2045
    %2047 = vmatpush1.msra.mxu0 %v2046
    %2048 = vmatprep.subr.mxu0 0.0
    %v2049 = vand.u32 %v1652, 4294901760
    %v2050 = vsub.f32 %v1652, %v2049
    %2051 = vmatpush1.msra.mxu0 %v2050
    %2052 = vmatprep.subr.mxu0 0.0
    %v2053 = vand.u32 %v1651, 4294901760
    %v2054 = vsub.f32 %v1651, %v2053
    %2055 = vmatpush1.msra.mxu0 %v2054
    %2056 = vmatprep.subr.mxu0 0.0
    %v2057 = vand.u32 %v1650, 4294901760
    %v2058 = vsub.f32 %v1650, %v2057
    %2059 = vmatpush1.msra.mxu0 %v2058
    %2060 = vmatprep.subr.mxu0 0.0
    %v2061 = vand.u32 %v1649, 4294901760
    %v2062 = vsub.f32 %v1649, %v2061
    %2063 = vmatpush1.msra.mxu0 %v2062
    %2064 = vmatprep.subr.mxu0 0.0
    %v2065 = vand.u32 %v1648, 4294901760
    %v2066 = vsub.f32 %v1648, %v2065
    %2067 = vmatpush1.msra.mxu0 %v2066
    %2068 = vmatprep.subr.mxu0 0.0
    %v2069 = vand.u32 %v1647, 4294901760
    %v2070 = vsub.f32 %v1647, %v2069
    %2071 = vmatpush1.msra.mxu0 %v2070
    %2072 = vmatprep.subr.mxu0 0.0
    %v2073 = vand.u32 %v1646, 4294901760
    %v2074 = vsub.f32 %v1646, %v2073
    %2075 = vmatpush1.msra.mxu0 %v2074
    %2076 = vmatprep.subr.mxu0 0.0
    %v2077 = vand.u32 %v1645, 4294901760
    %v2078 = vsub.f32 %v1645, %v2077
    %2079 = vmatpush1.msra.mxu0 %v2078
    %2080 = vmatprep.subr.mxu0 0.0
    %v2081 = vand.u32 %v1644, 4294901760
    %v2082 = vsub.f32 %v1644, %v2081
    %2083 = vmatpush1.msra.mxu0 %v2082
    %2084 = vmatprep.subr.mxu0 0.0
    %v2085 = vand.u32 %v1643, 4294901760
    %v2086 = vsub.f32 %v1643, %v2085
    %2087 = vmatpush1.msra.mxu0 %v2086
    %2088 = vmatprep.subr.mxu0 0.0
    %v2089 = vand.u32 %v1674, 4294901760
    %v2090 = vsub.f32 %v1674, %v2089
    %2091 = vmatpush2.msra.mxu0 %v2090
    %2092 = vmatprep.subr.mxu0 0.0
    %v2093 = vand.u32 %v1673, 4294901760
    %v2094 = vsub.f32 %v1673, %v2093
    %2095 = vmatpush2.msra.mxu0 %v2094
    %2096 = vmatprep.subr.mxu0 0.0
    %v2097 = vand.u32 %v1672, 4294901760
    %v2098 = vsub.f32 %v1672, %v2097
    %2099 = vmatpush2.msra.mxu0 %v2098
    %2100 = vmatprep.subr.mxu0 0.0
    %v2101 = vand.u32 %v1671, 4294901760
    %v2102 = vsub.f32 %v1671, %v2101
    %2103 = vmatpush2.msra.mxu0 %v2102
    %2104 = vmatprep.subr.mxu0 0.0
    %v2105 = vand.u32 %v1670, 4294901760
    %v2106 = vsub.f32 %v1670, %v2105
    %2107 = vmatpush2.msra.mxu0 %v2106
    %2108 = vmatprep.subr.mxu0 0.0
    %v2109 = vand.u32 %v1669, 4294901760
    %v2110 = vsub.f32 %v1669, %v2109
    %2111 = vmatpush2.msra.mxu0 %v2110
    %2112 = vmatprep.subr.mxu0 0.0
    %v2113 = vand.u32 %v1668, 4294901760
    %v2114 = vsub.f32 %v1668, %v2113
    %2115 = vmatpush2.msra.mxu0 %v2114
    %2116 = vmatprep.subr.mxu0 0.0
    %v2117 = vand.u32 %v1667, 4294901760
    %v2118 = vsub.f32 %v1667, %v2117
    %2119 = vmatpush2.msra.mxu0 %v2118
    %2120 = vmatprep.subr.mxu0 0.0
    %v2121 = vand.u32 %v1666, 4294901760
    %v2122 = vsub.f32 %v1666, %v2121
    %2123 = vmatpush2.msra.mxu0 %v2122
    %2124 = vmatprep.subr.mxu0 0.0
    %v2125 = vand.u32 %v1665, 4294901760
    %v2126 = vsub.f32 %v1665, %v2125
    %2127 = vmatpush2.msra.mxu0 %v2126
    %2128 = vmatprep.subr.mxu0 0.0
    %v2129 = vand.u32 %v1664, 4294901760
    %v2130 = vsub.f32 %v1664, %v2129
    %2131 = vmatpush2.msra.mxu0 %v2130
    %2132 = vmatprep.subr.mxu0 0.0
    %v2133 = vand.u32 %v1663, 4294901760
    %v2134 = vsub.f32 %v1663, %v2133
    %2135 = vmatpush2.msra.mxu0 %v2134
    %2136 = vmatprep.subr.mxu0 0.0
    %v2137 = vand.u32 %v1662, 4294901760
    %v2138 = vsub.f32 %v1662, %v2137
    %2139 = vmatpush2.msra.mxu0 %v2138
    %2140 = vmatprep.subr.mxu0 0.0
    %v2141 = vand.u32 %v1661, 4294901760
    %v2142 = vsub.f32 %v1661, %v2141
    %2143 = vmatpush2.msra.mxu0 %v2142
    %2144 = vmatprep.subr.mxu0 0.0
    %v2145 = vand.u32 %v1660, 4294901760
    %v2146 = vsub.f32 %v1660, %v2145
    %2147 = vmatpush2.msra.mxu0 %v2146
    %2148 = vmatprep.subr.mxu0 0.0
    %v2149 = vand.u32 %v1659, 4294901760
    %v2150 = vsub.f32 %v1659, %v2149
    %2151 = vmatpush2.msra.mxu0 %v2150
    %v2152 = vand.u32 %v1642, 4294901760
    %v2153 = vsub.f32 %v1642, %v2152
    %2154 = vmatprep.mubr.f32.mxu0 %v2153
    %v2155 = vand.u32 %v1641, 4294901760
    %v2156 = vsub.f32 %v1641, %v2155
    %2157 = vmatmul.mubr.f32.gmra.mxu0 %v2156
    %v2158 = vpop.f32.mrf.mxu0
    %v2159 = vadd.f32 %v2021, %v2158
    %v2160 = vpop.f32.mrf.mxu0
    %2161 = vdwg.mxu0
    %2162 = vmatprep.subr.mxu0 0.0
    %v2163 = vand.u32 %v1658, 4294901760
    %2164 = vmatpush1.msra.mxu0 %v2163
    %2165 = vmatprep.subr.mxu0 0.0
    %v2166 = vand.u32 %v1657, 4294901760
    %2167 = vmatpush1.msra.mxu0 %v2166
    %2168 = vmatprep.subr.mxu0 0.0
    %v2169 = vand.u32 %v1656, 4294901760
    %2170 = vmatpush1.msra.mxu0 %v2169
    %2171 = vmatprep.subr.mxu0 0.0
    %v2172 = vand.u32 %v1655, 4294901760
    %2173 = vmatpush1.msra.mxu0 %v2172
    %2174 = vmatprep.subr.mxu0 0.0
    %v2175 = vand.u32 %v1654, 4294901760
    %2176 = vmatpush1.msra.mxu0 %v2175
    %2177 = vmatprep.subr.mxu0 0.0
    %v2178 = vand.u32 %v1653, 4294901760
    %2179 = vmatpush1.msra.mxu0 %v2178
    %2180 = vmatprep.subr.mxu0 0.0
    %v2181 = vand.u32 %v1652, 4294901760
    %2182 = vmatpush1.msra.mxu0 %v2181
    %2183 = vmatprep.subr.mxu0 0.0
    %v2184 = vand.u32 %v1651, 4294901760
    %2185 = vmatpush1.msra.mxu0 %v2184
    %2186 = vmatprep.subr.mxu0 0.0
    %v2187 = vand.u32 %v1650, 4294901760
    %2188 = vmatpush1.msra.mxu0 %v2187
    %2189 = vmatprep.subr.mxu0 0.0
    %v2190 = vand.u32 %v1649, 4294901760
    %2191 = vmatpush1.msra.mxu0 %v2190
    %2192 = vmatprep.subr.mxu0 0.0
    %v2193 = vand.u32 %v1648, 4294901760
    %2194 = vmatpush1.msra.mxu0 %v2193
    %2195 = vmatprep.subr.mxu0 0.0
    %v2196 = vand.u32 %v1647, 4294901760
    %2197 = vmatpush1.msra.mxu0 %v2196
    %2198 = vmatprep.subr.mxu0 0.0
    %v2199 = vand.u32 %v1646, 4294901760
    %2200 = vmatpush1.msra.mxu0 %v2199
    %2201 = vmatprep.subr.mxu0 0.0
    %v2202 = vand.u32 %v1645, 4294901760
    %2203 = vmatpush1.msra.mxu0 %v2202
    %2204 = vmatprep.subr.mxu0 0.0
    %v2205 = vand.u32 %v1644, 4294901760
    %2206 = vmatpush1.msra.mxu0 %v2205
    %2207 = vmatprep.subr.mxu0 0.0
    %v2208 = vand.u32 %v1643, 4294901760
    %2209 = vmatpush1.msra.mxu0 %v2208
    %2210 = vmatprep.subr.mxu0 0.0
    %v2211 = vand.u32 %v1674, 4294901760
    %2212 = vmatpush2.msra.mxu0 %v2211
    %2213 = vmatprep.subr.mxu0 0.0
    %v2214 = vand.u32 %v1673, 4294901760
    %2215 = vmatpush2.msra.mxu0 %v2214
    %2216 = vmatprep.subr.mxu0 0.0
    %v2217 = vand.u32 %v1672, 4294901760
    %2218 = vmatpush2.msra.mxu0 %v2217
    %2219 = vmatprep.subr.mxu0 0.0
    %v2220 = vand.u32 %v1671, 4294901760
    %2221 = vmatpush2.msra.mxu0 %v2220
    %2222 = vmatprep.subr.mxu0 0.0
    %v2223 = vand.u32 %v1670, 4294901760
    %2224 = vmatpush2.msra.mxu0 %v2223
    %2225 = vmatprep.subr.mxu0 0.0
    %v2226 = vand.u32 %v1669, 4294901760
    %2227 = vmatpush2.msra.mxu0 %v2226
    %2228 = vmatprep.subr.mxu0 0.0
    %v2229 = vand.u32 %v1668, 4294901760
    %2230 = vmatpush2.msra.mxu0 %v2229
    %2231 = vmatprep.subr.mxu0 0.0
    %v2232 = vand.u32 %v1667, 4294901760
    %2233 = vmatpush2.msra.mxu0 %v2232
    %2234 = vmatprep.subr.mxu0 0.0
    %v2235 = vand.u32 %v1666, 4294901760
    %2236 = vmatpush2.msra.mxu0 %v2235
    %2237 = vmatprep.subr.mxu0 0.0
    %v2238 = vand.u32 %v1665, 4294901760
    %2239 = vmatpush2.msra.mxu0 %v2238
    %2240 = vmatprep.subr.mxu0 0.0
    %v2241 = vand.u32 %v1664, 4294901760
    %2242 = vmatpush2.msra.mxu0 %v2241
    %2243 = vmatprep.subr.mxu0 0.0
    %v2244 = vand.u32 %v1663, 4294901760
    %2245 = vmatpush2.msra.mxu0 %v2244
    %2246 = vmatprep.subr.mxu0 0.0
    %v2247 = vand.u32 %v1662, 4294901760
    %2248 = vmatpush2.msra.mxu0 %v2247
    %2249 = vmatprep.subr.mxu0 0.0
    %v2250 = vand.u32 %v1661, 4294901760
    %2251 = vmatpush2.msra.mxu0 %v2250
    %2252 = vmatprep.subr.mxu0 0.0
    %v2253 = vand.u32 %v1660, 4294901760
    %2254 = vmatpush2.msra.mxu0 %v2253
    %2255 = vmatprep.subr.mxu0 0.0
    %v2256 = vand.u32 %v1659, 4294901760
    %2257 = vmatpush2.msra.mxu0 %v2256
    %v2258 = vand.u32 %v1642, 4294901760
    %v2259 = vsub.f32 %v1642, %v2258
    %v2260 = vand.u32 %v2259, 4294901760
    %2261 = vmatprep.mubr.f32.mxu0 %v2260
    %v2262 = vand.u32 %v1641, 4294901760
    %v2263 = vsub.f32 %v1641, %v2262
    %v2264 = vand.u32 %v2263, 4294901760
    %2265 = vmatmul.mubr.f32.gmra.mxu0 %v2264
    %v2266 = vpop.f32.mrf.mxu0
    %v2267 = vadd.f32 %v2159, %v2266
    %v2268 = vpop.f32.mrf.mxu0
    %2269 = vdwg.mxu0
    %2270 = vmatprep.subr.mxu0 0.0
    %v2271 = vand.u32 %v1658, 4294901760
    %v2272 = vsub.f32 %v1658, %v2271
    %v2273 = vand.u32 %v2272, 4294901760
    %2274 = vmatpush1.msra.mxu0 %v2273
    %2275 = vmatprep.subr.mxu0 0.0
    %v2276 = vand.u32 %v1657, 4294901760
    %v2277 = vsub.f32 %v1657, %v2276
    %v2278 = vand.u32 %v2277, 4294901760
    %2279 = vmatpush1.msra.mxu0 %v2278
    %2280 = vmatprep.subr.mxu0 0.0
    %v2281 = vand.u32 %v1656, 4294901760
    %v2282 = vsub.f32 %v1656, %v2281
    %v2283 = vand.u32 %v2282, 4294901760
    %2284 = vmatpush1.msra.mxu0 %v2283
    %2285 = vmatprep.subr.mxu0 0.0
    %v2286 = vand.u32 %v1655, 4294901760
    %v2287 = vsub.f32 %v1655, %v2286
    %v2288 = vand.u32 %v2287, 4294901760
    %2289 = vmatpush1.msra.mxu0 %v2288
    %2290 = vmatprep.subr.mxu0 0.0
    %v2291 = vand.u32 %v1654, 4294901760
    %v2292 = vsub.f32 %v1654, %v2291
    %v2293 = vand.u32 %v2292, 4294901760
    %2294 = vmatpush1.msra.mxu0 %v2293
    %2295 = vmatprep.subr.mxu0 0.0
    %v2296 = vand.u32 %v1653, 4294901760
    %v2297 = vsub.f32 %v1653, %v2296
    %v2298 = vand.u32 %v2297, 4294901760
    %2299 = vmatpush1.msra.mxu0 %v2298
    %2300 = vmatprep.subr.mxu0 0.0
    %v2301 = vand.u32 %v1652, 4294901760
    %v2302 = vsub.f32 %v1652, %v2301
    %v2303 = vand.u32 %v2302, 4294901760
    %2304 = vmatpush1.msra.mxu0 %v2303
    %2305 = vmatprep.subr.mxu0 0.0
    %v2306 = vand.u32 %v1651, 4294901760
    %v2307 = vsub.f32 %v1651, %v2306
    %v2308 = vand.u32 %v2307, 4294901760
    %2309 = vmatpush1.msra.mxu0 %v2308
    %2310 = vmatprep.subr.mxu0 0.0
    %v2311 = vand.u32 %v1650, 4294901760
    %v2312 = vsub.f32 %v1650, %v2311
    %v2313 = vand.u32 %v2312, 4294901760
    %2314 = vmatpush1.msra.mxu0 %v2313
    %2315 = vmatprep.subr.mxu0 0.0
    %v2316 = vand.u32 %v1649, 4294901760
    %v2317 = vsub.f32 %v1649, %v2316
    %v2318 = vand.u32 %v2317, 4294901760
    %2319 = vmatpush1.msra.mxu0 %v2318
    %2320 = vmatprep.subr.mxu0 0.0
    %v2321 = vand.u32 %v1648, 4294901760
    %v2322 = vsub.f32 %v1648, %v2321
    %v2323 = vand.u32 %v2322, 4294901760
    %2324 = vmatpush1.msra.mxu0 %v2323
    %2325 = vmatprep.subr.mxu0 0.0
    %v2326 = vand.u32 %v1647, 4294901760
    %v2327 = vsub.f32 %v1647, %v2326
    %v2328 = vand.u32 %v2327, 4294901760
    %2329 = vmatpush1.msra.mxu0 %v2328
    %2330 = vmatprep.subr.mxu0 0.0
    %v2331 = vand.u32 %v1646, 4294901760
    %v2332 = vsub.f32 %v1646, %v2331
    %v2333 = vand.u32 %v2332, 4294901760
    %2334 = vmatpush1.msra.mxu0 %v2333
    %2335 = vmatprep.subr.mxu0 0.0
    %v2336 = vand.u32 %v1645, 4294901760
    %v2337 = vsub.f32 %v1645, %v2336
    %v2338 = vand.u32 %v2337, 4294901760
    %2339 = vmatpush1.msra.mxu0 %v2338
    %2340 = vmatprep.subr.mxu0 0.0
    %v2341 = vand.u32 %v1644, 4294901760
    %v2342 = vsub.f32 %v1644, %v2341
    %v2343 = vand.u32 %v2342, 4294901760
    %2344 = vmatpush1.msra.mxu0 %v2343
    %2345 = vmatprep.subr.mxu0 0.0
    %v2346 = vand.u32 %v1643, 4294901760
    %v2347 = vsub.f32 %v1643, %v2346
    %v2348 = vand.u32 %v2347, 4294901760
    %2349 = vmatpush1.msra.mxu0 %v2348
    %2350 = vmatprep.subr.mxu0 0.0
    %v2351 = vand.u32 %v1674, 4294901760
    %v2352 = vsub.f32 %v1674, %v2351
    %v2353 = vand.u32 %v2352, 4294901760
    %2354 = vmatpush2.msra.mxu0 %v2353
    %2355 = vmatprep.subr.mxu0 0.0
    %v2356 = vand.u32 %v1673, 4294901760
    %v2357 = vsub.f32 %v1673, %v2356
    %v2358 = vand.u32 %v2357, 4294901760
    %2359 = vmatpush2.msra.mxu0 %v2358
    %2360 = vmatprep.subr.mxu0 0.0
    %v2361 = vand.u32 %v1672, 4294901760
    %v2362 = vsub.f32 %v1672, %v2361
    %v2363 = vand.u32 %v2362, 4294901760
    %2364 = vmatpush2.msra.mxu0 %v2363
    %2365 = vmatprep.subr.mxu0 0.0
    %v2366 = vand.u32 %v1671, 4294901760
    %v2367 = vsub.f32 %v1671, %v2366
    %v2368 = vand.u32 %v2367, 4294901760
    %2369 = vmatpush2.msra.mxu0 %v2368
    %2370 = vmatprep.subr.mxu0 0.0
    %v2371 = vand.u32 %v1670, 4294901760
    %v2372 = vsub.f32 %v1670, %v2371
    %v2373 = vand.u32 %v2372, 4294901760
    %2374 = vmatpush2.msra.mxu0 %v2373
    %2375 = vmatprep.subr.mxu0 0.0
    %v2376 = vand.u32 %v1669, 4294901760
    %v2377 = vsub.f32 %v1669, %v2376
    %v2378 = vand.u32 %v2377, 4294901760
    %2379 = vmatpush2.msra.mxu0 %v2378
    %2380 = vmatprep.subr.mxu0 0.0
    %v2381 = vand.u32 %v1668, 4294901760
    %v2382 = vsub.f32 %v1668, %v2381
    %v2383 = vand.u32 %v2382, 4294901760
    %2384 = vmatpush2.msra.mxu0 %v2383
    %2385 = vmatprep.subr.mxu0 0.0
    %v2386 = vand.u32 %v1667, 4294901760
    %v2387 = vsub.f32 %v1667, %v2386
    %v2388 = vand.u32 %v2387, 4294901760
    %2389 = vmatpush2.msra.mxu0 %v2388
    %2390 = vmatprep.subr.mxu0 0.0
    %v2391 = vand.u32 %v1666, 4294901760
    %v2392 = vsub.f32 %v1666, %v2391
    %v2393 = vand.u32 %v2392, 4294901760
    %2394 = vmatpush2.msra.mxu0 %v2393
    %2395 = vmatprep.subr.mxu0 0.0
    %v2396 = vand.u32 %v1665, 4294901760
    %v2397 = vsub.f32 %v1665, %v2396
    %v2398 = vand.u32 %v2397, 4294901760
    %2399 = vmatpush2.msra.mxu0 %v2398
    %2400 = vmatprep.subr.mxu0 0.0
    %v2401 = vand.u32 %v1664, 4294901760
    %v2402 = vsub.f32 %v1664, %v2401
    %v2403 = vand.u32 %v2402, 4294901760
    %2404 = vmatpush2.msra.mxu0 %v2403
    %2405 = vmatprep.subr.mxu0 0.0
    %v2406 = vand.u32 %v1663, 4294901760
    %v2407 = vsub.f32 %v1663, %v2406
    %v2408 = vand.u32 %v2407, 4294901760
    %2409 = vmatpush2.msra.mxu0 %v2408
    %2410 = vmatprep.subr.mxu0 0.0
    %v2411 = vand.u32 %v1662, 4294901760
    %v2412 = vsub.f32 %v1662, %v2411
    %v2413 = vand.u32 %v2412, 4294901760
    %2414 = vmatpush2.msra.mxu0 %v2413
    %2415 = vmatprep.subr.mxu0 0.0
    %v2416 = vand.u32 %v1661, 4294901760
    %v2417 = vsub.f32 %v1661, %v2416
    %v2418 = vand.u32 %v2417, 4294901760
    %2419 = vmatpush2.msra.mxu0 %v2418
    %2420 = vmatprep.subr.mxu0 0.0
    %v2421 = vand.u32 %v1660, 4294901760
    %v2422 = vsub.f32 %v1660, %v2421
    %v2423 = vand.u32 %v2422, 4294901760
    %2424 = vmatpush2.msra.mxu0 %v2423
    %2425 = vmatprep.subr.mxu0 0.0
    %v2426 = vand.u32 %v1659, 4294901760
    %v2427 = vsub.f32 %v1659, %v2426
    %v2428 = vand.u32 %v2427, 4294901760
    %2429 = vmatpush2.msra.mxu0 %v2428
    %v2430 = vand.u32 %v1642, 4294901760
    %2431 = vmatprep.mubr.f32.mxu0 %v2430
    %v2432 = vand.u32 %v1641, 4294901760
    %2433 = vmatmul.mubr.f32.gmra.mxu0 %v2432
    %v2434 = vpop.f32.mrf.mxu0
    %v2435 = vadd.f32 %v2267, %v2434
    %v2436 = vpop.f32.mrf.mxu0
    %2437 = vdwg.mxu0
    %2438 = vmatprep.subr.mxu0 0.0
    %v2439 = vand.u32 %v1658, 4294901760
    %2440 = vmatpush1.msra.mxu0 %v2439
    %2441 = vmatprep.subr.mxu0 0.0
    %v2442 = vand.u32 %v1657, 4294901760
    %2443 = vmatpush1.msra.mxu0 %v2442
    %2444 = vmatprep.subr.mxu0 0.0
    %v2445 = vand.u32 %v1656, 4294901760
    %2446 = vmatpush1.msra.mxu0 %v2445
    %2447 = vmatprep.subr.mxu0 0.0
    %v2448 = vand.u32 %v1655, 4294901760
    %2449 = vmatpush1.msra.mxu0 %v2448
    %2450 = vmatprep.subr.mxu0 0.0
    %v2451 = vand.u32 %v1654, 4294901760
    %2452 = vmatpush1.msra.mxu0 %v2451
    %2453 = vmatprep.subr.mxu0 0.0
    %v2454 = vand.u32 %v1653, 4294901760
    %2455 = vmatpush1.msra.mxu0 %v2454
    %2456 = vmatprep.subr.mxu0 0.0
    %v2457 = vand.u32 %v1652, 4294901760
    %2458 = vmatpush1.msra.mxu0 %v2457
    %2459 = vmatprep.subr.mxu0 0.0
    %v2460 = vand.u32 %v1651, 4294901760
    %2461 = vmatpush1.msra.mxu0 %v2460
    %2462 = vmatprep.subr.mxu0 0.0
    %v2463 = vand.u32 %v1650, 4294901760
    %2464 = vmatpush1.msra.mxu0 %v2463
    %2465 = vmatprep.subr.mxu0 0.0
    %v2466 = vand.u32 %v1649, 4294901760
    %2467 = vmatpush1.msra.mxu0 %v2466
    %2468 = vmatprep.subr.mxu0 0.0
    %v2469 = vand.u32 %v1648, 4294901760
    %2470 = vmatpush1.msra.mxu0 %v2469
    %2471 = vmatprep.subr.mxu0 0.0
    %v2472 = vand.u32 %v1647, 4294901760
    %2473 = vmatpush1.msra.mxu0 %v2472
    %2474 = vmatprep.subr.mxu0 0.0
    %v2475 = vand.u32 %v1646, 4294901760
    %2476 = vmatpush1.msra.mxu0 %v2475
    %2477 = vmatprep.subr.mxu0 0.0
    %v2478 = vand.u32 %v1645, 4294901760
    %2479 = vmatpush1.msra.mxu0 %v2478
    %2480 = vmatprep.subr.mxu0 0.0
    %v2481 = vand.u32 %v1644, 4294901760
    %2482 = vmatpush1.msra.mxu0 %v2481
    %2483 = vmatprep.subr.mxu0 0.0
    %v2484 = vand.u32 %v1643, 4294901760
    %2485 = vmatpush1.msra.mxu0 %v2484
    %2486 = vmatprep.subr.mxu0 0.0
    %v2487 = vand.u32 %v1674, 4294901760
    %2488 = vmatpush2.msra.mxu0 %v2487
    %2489 = vmatprep.subr.mxu0 0.0
    %v2490 = vand.u32 %v1673, 4294901760
    %2491 = vmatpush2.msra.mxu0 %v2490
    %2492 = vmatprep.subr.mxu0 0.0
    %v2493 = vand.u32 %v1672, 4294901760
    %2494 = vmatpush2.msra.mxu0 %v2493
    %2495 = vmatprep.subr.mxu0 0.0
    %v2496 = vand.u32 %v1671, 4294901760
    %2497 = vmatpush2.msra.mxu0 %v2496
    %2498 = vmatprep.subr.mxu0 0.0
    %v2499 = vand.u32 %v1670, 4294901760
    %2500 = vmatpush2.msra.mxu0 %v2499
    %2501 = vmatprep.subr.mxu0 0.0
    %v2502 = vand.u32 %v1669, 4294901760
    %2503 = vmatpush2.msra.mxu0 %v2502
    %2504 = vmatprep.subr.mxu0 0.0
    %v2505 = vand.u32 %v1668, 4294901760
    %2506 = vmatpush2.msra.mxu0 %v2505
    %2507 = vmatprep.subr.mxu0 0.0
    %v2508 = vand.u32 %v1667, 4294901760
    %2509 = vmatpush2.msra.mxu0 %v2508
    %2510 = vmatprep.subr.mxu0 0.0
    %v2511 = vand.u32 %v1666, 4294901760
    %2512 = vmatpush2.msra.mxu0 %v2511
    %2513 = vmatprep.subr.mxu0 0.0
    %v2514 = vand.u32 %v1665, 4294901760
    %2515 = vmatpush2.msra.mxu0 %v2514
    %2516 = vmatprep.subr.mxu0 0.0
    %v2517 = vand.u32 %v1664, 4294901760
    %2518 = vmatpush2.msra.mxu0 %v2517
    %2519 = vmatprep.subr.mxu0 0.0
    %v2520 = vand.u32 %v1663, 4294901760
    %2521 = vmatpush2.msra.mxu0 %v2520
    %2522 = vmatprep.subr.mxu0 0.0
    %v2523 = vand.u32 %v1662, 4294901760
    %2524 = vmatpush2.msra.mxu0 %v2523
    %2525 = vmatprep.subr.mxu0 0.0
    %v2526 = vand.u32 %v1661, 4294901760
    %2527 = vmatpush2.msra.mxu0 %v2526
    %2528 = vmatprep.subr.mxu0 0.0
    %v2529 = vand.u32 %v1660, 4294901760
    %2530 = vmatpush2.msra.mxu0 %v2529
    %2531 = vmatprep.subr.mxu0 0.0
    %v2532 = vand.u32 %v1659, 4294901760
    %2533 = vmatpush2.msra.mxu0 %v2532
    %v2534 = vand.u32 %v1642, 4294901760
    %2535 = vmatprep.mubr.f32.mxu0 %v2534
    %v2536 = vand.u32 %v1641, 4294901760
    %2537 = vmatmul.mubr.f32.gmra.mxu0 %v2536
    %v2538 = vpop.f32.mrf.mxu0
    %v2539 = vadd.f32 %v2435, %v2538
    %v2540 = vpop.f32.mrf.mxu0
    %2541 = vdwg.mxu0
    %v2542 = vmul.f32 %v2539, 0.5
    %v2543 = vmul.f32 %v2539, %v1567
    %v2544 = verf.f32.pop %v2543
    %v2545 = vadd.f32 %v2544, 1.0
    %v2546 = vmul.f32 %v2542, %v2545
    %2547 = vadd.xlane.f32.xlu0 %v2546
    %v2548 = vpop.xlane.xlu0 %2547
    %v2549 = vmul.f32 %v2548, 0.03125
    %v2550 = vsub.f32 %v2546, %v2549
    %vm2551 = vcmp.lt.s32.totalorder %v1583, 32
    %v2552 = vsel %vm2551, 1, 0
    %v2553 = vcvt.s32.f32 %v2552
    %v2554 = vmul.f32 %v2550, %v2553
    %v2555 = vmul.f32 %v2554, %v2554
    %2556 = vadd.xlane.f32.xlu0 %v2555
    %v2557 = vpop.xlane.xlu0 %2556
    %v2558 = vmul.f32 %v2557, 0.03125
    %v2559 = vadd.f32 %v2558, 1e-05
    %v2560 = vrsqrt.pop %v2559
    %v2561 = vmul.f32 %v2554, %v2560
    %v2562 = vlaneseq
    %v2563 = vshrl.u32 %v2562, 7
    %v2564 = vsub.s32 1, %v2563
    %v2565 = vrot.slane %v1675, %v2564
    %v2566 = vmul.f32 %v2561, %v2565
    %v2567 = vlaneseq
    %v2568 = vshrl.u32 %v2567, 7
    %v2569 = vsub.s32 2, %v2568
    %v2570 = vrot.slane %v1675, %v2569
    %v2571 = vadd.f32 %v2566, %v2570
    %v2572 = vld [vmem:[#allocation10] sm:$0xff]
    %v2573 = vld [vmem:[#allocation10 + $0x8] sm:$0xff]
    %v2574 = vld [vmem:[#allocation10 + $0x10] sm:$0xff]
    %v2575 = vld [vmem:[#allocation10 + $0x18] sm:$0xff]
    %v2576 = vld [vmem:[#allocation10 + $0x20] sm:$0xff]
    %v2577 = vld [vmem:[#allocation10 + $0x28] sm:$0xff]
    %v2578 = vld [vmem:[#allocation10 + $0x30] sm:$0xff]
    %v2579 = vld [vmem:[#allocation10 + $0x38] sm:$0xff]
    %v2580 = vld [vmem:[#allocation10 + $0x40] sm:$0xff]
    %v2581 = vld [vmem:[#allocation10 + $0x48] sm:$0xff]
    %v2582 = vld [vmem:[#allocation10 + $0x50] sm:$0xff]
    %v2583 = vld [vmem:[#allocation10 + $0x58] sm:$0xff]
    %v2584 = vld [vmem:[#allocation10 + $0x60] sm:$0xff]
    %v2585 = vld [vmem:[#allocation10 + $0x68] sm:$0xff]
    %v2586 = vld [vmem:[#allocation10 + $0x70] sm:$0xff]
    %v2587 = vld [vmem:[#allocation10 + $0x78] sm:$0xff]
    %v2588 = vld [vmem:[#allocation12] sm:$0x7]
    %v2589 = vlaneseq
    %v2590 = vshrl.u32 %v2589, 7
    %v2591 = vsub.s32 0, %v2590
    %v2592 = vrot.slane %v2588, %v2591
    %2593 = vmatprep.subr.mxu0 0.0
    %v2594 = vand.u32 %v2587, 4294901760
    %2595 = vmatpush1.msra.mxu0 %v2594
    %2596 = vmatprep.subr.mxu0 0.0
    %v2597 = vand.u32 %v2586, 4294901760
    %2598 = vmatpush1.msra.mxu0 %v2597
    %2599 = vmatprep.subr.mxu0 0.0
    %v2600 = vand.u32 %v2585, 4294901760
    %2601 = vmatpush1.msra.mxu0 %v2600
    %2602 = vmatprep.subr.mxu0 0.0
    %v2603 = vand.u32 %v2584, 4294901760
    %2604 = vmatpush1.msra.mxu0 %v2603
    %2605 = vmatprep.subr.mxu0 0.0
    %v2606 = vand.u32 %v2583, 4294901760
    %2607 = vmatpush1.msra.mxu0 %v2606
    %2608 = vmatprep.subr.mxu0 0.0
    %v2609 = vand.u32 %v2582, 4294901760
    %2610 = vmatpush1.msra.mxu0 %v2609
    %2611 = vmatprep.subr.mxu0 0.0
    %v2612 = vand.u32 %v2581, 4294901760
    %2613 = vmatpush1.msra.mxu0 %v2612
    %2614 = vmatprep.subr.mxu0 0.0
    %v2615 = vand.u32 %v2580, 4294901760
    %2616 = vmatpush1.msra.mxu0 %v2615
    %2617 = vmatprep.subr.mxu0 0.0
    %v2618 = vand.u32 %v2579, 4294901760
    %2619 = vmatpush1.msra.mxu0 %v2618
    %2620 = vmatprep.subr.mxu0 0.0
    %v2621 = vand.u32 %v2578, 4294901760
    %2622 = vmatpush1.msra.mxu0 %v2621
    %2623 = vmatprep.subr.mxu0 0.0
    %v2624 = vand.u32 %v2577, 4294901760
    %2625 = vmatpush1.msra.mxu0 %v2624
    %2626 = vmatprep.subr.mxu0 0.0
    %v2627 = vand.u32 %v2576, 4294901760
    %2628 = vmatpush1.msra.mxu0 %v2627
    %2629 = vmatprep.subr.mxu0 0.0
    %v2630 = vand.u32 %v2575, 4294901760
    %2631 = vmatpush1.msra.mxu0 %v2630
    %2632 = vmatprep.subr.mxu0 0.0
    %v2633 = vand.u32 %v2574, 4294901760
    %2634 = vmatpush1.msra.mxu0 %v2633
    %2635 = vmatprep.subr.mxu0 0.0
    %v2636 = vand.u32 %v2573, 4294901760
    %2637 = vmatpush1.msra.mxu0 %v2636
    %2638 = vmatprep.subr.mxu0 0.0
    %v2639 = vand.u32 %v2572, 4294901760
    %2640 = vmatpush1.msra.mxu0 %v2639
    %2641 = vmatprep.subr.mxu0 0.0
    %2642 = vmatpush2.msra.mxu0 0.0
    %2643 = vmatprep.subr.mxu0 0.0
    %2644 = vmatpush2.msra.mxu0 0.0
    %2645 = vmatprep.subr.mxu0 0.0
    %2646 = vmatpush2.msra.mxu0 0.0
    %2647 = vmatprep.subr.mxu0 0.0
    %2648 = vmatpush2.msra.mxu0 0.0
    %2649 = vmatprep.subr.mxu0 0.0
    %2650 = vmatpush2.msra.mxu0 0.0
    %2651 = vmatprep.subr.mxu0 0.0
    %2652 = vmatpush2.msra.mxu0 0.0
    %2653 = vmatprep.subr.mxu0 0.0
    %2654 = vmatpush2.msra.mxu0 0.0
    %2655 = vmatprep.subr.mxu0 0.0
    %2656 = vmatpush2.msra.mxu0 0.0
    %2657 = vmatprep.subr.mxu0 0.0
    %2658 = vmatpush2.msra.mxu0 0.0
    %2659 = vmatprep.subr.mxu0 0.0
    %2660 = vmatpush2.msra.mxu0 0.0
    %2661 = vmatprep.subr.mxu0 0.0
    %2662 = vmatpush2.msra.mxu0 0.0
    %2663 = vmatprep.subr.mxu0 0.0
    %2664 = vmatpush2.msra.mxu0 0.0
    %2665 = vmatprep.subr.mxu0 0.0
    %2666 = vmatpush2.msra.mxu0 0.0
    %2667 = vmatprep.subr.mxu0 0.0
    %2668 = vmatpush2.msra.mxu0 0.0
    %2669 = vmatprep.subr.mxu0 0.0
    %2670 = vmatpush2.msra.mxu0 0.0
    %2671 = vmatprep.subr.mxu0 0.0
    %2672 = vmatpush2.msra.mxu0 0.0
    %2673 = vmatprep.mubr.f32.mxu0 0.0
    %v2674 = vand.u32 %v2571, 4294901760
    %v2675 = vsub.f32 %v2571, %v2674
    %v2676 = vand.u32 %v2675, 4294901760
    %v2677 = vsub.f32 %v2675, %v2676
    %v2678 = vand.u32 %v2677, 4294901760
    %2679 = vmatmul.mubr.f32.gmra.mxu0 %v2678
    %v2680 = vpop.f32.mrf.mxu0
    %v2681 = vadd.f32 %v2592, %v2680
    %v2682 = vpop.f32.mrf.mxu0
    %2683 = vdwg.mxu0
    %2684 = vmatprep.subr.mxu0 0.0
    %v2685 = vand.u32 %v2587, 4294901760
    %v2686 = vsub.f32 %v2587, %v2685
    %v2687 = vand.u32 %v2686, 4294901760
    %v2688 = vsub.f32 %v2686, %v2687
    %v2689 = vand.u32 %v2688, 4294901760
    %2690 = vmatpush1.msra.mxu0 %v2689
    %2691 = vmatprep.subr.mxu0 0.0
    %v2692 = vand.u32 %v2586, 4294901760
    %v2693 = vsub.f32 %v2586, %v2692
    %v2694 = vand.u32 %v2693, 4294901760
    %v2695 = vsub.f32 %v2693, %v2694
    %v2696 = vand.u32 %v2695, 4294901760
    %2697 = vmatpush1.msra.mxu0 %v2696
    %2698 = vmatprep.subr.mxu0 0.0
    %v2699 = vand.u32 %v2585, 4294901760
    %v2700 = vsub.f32 %v2585, %v2699
    %v2701 = vand.u32 %v2700, 4294901760
    %v2702 = vsub.f32 %v2700, %v2701
    %v2703 = vand.u32 %v2702, 4294901760
    %2704 = vmatpush1.msra.mxu0 %v2703
    %2705 = vmatprep.subr.mxu0 0.0
    %v2706 = vand.u32 %v2584, 4294901760
    %v2707 = vsub.f32 %v2584, %v2706
    %v2708 = vand.u32 %v2707, 4294901760
    %v2709 = vsub.f32 %v2707, %v2708
    %v2710 = vand.u32 %v2709, 4294901760
    %2711 = vmatpush1.msra.mxu0 %v2710
    %2712 = vmatprep.subr.mxu0 0.0
    %v2713 = vand.u32 %v2583, 4294901760
    %v2714 = vsub.f32 %v2583, %v2713
    %v2715 = vand.u32 %v2714, 4294901760
    %v2716 = vsub.f32 %v2714, %v2715
    %v2717 = vand.u32 %v2716, 4294901760
    %2718 = vmatpush1.msra.mxu0 %v2717
    %2719 = vmatprep.subr.mxu0 0.0
    %v2720 = vand.u32 %v2582, 4294901760
    %v2721 = vsub.f32 %v2582, %v2720
    %v2722 = vand.u32 %v2721, 4294901760
    %v2723 = vsub.f32 %v2721, %v2722
    %v2724 = vand.u32 %v2723, 4294901760
    %2725 = vmatpush1.msra.mxu0 %v2724
    %2726 = vmatprep.subr.mxu0 0.0
    %v2727 = vand.u32 %v2581, 4294901760
    %v2728 = vsub.f32 %v2581, %v2727
    %v2729 = vand.u32 %v2728, 4294901760
    %v2730 = vsub.f32 %v2728, %v2729
    %v2731 = vand.u32 %v2730, 4294901760
    %2732 = vmatpush1.msra.mxu0 %v2731
    %2733 = vmatprep.subr.mxu0 0.0
    %v2734 = vand.u32 %v2580, 4294901760
    %v2735 = vsub.f32 %v2580, %v2734
    %v2736 = vand.u32 %v2735, 4294901760
    %v2737 = vsub.f32 %v2735, %v2736
    %v2738 = vand.u32 %v2737, 4294901760
    %2739 = vmatpush1.msra.mxu0 %v2738
    %2740 = vmatprep.subr.mxu0 0.0
    %v2741 = vand.u32 %v2579, 4294901760
    %v2742 = vsub.f32 %v2579, %v2741
    %v2743 = vand.u32 %v2742, 4294901760
    %v2744 = vsub.f32 %v2742, %v2743
    %v2745 = vand.u32 %v2744, 4294901760
    %2746 = vmatpush1.msra.mxu0 %v2745
    %2747 = vmatprep.subr.mxu0 0.0
    %v2748 = vand.u32 %v2578, 4294901760
    %v2749 = vsub.f32 %v2578, %v2748
    %v2750 = vand.u32 %v2749, 4294901760
    %v2751 = vsub.f32 %v2749, %v2750
    %v2752 = vand.u32 %v2751, 4294901760
    %2753 = vmatpush1.msra.mxu0 %v2752
    %2754 = vmatprep.subr.mxu0 0.0
    %v2755 = vand.u32 %v2577, 4294901760
    %v2756 = vsub.f32 %v2577, %v2755
    %v2757 = vand.u32 %v2756, 4294901760
    %v2758 = vsub.f32 %v2756, %v2757
    %v2759 = vand.u32 %v2758, 4294901760
    %2760 = vmatpush1.msra.mxu0 %v2759
    %2761 = vmatprep.subr.mxu0 0.0
    %v2762 = vand.u32 %v2576, 4294901760
    %v2763 = vsub.f32 %v2576, %v2762
    %v2764 = vand.u32 %v2763, 4294901760
    %v2765 = vsub.f32 %v2763, %v2764
    %v2766 = vand.u32 %v2765, 4294901760
    %2767 = vmatpush1.msra.mxu0 %v2766
    %2768 = vmatprep.subr.mxu0 0.0
    %v2769 = vand.u32 %v2575, 4294901760
    %v2770 = vsub.f32 %v2575, %v2769
    %v2771 = vand.u32 %v2770, 4294901760
    %v2772 = vsub.f32 %v2770, %v2771
    %v2773 = vand.u32 %v2772, 4294901760
    %2774 = vmatpush1.msra.mxu0 %v2773
    %2775 = vmatprep.subr.mxu0 0.0
    %v2776 = vand.u32 %v2574, 4294901760
    %v2777 = vsub.f32 %v2574, %v2776
    %v2778 = vand.u32 %v2777, 4294901760
    %v2779 = vsub.f32 %v2777, %v2778
    %v2780 = vand.u32 %v2779, 4294901760
    %2781 = vmatpush1.msra.mxu0 %v2780
    %2782 = vmatprep.subr.mxu0 0.0
    %v2783 = vand.u32 %v2573, 4294901760
    %v2784 = vsub.f32 %v2573, %v2783
    %v2785 = vand.u32 %v2784, 4294901760
    %v2786 = vsub.f32 %v2784, %v2785
    %v2787 = vand.u32 %v2786, 4294901760
    %2788 = vmatpush1.msra.mxu0 %v2787
    %2789 = vmatprep.subr.mxu0 0.0
    %v2790 = vand.u32 %v2572, 4294901760
    %v2791 = vsub.f32 %v2572, %v2790
    %v2792 = vand.u32 %v2791, 4294901760
    %v2793 = vsub.f32 %v2791, %v2792
    %v2794 = vand.u32 %v2793, 4294901760
    %2795 = vmatpush1.msra.mxu0 %v2794
    %2796 = vmatprep.subr.mxu0 0.0
    %2797 = vmatpush2.msra.mxu0 0.0
    %2798 = vmatprep.subr.mxu0 0.0
    %2799 = vmatpush2.msra.mxu0 0.0
    %2800 = vmatprep.subr.mxu0 0.0
    %2801 = vmatpush2.msra.mxu0 0.0
    %2802 = vmatprep.subr.mxu0 0.0
    %2803 = vmatpush2.msra.mxu0 0.0
    %2804 = vmatprep.subr.mxu0 0.0
    %2805 = vmatpush2.msra.mxu0 0.0
    %2806 = vmatprep.subr.mxu0 0.0
    %2807 = vmatpush2.msra.mxu0 0.0
    %2808 = vmatprep.subr.mxu0 0.0
    %2809 = vmatpush2.msra.mxu0 0.0
    %2810 = vmatprep.subr.mxu0 0.0
    %2811 = vmatpush2.msra.mxu0 0.0
    %2812 = vmatprep.subr.mxu0 0.0
    %2813 = vmatpush2.msra.mxu0 0.0
    %2814 = vmatprep.subr.mxu0 0.0
    %2815 = vmatpush2.msra.mxu0 0.0
    %2816 = vmatprep.subr.mxu0 0.0
    %2817 = vmatpush2.msra.mxu0 0.0
    %2818 = vmatprep.subr.mxu0 0.0
    %2819 = vmatpush2.msra.mxu0 0.0
    %2820 = vmatprep.subr.mxu0 0.0
    %2821 = vmatpush2.msra.mxu0 0.0
    %2822 = vmatprep.subr.mxu0 0.0
    %2823 = vmatpush2.msra.mxu0 0.0
    %2824 = vmatprep.subr.mxu0 0.0
    %2825 = vmatpush2.msra.mxu0 0.0
    %2826 = vmatprep.subr.mxu0 0.0
    %2827 = vmatpush2.msra.mxu0 0.0
    %2828 = vmatprep.mubr.f32.mxu0 0.0
    %v2829 = vand.u32 %v2571, 4294901760
    %2830 = vmatmul.mubr.f32.gmra.mxu0 %v2829
    %v2831 = vpop.f32.mrf.mxu0
    %v2832 = vadd.f32 %v2681, %v2831
    %v2833 = vpop.f32.mrf.mxu0
    %2834 = vdwg.mxu0
    %2835 = vmatprep.subr.mxu0 0.0
    %v2836 = vand.u32 %v2587, 4294901760
    %v2837 = vsub.f32 %v2587, %v2836
    %2838 = vmatpush1.msra.mxu0 %v2837
    %2839 = vmatprep.subr.mxu0 0.0
    %v2840 = vand.u32 %v2586, 4294901760
    %v2841 = vsub.f32 %v2586, %v2840
    %2842 = vmatpush1.msra.mxu0 %v2841
    %2843 = vmatprep.subr.mxu0 0.0
    %v2844 = vand.u32 %v2585, 4294901760
    %v2845 = vsub.f32 %v2585, %v2844
    %2846 = vmatpush1.msra.mxu0 %v2845
    %2847 = vmatprep.subr.mxu0 0.0
    %v2848 = vand.u32 %v2584, 4294901760
    %v2849 = vsub.f32 %v2584, %v2848
    %2850 = vmatpush1.msra.mxu0 %v2849
    %2851 = vmatprep.subr.mxu0 0.0
    %v2852 = vand.u32 %v2583, 4294901760
    %v2853 = vsub.f32 %v2583, %v2852
    %2854 = vmatpush1.msra.mxu0 %v2853
    %2855 = vmatprep.subr.mxu0 0.0
    %v2856 = vand.u32 %v2582, 4294901760
    %v2857 = vsub.f32 %v2582, %v2856
    %2858 = vmatpush1.msra.mxu0 %v2857
    %2859 = vmatprep.subr.mxu0 0.0
    %v2860 = vand.u32 %v2581, 4294901760
    %v2861 = vsub.f32 %v2581, %v2860
    %2862 = vmatpush1.msra.mxu0 %v2861
    %2863 = vmatprep.subr.mxu0 0.0
    %v2864 = vand.u32 %v2580, 4294901760
    %v2865 = vsub.f32 %v2580, %v2864
    %2866 = vmatpush1.msra.mxu0 %v2865
    %2867 = vmatprep.subr.mxu0 0.0
    %v2868 = vand.u32 %v2579, 4294901760
    %v2869 = vsub.f32 %v2579, %v2868
    %2870 = vmatpush1.msra.mxu0 %v2869
    %2871 = vmatprep.subr.mxu0 0.0
    %v2872 = vand.u32 %v2578, 4294901760
    %v2873 = vsub.f32 %v2578, %v2872
    %2874 = vmatpush1.msra.mxu0 %v2873
    %2875 = vmatprep.subr.mxu0 0.0
    %v2876 = vand.u32 %v2577, 4294901760
    %v2877 = vsub.f32 %v2577, %v2876
    %2878 = vmatpush1.msra.mxu0 %v2877
    %2879 = vmatprep.subr.mxu0 0.0
    %v2880 = vand.u32 %v2576, 4294901760
    %v2881 = vsub.f32 %v2576, %v2880
    %2882 = vmatpush1.msra.mxu0 %v2881
    %2883 = vmatprep.subr.mxu0 0.0
    %v2884 = vand.u32 %v2575, 4294901760
    %v2885 = vsub.f32 %v2575, %v2884
    %2886 = vmatpush1.msra.mxu0 %v2885
    %2887 = vmatprep.subr.mxu0 0.0
    %v2888 = vand.u32 %v2574, 4294901760
    %v2889 = vsub.f32 %v2574, %v2888
    %2890 = vmatpush1.msra.mxu0 %v2889
    %2891 = vmatprep.subr.mxu0 0.0
    %v2892 = vand.u32 %v2573, 4294901760
    %v2893 = vsub.f32 %v2573, %v2892
    %2894 = vmatpush1.msra.mxu0 %v2893
    %2895 = vmatprep.subr.mxu0 0.0
    %v2896 = vand.u32 %v2572, 4294901760
    %v2897 = vsub.f32 %v2572, %v2896
    %2898 = vmatpush1.msra.mxu0 %v2897
    %2899 = vmatprep.subr.mxu0 0.0
    %2900 = vmatpush2.msra.mxu0 0.0
    %2901 = vmatprep.subr.mxu0 0.0
    %2902 = vmatpush2.msra.mxu0 0.0
    %2903 = vmatprep.subr.mxu0 0.0
    %2904 = vmatpush2.msra.mxu0 0.0
    %2905 = vmatprep.subr.mxu0 0.0
    %2906 = vmatpush2.msra.mxu0 0.0
    %2907 = vmatprep.subr.mxu0 0.0
    %2908 = vmatpush2.msra.mxu0 0.0
    %2909 = vmatprep.subr.mxu0 0.0
    %2910 = vmatpush2.msra.mxu0 0.0
    %2911 = vmatprep.subr.mxu0 0.0
    %2912 = vmatpush2.msra.mxu0 0.0
    %2913 = vmatprep.subr.mxu0 0.0
    %2914 = vmatpush2.msra.mxu0 0.0
    %2915 = vmatprep.subr.mxu0 0.0
    %2916 = vmatpush2.msra.mxu0 0.0
    %2917 = vmatprep.subr.mxu0 0.0
    %2918 = vmatpush2.msra.mxu0 0.0
    %2919 = vmatprep.subr.mxu0 0.0
    %2920 = vmatpush2.msra.mxu0 0.0
    %2921 = vmatprep.subr.mxu0 0.0
    %2922 = vmatpush2.msra.mxu0 0.0
    %2923 = vmatprep.subr.mxu0 0.0
    %2924 = vmatpush2.msra.mxu0 0.0
    %2925 = vmatprep.subr.mxu0 0.0
    %2926 = vmatpush2.msra.mxu0 0.0
    %2927 = vmatprep.subr.mxu0 0.0
    %2928 = vmatpush2.msra.mxu0 0.0
    %2929 = vmatprep.subr.mxu0 0.0
    %2930 = vmatpush2.msra.mxu0 0.0
    %2931 = vmatprep.mubr.f32.mxu0 0.0
    %v2932 = vand.u32 %v2571, 4294901760
    %v2933 = vsub.f32 %v2571, %v2932
    %2934 = vmatmul.mubr.f32.gmra.mxu0 %v2933
    %v2935 = vpop.f32.mrf.mxu0
    %v2936 = vadd.f32 %v2832, %v2935
    %v2937 = vpop.f32.mrf.mxu0
    %2938 = vdwg.mxu0
    %2939 = vmatprep.subr.mxu0 0.0
    %v2940 = vand.u32 %v2587, 4294901760
    %2941 = vmatpush1.msra.mxu0 %v2940
    %2942 = vmatprep.subr.mxu0 0.0
    %v2943 = vand.u32 %v2586, 4294901760
    %2944 = vmatpush1.msra.mxu0 %v2943
    %2945 = vmatprep.subr.mxu0 0.0
    %v2946 = vand.u32 %v2585, 4294901760
    %2947 = vmatpush1.msra.mxu0 %v2946
    %2948 = vmatprep.subr.mxu0 0.0
    %v2949 = vand.u32 %v2584, 4294901760
    %2950 = vmatpush1.msra.mxu0 %v2949
    %2951 = vmatprep.subr.mxu0 0.0
    %v2952 = vand.u32 %v2583, 4294901760
    %2953 = vmatpush1.msra.mxu0 %v2952
    %2954 = vmatprep.subr.mxu0 0.0
    %v2955 = vand.u32 %v2582, 4294901760
    %2956 = vmatpush1.msra.mxu0 %v2955
    %2957 = vmatprep.subr.mxu0 0.0
    %v2958 = vand.u32 %v2581, 4294901760
    %2959 = vmatpush1.msra.mxu0 %v2958
    %2960 = vmatprep.subr.mxu0 0.0
    %v2961 = vand.u32 %v2580, 4294901760
    %2962 = vmatpush1.msra.mxu0 %v2961
    %2963 = vmatprep.subr.mxu0 0.0
    %v2964 = vand.u32 %v2579, 4294901760
    %2965 = vmatpush1.msra.mxu0 %v2964
    %2966 = vmatprep.subr.mxu0 0.0
    %v2967 = vand.u32 %v2578, 4294901760
    %2968 = vmatpush1.msra.mxu0 %v2967
    %2969 = vmatprep.subr.mxu0 0.0
    %v2970 = vand.u32 %v2577, 4294901760
    %2971 = vmatpush1.msra.mxu0 %v2970
    %2972 = vmatprep.subr.mxu0 0.0
    %v2973 = vand.u32 %v2576, 4294901760
    %2974 = vmatpush1.msra.mxu0 %v2973
    %2975 = vmatprep.subr.mxu0 0.0
    %v2976 = vand.u32 %v2575, 4294901760
    %2977 = vmatpush1.msra.mxu0 %v2976
    %2978 = vmatprep.subr.mxu0 0.0
    %v2979 = vand.u32 %v2574, 4294901760
    %2980 = vmatpush1.msra.mxu0 %v2979
    %2981 = vmatprep.subr.mxu0 0.0
    %v2982 = vand.u32 %v2573, 4294901760
    %2983 = vmatpush1.msra.mxu0 %v2982
    %2984 = vmatprep.subr.mxu0 0.0
    %v2985 = vand.u32 %v2572, 4294901760
    %2986 = vmatpush1.msra.mxu0 %v2985
    %2987 = vmatprep.subr.mxu0 0.0
    %2988 = vmatpush2.msra.mxu0 0.0
    %2989 = vmatprep.subr.mxu0 0.0
    %2990 = vmatpush2.msra.mxu0 0.0
    %2991 = vmatprep.subr.mxu0 0.0
    %2992 = vmatpush2.msra.mxu0 0.0
    %2993 = vmatprep.subr.mxu0 0.0
    %2994 = vmatpush2.msra.mxu0 0.0
    %2995 = vmatprep.subr.mxu0 0.0
    %2996 = vmatpush2.msra.mxu0 0.0
    %2997 = vmatprep.subr.mxu0 0.0
    %2998 = vmatpush2.msra.mxu0 0.0
    %2999 = vmatprep.subr.mxu0 0.0
    %3000 = vmatpush2.msra.mxu0 0.0
    %3001 = vmatprep.subr.mxu0 0.0
    %3002 = vmatpush2.msra.mxu0 0.0
    %3003 = vmatprep.subr.mxu0 0.0
    %3004 = vmatpush2.msra.mxu0 0.0
    %3005 = vmatprep.subr.mxu0 0.0
    %3006 = vmatpush2.msra.mxu0 0.0
    %3007 = vmatprep.subr.mxu0 0.0
    %3008 = vmatpush2.msra.mxu0 0.0
    %3009 = vmatprep.subr.mxu0 0.0
    %3010 = vmatpush2.msra.mxu0 0.0
    %3011 = vmatprep.subr.mxu0 0.0
    %3012 = vmatpush2.msra.mxu0 0.0
    %3013 = vmatprep.subr.mxu0 0.0
    %3014 = vmatpush2.msra.mxu0 0.0
    %3015 = vmatprep.subr.mxu0 0.0
    %3016 = vmatpush2.msra.mxu0 0.0
    %3017 = vmatprep.subr.mxu0 0.0
    %3018 = vmatpush2.msra.mxu0 0.0
    %3019 = vmatprep.mubr.f32.mxu0 0.0
    %v3020 = vand.u32 %v2571, 4294901760
    %v3021 = vsub.f32 %v2571, %v3020
    %v3022 = vand.u32 %v3021, 4294901760
    %3023 = vmatmul.mubr.f32.gmra.mxu0 %v3022
    %v3024 = vpop.f32.mrf.mxu0
    %v3025 = vadd.f32 %v2936, %v3024
    %v3026 = vpop.f32.mrf.mxu0
    %3027 = vdwg.mxu0
    %3028 = vmatprep.subr.mxu0 0.0
    %v3029 = vand.u32 %v2587, 4294901760
    %v3030 = vsub.f32 %v2587, %v3029
    %v3031 = vand.u32 %v3030, 4294901760
    %3032 = vmatpush1.msra.mxu0 %v3031
    %3033 = vmatprep.subr.mxu0 0.0
    %v3034 = vand.u32 %v2586, 4294901760
    %v3035 = vsub.f32 %v2586, %v3034
    %v3036 = vand.u32 %v3035, 4294901760
    %3037 = vmatpush1.msra.mxu0 %v3036
    %3038 = vmatprep.subr.mxu0 0.0
    %v3039 = vand.u32 %v2585, 4294901760
    %v3040 = vsub.f32 %v2585, %v3039
    %v3041 = vand.u32 %v3040, 4294901760
    %3042 = vmatpush1.msra.mxu0 %v3041
    %3043 = vmatprep.subr.mxu0 0.0
    %v3044 = vand.u32 %v2584, 4294901760
    %v3045 = vsub.f32 %v2584, %v3044
    %v3046 = vand.u32 %v3045, 4294901760
    %3047 = vmatpush1.msra.mxu0 %v3046
    %3048 = vmatprep.subr.mxu0 0.0
    %v3049 = vand.u32 %v2583, 4294901760
    %v3050 = vsub.f32 %v2583, %v3049
    %v3051 = vand.u32 %v3050, 4294901760
    %3052 = vmatpush1.msra.mxu0 %v3051
    %3053 = vmatprep.subr.mxu0 0.0
    %v3054 = vand.u32 %v2582, 4294901760
    %v3055 = vsub.f32 %v2582, %v3054
    %v3056 = vand.u32 %v3055, 4294901760
    %3057 = vmatpush1.msra.mxu0 %v3056
    %3058 = vmatprep.subr.mxu0 0.0
    %v3059 = vand.u32 %v2581, 4294901760
    %v3060 = vsub.f32 %v2581, %v3059
    %v3061 = vand.u32 %v3060, 4294901760
    %3062 = vmatpush1.msra.mxu0 %v3061
    %3063 = vmatprep.subr.mxu0 0.0
    %v3064 = vand.u32 %v2580, 4294901760
    %v3065 = vsub.f32 %v2580, %v3064
    %v3066 = vand.u32 %v3065, 4294901760
    %3067 = vmatpush1.msra.mxu0 %v3066
    %3068 = vmatprep.subr.mxu0 0.0
    %v3069 = vand.u32 %v2579, 4294901760
    %v3070 = vsub.f32 %v2579, %v3069
    %v3071 = vand.u32 %v3070, 4294901760
    %3072 = vmatpush1.msra.mxu0 %v3071
    %3073 = vmatprep.subr.mxu0 0.0
    %v3074 = vand.u32 %v2578, 4294901760
    %v3075 = vsub.f32 %v2578, %v3074
    %v3076 = vand.u32 %v3075, 4294901760
    %3077 = vmatpush1.msra.mxu0 %v3076
    %3078 = vmatprep.subr.mxu0 0.0
    %v3079 = vand.u32 %v2577, 4294901760
    %v3080 = vsub.f32 %v2577, %v3079
    %v3081 = vand.u32 %v3080, 4294901760
    %3082 = vmatpush1.msra.mxu0 %v3081
    %3083 = vmatprep.subr.mxu0 0.0
    %v3084 = vand.u32 %v2576, 4294901760
    %v3085 = vsub.f32 %v2576, %v3084
    %v3086 = vand.u32 %v3085, 4294901760
    %3087 = vmatpush1.msra.mxu0 %v3086
    %3088 = vmatprep.subr.mxu0 0.0
    %v3089 = vand.u32 %v2575, 4294901760
    %v3090 = vsub.f32 %v2575, %v3089
    %v3091 = vand.u32 %v3090, 4294901760
    %3092 = vmatpush1.msra.mxu0 %v3091
    %3093 = vmatprep.subr.mxu0 0.0
    %v3094 = vand.u32 %v2574, 4294901760
    %v3095 = vsub.f32 %v2574, %v3094
    %v3096 = vand.u32 %v3095, 4294901760
    %3097 = vmatpush1.msra.mxu0 %v3096
    %3098 = vmatprep.subr.mxu0 0.0
    %v3099 = vand.u32 %v2573, 4294901760
    %v3100 = vsub.f32 %v2573, %v3099
    %v3101 = vand.u32 %v3100, 4294901760
    %3102 = vmatpush1.msra.mxu0 %v3101
    %3103 = vmatprep.subr.mxu0 0.0
    %v3104 = vand.u32 %v2572, 4294901760
    %v3105 = vsub.f32 %v2572, %v3104
    %v3106 = vand.u32 %v3105, 4294901760
    %3107 = vmatpush1.msra.mxu0 %v3106
    %3108 = vmatprep.subr.mxu0 0.0
    %3109 = vmatpush2.msra.mxu0 0.0
    %3110 = vmatprep.subr.mxu0 0.0
    %3111 = vmatpush2.msra.mxu0 0.0
    %3112 = vmatprep.subr.mxu0 0.0
    %3113 = vmatpush2.msra.mxu0 0.0
    %3114 = vmatprep.subr.mxu0 0.0
    %3115 = vmatpush2.msra.mxu0 0.0
    %3116 = vmatprep.subr.mxu0 0.0
    %3117 = vmatpush2.msra.mxu0 0.0
    %3118 = vmatprep.subr.mxu0 0.0
    %3119 = vmatpush2.msra.mxu0 0.0
    %3120 = vmatprep.subr.mxu0 0.0
    %3121 = vmatpush2.msra.mxu0 0.0
    %3122 = vmatprep.subr.mxu0 0.0
    %3123 = vmatpush2.msra.mxu0 0.0
    %3124 = vmatprep.subr.mxu0 0.0
    %3125 = vmatpush2.msra.mxu0 0.0
    %3126 = vmatprep.subr.mxu0 0.0
    %3127 = vmatpush2.msra.mxu0 0.0
    %3128 = vmatprep.subr.mxu0 0.0
    %3129 = vmatpush2.msra.mxu0 0.0
    %3130 = vmatprep.subr.mxu0 0.0
    %3131 = vmatpush2.msra.mxu0 0.0
    %3132 = vmatprep.subr.mxu0 0.0
    %3133 = vmatpush2.msra.mxu0 0.0
    %3134 = vmatprep.subr.mxu0 0.0
    %3135 = vmatpush2.msra.mxu0 0.0
    %3136 = vmatprep.subr.mxu0 0.0
    %3137 = vmatpush2.msra.mxu0 0.0
    %3138 = vmatprep.subr.mxu0 0.0
    %3139 = vmatpush2.msra.mxu0 0.0
    %3140 = vmatprep.mubr.f32.mxu0 0.0
    %v3141 = vand.u32 %v2571, 4294901760
    %3142 = vmatmul.mubr.f32.gmra.mxu0 %v3141
    %v3143 = vpop.f32.mrf.mxu0
    %v3144 = vadd.f32 %v3025, %v3143
    %v3145 = vpop.f32.mrf.mxu0
    %3146 = vdwg.mxu0
    %3147 = vmatprep.subr.mxu0 0.0
    %v3148 = vand.u32 %v2587, 4294901760
    %3149 = vmatpush1.msra.mxu0 %v3148
    %3150 = vmatprep.subr.mxu0 0.0
    %v3151 = vand.u32 %v2586, 4294901760
    %3152 = vmatpush1.msra.mxu0 %v3151
    %3153 = vmatprep.subr.mxu0 0.0
    %v3154 = vand.u32 %v2585, 4294901760
    %3155 = vmatpush1.msra.mxu0 %v3154
    %3156 = vmatprep.subr.mxu0 0.0
    %v3157 = vand.u32 %v2584, 4294901760
    %3158 = vmatpush1.msra.mxu0 %v3157
    %3159 = vmatprep.subr.mxu0 0.0
    %v3160 = vand.u32 %v2583, 4294901760
    %3161 = vmatpush1.msra.mxu0 %v3160
    %3162 = vmatprep.subr.mxu0 0.0
    %v3163 = vand.u32 %v2582, 4294901760
    %3164 = vmatpush1.msra.mxu0 %v3163
    %3165 = vmatprep.subr.mxu0 0.0
    %v3166 = vand.u32 %v2581, 4294901760
    %3167 = vmatpush1.msra.mxu0 %v3166
    %3168 = vmatprep.subr.mxu0 0.0
    %v3169 = vand.u32 %v2580, 4294901760
    %3170 = vmatpush1.msra.mxu0 %v3169
    %3171 = vmatprep.subr.mxu0 0.0
    %v3172 = vand.u32 %v2579, 4294901760
    %3173 = vmatpush1.msra.mxu0 %v3172
    %3174 = vmatprep.subr.mxu0 0.0
    %v3175 = vand.u32 %v2578, 4294901760
    %3176 = vmatpush1.msra.mxu0 %v3175
    %3177 = vmatprep.subr.mxu0 0.0
    %v3178 = vand.u32 %v2577, 4294901760
    %3179 = vmatpush1.msra.mxu0 %v3178
    %3180 = vmatprep.subr.mxu0 0.0
    %v3181 = vand.u32 %v2576, 4294901760
    %3182 = vmatpush1.msra.mxu0 %v3181
    %3183 = vmatprep.subr.mxu0 0.0
    %v3184 = vand.u32 %v2575, 4294901760
    %3185 = vmatpush1.msra.mxu0 %v3184
    %3186 = vmatprep.subr.mxu0 0.0
    %v3187 = vand.u32 %v2574, 4294901760
    %3188 = vmatpush1.msra.mxu0 %v3187
    %3189 = vmatprep.subr.mxu0 0.0
    %v3190 = vand.u32 %v2573, 4294901760
    %3191 = vmatpush1.msra.mxu0 %v3190
    %3192 = vmatprep.subr.mxu0 0.0
    %v3193 = vand.u32 %v2572, 4294901760
    %3194 = vmatpush1.msra.mxu0 %v3193
    %3195 = vmatprep.subr.mxu0 0.0
    %3196 = vmatpush2.msra.mxu0 0.0
    %3197 = vmatprep.subr.mxu0 0.0
    %3198 = vmatpush2.msra.mxu0 0.0
    %3199 = vmatprep.subr.mxu0 0.0
    %3200 = vmatpush2.msra.mxu0 0.0
    %3201 = vmatprep.subr.mxu0 0.0
    %3202 = vmatpush2.msra.mxu0 0.0
    %3203 = vmatprep.subr.mxu0 0.0
    %3204 = vmatpush2.msra.mxu0 0.0
    %3205 = vmatprep.subr.mxu0 0.0
    %3206 = vmatpush2.msra.mxu0 0.0
    %3207 = vmatprep.subr.mxu0 0.0
    %3208 = vmatpush2.msra.mxu0 0.0
    %3209 = vmatprep.subr.mxu0 0.0
    %3210 = vmatpush2.msra.mxu0 0.0
    %3211 = vmatprep.subr.mxu0 0.0
    %3212 = vmatpush2.msra.mxu0 0.0
    %3213 = vmatprep.subr.mxu0 0.0
    %3214 = vmatpush2.msra.mxu0 0.0
    %3215 = vmatprep.subr.mxu0 0.0
    %3216 = vmatpush2.msra.mxu0 0.0
    %3217 = vmatprep.subr.mxu0 0.0
    %3218 = vmatpush2.msra.mxu0 0.0
    %3219 = vmatprep.subr.mxu0 0.0
    %3220 = vmatpush2.msra.mxu0 0.0
    %3221 = vmatprep.subr.mxu0 0.0
    %3222 = vmatpush2.msra.mxu0 0.0
    %3223 = vmatprep.subr.mxu0 0.0
    %3224 = vmatpush2.msra.mxu0 0.0
    %3225 = vmatprep.subr.mxu0 0.0
    %3226 = vmatpush2.msra.mxu0 0.0
    %3227 = vmatprep.mubr.f32.mxu0 0.0
    %v3228 = vand.u32 %v2571, 4294901760
    %3229 = vmatmul.mubr.f32.gmra.mxu0 %v3228
    %v3230 = vpop.f32.mrf.mxu0
    %v3231 = vadd.f32 %v3144, %v3230
    %v3232 = vpop.f32.mrf.mxu0
    %3233 = vdwg.mxu0
    %v3234 = vmul.f32 %v3231, 0.5
    %v3235 = vmul.f32 %v3231, %v1567
    %v3236 = verf.f32.pop %v3235
    %v3237 = vadd.f32 %v3236, 1.0
    %v3238 = vmul.f32 %v3234, %v3237
    %3239 = vadd.xlane.f32.xlu0 %v3238
    %v3240 = vpop.xlane.xlu0 %3239
    %v3241 = vmul.f32 %v3240, 0.03125
    %v3242 = vsub.f32 %v3238, %v3241
    %v3243 = vmul.f32 %v3242, %v2553
    %v3244 = vmul.f32 %v3243, %v3243
    %3245 = vadd.xlane.f32.xlu0 %v3244
    %v3246 = vpop.xlane.xlu0 %3245
    %v3247 = vmul.f32 %v3246, 0.03125
    %v3248 = vadd.f32 %v3247, 1e-05
    %v3249 = vrsqrt.pop %v3248
    %v3250 = vmul.f32 %v3243, %v3249
    %v3251 = vlaneseq
    %v3252 = vshrl.u32 %v3251, 7
    %v3253 = vsub.s32 1, %v3252
    %v3254 = vrot.slane %v2588, %v3253
    %v3255 = vmul.f32 %v3250, %v3254
    %v3256 = vlaneseq
    %v3257 = vshrl.u32 %v3256, 7
    %v3258 = vsub.s32 2, %v3257
    %v3259 = vrot.slane %v2588, %v3258
    %v3260 = vadd.f32 %v3255, %v3259
    %v3261 = vcvt.s32.f32 %v1583
    %v3262 = vmul.f32 %v3261, -0.9868222
    %v3263 = vmul.f32 %v3262, 1.442695
    %v3264 = vpow.pop %v3263
    %v3265 = vld [vmem:[%s1] sm:$0xff]
    %3267 = vset.pattern.permute.xlu0 0
    %3268 = vperm.xlu0 %3267, %v3265
    %v3269 = vpop.permute.xlu0 %3268
    %v3271 = vmul.f32 %v3269, %v3264
    %v3272 = vand.u32 2147483647, %v3271
    %vm3273 = vcmp.le.f32.partialorder %v3272, 0.7853982
    %vm3274 = vcmp.lt.s32.totalorder %v3271, 0
    %v3275 = vand.u32 %v3271, 2139095040
    %v3276 = vshrl.u32 %v3275, 23
    %v3277 = vsub.s32 %v3276, 127
    %v3278 = vand.u32 2147483647, %v3271
    %v3279 = vand.u32 %v3278, 8388607
    %v3280 = vor.u32 %v3279, 8388608
    %v3281 = vsub.s32 0, %v3280
    %v3282 = vadd.s32 %v3277, 1
    %vm3283 = vcmp.gt.s32.totalorder %v3282, 0
    %v3284 = vsel %vm3283, %v3282, 0
    %v3285 = vshrl.u32 %v3284, 5
    %v3286 = vand.u32 %v3284, 31
    %v3287 = vsub.s32 32, %v3286
    %v3288 = vshrl.u32 683565275, %v3287
    %v3289 = vshll.u32 683565275, %v3286
    %v3290 = vshrl.u32 2475754826, %v3287
    %v3291 = vor.u32 %v3289, %v3290
    %v3292 = vshll.u32 2475754826, %v3286
    %v3293 = vshrl.u32 2131351028, %v3287
    %v3294 = vor.u32 %v3292, %v3293
    %v3295 = vshll.u32 2131351028, %v3286
    %v3296 = vshrl.u32 2102212464, %v3287
    %v3297 = vor.u32 %v3295, %v3296
    %v3298 = vshll.u32 2102212464, %v3286
    %v3299 = vshrl.u32 920167782, %v3287
    %v3300 = vor.u32 %v3298, %v3299
    %v3301 = vshll.u32 920167782, %v3286
    %v3302 = vshrl.u32 1326507024, %v3287
    %v3303 = vor.u32 %v3301, %v3302
    %vm3304 = vcmp.lt.s32.totalorder %v3285, 1
    %vm3305 = vcmp.lt.s32.totalorder %v3285, 2
    %vm3306 = vcmp.lt.s32.totalorder %v3285, 3
    %vm3307 = vcmp.lt.s32.totalorder %v3285, 4
    %v3308 = vsel %vm3304, %v3288, %v3291
    %v3309 = vsel %vm3307, %v3297, 2102212464
    %v3310 = vsel %vm3306, %v3294, %v3309
    %v3311 = vsel %vm3305, %v3308, %v3310
    %v3312 = vsel %vm3304, %v3291, %v3294
    %v3313 = vsel %vm3307, %v3300, 920167782
    %v3314 = vsel %vm3306, %v3297, %v3313
    %v3315 = vsel %vm3305, %v3312, %v3314
    %v3316 = vsel %vm3304, %v3294, %v3297
    %v3317 = vsel %vm3307, %v3303, 1326507024
    %v3318 = vsel %vm3306, %v3300, %v3317
    %v3319 = vsel %vm3305, %v3316, %v3318
    %v3320 = vshll.u32 %v3280, 8
    %v3321 = vmul.u32.u64.compose %v3320, %v3319
    %v3322 = vextract.low.u32 %v3321
    %v3323 = vextract.high.u32 %v3321
    %v3324 = vmul.u32.u64.compose %v3320, %v3315
    %v3325 = vextract.low.u32 %v3324
    %v3326 = vextract.high.u32 %v3324
    %v3327 = vmul.u32 %v3320, %v3311
    %v3328 = vadd.s32 %v3323, %v3325
    %vm3329 = vc.u32 %v3323, %v3325
    %v3330 = vadd.s32 %v3326, 1
    %v3331 = vsel %vm3329, %v3330, %v3326
    %v3332 = vadd.s32 %v3327, %v3331
    %v3333 = vadd.s32 %v3332, 536870912
    %v3334 = vshrl.u32 %v3333, 30
    %v3335 = vshll.u32 %v3334, 30
    %v3336 = vsub.s32 %v3332, %v3335
    %vm3337 = vcmp.lt.s32.totalorder %v3336, 0
    %v3338 = vsub.s32 0, %v3336
    %v3339 = vsel %vm3337, %v3338, %v3336
    %v3340 = vclz %v3339
    %v3341 = vsub.s32 %v3340, 2
    %vm3342 = vcmp.gt.s32.totalorder 0, %v3341
    %v3343 = vsel %vm3342, 0, %v3341
    %v3344 = vsub.s32 32, %v3343
    %v3345 = vshll.u32 %v3336, %v3343
    %v3346 = vshrl.u32 %v3328, %v3344
    %v3347 = vor.u32 %v3345, %v3346
    %v3348 = vsub.s32 4294967266, %v3343
    %v3349 = vadd.s32 %v3348, 127
    %v3350 = vshll.u32 %v3349, 23
    %v3351 = vor.u32 4788187, %v3350
    %v3352 = vand.u32 2147483647, %v3351
    %v3354 = vcvt.s32.f32 %v3347
    %v3355 = vmul.f32 %v3354, %v3352
    %v3356 = vxor.u32 %v3355, 2147483648
    %v3357 = vsel %vm3274, %v3356, %v3355
    %v3358 = vsub.s32 4, %v3334
    %v3359 = vsel %vm3274, %v3358, %v3334
    %v3360 = vsel %vm3273, %v3271, %v3357
    %v3361 = vsel %vm3273, 0, %v3359
    %v3362 = vcosq.f32.pop %v3360
    %v3363 = vsinq.f32.pop %v3360
    %vm3364 = vweird.f32 %v3271
    %v3365 = vadd.s32 %v3361, 3
    %v3366 = vand.u32 %v3365, 3
    %vm3367 = vcmp.lt.s32.totalorder %v3366, 2
    %vm3368 = vcmp.eq.s32.totalorder %v3366, 0
    %v3369 = vxor.u32 %v3363, 2147483648
    %v3370 = vsel %vm3368, %v3362, %v3369
    %vm3371 = vcmp.eq.s32.totalorder %v3366, 2
    %v3372 = vxor.u32 %v3362, 2147483648
    %v3373 = vsel %vm3371, %v3372, %v3363
    %v3374 = vsel %vm3367, %v3370, %v3373
    %v3375 = vsel %vm3364, nan, %v3374
    %v3376 = vld [vmem:[%s10] sm:$0xff]
    %v3377 = vld [vmem:[%s10 + $0x8] sm:$0xff]
    %v3378 = vld [vmem:[%s10 + $0x10] sm:$0xff]
    %v3379 = vld [vmem:[%s10 + $0x18] sm:$0xff]
    %v3380 = vand.u32 2147483647, %v3271
    %vm3381 = vcmp.le.f32.partialorder %v3380, 0.7853982
    %vm3382 = vcmp.lt.s32.totalorder %v3271, 0
    %v3383 = vand.u32 %v3271, 2139095040
    %v3384 = vshrl.u32 %v3383, 23
    %v3385 = vsub.s32 %v3384, 127
    %v3386 = vand.u32 2147483647, %v3271
    %v3387 = vand.u32 %v3386, 8388607
    %v3388 = vor.u32 %v3387, 8388608
    %v3389 = vsub.s32 0, %v3388
    %v3390 = vadd.s32 %v3385, 1
    %vm3391 = vcmp.gt.s32.totalorder %v3390, 0
    %v3392 = vsel %vm3391, %v3390, 0
    %v3393 = vshrl.u32 %v3392, 5
    %v3394 = vand.u32 %v3392, 31
    %v3395 = vsub.s32 32, %v3394
    %v3396 = vshrl.u32 683565275, %v3395
    %v3397 = vshll.u32 683565275, %v3394
    %v3398 = vshrl.u32 2475754826, %v3395
    %v3399 = vor.u32 %v3397, %v3398
    %v3400 = vshll.u32 2475754826, %v3394
    %v3401 = vshrl.u32 2131351028, %v3395
    %v3402 = vor.u32 %v3400, %v3401
    %v3403 = vshll.u32 2131351028, %v3394
    %v3404 = vshrl.u32 2102212464, %v3395
    %v3405 = vor.u32 %v3403, %v3404
    %v3406 = vshll.u32 2102212464, %v3394
    %v3407 = vshrl.u32 920167782, %v3395
    %v3408 = vor.u32 %v3406, %v3407
    %v3409 = vshll.u32 920167782, %v3394
    %v3410 = vshrl.u32 1326507024, %v3395
    %v3411 = vor.u32 %v3409, %v3410
    %vm3412 = vcmp.lt.s32.totalorder %v3393, 1
    %vm3413 = vcmp.lt.s32.totalorder %v3393, 2
    %vm3414 = vcmp.lt.s32.totalorder %v3393, 3
    %vm3415 = vcmp.lt.s32.totalorder %v3393, 4
    %v3416 = vsel %vm3412, %v3396, %v3399
    %v3417 = vsel %vm3415, %v3405, 2102212464
    %v3418 = vsel %vm3414, %v3402, %v3417
    %v3419 = vsel %vm3413, %v3416, %v3418
    %v3420 = vsel %vm3412, %v3399, %v3402
    %v3421 = vsel %vm3415, %v3408, 920167782
    %v3422 = vsel %vm3414, %v3405, %v3421
    %v3423 = vsel %vm3413, %v3420, %v3422
    %v3424 = vsel %vm3412, %v3402, %v3405
    %v3425 = vsel %vm3415, %v3411, 1326507024
    %v3426 = vsel %vm3414, %v3408, %v3425
    %v3427 = vsel %vm3413, %v3424, %v3426
    %v3428 = vshll.u32 %v3388, 8
    %v3429 = vmul.u32.u64.compose %v3428, %v3427
    %v3430 = vextract.low.u32 %v3429
    %v3431 = vextract.high.u32 %v3429
    %v3432 = vmul.u32.u64.compose %v3428, %v3423
    %v3433 = vextract.low.u32 %v3432
    %v3434 = vextract.high.u32 %v3432
    %v3435 = vmul.u32 %v3428, %v3419
    %v3436 = vadd.s32 %v3431, %v3433
    %vm3437 = vc.u32 %v3431, %v3433
    %v3438 = vadd.s32 %v3434, 1
    %v3439 = vsel %vm3437, %v3438, %v3434
    %v3440 = vadd.s32 %v3435, %v3439
    %v3441 = vadd.s32 %v3440, 536870912
    %v3442 = vshrl.u32 %v3441, 30
    %v3443 = vshll.u32 %v3442, 30
    %v3444 = vsub.s32 %v3440, %v3443
    %vm3445 = vcmp.lt.s32.totalorder %v3444, 0
    %v3446 = vsub.s32 0, %v3444
    %v3447 = vsel %vm3445, %v3446, %v3444
    %v3448 = vclz %v3447
    %v3449 = vsub.s32 %v3448, 2
    %vm3450 = vcmp.gt.s32.totalorder 0, %v3449
    %v3451 = vsel %vm3450, 0, %v3449
    %v3452 = vsub.s32 32, %v3451
    %v3453 = vshll.u32 %v3444, %v3451
    %v3454 = vshrl.u32 %v3436, %v3452
    %v3455 = vor.u32 %v3453, %v3454
    %v3456 = vsub.s32 4294967266, %v3451
    %v3457 = vadd.s32 %v3456, 127
    %v3458 = vshll.u32 %v3457, 23
    %v3459 = vor.u32 4788187, %v3458
    %v3460 = vand.u32 2147483647, %v3459
    %v3462 = vcvt.s32.f32 %v3455
    %v3463 = vmul.f32 %v3462, %v3460
    %v3464 = vxor.u32 %v3463, 2147483648
    %v3465 = vsel %vm3382, %v3464, %v3463
    %v3466 = vsub.s32 4, %v3442
    %v3467 = vsel %vm3382, %v3466, %v3442
    %v3468 = vsel %vm3381, %v3271, %v3465
    %v3469 = vsel %vm3381, 0, %v3467
    %v3470 = vcosq.f32.pop %v3468
    %v3471 = vsinq.f32.pop %v3468
    %vm3472 = vweird.f32 %v3271
    %v3473 = vand.u32 %v3469, 3
    %vm3474 = vcmp.lt.s32.totalorder %v3473, 2
    %vm3475 = vcmp.eq.s32.totalorder %v3473, 0
    %v3476 = vxor.u32 %v3471, 2147483648
    %v3477 = vsel %vm3475, %v3470, %v3476
    %vm3478 = vcmp.eq.s32.totalorder %v3473, 2
    %v3479 = vxor.u32 %v3470, 2147483648
    %v3480 = vsel %vm3478, %v3479, %v3471
    %v3481 = vsel %vm3474, %v3477, %v3480
    %v3482 = vsel %vm3472, nan, %v3481
    %v3483 = vld [vmem:[%s11] sm:$0xff]
    %v3484 = vld [vmem:[%s11 + $0x8] sm:$0xff]
    %v3485 = vld [vmem:[%s11 + $0x10] sm:$0xff]
    %v3486 = vld [vmem:[%s11 + $0x18] sm:$0xff]
    %v3488 = vsel %vm205, %v3482, 0
    %3490 = vmatprep.subr.mxu0 0.0
    %3491 = vmatpush1.msra.mxu0 0.0
    %3492 = vmatprep.subr.mxu0 0.0
    %3493 = vmatpush1.msra.mxu0 0.0
    %3494 = vmatprep.subr.mxu0 0.0
    %3495 = vmatpush1.msra.mxu0 0.0
    %3496 = vmatprep.subr.mxu0 0.0
    %3497 = vmatpush1.msra.mxu0 0.0
    %3498 = vmatprep.subr.mxu0 0.0
    %3499 = vmatpush1.msra.mxu0 0.0
    %3500 = vmatprep.subr.mxu0 0.0
    %3501 = vmatpush1.msra.mxu0 0.0
    %3502 = vmatprep.subr.mxu0 0.0
    %3503 = vmatpush1.msra.mxu0 0.0
    %3504 = vmatprep.subr.mxu0 0.0
    %3505 = vmatpush1.msra.mxu0 0.0
    %3506 = vmatprep.subr.mxu0 0.0
    %3507 = vmatpush1.msra.mxu0 0.0
    %3508 = vmatprep.subr.mxu0 0.0
    %3509 = vmatpush1.msra.mxu0 0.0
    %3510 = vmatprep.subr.mxu0 0.0
    %3511 = vmatpush1.msra.mxu0 0.0
    %3512 = vmatprep.subr.mxu0 0.0
    %3513 = vmatpush1.msra.mxu0 0.0
    %3514 = vmatprep.subr.mxu0 0.0
    %3515 = vmatpush1.msra.mxu0 0.0
    %3516 = vmatprep.subr.mxu0 0.0
    %3517 = vmatpush1.msra.mxu0 0.0
    %3518 = vmatprep.subr.mxu0 0.0
    %3519 = vmatpush1.msra.mxu0 0.0
    %v3520 = vand.u32 %v3484, 4294901760
    %3521 = vmatprep.subr.mxu0 %v3520
    %v3522 = vand.u32 %v3483, 4294901760
    %3523 = vmatpush1.msra.mxu0 %v3522
    %3524 = vmatprep.subr.mxu0 0.0
    %3525 = vmatpush2.msra.mxu0 0.0
    %3526 = vmatprep.subr.mxu0 0.0
    %3527 = vmatpush2.msra.mxu0 0.0
    %3528 = vmatprep.subr.mxu0 0.0
    %3529 = vmatpush2.msra.mxu0 0.0
    %3530 = vmatprep.subr.mxu0 0.0
    %3531 = vmatpush2.msra.mxu0 0.0
    %3532 = vmatprep.subr.mxu0 0.0
    %3533 = vmatpush2.msra.mxu0 0.0
    %3534 = vmatprep.subr.mxu0 0.0
    %3535 = vmatpush2.msra.mxu0 0.0
    %3536 = vmatprep.subr.mxu0 0.0
    %3537 = vmatpush2.msra.mxu0 0.0
    %3538 = vmatprep.subr.mxu0 0.0
    %3539 = vmatpush2.msra.mxu0 0.0
    %3540 = vmatprep.subr.mxu0 0.0
    %3541 = vmatpush2.msra.mxu0 0.0
    %3542 = vmatprep.subr.mxu0 0.0
    %3543 = vmatpush2.msra.mxu0 0.0
    %3544 = vmatprep.subr.mxu0 0.0
    %3545 = vmatpush2.msra.mxu0 0.0
    %3546 = vmatprep.subr.mxu0 0.0
    %3547 = vmatpush2.msra.mxu0 0.0
    %3548 = vmatprep.subr.mxu0 0.0
    %3549 = vmatpush2.msra.mxu0 0.0
    %3550 = vmatprep.subr.mxu0 0.0
    %3551 = vmatpush2.msra.mxu0 0.0
    %3552 = vmatprep.subr.mxu0 0.0
    %3553 = vmatpush2.msra.mxu0 0.0
    %3554 = vmatprep.subr.mxu0 0.0
    %3555 = vmatpush2.msra.mxu0 0.0
    %3556 = vmatprep.mubr.f32.mxu0 0.0
    %v3557 = vand.u32 %v3488, 4294901760
    %v3558 = vsub.f32 %v3488, %v3557
    %v3559 = vand.u32 %v3558, 4294901760
    %v3560 = vsub.f32 %v3558, %v3559
    %v3561 = vand.u32 %v3560, 4294901760
    %3562 = vmatmul.mubr.f32.gmra.mxu0 %v3561
    %v3563 = vpop.f32.mrf.mxu0
    %v3564 = vadd.f32 0.0, %v3563
    %v3565 = vpop.f32.mrf.mxu0
    %v3566 = vadd.f32 0.0, %v3565
    %3567 = vdwg.mxu0
    %3568 = vmatprep.subr.mxu0 0.0
    %3569 = vmatpush1.msra.mxu0 0.0
    %3570 = vmatprep.subr.mxu0 0.0
    %3571 = vmatpush1.msra.mxu0 0.0
    %3572 = vmatprep.subr.mxu0 0.0
    %3573 = vmatpush1.msra.mxu0 0.0
    %3574 = vmatprep.subr.mxu0 0.0
    %3575 = vmatpush1.msra.mxu0 0.0
    %3576 = vmatprep.subr.mxu0 0.0
    %3577 = vmatpush1.msra.mxu0 0.0
    %3578 = vmatprep.subr.mxu0 0.0
    %3579 = vmatpush1.msra.mxu0 0.0
    %3580 = vmatprep.subr.mxu0 0.0
    %3581 = vmatpush1.msra.mxu0 0.0
    %3582 = vmatprep.subr.mxu0 0.0
    %3583 = vmatpush1.msra.mxu0 0.0
    %3584 = vmatprep.subr.mxu0 0.0
    %3585 = vmatpush1.msra.mxu0 0.0
    %3586 = vmatprep.subr.mxu0 0.0
    %3587 = vmatpush1.msra.mxu0 0.0
    %3588 = vmatprep.subr.mxu0 0.0
    %3589 = vmatpush1.msra.mxu0 0.0
    %3590 = vmatprep.subr.mxu0 0.0
    %3591 = vmatpush1.msra.mxu0 0.0
    %3592 = vmatprep.subr.mxu0 0.0
    %3593 = vmatpush1.msra.mxu0 0.0
    %3594 = vmatprep.subr.mxu0 0.0
    %3595 = vmatpush1.msra.mxu0 0.0
    %3596 = vmatprep.subr.mxu0 0.0
    %3597 = vmatpush1.msra.mxu0 0.0
    %v3598 = vand.u32 %v3484, 4294901760
    %v3599 = vsub.f32 %v3484, %v3598
    %v3600 = vand.u32 %v3599, 4294901760
    %v3601 = vsub.f32 %v3599, %v3600
    %v3602 = vand.u32 %v3601, 4294901760
    %3603 = vmatprep.subr.mxu0 %v3602
    %v3604 = vand.u32 %v3483, 4294901760
    %v3605 = vsub.f32 %v3483, %v3604
    %v3606 = vand.u32 %v3605, 4294901760
    %v3607 = vsub.f32 %v3605, %v3606
    %v3608 = vand.u32 %v3607, 4294901760
    %3609 = vmatpush1.msra.mxu0 %v3608
    %3610 = vmatprep.subr.mxu0 0.0
    %3611 = vmatpush2.msra.mxu0 0.0
    %3612 = vmatprep.subr.mxu0 0.0
    %3613 = vmatpush2.msra.mxu0 0.0
    %3614 = vmatprep.subr.mxu0 0.0
    %3615 = vmatpush2.msra.mxu0 0.0
    %3616 = vmatprep.subr.mxu0 0.0
    %3617 = vmatpush2.msra.mxu0 0.0
    %3618 = vmatprep.subr.mxu0 0.0
    %3619 = vmatpush2.msra.mxu0 0.0
    %3620 = vmatprep.subr.mxu0 0.0
    %3621 = vmatpush2.msra.mxu0 0.0
    %3622 = vmatprep.subr.mxu0 0.0
    %3623 = vmatpush2.msra.mxu0 0.0
    %3624 = vmatprep.subr.mxu0 0.0
    %3625 = vmatpush2.msra.mxu0 0.0
    %3626 = vmatprep.subr.mxu0 0.0
    %3627 = vmatpush2.msra.mxu0 0.0
    %3628 = vmatprep.subr.mxu0 0.0
    %3629 = vmatpush2.msra.mxu0 0.0
    %3630 = vmatprep.subr.mxu0 0.0
    %3631 = vmatpush2.msra.mxu0 0.0
    %3632 = vmatprep.subr.mxu0 0.0
    %3633 = vmatpush2.msra.mxu0 0.0
    %3634 = vmatprep.subr.mxu0 0.0
    %3635 = vmatpush2.msra.mxu0 0.0
    %3636 = vmatprep.subr.mxu0 0.0
    %3637 = vmatpush2.msra.mxu0 0.0
    %3638 = vmatprep.subr.mxu0 0.0
    %3639 = vmatpush2.msra.mxu0 0.0
    %3640 = vmatprep.subr.mxu0 0.0
    %3641 = vmatpush2.msra.mxu0 0.0
    %3642 = vmatprep.mubr.f32.mxu0 0.0
    %v3643 = vand.u32 %v3488, 4294901760
    %3644 = vmatmul.mubr.f32.gmra.mxu0 %v3643
    %v3645 = vpop.f32.mrf.mxu0
    %v3646 = vadd.f32 %v3564, %v3645
    %v3647 = vpop.f32.mrf.mxu0
    %v3648 = vadd.f32 %v3566, %v3647
    %3649 = vdwg.mxu0
    %3650 = vmatprep.subr.mxu0 0.0
    %3651 = vmatpush1.msra.mxu0 0.0
    %3652 = vmatprep.subr.mxu0 0.0
    %3653 = vmatpush1.msra.mxu0 0.0
    %3654 = vmatprep.subr.mxu0 0.0
    %3655 = vmatpush1.msra.mxu0 0.0
    %3656 = vmatprep.subr.mxu0 0.0
    %3657 = vmatpush1.msra.mxu0 0.0
    %3658 = vmatprep.subr.mxu0 0.0
    %3659 = vmatpush1.msra.mxu0 0.0
    %3660 = vmatprep.subr.mxu0 0.0
    %3661 = vmatpush1.msra.mxu0 0.0
    %3662 = vmatprep.subr.mxu0 0.0
    %3663 = vmatpush1.msra.mxu0 0.0
    %3664 = vmatprep.subr.mxu0 0.0
    %3665 = vmatpush1.msra.mxu0 0.0
    %3666 = vmatprep.subr.mxu0 0.0
    %3667 = vmatpush1.msra.mxu0 0.0
    %3668 = vmatprep.subr.mxu0 0.0
    %3669 = vmatpush1.msra.mxu0 0.0
    %3670 = vmatprep.subr.mxu0 0.0
    %3671 = vmatpush1.msra.mxu0 0.0
    %3672 = vmatprep.subr.mxu0 0.0
    %3673 = vmatpush1.msra.mxu0 0.0
    %3674 = vmatprep.subr.mxu0 0.0
    %3675 = vmatpush1.msra.mxu0 0.0
    %3676 = vmatprep.subr.mxu0 0.0
    %3677 = vmatpush1.msra.mxu0 0.0
    %3678 = vmatprep.subr.mxu0 0.0
    %3679 = vmatpush1.msra.mxu0 0.0
    %v3680 = vand.u32 %v3484, 4294901760
    %v3681 = vsub.f32 %v3484, %v3680
    %3682 = vmatprep.subr.mxu0 %v3681
    %v3683 = vand.u32 %v3483, 4294901760
    %v3684 = vsub.f32 %v3483, %v3683
    %3685 = vmatpush1.msra.mxu0 %v3684
    %3686 = vmatprep.subr.mxu0 0.0
    %3687 = vmatpush2.msra.mxu0 0.0
    %3688 = vmatprep.subr.mxu0 0.0
    %3689 = vmatpush2.msra.mxu0 0.0
    %3690 = vmatprep.subr.mxu0 0.0
    %3691 = vmatpush2.msra.mxu0 0.0
    %3692 = vmatprep.subr.mxu0 0.0
    %3693 = vmatpush2.msra.mxu0 0.0
    %3694 = vmatprep.subr.mxu0 0.0
    %3695 = vmatpush2.msra.mxu0 0.0
    %3696 = vmatprep.subr.mxu0 0.0
    %3697 = vmatpush2.msra.mxu0 0.0
    %3698 = vmatprep.subr.mxu0 0.0
    %3699 = vmatpush2.msra.mxu0 0.0
    %3700 = vmatprep.subr.mxu0 0.0
    %3701 = vmatpush2.msra.mxu0 0.0
    %3702 = vmatprep.subr.mxu0 0.0
    %3703 = vmatpush2.msra.mxu0 0.0
    %3704 = vmatprep.subr.mxu0 0.0
    %3705 = vmatpush2.msra.mxu0 0.0
    %3706 = vmatprep.subr.mxu0 0.0
    %3707 = vmatpush2.msra.mxu0 0.0
    %3708 = vmatprep.subr.mxu0 0.0
    %3709 = vmatpush2.msra.mxu0 0.0
    %3710 = vmatprep.subr.mxu0 0.0
    %3711 = vmatpush2.msra.mxu0 0.0
    %3712 = vmatprep.subr.mxu0 0.0
    %3713 = vmatpush2.msra.mxu0 0.0
    %3714 = vmatprep.subr.mxu0 0.0
    %3715 = vmatpush2.msra.mxu0 0.0
    %3716 = vmatprep.subr.mxu0 0.0
    %3717 = vmatpush2.msra.mxu0 0.0
    %3718 = vmatprep.mubr.f32.mxu0 0.0
    %v3719 = vand.u32 %v3488, 4294901760
    %v3720 = vsub.f32 %v3488, %v3719
    %3721 = vmatmul.mubr.f32.gmra.mxu0 %v3720
    %v3722 = vpop.f32.mrf.mxu0
    %v3723 = vadd.f32 %v3646, %v3722
    %v3724 = vpop.f32.mrf.mxu0
    %v3725 = vadd.f32 %v3648, %v3724
    %3726 = vdwg.mxu0
    %3727 = vmatprep.subr.mxu0 0.0
    %3728 = vmatpush1.msra.mxu0 0.0
    %3729 = vmatprep.subr.mxu0 0.0
    %3730 = vmatpush1.msra.mxu0 0.0
    %3731 = vmatprep.subr.mxu0 0.0
    %3732 = vmatpush1.msra.mxu0 0.0
    %3733 = vmatprep.subr.mxu0 0.0
    %3734 = vmatpush1.msra.mxu0 0.0
    %3735 = vmatprep.subr.mxu0 0.0
    %3736 = vmatpush1.msra.mxu0 0.0
    %3737 = vmatprep.subr.mxu0 0.0
    %3738 = vmatpush1.msra.mxu0 0.0
    %3739 = vmatprep.subr.mxu0 0.0
    %3740 = vmatpush1.msra.mxu0 0.0
    %3741 = vmatprep.subr.mxu0 0.0
    %3742 = vmatpush1.msra.mxu0 0.0
    %3743 = vmatprep.subr.mxu0 0.0
    %3744 = vmatpush1.msra.mxu0 0.0
    %3745 = vmatprep.subr.mxu0 0.0
    %3746 = vmatpush1.msra.mxu0 0.0
    %3747 = vmatprep.subr.mxu0 0.0
    %3748 = vmatpush1.msra.mxu0 0.0
    %3749 = vmatprep.subr.mxu0 0.0
    %3750 = vmatpush1.msra.mxu0 0.0
    %3751 = vmatprep.subr.mxu0 0.0
    %3752 = vmatpush1.msra.mxu0 0.0
    %3753 = vmatprep.subr.mxu0 0.0
    %3754 = vmatpush1.msra.mxu0 0.0
    %3755 = vmatprep.subr.mxu0 0.0
    %3756 = vmatpush1.msra.mxu0 0.0
    %v3757 = vand.u32 %v3484, 4294901760
    %3758 = vmatprep.subr.mxu0 %v3757
    %v3759 = vand.u32 %v3483, 4294901760
    %3760 = vmatpush1.msra.mxu0 %v3759
    %3761 = vmatprep.subr.mxu0 0.0
    %3762 = vmatpush2.msra.mxu0 0.0
    %3763 = vmatprep.subr.mxu0 0.0
    %3764 = vmatpush2.msra.mxu0 0.0
    %3765 = vmatprep.subr.mxu0 0.0
    %3766 = vmatpush2.msra.mxu0 0.0
    %3767 = vmatprep.subr.mxu0 0.0
    %3768 = vmatpush2.msra.mxu0 0.0
    %3769 = vmatprep.subr.mxu0 0.0
    %3770 = vmatpush2.msra.mxu0 0.0
    %3771 = vmatprep.subr.mxu0 0.0
    %3772 = vmatpush2.msra.mxu0 0.0
    %3773 = vmatprep.subr.mxu0 0.0
    %3774 = vmatpush2.msra.mxu0 0.0
    %3775 = vmatprep.subr.mxu0 0.0
    %3776 = vmatpush2.msra.mxu0 0.0
    %3777 = vmatprep.subr.mxu0 0.0
    %3778 = vmatpush2.msra.mxu0 0.0
    %3779 = vmatprep.subr.mxu0 0.0
    %3780 = vmatpush2.msra.mxu0 0.0
    %3781 = vmatprep.subr.mxu0 0.0
    %3782 = vmatpush2.msra.mxu0 0.0
    %3783 = vmatprep.subr.mxu0 0.0
    %3784 = vmatpush2.msra.mxu0 0.0
    %3785 = vmatprep.subr.mxu0 0.0
    %3786 = vmatpush2.msra.mxu0 0.0
    %3787 = vmatprep.subr.mxu0 0.0
    %3788 = vmatpush2.msra.mxu0 0.0
    %3789 = vmatprep.subr.mxu0 0.0
    %3790 = vmatpush2.msra.mxu0 0.0
    %3791 = vmatprep.subr.mxu0 0.0
    %3792 = vmatpush2.msra.mxu0 0.0
    %3793 = vmatprep.mubr.f32.mxu0 0.0
    %v3794 = vand.u32 %v3488, 4294901760
    %v3795 = vsub.f32 %v3488, %v3794
    %v3796 = vand.u32 %v3795, 4294901760
    %3797 = vmatmul.mubr.f32.gmra.mxu0 %v3796
    %v3798 = vpop.f32.mrf.mxu0
    %v3799 = vadd.f32 %v3723, %v3798
    %v3800 = vpop.f32.mrf.mxu0
    %v3801 = vadd.f32 %v3725, %v3800
    %3802 = vdwg.mxu0
    %3803 = vmatprep.subr.mxu0 0.0
    %3804 = vmatpush1.msra.mxu0 0.0
    %3805 = vmatprep.subr.mxu0 0.0
    %3806 = vmatpush1.msra.mxu0 0.0
    %3807 = vmatprep.subr.mxu0 0.0
    %3808 = vmatpush1.msra.mxu0 0.0
    %3809 = vmatprep.subr.mxu0 0.0
    %3810 = vmatpush1.msra.mxu0 0.0
    %3811 = vmatprep.subr.mxu0 0.0
    %3812 = vmatpush1.msra.mxu0 0.0
    %3813 = vmatprep.subr.mxu0 0.0
    %3814 = vmatpush1.msra.mxu0 0.0
    %3815 = vmatprep.subr.mxu0 0.0
    %3816 = vmatpush1.msra.mxu0 0.0
    %3817 = vmatprep.subr.mxu0 0.0
    %3818 = vmatpush1.msra.mxu0 0.0
    %3819 = vmatprep.subr.mxu0 0.0
    %3820 = vmatpush1.msra.mxu0 0.0
    %3821 = vmatprep.subr.mxu0 0.0
    %3822 = vmatpush1.msra.mxu0 0.0
    %3823 = vmatprep.subr.mxu0 0.0
    %3824 = vmatpush1.msra.mxu0 0.0
    %3825 = vmatprep.subr.mxu0 0.0
    %3826 = vmatpush1.msra.mxu0 0.0
    %3827 = vmatprep.subr.mxu0 0.0
    %3828 = vmatpush1.msra.mxu0 0.0
    %3829 = vmatprep.subr.mxu0 0.0
    %3830 = vmatpush1.msra.mxu0 0.0
    %3831 = vmatprep.subr.mxu0 0.0
    %3832 = vmatpush1.msra.mxu0 0.0
    %v3833 = vand.u32 %v3484, 4294901760
    %v3834 = vsub.f32 %v3484, %v3833
    %v3835 = vand.u32 %v3834, 4294901760
    %3836 = vmatprep.subr.mxu0 %v3835
    %v3837 = vand.u32 %v3483, 4294901760
    %v3838 = vsub.f32 %v3483, %v3837
    %v3839 = vand.u32 %v3838, 4294901760
    %3840 = vmatpush1.msra.mxu0 %v3839
    %3841 = vmatprep.subr.mxu0 0.0
    %3842 = vmatpush2.msra.mxu0 0.0
    %3843 = vmatprep.subr.mxu0 0.0
    %3844 = vmatpush2.msra.mxu0 0.0
    %3845 = vmatprep.subr.mxu0 0.0
    %3846 = vmatpush2.msra.mxu0 0.0
    %3847 = vmatprep.subr.mxu0 0.0
    %3848 = vmatpush2.msra.mxu0 0.0
    %3849 = vmatprep.subr.mxu0 0.0
    %3850 = vmatpush2.msra.mxu0 0.0
    %3851 = vmatprep.subr.mxu0 0.0
    %3852 = vmatpush2.msra.mxu0 0.0
    %3853 = vmatprep.subr.mxu0 0.0
    %3854 = vmatpush2.msra.mxu0 0.0
    %3855 = vmatprep.subr.mxu0 0.0
    %3856 = vmatpush2.msra.mxu0 0.0
    %3857 = vmatprep.subr.mxu0 0.0
    %3858 = vmatpush2.msra.mxu0 0.0
    %3859 = vmatprep.subr.mxu0 0.0
    %3860 = vmatpush2.msra.mxu0 0.0
    %3861 = vmatprep.subr.mxu0 0.0
    %3862 = vmatpush2.msra.mxu0 0.0
    %3863 = vmatprep.subr.mxu0 0.0
    %3864 = vmatpush2.msra.mxu0 0.0
    %3865 = vmatprep.subr.mxu0 0.0
    %3866 = vmatpush2.msra.mxu0 0.0
    %3867 = vmatprep.subr.mxu0 0.0
    %3868 = vmatpush2.msra.mxu0 0.0
    %3869 = vmatprep.subr.mxu0 0.0
    %3870 = vmatpush2.msra.mxu0 0.0
    %3871 = vmatprep.subr.mxu0 0.0
    %3872 = vmatpush2.msra.mxu0 0.0
    %3873 = vmatprep.mubr.f32.mxu0 0.0
    %v3874 = vand.u32 %v3488, 4294901760
    %3875 = vmatmul.mubr.f32.gmra.mxu0 %v3874
    %v3876 = vpop.f32.mrf.mxu0
    %v3877 = vadd.f32 %v3799, %v3876
    %v3878 = vpop.f32.mrf.mxu0
    %v3879 = vadd.f32 %v3801, %v3878
    %3880 = vdwg.mxu0
    %3881 = vmatprep.subr.mxu0 0.0
    %3882 = vmatpush1.msra.mxu0 0.0
    %3883 = vmatprep.subr.mxu0 0.0
    %3884 = vmatpush1.msra.mxu0 0.0
    %3885 = vmatprep.subr.mxu0 0.0
    %3886 = vmatpush1.msra.mxu0 0.0
    %3887 = vmatprep.subr.mxu0 0.0
    %3888 = vmatpush1.msra.mxu0 0.0
    %3889 = vmatprep.subr.mxu0 0.0
    %3890 = vmatpush1.msra.mxu0 0.0
    %3891 = vmatprep.subr.mxu0 0.0
    %3892 = vmatpush1.msra.mxu0 0.0
    %3893 = vmatprep.subr.mxu0 0.0
    %3894 = vmatpush1.msra.mxu0 0.0
    %3895 = vmatprep.subr.mxu0 0.0
    %3896 = vmatpush1.msra.mxu0 0.0
    %3897 = vmatprep.subr.mxu0 0.0
    %3898 = vmatpush1.msra.mxu0 0.0
    %3899 = vmatprep.subr.mxu0 0.0
    %3900 = vmatpush1.msra.mxu0 0.0
    %3901 = vmatprep.subr.mxu0 0.0
    %3902 = vmatpush1.msra.mxu0 0.0
    %3903 = vmatprep.subr.mxu0 0.0
    %3904 = vmatpush1.msra.mxu0 0.0
    %3905 = vmatprep.subr.mxu0 0.0
    %3906 = vmatpush1.msra.mxu0 0.0
    %3907 = vmatprep.subr.mxu0 0.0
    %3908 = vmatpush1.msra.mxu0 0.0
    %3909 = vmatprep.subr.mxu0 0.0
    %3910 = vmatpush1.msra.mxu0 0.0
    %v3911 = vand.u32 %v3484, 4294901760
    %3912 = vmatprep.subr.mxu0 %v3911
    %v3913 = vand.u32 %v3483, 4294901760
    %3914 = vmatpush1.msra.mxu0 %v3913
    %3915 = vmatprep.subr.mxu0 0.0
    %3916 = vmatpush2.msra.mxu0 0.0
    %3917 = vmatprep.subr.mxu0 0.0
    %3918 = vmatpush2.msra.mxu0 0.0
    %3919 = vmatprep.subr.mxu0 0.0
    %3920 = vmatpush2.msra.mxu0 0.0
    %3921 = vmatprep.subr.mxu0 0.0
    %3922 = vmatpush2.msra.mxu0 0.0
    %3923 = vmatprep.subr.mxu0 0.0
    %3924 = vmatpush2.msra.mxu0 0.0
    %3925 = vmatprep.subr.mxu0 0.0
    %3926 = vmatpush2.msra.mxu0 0.0
    %3927 = vmatprep.subr.mxu0 0.0
    %3928 = vmatpush2.msra.mxu0 0.0
    %3929 = vmatprep.subr.mxu0 0.0
    %3930 = vmatpush2.msra.mxu0 0.0
    %3931 = vmatprep.subr.mxu0 0.0
    %3932 = vmatpush2.msra.mxu0 0.0
    %3933 = vmatprep.subr.mxu0 0.0
    %3934 = vmatpush2.msra.mxu0 0.0
    %3935 = vmatprep.subr.mxu0 0.0
    %3936 = vmatpush2.msra.mxu0 0.0
    %3937 = vmatprep.subr.mxu0 0.0
    %3938 = vmatpush2.msra.mxu0 0.0
    %3939 = vmatprep.subr.mxu0 0.0
    %3940 = vmatpush2.msra.mxu0 0.0
    %3941 = vmatprep.subr.mxu0 0.0
    %3942 = vmatpush2.msra.mxu0 0.0
    %3943 = vmatprep.subr.mxu0 0.0
    %3944 = vmatpush2.msra.mxu0 0.0
    %3945 = vmatprep.subr.mxu0 0.0
    %3946 = vmatpush2.msra.mxu0 0.0
    %3947 = vmatprep.mubr.f32.mxu0 0.0
    %v3948 = vand.u32 %v3488, 4294901760
    %3949 = vmatmul.mubr.f32.gmra.mxu0 %v3948
    %v3950 = vpop.f32.mrf.mxu0
    %v3951 = vadd.f32 %v3877, %v3950
    %v3952 = vpop.f32.mrf.mxu0
    %v3953 = vadd.f32 %v3879, %v3952
    %3954 = vdwg.mxu0
    %3955 = vmatprep.subr.mxu0 0.0
    %3956 = vmatpush1.msra.mxu0 0.0
    %3957 = vmatprep.subr.mxu0 0.0
    %3958 = vmatpush1.msra.mxu0 0.0
    %3959 = vmatprep.subr.mxu0 0.0
    %3960 = vmatpush1.msra.mxu0 0.0
    %3961 = vmatprep.subr.mxu0 0.0
    %3962 = vmatpush1.msra.mxu0 0.0
    %3963 = vmatprep.subr.mxu0 0.0
    %3964 = vmatpush1.msra.mxu0 0.0
    %3965 = vmatprep.subr.mxu0 0.0
    %3966 = vmatpush1.msra.mxu0 0.0
    %3967 = vmatprep.subr.mxu0 0.0
    %3968 = vmatpush1.msra.mxu0 0.0
    %3969 = vmatprep.subr.mxu0 0.0
    %3970 = vmatpush1.msra.mxu0 0.0
    %3971 = vmatprep.subr.mxu0 0.0
    %3972 = vmatpush1.msra.mxu0 0.0
    %3973 = vmatprep.subr.mxu0 0.0
    %3974 = vmatpush1.msra.mxu0 0.0
    %3975 = vmatprep.subr.mxu0 0.0
    %3976 = vmatpush1.msra.mxu0 0.0
    %3977 = vmatprep.subr.mxu0 0.0
    %3978 = vmatpush1.msra.mxu0 0.0
    %3979 = vmatprep.subr.mxu0 0.0
    %3980 = vmatpush1.msra.mxu0 0.0
    %3981 = vmatprep.subr.mxu0 0.0
    %3982 = vmatpush1.msra.mxu0 0.0
    %3983 = vmatprep.subr.mxu0 0.0
    %3984 = vmatpush1.msra.mxu0 0.0
    %v3985 = vand.u32 %v3486, 4294901760
    %3986 = vmatprep.subr.mxu0 %v3985
    %v3987 = vand.u32 %v3485, 4294901760
    %3988 = vmatpush1.msra.mxu0 %v3987
    %3989 = vmatprep.subr.mxu0 0.0
    %3990 = vmatpush2.msra.mxu0 0.0
    %3991 = vmatprep.subr.mxu0 0.0
    %3992 = vmatpush2.msra.mxu0 0.0
    %3993 = vmatprep.subr.mxu0 0.0
    %3994 = vmatpush2.msra.mxu0 0.0
    %3995 = vmatprep.subr.mxu0 0.0
    %3996 = vmatpush2.msra.mxu0 0.0
    %3997 = vmatprep.subr.mxu0 0.0
    %3998 = vmatpush2.msra.mxu0 0.0
    %3999 = vmatprep.subr.mxu0 0.0
    %4000 = vmatpush2.msra.mxu0 0.0
    %4001 = vmatprep.subr.mxu0 0.0
    %4002 = vmatpush2.msra.mxu0 0.0
    %4003 = vmatprep.subr.mxu0 0.0
    %4004 = vmatpush2.msra.mxu0 0.0
    %4005 = vmatprep.subr.mxu0 0.0
    %4006 = vmatpush2.msra.mxu0 0.0
    %4007 = vmatprep.subr.mxu0 0.0
    %4008 = vmatpush2.msra.mxu0 0.0
    %4009 = vmatprep.subr.mxu0 0.0
    %4010 = vmatpush2.msra.mxu0 0.0
    %4011 = vmatprep.subr.mxu0 0.0
    %4012 = vmatpush2.msra.mxu0 0.0
    %4013 = vmatprep.subr.mxu0 0.0
    %4014 = vmatpush2.msra.mxu0 0.0
    %4015 = vmatprep.subr.mxu0 0.0
    %4016 = vmatpush2.msra.mxu0 0.0
    %4017 = vmatprep.subr.mxu0 0.0
    %4018 = vmatpush2.msra.mxu0 0.0
    %4019 = vmatprep.subr.mxu0 0.0
    %4020 = vmatpush2.msra.mxu0 0.0
    %4021 = vmatprep.mubr.f32.mxu0 0.0
    %v4022 = vand.u32 %v3488, 4294901760
    %v4023 = vsub.f32 %v3488, %v4022
    %v4024 = vand.u32 %v4023, 4294901760
    %v4025 = vsub.f32 %v4023, %v4024
    %v4026 = vand.u32 %v4025, 4294901760
    %4027 = vmatmul.mubr.f32.gmra.mxu0 %v4026
    %v4028 = vpop.f32.mrf.mxu0
    %v4029 = vadd.f32 0.0, %v4028
    %v4030 = vpop.f32.mrf.mxu0
    %v4031 = vadd.f32 0.0, %v4030
    %4032 = vdwg.mxu0
    %4033 = vmatprep.subr.mxu0 0.0
    %4034 = vmatpush1.msra.mxu0 0.0
    %4035 = vmatprep.subr.mxu0 0.0
    %4036 = vmatpush1.msra.mxu0 0.0
    %4037 = vmatprep.subr.mxu0 0.0
    %4038 = vmatpush1.msra.mxu0 0.0
    %4039 = vmatprep.subr.mxu0 0.0
    %4040 = vmatpush1.msra.mxu0 0.0
    %4041 = vmatprep.subr.mxu0 0.0
    %4042 = vmatpush1.msra.mxu0 0.0
    %4043 = vmatprep.subr.mxu0 0.0
    %4044 = vmatpush1.msra.mxu0 0.0
    %4045 = vmatprep.subr.mxu0 0.0
    %4046 = vmatpush1.msra.mxu0 0.0
    %4047 = vmatprep.subr.mxu0 0.0
    %4048 = vmatpush1.msra.mxu0 0.0
    %4049 = vmatprep.subr.mxu0 0.0
    %4050 = vmatpush1.msra.mxu0 0.0
    %4051 = vmatprep.subr.mxu0 0.0
    %4052 = vmatpush1.msra.mxu0 0.0
    %4053 = vmatprep.subr.mxu0 0.0
    %4054 = vmatpush1.msra.mxu0 0.0
    %4055 = vmatprep.subr.mxu0 0.0
    %4056 = vmatpush1.msra.mxu0 0.0
    %4057 = vmatprep.subr.mxu0 0.0
    %4058 = vmatpush1.msra.mxu0 0.0
    %4059 = vmatprep.subr.mxu0 0.0
    %4060 = vmatpush1.msra.mxu0 0.0
    %4061 = vmatprep.subr.mxu0 0.0
    %4062 = vmatpush1.msra.mxu0 0.0
    %v4063 = vand.u32 %v3486, 4294901760
    %v4064 = vsub.f32 %v3486, %v4063
    %v4065 = vand.u32 %v4064, 4294901760
    %v4066 = vsub.f32 %v4064, %v4065
    %v4067 = vand.u32 %v4066, 4294901760
    %4068 = vmatprep.subr.mxu0 %v4067
    %v4069 = vand.u32 %v3485, 4294901760
    %v4070 = vsub.f32 %v3485, %v4069
    %v4071 = vand.u32 %v4070, 4294901760
    %v4072 = vsub.f32 %v4070, %v4071
    %v4073 = vand.u32 %v4072, 4294901760
    %4074 = vmatpush1.msra.mxu0 %v4073
    %4075 = vmatprep.subr.mxu0 0.0
    %4076 = vmatpush2.msra.mxu0 0.0
    %4077 = vmatprep.subr.mxu0 0.0
    %4078 = vmatpush2.msra.mxu0 0.0
    %4079 = vmatprep.subr.mxu0 0.0
    %4080 = vmatpush2.msra.mxu0 0.0
    %4081 = vmatprep.subr.mxu0 0.0
    %4082 = vmatpush2.msra.mxu0 0.0
    %4083 = vmatprep.subr.mxu0 0.0
    %4084 = vmatpush2.msra.mxu0 0.0
    %4085 = vmatprep.subr.mxu0 0.0
    %4086 = vmatpush2.msra.mxu0 0.0
    %4087 = vmatprep.subr.mxu0 0.0
    %4088 = vmatpush2.msra.mxu0 0.0
    %4089 = vmatprep.subr.mxu0 0.0
    %4090 = vmatpush2.msra.mxu0 0.0
    %4091 = vmatprep.subr.mxu0 0.0
    %4092 = vmatpush2.msra.mxu0 0.0
    %4093 = vmatprep.subr.mxu0 0.0
    %4094 = vmatpush2.msra.mxu0 0.0
    %4095 = vmatprep.subr.mxu0 0.0
    %4096 = vmatpush2.msra.mxu0 0.0
    %4097 = vmatprep.subr.mxu0 0.0
    %4098 = vmatpush2.msra.mxu0 0.0
    %4099 = vmatprep.subr.mxu0 0.0
    %4100 = vmatpush2.msra.mxu0 0.0
    %4101 = vmatprep.subr.mxu0 0.0
    %4102 = vmatpush2.msra.mxu0 0.0
    %4103 = vmatprep.subr.mxu0 0.0
    %4104 = vmatpush2.msra.mxu0 0.0
    %4105 = vmatprep.subr.mxu0 0.0
    %4106 = vmatpush2.msra.mxu0 0.0
    %4107 = vmatprep.mubr.f32.mxu0 0.0
    %v4108 = vand.u32 %v3488, 4294901760
    %4109 = vmatmul.mubr.f32.gmra.mxu0 %v4108
    %v4110 = vpop.f32.mrf.mxu0
    %v4111 = vadd.f32 %v4029, %v4110
    %v4112 = vpop.f32.mrf.mxu0
    %v4113 = vadd.f32 %v4031, %v4112
    %4114 = vdwg.mxu0
    %4115 = vmatprep.subr.mxu0 0.0
    %4116 = vmatpush1.msra.mxu0 0.0
    %4117 = vmatprep.subr.mxu0 0.0
    %4118 = vmatpush1.msra.mxu0 0.0
    %4119 = vmatprep.subr.mxu0 0.0
    %4120 = vmatpush1.msra.mxu0 0.0
    %4121 = vmatprep.subr.mxu0 0.0
    %4122 = vmatpush1.msra.mxu0 0.0
    %4123 = vmatprep.subr.mxu0 0.0
    %4124 = vmatpush1.msra.mxu0 0.0
    %4125 = vmatprep.subr.mxu0 0.0
    %4126 = vmatpush1.msra.mxu0 0.0
    %4127 = vmatprep.subr.mxu0 0.0
    %4128 = vmatpush1.msra.mxu0 0.0
    %4129 = vmatprep.subr.mxu0 0.0
    %4130 = vmatpush1.msra.mxu0 0.0
    %4131 = vmatprep.subr.mxu0 0.0
    %4132 = vmatpush1.msra.mxu0 0.0
    %4133 = vmatprep.subr.mxu0 0.0
    %4134 = vmatpush1.msra.mxu0 0.0
    %4135 = vmatprep.subr.mxu0 0.0
    %4136 = vmatpush1.msra.mxu0 0.0
    %4137 = vmatprep.subr.mxu0 0.0
    %4138 = vmatpush1.msra.mxu0 0.0
    %4139 = vmatprep.subr.mxu0 0.0
    %4140 = vmatpush1.msra.mxu0 0.0
    %4141 = vmatprep.subr.mxu0 0.0
    %4142 = vmatpush1.msra.mxu0 0.0
    %4143 = vmatprep.subr.mxu0 0.0
    %4144 = vmatpush1.msra.mxu0 0.0
    %v4145 = vand.u32 %v3486, 4294901760
    %v4146 = vsub.f32 %v3486, %v4145
    %4147 = vmatprep.subr.mxu0 %v4146
    %v4148 = vand.u32 %v3485, 4294901760
    %v4149 = vsub.f32 %v3485, %v4148
    %4150 = vmatpush1.msra.mxu0 %v4149
    %4151 = vmatprep.subr.mxu0 0.0
    %4152 = vmatpush2.msra.mxu0 0.0
    %4153 = vmatprep.subr.mxu0 0.0
    %4154 = vmatpush2.msra.mxu0 0.0
    %4155 = vmatprep.subr.mxu0 0.0
    %4156 = vmatpush2.msra.mxu0 0.0
    %4157 = vmatprep.subr.mxu0 0.0
    %4158 = vmatpush2.msra.mxu0 0.0
    %4159 = vmatprep.subr.mxu0 0.0
    %4160 = vmatpush2.msra.mxu0 0.0
    %4161 = vmatprep.subr.mxu0 0.0
    %4162 = vmatpush2.msra.mxu0 0.0
    %4163 = vmatprep.subr.mxu0 0.0
    %4164 = vmatpush2.msra.mxu0 0.0
    %4165 = vmatprep.subr.mxu0 0.0
    %4166 = vmatpush2.msra.mxu0 0.0
    %4167 = vmatprep.subr.mxu0 0.0
    %4168 = vmatpush2.msra.mxu0 0.0
    %4169 = vmatprep.subr.mxu0 0.0
    %4170 = vmatpush2.msra.mxu0 0.0
    %4171 = vmatprep.subr.mxu0 0.0
    %4172 = vmatpush2.msra.mxu0 0.0
    %4173 = vmatprep.subr.mxu0 0.0
    %4174 = vmatpush2.msra.mxu0 0.0
    %4175 = vmatprep.subr.mxu0 0.0
    %4176 = vmatpush2.msra.mxu0 0.0
    %4177 = vmatprep.subr.mxu0 0.0
    %4178 = vmatpush2.msra.mxu0 0.0
    %4179 = vmatprep.subr.mxu0 0.0
    %4180 = vmatpush2.msra.mxu0 0.0
    %4181 = vmatprep.subr.mxu0 0.0
    %4182 = vmatpush2.msra.mxu0 0.0
    %4183 = vmatprep.mubr.f32.mxu0 0.0
    %v4184 = vand.u32 %v3488, 4294901760
    %v4185 = vsub.f32 %v3488, %v4184
    %4186 = vmatmul.mubr.f32.gmra.mxu0 %v4185
    %v4187 = vpop.f32.mrf.mxu0
    %v4188 = vadd.f32 %v4111, %v4187
    %v4189 = vpop.f32.mrf.mxu0
    %v4190 = vadd.f32 %v4113, %v4189
    %4191 = vdwg.mxu0
    %4192 = vmatprep.subr.mxu0 0.0
    %4193 = vmatpush1.msra.mxu0 0.0
    %4194 = vmatprep.subr.mxu0 0.0
    %4195 = vmatpush1.msra.mxu0 0.0
    %4196 = vmatprep.subr.mxu0 0.0
    %4197 = vmatpush1.msra.mxu0 0.0
    %4198 = vmatprep.subr.mxu0 0.0
    %4199 = vmatpush1.msra.mxu0 0.0
    %4200 = vmatprep.subr.mxu0 0.0
    %4201 = vmatpush1.msra.mxu0 0.0
    %4202 = vmatprep.subr.mxu0 0.0
    %4203 = vmatpush1.msra.mxu0 0.0
    %4204 = vmatprep.subr.mxu0 0.0
    %4205 = vmatpush1.msra.mxu0 0.0
    %4206 = vmatprep.subr.mxu0 0.0
    %4207 = vmatpush1.msra.mxu0 0.0
    %4208 = vmatprep.subr.mxu0 0.0
    %4209 = vmatpush1.msra.mxu0 0.0
    %4210 = vmatprep.subr.mxu0 0.0
    %4211 = vmatpush1.msra.mxu0 0.0
    %4212 = vmatprep.subr.mxu0 0.0
    %4213 = vmatpush1.msra.mxu0 0.0
    %4214 = vmatprep.subr.mxu0 0.0
    %4215 = vmatpush1.msra.mxu0 0.0
    %4216 = vmatprep.subr.mxu0 0.0
    %4217 = vmatpush1.msra.mxu0 0.0
    %4218 = vmatprep.subr.mxu0 0.0
    %4219 = vmatpush1.msra.mxu0 0.0
    %4220 = vmatprep.subr.mxu0 0.0
    %4221 = vmatpush1.msra.mxu0 0.0
    %v4222 = vand.u32 %v3486, 4294901760
    %4223 = vmatprep.subr.mxu0 %v4222
    %v4224 = vand.u32 %v3485, 4294901760
    %4225 = vmatpush1.msra.mxu0 %v4224
    %4226 = vmatprep.subr.mxu0 0.0
    %4227 = vmatpush2.msra.mxu0 0.0
    %4228 = vmatprep.subr.mxu0 0.0
    %4229 = vmatpush2.msra.mxu0 0.0
    %4230 = vmatprep.subr.mxu0 0.0
    %4231 = vmatpush2.msra.mxu0 0.0
    %4232 = vmatprep.subr.mxu0 0.0
    %4233 = vmatpush2.msra.mxu0 0.0
    %4234 = vmatprep.subr.mxu0 0.0
    %4235 = vmatpush2.msra.mxu0 0.0
    %4236 = vmatprep.subr.mxu0 0.0
    %4237 = vmatpush2.msra.mxu0 0.0
    %4238 = vmatprep.subr.mxu0 0.0
    %4239 = vmatpush2.msra.mxu0 0.0
    %4240 = vmatprep.subr.mxu0 0.0
    %4241 = vmatpush2.msra.mxu0 0.0
    %4242 = vmatprep.subr.mxu0 0.0
    %4243 = vmatpush2.msra.mxu0 0.0
    %4244 = vmatprep.subr.mxu0 0.0
    %4245 = vmatpush2.msra.mxu0 0.0
    %4246 = vmatprep.subr.mxu0 0.0
    %4247 = vmatpush2.msra.mxu0 0.0
    %4248 = vmatprep.subr.mxu0 0.0
    %4249 = vmatpush2.msra.mxu0 0.0
    %4250 = vmatprep.subr.mxu0 0.0
    %4251 = vmatpush2.msra.mxu0 0.0
    %4252 = vmatprep.subr.mxu0 0.0
    %4253 = vmatpush2.msra.mxu0 0.0
    %4254 = vmatprep.subr.mxu0 0.0
    %4255 = vmatpush2.msra.mxu0 0.0
    %4256 = vmatprep.subr.mxu0 0.0
    %4257 = vmatpush2.msra.mxu0 0.0
    %4258 = vmatprep.mubr.f32.mxu0 0.0
    %v4259 = vand.u32 %v3488, 4294901760
    %v4260 = vsub.f32 %v3488, %v4259
    %v4261 = vand.u32 %v4260, 4294901760
    %4262 = vmatmul.mubr.f32.gmra.mxu0 %v4261
    %v4263 = vpop.f32.mrf.mxu0
    %v4264 = vadd.f32 %v4188, %v4263
    %v4265 = vpop.f32.mrf.mxu0
    %v4266 = vadd.f32 %v4190, %v4265
    %4267 = vdwg.mxu0
    %4268 = vmatprep.subr.mxu0 0.0
    %4269 = vmatpush1.msra.mxu0 0.0
    %4270 = vmatprep.subr.mxu0 0.0
    %4271 = vmatpush1.msra.mxu0 0.0
    %4272 = vmatprep.subr.mxu0 0.0
    %4273 = vmatpush1.msra.mxu0 0.0
    %4274 = vmatprep.subr.mxu0 0.0
    %4275 = vmatpush1.msra.mxu0 0.0
    %4276 = vmatprep.subr.mxu0 0.0
    %4277 = vmatpush1.msra.mxu0 0.0
    %4278 = vmatprep.subr.mxu0 0.0
    %4279 = vmatpush1.msra.mxu0 0.0
    %4280 = vmatprep.subr.mxu0 0.0
    %4281 = vmatpush1.msra.mxu0 0.0
    %4282 = vmatprep.subr.mxu0 0.0
    %4283 = vmatpush1.msra.mxu0 0.0
    %4284 = vmatprep.subr.mxu0 0.0
    %4285 = vmatpush1.msra.mxu0 0.0
    %4286 = vmatprep.subr.mxu0 0.0
    %4287 = vmatpush1.msra.mxu0 0.0
    %4288 = vmatprep.subr.mxu0 0.0
    %4289 = vmatpush1.msra.mxu0 0.0
    %4290 = vmatprep.subr.mxu0 0.0
    %4291 = vmatpush1.msra.mxu0 0.0
    %4292 = vmatprep.subr.mxu0 0.0
    %4293 = vmatpush1.msra.mxu0 0.0
    %4294 = vmatprep.subr.mxu0 0.0
    %4295 = vmatpush1.msra.mxu0 0.0
    %4296 = vmatprep.subr.mxu0 0.0
    %4297 = vmatpush1.msra.mxu0 0.0
    %v4298 = vand.u32 %v3486, 4294901760
    %v4299 = vsub.f32 %v3486, %v4298
    %v4300 = vand.u32 %v4299, 4294901760
    %4301 = vmatprep.subr.mxu0 %v4300
    %v4302 = vand.u32 %v3485, 4294901760
    %v4303 = vsub.f32 %v3485, %v4302
    %v4304 = vand.u32 %v4303, 4294901760
    %4305 = vmatpush1.msra.mxu0 %v4304
    %4306 = vmatprep.subr.mxu0 0.0
    %4307 = vmatpush2.msra.mxu0 0.0
    %4308 = vmatprep.subr.mxu0 0.0
    %4309 = vmatpush2.msra.mxu0 0.0
    %4310 = vmatprep.subr.mxu0 0.0
    %4311 = vmatpush2.msra.mxu0 0.0
    %4312 = vmatprep.subr.mxu0 0.0
    %4313 = vmatpush2.msra.mxu0 0.0
    %4314 = vmatprep.subr.mxu0 0.0
    %4315 = vmatpush2.msra.mxu0 0.0
    %4316 = vmatprep.subr.mxu0 0.0
    %4317 = vmatpush2.msra.mxu0 0.0
    %4318 = vmatprep.subr.mxu0 0.0
    %4319 = vmatpush2.msra.mxu0 0.0
    %4320 = vmatprep.subr.mxu0 0.0
    %4321 = vmatpush2.msra.mxu0 0.0
    %4322 = vmatprep.subr.mxu0 0.0
    %4323 = vmatpush2.msra.mxu0 0.0
    %4324 = vmatprep.subr.mxu0 0.0
    %4325 = vmatpush2.msra.mxu0 0.0
    %4326 = vmatprep.subr.mxu0 0.0
    %4327 = vmatpush2.msra.mxu0 0.0
    %4328 = vmatprep.subr.mxu0 0.0
    %4329 = vmatpush2.msra.mxu0 0.0
    %4330 = vmatprep.subr.mxu0 0.0
    %4331 = vmatpush2.msra.mxu0 0.0
    %4332 = vmatprep.subr.mxu0 0.0
    %4333 = vmatpush2.msra.mxu0 0.0
    %4334 = vmatprep.subr.mxu0 0.0
    %4335 = vmatpush2.msra.mxu0 0.0
    %4336 = vmatprep.subr.mxu0 0.0
    %4337 = vmatpush2.msra.mxu0 0.0
    %4338 = vmatprep.mubr.f32.mxu0 0.0
    %v4339 = vand.u32 %v3488, 4294901760
    %4340 = vmatmul.mubr.f32.gmra.mxu0 %v4339
    %v4341 = vpop.f32.mrf.mxu0
    %v4342 = vadd.f32 %v4264, %v4341
    %v4343 = vpop.f32.mrf.mxu0
    %v4344 = vadd.f32 %v4266, %v4343
    %4345 = vdwg.mxu0
    %4346 = vmatprep.subr.mxu0 0.0
    %4347 = vmatpush1.msra.mxu0 0.0
    %4348 = vmatprep.subr.mxu0 0.0
    %4349 = vmatpush1.msra.mxu0 0.0
    %4350 = vmatprep.subr.mxu0 0.0
    %4351 = vmatpush1.msra.mxu0 0.0
    %4352 = vmatprep.subr.mxu0 0.0
    %4353 = vmatpush1.msra.mxu0 0.0
    %4354 = vmatprep.subr.mxu0 0.0
    %4355 = vmatpush1.msra.mxu0 0.0
    %4356 = vmatprep.subr.mxu0 0.0
    %4357 = vmatpush1.msra.mxu0 0.0
    %4358 = vmatprep.subr.mxu0 0.0
    %4359 = vmatpush1.msra.mxu0 0.0
    %4360 = vmatprep.subr.mxu0 0.0
    %4361 = vmatpush1.msra.mxu0 0.0
    %4362 = vmatprep.subr.mxu0 0.0
    %4363 = vmatpush1.msra.mxu0 0.0
    %4364 = vmatprep.subr.mxu0 0.0
    %4365 = vmatpush1.msra.mxu0 0.0
    %4366 = vmatprep.subr.mxu0 0.0
    %4367 = vmatpush1.msra.mxu0 0.0
    %4368 = vmatprep.subr.mxu0 0.0
    %4369 = vmatpush1.msra.mxu0 0.0
    %4370 = vmatprep.subr.mxu0 0.0
    %4371 = vmatpush1.msra.mxu0 0.0
    %4372 = vmatprep.subr.mxu0 0.0
    %4373 = vmatpush1.msra.mxu0 0.0
    %4374 = vmatprep.subr.mxu0 0.0
    %4375 = vmatpush1.msra.mxu0 0.0
    %v4376 = vand.u32 %v3486, 4294901760
    %4377 = vmatprep.subr.mxu0 %v4376
    %v4378 = vand.u32 %v3485, 4294901760
    %4379 = vmatpush1.msra.mxu0 %v4378
    %4380 = vmatprep.subr.mxu0 0.0
    %4381 = vmatpush2.msra.mxu0 0.0
    %4382 = vmatprep.subr.mxu0 0.0
    %4383 = vmatpush2.msra.mxu0 0.0
    %4384 = vmatprep.subr.mxu0 0.0
    %4385 = vmatpush2.msra.mxu0 0.0
    %4386 = vmatprep.subr.mxu0 0.0
    %4387 = vmatpush2.msra.mxu0 0.0
    %4388 = vmatprep.subr.mxu0 0.0
    %4389 = vmatpush2.msra.mxu0 0.0
    %4390 = vmatprep.subr.mxu0 0.0
    %4391 = vmatpush2.msra.mxu0 0.0
    %4392 = vmatprep.subr.mxu0 0.0
    %4393 = vmatpush2.msra.mxu0 0.0
    %4394 = vmatprep.subr.mxu0 0.0
    %4395 = vmatpush2.msra.mxu0 0.0
    %4396 = vmatprep.subr.mxu0 0.0
    %4397 = vmatpush2.msra.mxu0 0.0
    %4398 = vmatprep.subr.mxu0 0.0
    %4399 = vmatpush2.msra.mxu0 0.0
    %4400 = vmatprep.subr.mxu0 0.0
    %4401 = vmatpush2.msra.mxu0 0.0
    %4402 = vmatprep.subr.mxu0 0.0
    %4403 = vmatpush2.msra.mxu0 0.0
    %4404 = vmatprep.subr.mxu0 0.0
    %4405 = vmatpush2.msra.mxu0 0.0
    %4406 = vmatprep.subr.mxu0 0.0
    %4407 = vmatpush2.msra.mxu0 0.0
    %4408 = vmatprep.subr.mxu0 0.0
    %4409 = vmatpush2.msra.mxu0 0.0
    %4410 = vmatprep.subr.mxu0 0.0
    %4411 = vmatpush2.msra.mxu0 0.0
    %4412 = vmatprep.mubr.f32.mxu0 0.0
    %v4413 = vand.u32 %v3488, 4294901760
    %4414 = vmatmul.mubr.f32.gmra.mxu0 %v4413
    %v4415 = vpop.f32.mrf.mxu0
    %v4416 = vadd.f32 %v4342, %v4415
    %v4417 = vpop.f32.mrf.mxu0
    %v4418 = vadd.f32 %v4344, %v4417
    %4419 = vdwg.mxu0
    %v4421 = vsel %vm205, %v3375, 0
    %4423 = vmatprep.subr.mxu0 0.0
    %4424 = vmatpush1.msra.mxu0 0.0
    %4425 = vmatprep.subr.mxu0 0.0
    %4426 = vmatpush1.msra.mxu0 0.0
    %4427 = vmatprep.subr.mxu0 0.0
    %4428 = vmatpush1.msra.mxu0 0.0
    %4429 = vmatprep.subr.mxu0 0.0
    %4430 = vmatpush1.msra.mxu0 0.0
    %4431 = vmatprep.subr.mxu0 0.0
    %4432 = vmatpush1.msra.mxu0 0.0
    %4433 = vmatprep.subr.mxu0 0.0
    %4434 = vmatpush1.msra.mxu0 0.0
    %4435 = vmatprep.subr.mxu0 0.0
    %4436 = vmatpush1.msra.mxu0 0.0
    %4437 = vmatprep.subr.mxu0 0.0
    %4438 = vmatpush1.msra.mxu0 0.0
    %4439 = vmatprep.subr.mxu0 0.0
    %4440 = vmatpush1.msra.mxu0 0.0
    %4441 = vmatprep.subr.mxu0 0.0
    %4442 = vmatpush1.msra.mxu0 0.0
    %4443 = vmatprep.subr.mxu0 0.0
    %4444 = vmatpush1.msra.mxu0 0.0
    %4445 = vmatprep.subr.mxu0 0.0
    %4446 = vmatpush1.msra.mxu0 0.0
    %4447 = vmatprep.subr.mxu0 0.0
    %4448 = vmatpush1.msra.mxu0 0.0
    %4449 = vmatprep.subr.mxu0 0.0
    %4450 = vmatpush1.msra.mxu0 0.0
    %4451 = vmatprep.subr.mxu0 0.0
    %4452 = vmatpush1.msra.mxu0 0.0
    %v4453 = vand.u32 %v3377, 4294901760
    %4454 = vmatprep.subr.mxu0 %v4453
    %v4455 = vand.u32 %v3376, 4294901760
    %4456 = vmatpush1.msra.mxu0 %v4455
    %4457 = vmatprep.subr.mxu0 0.0
    %4458 = vmatpush2.msra.mxu0 0.0
    %4459 = vmatprep.subr.mxu0 0.0
    %4460 = vmatpush2.msra.mxu0 0.0
    %4461 = vmatprep.subr.mxu0 0.0
    %4462 = vmatpush2.msra.mxu0 0.0
    %4463 = vmatprep.subr.mxu0 0.0
    %4464 = vmatpush2.msra.mxu0 0.0
    %4465 = vmatprep.subr.mxu0 0.0
    %4466 = vmatpush2.msra.mxu0 0.0
    %4467 = vmatprep.subr.mxu0 0.0
    %4468 = vmatpush2.msra.mxu0 0.0
    %4469 = vmatprep.subr.mxu0 0.0
    %4470 = vmatpush2.msra.mxu0 0.0
    %4471 = vmatprep.subr.mxu0 0.0
    %4472 = vmatpush2.msra.mxu0 0.0
    %4473 = vmatprep.subr.mxu0 0.0
    %4474 = vmatpush2.msra.mxu0 0.0
    %4475 = vmatprep.subr.mxu0 0.0
    %4476 = vmatpush2.msra.mxu0 0.0
    %4477 = vmatprep.subr.mxu0 0.0
    %4478 = vmatpush2.msra.mxu0 0.0
    %4479 = vmatprep.subr.mxu0 0.0
    %4480 = vmatpush2.msra.mxu0 0.0
    %4481 = vmatprep.subr.mxu0 0.0
    %4482 = vmatpush2.msra.mxu0 0.0
    %4483 = vmatprep.subr.mxu0 0.0
    %4484 = vmatpush2.msra.mxu0 0.0
    %4485 = vmatprep.subr.mxu0 0.0
    %4486 = vmatpush2.msra.mxu0 0.0
    %4487 = vmatprep.subr.mxu0 0.0
    %4488 = vmatpush2.msra.mxu0 0.0
    %4489 = vmatprep.mubr.f32.mxu0 0.0
    %v4490 = vand.u32 %v4421, 4294901760
    %v4491 = vsub.f32 %v4421, %v4490
    %v4492 = vand.u32 %v4491, 4294901760
    %v4493 = vsub.f32 %v4491, %v4492
    %v4494 = vand.u32 %v4493, 4294901760
    %4495 = vmatmul.mubr.f32.gmra.mxu0 %v4494
    %v4496 = vpop.f32.mrf.mxu0
    %v4497 = vadd.f32 %v3951, %v4496
    %v4498 = vpop.f32.mrf.mxu0
    %v4499 = vadd.f32 %v3953, %v4498
    %4500 = vdwg.mxu0
    %4501 = vmatprep.subr.mxu0 0.0
    %4502 = vmatpush1.msra.mxu0 0.0
    %4503 = vmatprep.subr.mxu0 0.0
    %4504 = vmatpush1.msra.mxu0 0.0
    %4505 = vmatprep.subr.mxu0 0.0
    %4506 = vmatpush1.msra.mxu0 0.0
    %4507 = vmatprep.subr.mxu0 0.0
    %4508 = vmatpush1.msra.mxu0 0.0
    %4509 = vmatprep.subr.mxu0 0.0
    %4510 = vmatpush1.msra.mxu0 0.0
    %4511 = vmatprep.subr.mxu0 0.0
    %4512 = vmatpush1.msra.mxu0 0.0
    %4513 = vmatprep.subr.mxu0 0.0
    %4514 = vmatpush1.msra.mxu0 0.0
    %4515 = vmatprep.subr.mxu0 0.0
    %4516 = vmatpush1.msra.mxu0 0.0
    %4517 = vmatprep.subr.mxu0 0.0
    %4518 = vmatpush1.msra.mxu0 0.0
    %4519 = vmatprep.subr.mxu0 0.0
    %4520 = vmatpush1.msra.mxu0 0.0
    %4521 = vmatprep.subr.mxu0 0.0
    %4522 = vmatpush1.msra.mxu0 0.0
    %4523 = vmatprep.subr.mxu0 0.0
    %4524 = vmatpush1.msra.mxu0 0.0
    %4525 = vmatprep.subr.mxu0 0.0
    %4526 = vmatpush1.msra.mxu0 0.0
    %4527 = vmatprep.subr.mxu0 0.0
    %4528 = vmatpush1.msra.mxu0 0.0
    %4529 = vmatprep.subr.mxu0 0.0
    %4530 = vmatpush1.msra.mxu0 0.0
    %v4531 = vand.u32 %v3377, 4294901760
    %v4532 = vsub.f32 %v3377, %v4531
    %v4533 = vand.u32 %v4532, 4294901760
    %v4534 = vsub.f32 %v4532, %v4533
    %v4535 = vand.u32 %v4534, 4294901760
    %4536 = vmatprep.subr.mxu0 %v4535
    %v4537 = vand.u32 %v3376, 4294901760
    %v4538 = vsub.f32 %v3376, %v4537
    %v4539 = vand.u32 %v4538, 4294901760
    %v4540 = vsub.f32 %v4538, %v4539
    %v4541 = vand.u32 %v4540, 4294901760
    %4542 = vmatpush1.msra.mxu0 %v4541
    %4543 = vmatprep.subr.mxu0 0.0
    %4544 = vmatpush2.msra.mxu0 0.0
    %4545 = vmatprep.subr.mxu0 0.0
    %4546 = vmatpush2.msra.mxu0 0.0
    %4547 = vmatprep.subr.mxu0 0.0
    %4548 = vmatpush2.msra.mxu0 0.0
    %4549 = vmatprep.subr.mxu0 0.0
    %4550 = vmatpush2.msra.mxu0 0.0
    %4551 = vmatprep.subr.mxu0 0.0
    %4552 = vmatpush2.msra.mxu0 0.0
    %4553 = vmatprep.subr.mxu0 0.0
    %4554 = vmatpush2.msra.mxu0 0.0
    %4555 = vmatprep.subr.mxu0 0.0
    %4556 = vmatpush2.msra.mxu0 0.0
    %4557 = vmatprep.subr.mxu0 0.0
    %4558 = vmatpush2.msra.mxu0 0.0
    %4559 = vmatprep.subr.mxu0 0.0
    %4560 = vmatpush2.msra.mxu0 0.0
    %4561 = vmatprep.subr.mxu0 0.0
    %4562 = vmatpush2.msra.mxu0 0.0
    %4563 = vmatprep.subr.mxu0 0.0
    %4564 = vmatpush2.msra.mxu0 0.0
    %4565 = vmatprep.subr.mxu0 0.0
    %4566 = vmatpush2.msra.mxu0 0.0
    %4567 = vmatprep.subr.mxu0 0.0
    %4568 = vmatpush2.msra.mxu0 0.0
    %4569 = vmatprep.subr.mxu0 0.0
    %4570 = vmatpush2.msra.mxu0 0.0
    %4571 = vmatprep.subr.mxu0 0.0
    %4572 = vmatpush2.msra.mxu0 0.0
    %4573 = vmatprep.subr.mxu0 0.0
    %4574 = vmatpush2.msra.mxu0 0.0
    %4575 = vmatprep.mubr.f32.mxu0 0.0
    %v4576 = vand.u32 %v4421, 4294901760
    %4577 = vmatmul.mubr.f32.gmra.mxu0 %v4576
    %v4578 = vpop.f32.mrf.mxu0
    %v4579 = vadd.f32 %v4497, %v4578
    %v4580 = vpop.f32.mrf.mxu0
    %v4581 = vadd.f32 %v4499, %v4580
    %4582 = vdwg.mxu0
    %4583 = vmatprep.subr.mxu0 0.0
    %4584 = vmatpush1.msra.mxu0 0.0
    %4585 = vmatprep.subr.mxu0 0.0
    %4586 = vmatpush1.msra.mxu0 0.0
    %4587 = vmatprep.subr.mxu0 0.0
    %4588 = vmatpush1.msra.mxu0 0.0
    %4589 = vmatprep.subr.mxu0 0.0
    %4590 = vmatpush1.msra.mxu0 0.0
    %4591 = vmatprep.subr.mxu0 0.0
    %4592 = vmatpush1.msra.mxu0 0.0
    %4593 = vmatprep.subr.mxu0 0.0
    %4594 = vmatpush1.msra.mxu0 0.0
    %4595 = vmatprep.subr.mxu0 0.0
    %4596 = vmatpush1.msra.mxu0 0.0
    %4597 = vmatprep.subr.mxu0 0.0
    %4598 = vmatpush1.msra.mxu0 0.0
    %4599 = vmatprep.subr.mxu0 0.0
    %4600 = vmatpush1.msra.mxu0 0.0
    %4601 = vmatprep.subr.mxu0 0.0
    %4602 = vmatpush1.msra.mxu0 0.0
    %4603 = vmatprep.subr.mxu0 0.0
    %4604 = vmatpush1.msra.mxu0 0.0
    %4605 = vmatprep.subr.mxu0 0.0
    %4606 = vmatpush1.msra.mxu0 0.0
    %4607 = vmatprep.subr.mxu0 0.0
    %4608 = vmatpush1.msra.mxu0 0.0
    %4609 = vmatprep.subr.mxu0 0.0
    %4610 = vmatpush1.msra.mxu0 0.0
    %4611 = vmatprep.subr.mxu0 0.0
    %4612 = vmatpush1.msra.mxu0 0.0
    %v4613 = vand.u32 %v3377, 4294901760
    %v4614 = vsub.f32 %v3377, %v4613
    %4615 = vmatprep.subr.mxu0 %v4614
    %v4616 = vand.u32 %v3376, 4294901760
    %v4617 = vsub.f32 %v3376, %v4616
    %4618 = vmatpush1.msra.mxu0 %v4617
    %4619 = vmatprep.subr.mxu0 0.0
    %4620 = vmatpush2.msra.mxu0 0.0
    %4621 = vmatprep.subr.mxu0 0.0
    %4622 = vmatpush2.msra.mxu0 0.0
    %4623 = vmatprep.subr.mxu0 0.0
    %4624 = vmatpush2.msra.mxu0 0.0
    %4625 = vmatprep.subr.mxu0 0.0
    %4626 = vmatpush2.msra.mxu0 0.0
    %4627 = vmatprep.subr.mxu0 0.0
    %4628 = vmatpush2.msra.mxu0 0.0
    %4629 = vmatprep.subr.mxu0 0.0
    %4630 = vmatpush2.msra.mxu0 0.0
    %4631 = vmatprep.subr.mxu0 0.0
    %4632 = vmatpush2.msra.mxu0 0.0
    %4633 = vmatprep.subr.mxu0 0.0
    %4634 = vmatpush2.msra.mxu0 0.0
    %4635 = vmatprep.subr.mxu0 0.0
    %4636 = vmatpush2.msra.mxu0 0.0
    %4637 = vmatprep.subr.mxu0 0.0
    %4638 = vmatpush2.msra.mxu0 0.0
    %4639 = vmatprep.subr.mxu0 0.0
    %4640 = vmatpush2.msra.mxu0 0.0
    %4641 = vmatprep.subr.mxu0 0.0
    %4642 = vmatpush2.msra.mxu0 0.0
    %4643 = vmatprep.subr.mxu0 0.0
    %4644 = vmatpush2.msra.mxu0 0.0
    %4645 = vmatprep.subr.mxu0 0.0
    %4646 = vmatpush2.msra.mxu0 0.0
    %4647 = vmatprep.subr.mxu0 0.0
    %4648 = vmatpush2.msra.mxu0 0.0
    %4649 = vmatprep.subr.mxu0 0.0
    %4650 = vmatpush2.msra.mxu0 0.0
    %4651 = vmatprep.mubr.f32.mxu0 0.0
    %v4652 = vand.u32 %v4421, 4294901760
    %v4653 = vsub.f32 %v4421, %v4652
    %4654 = vmatmul.mubr.f32.gmra.mxu0 %v4653
    %v4655 = vpop.f32.mrf.mxu0
    %v4656 = vadd.f32 %v4579, %v4655
    %v4657 = vpop.f32.mrf.mxu0
    %v4658 = vadd.f32 %v4581, %v4657
    %4659 = vdwg.mxu0
    %4660 = vmatprep.subr.mxu0 0.0
    %4661 = vmatpush1.msra.mxu0 0.0
    %4662 = vmatprep.subr.mxu0 0.0
    %4663 = vmatpush1.msra.mxu0 0.0
    %4664 = vmatprep.subr.mxu0 0.0
    %4665 = vmatpush1.msra.mxu0 0.0
    %4666 = vmatprep.subr.mxu0 0.0
    %4667 = vmatpush1.msra.mxu0 0.0
    %4668 = vmatprep.subr.mxu0 0.0
    %4669 = vmatpush1.msra.mxu0 0.0
    %4670 = vmatprep.subr.mxu0 0.0
    %4671 = vmatpush1.msra.mxu0 0.0
    %4672 = vmatprep.subr.mxu0 0.0
    %4673 = vmatpush1.msra.mxu0 0.0
    %4674 = vmatprep.subr.mxu0 0.0
    %4675 = vmatpush1.msra.mxu0 0.0
    %4676 = vmatprep.subr.mxu0 0.0
    %4677 = vmatpush1.msra.mxu0 0.0
    %4678 = vmatprep.subr.mxu0 0.0
    %4679 = vmatpush1.msra.mxu0 0.0
    %4680 = vmatprep.subr.mxu0 0.0
    %4681 = vmatpush1.msra.mxu0 0.0
    %4682 = vmatprep.subr.mxu0 0.0
    %4683 = vmatpush1.msra.mxu0 0.0
    %4684 = vmatprep.subr.mxu0 0.0
    %4685 = vmatpush1.msra.mxu0 0.0
    %4686 = vmatprep.subr.mxu0 0.0
    %4687 = vmatpush1.msra.mxu0 0.0
    %4688 = vmatprep.subr.mxu0 0.0
    %4689 = vmatpush1.msra.mxu0 0.0
    %v4690 = vand.u32 %v3377, 4294901760
    %4691 = vmatprep.subr.mxu0 %v4690
    %v4692 = vand.u32 %v3376, 4294901760
    %4693 = vmatpush1.msra.mxu0 %v4692
    %4694 = vmatprep.subr.mxu0 0.0
    %4695 = vmatpush2.msra.mxu0 0.0
    %4696 = vmatprep.subr.mxu0 0.0
    %4697 = vmatpush2.msra.mxu0 0.0
    %4698 = vmatprep.subr.mxu0 0.0
    %4699 = vmatpush2.msra.mxu0 0.0
    %4700 = vmatprep.subr.mxu0 0.0
    %4701 = vmatpush2.msra.mxu0 0.0
    %4702 = vmatprep.subr.mxu0 0.0
    %4703 = vmatpush2.msra.mxu0 0.0
    %4704 = vmatprep.subr.mxu0 0.0
    %4705 = vmatpush2.msra.mxu0 0.0
    %4706 = vmatprep.subr.mxu0 0.0
    %4707 = vmatpush2.msra.mxu0 0.0
    %4708 = vmatprep.subr.mxu0 0.0
    %4709 = vmatpush2.msra.mxu0 0.0
    %4710 = vmatprep.subr.mxu0 0.0
    %4711 = vmatpush2.msra.mxu0 0.0
    %4712 = vmatprep.subr.mxu0 0.0
    %4713 = vmatpush2.msra.mxu0 0.0
    %4714 = vmatprep.subr.mxu0 0.0
    %4715 = vmatpush2.msra.mxu0 0.0
    %4716 = vmatprep.subr.mxu0 0.0
    %4717 = vmatpush2.msra.mxu0 0.0
    %4718 = vmatprep.subr.mxu0 0.0
    %4719 = vmatpush2.msra.mxu0 0.0
    %4720 = vmatprep.subr.mxu0 0.0
    %4721 = vmatpush2.msra.mxu0 0.0
    %4722 = vmatprep.subr.mxu0 0.0
    %4723 = vmatpush2.msra.mxu0 0.0
    %4724 = vmatprep.subr.mxu0 0.0
    %4725 = vmatpush2.msra.mxu0 0.0
    %4726 = vmatprep.mubr.f32.mxu0 0.0
    %v4727 = vand.u32 %v4421, 4294901760
    %v4728 = vsub.f32 %v4421, %v4727
    %v4729 = vand.u32 %v4728, 4294901760
    %4730 = vmatmul.mubr.f32.gmra.mxu0 %v4729
    %v4731 = vpop.f32.mrf.mxu0
    %v4732 = vadd.f32 %v4656, %v4731
    %v4733 = vpop.f32.mrf.mxu0
    %v4734 = vadd.f32 %v4658, %v4733
    %4735 = vdwg.mxu0
    %4736 = vmatprep.subr.mxu0 0.0
    %4737 = vmatpush1.msra.mxu0 0.0
    %4738 = vmatprep.subr.mxu0 0.0
    %4739 = vmatpush1.msra.mxu0 0.0
    %4740 = vmatprep.subr.mxu0 0.0
    %4741 = vmatpush1.msra.mxu0 0.0
    %4742 = vmatprep.subr.mxu0 0.0
    %4743 = vmatpush1.msra.mxu0 0.0
    %4744 = vmatprep.subr.mxu0 0.0
    %4745 = vmatpush1.msra.mxu0 0.0
    %4746 = vmatprep.subr.mxu0 0.0
    %4747 = vmatpush1.msra.mxu0 0.0
    %4748 = vmatprep.subr.mxu0 0.0
    %4749 = vmatpush1.msra.mxu0 0.0
    %4750 = vmatprep.subr.mxu0 0.0
    %4751 = vmatpush1.msra.mxu0 0.0
    %4752 = vmatprep.subr.mxu0 0.0
    %4753 = vmatpush1.msra.mxu0 0.0
    %4754 = vmatprep.subr.mxu0 0.0
    %4755 = vmatpush1.msra.mxu0 0.0
    %4756 = vmatprep.subr.mxu0 0.0
    %4757 = vmatpush1.msra.mxu0 0.0
    %4758 = vmatprep.subr.mxu0 0.0
    %4759 = vmatpush1.msra.mxu0 0.0
    %4760 = vmatprep.subr.mxu0 0.0
    %4761 = vmatpush1.msra.mxu0 0.0
    %4762 = vmatprep.subr.mxu0 0.0
    %4763 = vmatpush1.msra.mxu0 0.0
    %4764 = vmatprep.subr.mxu0 0.0
    %4765 = vmatpush1.msra.mxu0 0.0
    %v4766 = vand.u32 %v3377, 4294901760
    %v4767 = vsub.f32 %v3377, %v4766
    %v4768 = vand.u32 %v4767, 4294901760
    %4769 = vmatprep.subr.mxu0 %v4768
    %v4770 = vand.u32 %v3376, 4294901760
    %v4771 = vsub.f32 %v3376, %v4770
    %v4772 = vand.u32 %v4771, 4294901760
    %4773 = vmatpush1.msra.mxu0 %v4772
    %4774 = vmatprep.subr.mxu0 0.0
    %4775 = vmatpush2.msra.mxu0 0.0
    %4776 = vmatprep.subr.mxu0 0.0
    %4777 = vmatpush2.msra.mxu0 0.0
    %4778 = vmatprep.subr.mxu0 0.0
    %4779 = vmatpush2.msra.mxu0 0.0
    %4780 = vmatprep.subr.mxu0 0.0
    %4781 = vmatpush2.msra.mxu0 0.0
    %4782 = vmatprep.subr.mxu0 0.0
    %4783 = vmatpush2.msra.mxu0 0.0
    %4784 = vmatprep.subr.mxu0 0.0
    %4785 = vmatpush2.msra.mxu0 0.0
    %4786 = vmatprep.subr.mxu0 0.0
    %4787 = vmatpush2.msra.mxu0 0.0
    %4788 = vmatprep.subr.mxu0 0.0
    %4789 = vmatpush2.msra.mxu0 0.0
    %4790 = vmatprep.subr.mxu0 0.0
    %4791 = vmatpush2.msra.mxu0 0.0
    %4792 = vmatprep.subr.mxu0 0.0
    %4793 = vmatpush2.msra.mxu0 0.0
    %4794 = vmatprep.subr.mxu0 0.0
    %4795 = vmatpush2.msra.mxu0 0.0
    %4796 = vmatprep.subr.mxu0 0.0
    %4797 = vmatpush2.msra.mxu0 0.0
    %4798 = vmatprep.subr.mxu0 0.0
    %4799 = vmatpush2.msra.mxu0 0.0
    %4800 = vmatprep.subr.mxu0 0.0
    %4801 = vmatpush2.msra.mxu0 0.0
    %4802 = vmatprep.subr.mxu0 0.0
    %4803 = vmatpush2.msra.mxu0 0.0
    %4804 = vmatprep.subr.mxu0 0.0
    %4805 = vmatpush2.msra.mxu0 0.0
    %4806 = vmatprep.mubr.f32.mxu0 0.0
    %v4807 = vand.u32 %v4421, 4294901760
    %4808 = vmatmul.mubr.f32.gmra.mxu0 %v4807
    %v4809 = vpop.f32.mrf.mxu0
    %v4810 = vadd.f32 %v4732, %v4809
    %v4811 = vpop.f32.mrf.mxu0
    %v4812 = vadd.f32 %v4734, %v4811
    %4813 = vdwg.mxu0
    %4814 = vmatprep.subr.mxu0 0.0
    %4815 = vmatpush1.msra.mxu0 0.0
    %4816 = vmatprep.subr.mxu0 0.0
    %4817 = vmatpush1.msra.mxu0 0.0
    %4818 = vmatprep.subr.mxu0 0.0
    %4819 = vmatpush1.msra.mxu0 0.0
    %4820 = vmatprep.subr.mxu0 0.0
    %4821 = vmatpush1.msra.mxu0 0.0
    %4822 = vmatprep.subr.mxu0 0.0
    %4823 = vmatpush1.msra.mxu0 0.0
    %4824 = vmatprep.subr.mxu0 0.0
    %4825 = vmatpush1.msra.mxu0 0.0
    %4826 = vmatprep.subr.mxu0 0.0
    %4827 = vmatpush1.msra.mxu0 0.0
    %4828 = vmatprep.subr.mxu0 0.0
    %4829 = vmatpush1.msra.mxu0 0.0
    %4830 = vmatprep.subr.mxu0 0.0
    %4831 = vmatpush1.msra.mxu0 0.0
    %4832 = vmatprep.subr.mxu0 0.0
    %4833 = vmatpush1.msra.mxu0 0.0
    %4834 = vmatprep.subr.mxu0 0.0
    %4835 = vmatpush1.msra.mxu0 0.0
    %4836 = vmatprep.subr.mxu0 0.0
    %4837 = vmatpush1.msra.mxu0 0.0
    %4838 = vmatprep.subr.mxu0 0.0
    %4839 = vmatpush1.msra.mxu0 0.0
    %4840 = vmatprep.subr.mxu0 0.0
    %4841 = vmatpush1.msra.mxu0 0.0
    %4842 = vmatprep.subr.mxu0 0.0
    %4843 = vmatpush1.msra.mxu0 0.0
    %v4844 = vand.u32 %v3377, 4294901760
    %4845 = vmatprep.subr.mxu0 %v4844
    %v4846 = vand.u32 %v3376, 4294901760
    %4847 = vmatpush1.msra.mxu0 %v4846
    %4848 = vmatprep.subr.mxu0 0.0
    %4849 = vmatpush2.msra.mxu0 0.0
    %4850 = vmatprep.subr.mxu0 0.0
    %4851 = vmatpush2.msra.mxu0 0.0
    %4852 = vmatprep.subr.mxu0 0.0
    %4853 = vmatpush2.msra.mxu0 0.0
    %4854 = vmatprep.subr.mxu0 0.0
    %4855 = vmatpush2.msra.mxu0 0.0
    %4856 = vmatprep.subr.mxu0 0.0
    %4857 = vmatpush2.msra.mxu0 0.0
    %4858 = vmatprep.subr.mxu0 0.0
    %4859 = vmatpush2.msra.mxu0 0.0
    %4860 = vmatprep.subr.mxu0 0.0
    %4861 = vmatpush2.msra.mxu0 0.0
    %4862 = vmatprep.subr.mxu0 0.0
    %4863 = vmatpush2.msra.mxu0 0.0
    %4864 = vmatprep.subr.mxu0 0.0
    %4865 = vmatpush2.msra.mxu0 0.0
    %4866 = vmatprep.subr.mxu0 0.0
    %4867 = vmatpush2.msra.mxu0 0.0
    %4868 = vmatprep.subr.mxu0 0.0
    %4869 = vmatpush2.msra.mxu0 0.0
    %4870 = vmatprep.subr.mxu0 0.0
    %4871 = vmatpush2.msra.mxu0 0.0
    %4872 = vmatprep.subr.mxu0 0.0
    %4873 = vmatpush2.msra.mxu0 0.0
    %4874 = vmatprep.subr.mxu0 0.0
    %4875 = vmatpush2.msra.mxu0 0.0
    %4876 = vmatprep.subr.mxu0 0.0
    %4877 = vmatpush2.msra.mxu0 0.0
    %4878 = vmatprep.subr.mxu0 0.0
    %4879 = vmatpush2.msra.mxu0 0.0
    %4880 = vmatprep.mubr.f32.mxu0 0.0
    %v4881 = vand.u32 %v4421, 4294901760
    %4882 = vmatmul.mubr.f32.gmra.mxu0 %v4881
    %v4883 = vpop.f32.mrf.mxu0
    %v4884 = vadd.f32 %v4810, %v4883
    %v4885 = vpop.f32.mrf.mxu0
    %v4886 = vadd.f32 %v4812, %v4885
    %4887 = vdwg.mxu0
    %4888 = vmatprep.subr.mxu0 0.0
    %4889 = vmatpush1.msra.mxu0 0.0
    %4890 = vmatprep.subr.mxu0 0.0
    %4891 = vmatpush1.msra.mxu0 0.0
    %4892 = vmatprep.subr.mxu0 0.0
    %4893 = vmatpush1.msra.mxu0 0.0
    %4894 = vmatprep.subr.mxu0 0.0
    %4895 = vmatpush1.msra.mxu0 0.0
    %4896 = vmatprep.subr.mxu0 0.0
    %4897 = vmatpush1.msra.mxu0 0.0
    %4898 = vmatprep.subr.mxu0 0.0
    %4899 = vmatpush1.msra.mxu0 0.0
    %4900 = vmatprep.subr.mxu0 0.0
    %4901 = vmatpush1.msra.mxu0 0.0
    %4902 = vmatprep.subr.mxu0 0.0
    %4903 = vmatpush1.msra.mxu0 0.0
    %4904 = vmatprep.subr.mxu0 0.0
    %4905 = vmatpush1.msra.mxu0 0.0
    %4906 = vmatprep.subr.mxu0 0.0
    %4907 = vmatpush1.msra.mxu0 0.0
    %4908 = vmatprep.subr.mxu0 0.0
    %4909 = vmatpush1.msra.mxu0 0.0
    %4910 = vmatprep.subr.mxu0 0.0
    %4911 = vmatpush1.msra.mxu0 0.0
    %4912 = vmatprep.subr.mxu0 0.0
    %4913 = vmatpush1.msra.mxu0 0.0
    %4914 = vmatprep.subr.mxu0 0.0
    %4915 = vmatpush1.msra.mxu0 0.0
    %4916 = vmatprep.subr.mxu0 0.0
    %4917 = vmatpush1.msra.mxu0 0.0
    %v4918 = vand.u32 %v3379, 4294901760
    %4919 = vmatprep.subr.mxu0 %v4918
    %v4920 = vand.u32 %v3378, 4294901760
    %4921 = vmatpush1.msra.mxu0 %v4920
    %4922 = vmatprep.subr.mxu0 0.0
    %4923 = vmatpush2.msra.mxu0 0.0
    %4924 = vmatprep.subr.mxu0 0.0
    %4925 = vmatpush2.msra.mxu0 0.0
    %4926 = vmatprep.subr.mxu0 0.0
    %4927 = vmatpush2.msra.mxu0 0.0
    %4928 = vmatprep.subr.mxu0 0.0
    %4929 = vmatpush2.msra.mxu0 0.0
    %4930 = vmatprep.subr.mxu0 0.0
    %4931 = vmatpush2.msra.mxu0 0.0
    %4932 = vmatprep.subr.mxu0 0.0
    %4933 = vmatpush2.msra.mxu0 0.0
    %4934 = vmatprep.subr.mxu0 0.0
    %4935 = vmatpush2.msra.mxu0 0.0
    %4936 = vmatprep.subr.mxu0 0.0
    %4937 = vmatpush2.msra.mxu0 0.0
    %4938 = vmatprep.subr.mxu0 0.0
    %4939 = vmatpush2.msra.mxu0 0.0
    %4940 = vmatprep.subr.mxu0 0.0
    %4941 = vmatpush2.msra.mxu0 0.0
    %4942 = vmatprep.subr.mxu0 0.0
    %4943 = vmatpush2.msra.mxu0 0.0
    %4944 = vmatprep.subr.mxu0 0.0
    %4945 = vmatpush2.msra.mxu0 0.0
    %4946 = vmatprep.subr.mxu0 0.0
    %4947 = vmatpush2.msra.mxu0 0.0
    %4948 = vmatprep.subr.mxu0 0.0
    %4949 = vmatpush2.msra.mxu0 0.0
    %4950 = vmatprep.subr.mxu0 0.0
    %4951 = vmatpush2.msra.mxu0 0.0
    %4952 = vmatprep.subr.mxu0 0.0
    %4953 = vmatpush2.msra.mxu0 0.0
    %4954 = vmatprep.mubr.f32.mxu0 0.0
    %v4955 = vand.u32 %v4421, 4294901760
    %v4956 = vsub.f32 %v4421, %v4955
    %v4957 = vand.u32 %v4956, 4294901760
    %v4958 = vsub.f32 %v4956, %v4957
    %v4959 = vand.u32 %v4958, 4294901760
    %4960 = vmatmul.mubr.f32.gmra.mxu0 %v4959
    %v4961 = vpop.f32.mrf.mxu0
    %v4962 = vadd.f32 %v4416, %v4961
    %v4963 = vpop.f32.mrf.mxu0
    %v4964 = vadd.f32 %v4418, %v4963
    %4965 = vdwg.mxu0
    %4966 = vmatprep.subr.mxu0 0.0
    %4967 = vmatpush1.msra.mxu0 0.0
    %4968 = vmatprep.subr.mxu0 0.0
    %4969 = vmatpush1.msra.mxu0 0.0
    %4970 = vmatprep.subr.mxu0 0.0
    %4971 = vmatpush1.msra.mxu0 0.0
    %4972 = vmatprep.subr.mxu0 0.0
    %4973 = vmatpush1.msra.mxu0 0.0
    %4974 = vmatprep.subr.mxu0 0.0
    %4975 = vmatpush1.msra.mxu0 0.0
    %4976 = vmatprep.subr.mxu0 0.0
    %4977 = vmatpush1.msra.mxu0 0.0
    %4978 = vmatprep.subr.mxu0 0.0
    %4979 = vmatpush1.msra.mxu0 0.0
    %4980 = vmatprep.subr.mxu0 0.0
    %4981 = vmatpush1.msra.mxu0 0.0
    %4982 = vmatprep.subr.mxu0 0.0
    %4983 = vmatpush1.msra.mxu0 0.0
    %4984 = vmatprep.subr.mxu0 0.0
    %4985 = vmatpush1.msra.mxu0 0.0
    %4986 = vmatprep.subr.mxu0 0.0
    %4987 = vmatpush1.msra.mxu0 0.0
    %4988 = vmatprep.subr.mxu0 0.0
    %4989 = vmatpush1.msra.mxu0 0.0
    %4990 = vmatprep.subr.mxu0 0.0
    %4991 = vmatpush1.msra.mxu0 0.0
    %4992 = vmatprep.subr.mxu0 0.0
    %4993 = vmatpush1.msra.mxu0 0.0
    %4994 = vmatprep.subr.mxu0 0.0
    %4995 = vmatpush1.msra.mxu0 0.0
    %v4996 = vand.u32 %v3379, 4294901760
    %v4997 = vsub.f32 %v3379, %v4996
    %v4998 = vand.u32 %v4997, 4294901760
    %v4999 = vsub.f32 %v4997, %v4998
    %v5000 = vand.u32 %v4999, 4294901760
    %5001 = vmatprep.subr.mxu0 %v5000
    %v5002 = vand.u32 %v3378, 4294901760
    %v5003 = vsub.f32 %v3378, %v5002
    %v5004 = vand.u32 %v5003, 4294901760
    %v5005 = vsub.f32 %v5003, %v5004
    %v5006 = vand.u32 %v5005, 4294901760
    %5007 = vmatpush1.msra.mxu0 %v5006
    %5008 = vmatprep.subr.mxu0 0.0
    %5009 = vmatpush2.msra.mxu0 0.0
    %5010 = vmatprep.subr.mxu0 0.0
    %5011 = vmatpush2.msra.mxu0 0.0
    %5012 = vmatprep.subr.mxu0 0.0
    %5013 = vmatpush2.msra.mxu0 0.0
    %5014 = vmatprep.subr.mxu0 0.0
    %5015 = vmatpush2.msra.mxu0 0.0
    %5016 = vmatprep.subr.mxu0 0.0
    %5017 = vmatpush2.msra.mxu0 0.0
    %5018 = vmatprep.subr.mxu0 0.0
    %5019 = vmatpush2.msra.mxu0 0.0
    %5020 = vmatprep.subr.mxu0 0.0
    %5021 = vmatpush2.msra.mxu0 0.0
    %5022 = vmatprep.subr.mxu0 0.0
    %5023 = vmatpush2.msra.mxu0 0.0
    %5024 = vmatprep.subr.mxu0 0.0
    %5025 = vmatpush2.msra.mxu0 0.0
    %5026 = vmatprep.subr.mxu0 0.0
    %5027 = vmatpush2.msra.mxu0 0.0
    %5028 = vmatprep.subr.mxu0 0.0
    %5029 = vmatpush2.msra.mxu0 0.0
    %5030 = vmatprep.subr.mxu0 0.0
    %5031 = vmatpush2.msra.mxu0 0.0
    %5032 = vmatprep.subr.mxu0 0.0
    %5033 = vmatpush2.msra.mxu0 0.0
    %5034 = vmatprep.subr.mxu0 0.0
    %5035 = vmatpush2.msra.mxu0 0.0
    %5036 = vmatprep.subr.mxu0 0.0
    %5037 = vmatpush2.msra.mxu0 0.0
    %5038 = vmatprep.subr.mxu0 0.0
    %5039 = vmatpush2.msra.mxu0 0.0
    %5040 = vmatprep.mubr.f32.mxu0 0.0
    %v5041 = vand.u32 %v4421, 4294901760
    %5042 = vmatmul.mubr.f32.gmra.mxu0 %v5041
    %v5043 = vpop.f32.mrf.mxu0
    %v5044 = vadd.f32 %v4962, %v5043
    %v5045 = vpop.f32.mrf.mxu0
    %v5046 = vadd.f32 %v4964, %v5045
    %5047 = vdwg.mxu0
    %5048 = vmatprep.subr.mxu0 0.0
    %5049 = vmatpush1.msra.mxu0 0.0
    %5050 = vmatprep.subr.mxu0 0.0
    %5051 = vmatpush1.msra.mxu0 0.0
    %5052 = vmatprep.subr.mxu0 0.0
    %5053 = vmatpush1.msra.mxu0 0.0
    %5054 = vmatprep.subr.mxu0 0.0
    %5055 = vmatpush1.msra.mxu0 0.0
    %5056 = vmatprep.subr.mxu0 0.0
    %5057 = vmatpush1.msra.mxu0 0.0
    %5058 = vmatprep.subr.mxu0 0.0
    %5059 = vmatpush1.msra.mxu0 0.0
    %5060 = vmatprep.subr.mxu0 0.0
    %5061 = vmatpush1.msra.mxu0 0.0
    %5062 = vmatprep.subr.mxu0 0.0
    %5063 = vmatpush1.msra.mxu0 0.0
    %5064 = vmatprep.subr.mxu0 0.0
    %5065 = vmatpush1.msra.mxu0 0.0
    %5066 = vmatprep.subr.mxu0 0.0
    %5067 = vmatpush1.msra.mxu0 0.0
    %5068 = vmatprep.subr.mxu0 0.0
    %5069 = vmatpush1.msra.mxu0 0.0
    %5070 = vmatprep.subr.mxu0 0.0
    %5071 = vmatpush1.msra.mxu0 0.0
    %5072 = vmatprep.subr.mxu0 0.0
    %5073 = vmatpush1.msra.mxu0 0.0
    %5074 = vmatprep.subr.mxu0 0.0
    %5075 = vmatpush1.msra.mxu0 0.0
    %5076 = vmatprep.subr.mxu0 0.0
    %5077 = vmatpush1.msra.mxu0 0.0
    %v5078 = vand.u32 %v3379, 4294901760
    %v5079 = vsub.f32 %v3379, %v5078
    %5080 = vmatprep.subr.mxu0 %v5079
    %v5081 = vand.u32 %v3378, 4294901760
    %v5082 = vsub.f32 %v3378, %v5081
    %5083 = vmatpush1.msra.mxu0 %v5082
    %5084 = vmatprep.subr.mxu0 0.0
    %5085 = vmatpush2.msra.mxu0 0.0
    %5086 = vmatprep.subr.mxu0 0.0
    %5087 = vmatpush2.msra.mxu0 0.0
    %5088 = vmatprep.subr.mxu0 0.0
    %5089 = vmatpush2.msra.mxu0 0.0
    %5090 = vmatprep.subr.mxu0 0.0
    %5091 = vmatpush2.msra.mxu0 0.0
    %5092 = vmatprep.subr.mxu0 0.0
    %5093 = vmatpush2.msra.mxu0 0.0
    %5094 = vmatprep.subr.mxu0 0.0
    %5095 = vmatpush2.msra.mxu0 0.0
    %5096 = vmatprep.subr.mxu0 0.0
    %5097 = vmatpush2.msra.mxu0 0.0
    %5098 = vmatprep.subr.mxu0 0.0
    %5099 = vmatpush2.msra.mxu0 0.0
    %5100 = vmatprep.subr.mxu0 0.0
    %5101 = vmatpush2.msra.mxu0 0.0
    %5102 = vmatprep.subr.mxu0 0.0
    %5103 = vmatpush2.msra.mxu0 0.0
    %5104 = vmatprep.subr.mxu0 0.0
    %5105 = vmatpush2.msra.mxu0 0.0
    %5106 = vmatprep.subr.mxu0 0.0
    %5107 = vmatpush2.msra.mxu0 0.0
    %5108 = vmatprep.subr.mxu0 0.0
    %5109 = vmatpush2.msra.mxu0 0.0
    %5110 = vmatprep.subr.mxu0 0.0
    %5111 = vmatpush2.msra.mxu0 0.0
    %5112 = vmatprep.subr.mxu0 0.0
    %5113 = vmatpush2.msra.mxu0 0.0
    %5114 = vmatprep.subr.mxu0 0.0
    %5115 = vmatpush2.msra.mxu0 0.0
    %5116 = vmatprep.mubr.f32.mxu0 0.0
    %v5117 = vand.u32 %v4421, 4294901760
    %v5118 = vsub.f32 %v4421, %v5117
    %5119 = vmatmul.mubr.f32.gmra.mxu0 %v5118
    %v5120 = vpop.f32.mrf.mxu0
    %v5121 = vadd.f32 %v5044, %v5120
    %v5122 = vpop.f32.mrf.mxu0
    %v5123 = vadd.f32 %v5046, %v5122
    %5124 = vdwg.mxu0
    %5125 = vmatprep.subr.mxu0 0.0
    %5126 = vmatpush1.msra.mxu0 0.0
    %5127 = vmatprep.subr.mxu0 0.0
    %5128 = vmatpush1.msra.mxu0 0.0
    %5129 = vmatprep.subr.mxu0 0.0
    %5130 = vmatpush1.msra.mxu0 0.0
    %5131 = vmatprep.subr.mxu0 0.0
    %5132 = vmatpush1.msra.mxu0 0.0
    %5133 = vmatprep.subr.mxu0 0.0
    %5134 = vmatpush1.msra.mxu0 0.0
    %5135 = vmatprep.subr.mxu0 0.0
    %5136 = vmatpush1.msra.mxu0 0.0
    %5137 = vmatprep.subr.mxu0 0.0
    %5138 = vmatpush1.msra.mxu0 0.0
    %5139 = vmatprep.subr.mxu0 0.0
    %5140 = vmatpush1.msra.mxu0 0.0
    %5141 = vmatprep.subr.mxu0 0.0
    %5142 = vmatpush1.msra.mxu0 0.0
    %5143 = vmatprep.subr.mxu0 0.0
    %5144 = vmatpush1.msra.mxu0 0.0
    %5145 = vmatprep.subr.mxu0 0.0
    %5146 = vmatpush1.msra.mxu0 0.0
    %5147 = vmatprep.subr.mxu0 0.0
    %5148 = vmatpush1.msra.mxu0 0.0
    %5149 = vmatprep.subr.mxu0 0.0
    %5150 = vmatpush1.msra.mxu0 0.0
    %5151 = vmatprep.subr.mxu0 0.0
    %5152 = vmatpush1.msra.mxu0 0.0
    %5153 = vmatprep.subr.mxu0 0.0
    %5154 = vmatpush1.msra.mxu0 0.0
    %v5155 = vand.u32 %v3379, 4294901760
    %5156 = vmatprep.subr.mxu0 %v5155
    %v5157 = vand.u32 %v3378, 4294901760
    %5158 = vmatpush1.msra.mxu0 %v5157
    %5159 = vmatprep.subr.mxu0 0.0
    %5160 = vmatpush2.msra.mxu0 0.0
    %5161 = vmatprep.subr.mxu0 0.0
    %5162 = vmatpush2.msra.mxu0 0.0
    %5163 = vmatprep.subr.mxu0 0.0
    %5164 = vmatpush2.msra.mxu0 0.0
    %5165 = vmatprep.subr.mxu0 0.0
    %5166 = vmatpush2.msra.mxu0 0.0
    %5167 = vmatprep.subr.mxu0 0.0
    %5168 = vmatpush2.msra.mxu0 0.0
    %5169 = vmatprep.subr.mxu0 0.0
    %5170 = vmatpush2.msra.mxu0 0.0
    %5171 = vmatprep.subr.mxu0 0.0
    %5172 = vmatpush2.msra.mxu0 0.0
    %5173 = vmatprep.subr.mxu0 0.0
    %5174 = vmatpush2.msra.mxu0 0.0
    %5175 = vmatprep.subr.mxu0 0.0
    %5176 = vmatpush2.msra.mxu0 0.0
    %5177 = vmatprep.subr.mxu0 0.0
    %5178 = vmatpush2.msra.mxu0 0.0
    %5179 = vmatprep.subr.mxu0 0.0
    %5180 = vmatpush2.msra.mxu0 0.0
    %5181 = vmatprep.subr.mxu0 0.0
    %5182 = vmatpush2.msra.mxu0 0.0
    %5183 = vmatprep.subr.mxu0 0.0
    %5184 = vmatpush2.msra.mxu0 0.0
    %5185 = vmatprep.subr.mxu0 0.0
    %5186 = vmatpush2.msra.mxu0 0.0
    %5187 = vmatprep.subr.mxu0 0.0
    %5188 = vmatpush2.msra.mxu0 0.0
    %5189 = vmatprep.subr.mxu0 0.0
    %5190 = vmatpush2.msra.mxu0 0.0
    %5191 = vmatprep.mubr.f32.mxu0 0.0
    %v5192 = vand.u32 %v4421, 4294901760
    %v5193 = vsub.f32 %v4421, %v5192
    %v5194 = vand.u32 %v5193, 4294901760
    %5195 = vmatmul.mubr.f32.gmra.mxu0 %v5194
    %v5196 = vpop.f32.mrf.mxu0
    %v5197 = vadd.f32 %v5121, %v5196
    %v5198 = vpop.f32.mrf.mxu0
    %v5199 = vadd.f32 %v5123, %v5198
    %5200 = vdwg.mxu0
    %5201 = vmatprep.subr.mxu0 0.0
    %5202 = vmatpush1.msra.mxu0 0.0
    %5203 = vmatprep.subr.mxu0 0.0
    %5204 = vmatpush1.msra.mxu0 0.0
    %5205 = vmatprep.subr.mxu0 0.0
    %5206 = vmatpush1.msra.mxu0 0.0
    %5207 = vmatprep.subr.mxu0 0.0
    %5208 = vmatpush1.msra.mxu0 0.0
    %5209 = vmatprep.subr.mxu0 0.0
    %5210 = vmatpush1.msra.mxu0 0.0
    %5211 = vmatprep.subr.mxu0 0.0
    %5212 = vmatpush1.msra.mxu0 0.0
    %5213 = vmatprep.subr.mxu0 0.0
    %5214 = vmatpush1.msra.mxu0 0.0
    %5215 = vmatprep.subr.mxu0 0.0
    %5216 = vmatpush1.msra.mxu0 0.0
    %5217 = vmatprep.subr.mxu0 0.0
    %5218 = vmatpush1.msra.mxu0 0.0
    %5219 = vmatprep.subr.mxu0 0.0
    %5220 = vmatpush1.msra.mxu0 0.0
    %5221 = vmatprep.subr.mxu0 0.0
    %5222 = vmatpush1.msra.mxu0 0.0
    %5223 = vmatprep.subr.mxu0 0.0
    %5224 = vmatpush1.msra.mxu0 0.0
    %5225 = vmatprep.subr.mxu0 0.0
    %5226 = vmatpush1.msra.mxu0 0.0
    %5227 = vmatprep.subr.mxu0 0.0
    %5228 = vmatpush1.msra.mxu0 0.0
    %5229 = vmatprep.subr.mxu0 0.0
    %5230 = vmatpush1.msra.mxu0 0.0
    %v5231 = vand.u32 %v3379, 4294901760
    %v5232 = vsub.f32 %v3379, %v5231
    %v5233 = vand.u32 %v5232, 4294901760
    %5234 = vmatprep.subr.mxu0 %v5233
    %v5235 = vand.u32 %v3378, 4294901760
    %v5236 = vsub.f32 %v3378, %v5235
    %v5237 = vand.u32 %v5236, 4294901760
    %5238 = vmatpush1.msra.mxu0 %v5237
    %5239 = vmatprep.subr.mxu0 0.0
    %5240 = vmatpush2.msra.mxu0 0.0
    %5241 = vmatprep.subr.mxu0 0.0
    %5242 = vmatpush2.msra.mxu0 0.0
    %5243 = vmatprep.subr.mxu0 0.0
    %5244 = vmatpush2.msra.mxu0 0.0
    %5245 = vmatprep.subr.mxu0 0.0
    %5246 = vmatpush2.msra.mxu0 0.0
    %5247 = vmatprep.subr.mxu0 0.0
    %5248 = vmatpush2.msra.mxu0 0.0
    %5249 = vmatprep.subr.mxu0 0.0
    %5250 = vmatpush2.msra.mxu0 0.0
    %5251 = vmatprep.subr.mxu0 0.0
    %5252 = vmatpush2.msra.mxu0 0.0
    %5253 = vmatprep.subr.mxu0 0.0
    %5254 = vmatpush2.msra.mxu0 0.0
    %5255 = vmatprep.subr.mxu0 0.0
    %5256 = vmatpush2.msra.mxu0 0.0
    %5257 = vmatprep.subr.mxu0 0.0
    %5258 = vmatpush2.msra.mxu0 0.0
    %5259 = vmatprep.subr.mxu0 0.0
    %5260 = vmatpush2.msra.mxu0 0.0
    %5261 = vmatprep.subr.mxu0 0.0
    %5262 = vmatpush2.msra.mxu0 0.0
    %5263 = vmatprep.subr.mxu0 0.0
    %5264 = vmatpush2.msra.mxu0 0.0
    %5265 = vmatprep.subr.mxu0 0.0
    %5266 = vmatpush2.msra.mxu0 0.0
    %5267 = vmatprep.subr.mxu0 0.0
    %5268 = vmatpush2.msra.mxu0 0.0
    %5269 = vmatprep.subr.mxu0 0.0
    %5270 = vmatpush2.msra.mxu0 0.0
    %5271 = vmatprep.mubr.f32.mxu0 0.0
    %v5272 = vand.u32 %v4421, 4294901760
    %5273 = vmatmul.mubr.f32.gmra.mxu0 %v5272
    %v5274 = vpop.f32.mrf.mxu0
    %v5275 = vadd.f32 %v5197, %v5274
    %v5276 = vpop.f32.mrf.mxu0
    %v5277 = vadd.f32 %v5199, %v5276
    %5278 = vdwg.mxu0
    %5279 = vmatprep.subr.mxu0 0.0
    %5280 = vmatpush1.msra.mxu0 0.0
    %5281 = vmatprep.subr.mxu0 0.0
    %5282 = vmatpush1.msra.mxu0 0.0
    %5283 = vmatprep.subr.mxu0 0.0
    %5284 = vmatpush1.msra.mxu0 0.0
    %5285 = vmatprep.subr.mxu0 0.0
    %5286 = vmatpush1.msra.mxu0 0.0
    %5287 = vmatprep.subr.mxu0 0.0
    %5288 = vmatpush1.msra.mxu0 0.0
    %5289 = vmatprep.subr.mxu0 0.0
    %5290 = vmatpush1.msra.mxu0 0.0
    %5291 = vmatprep.subr.mxu0 0.0
    %5292 = vmatpush1.msra.mxu0 0.0
    %5293 = vmatprep.subr.mxu0 0.0
    %5294 = vmatpush1.msra.mxu0 0.0
    %5295 = vmatprep.subr.mxu0 0.0
    %5296 = vmatpush1.msra.mxu0 0.0
    %5297 = vmatprep.subr.mxu0 0.0
    %5298 = vmatpush1.msra.mxu0 0.0
    %5299 = vmatprep.subr.mxu0 0.0
    %5300 = vmatpush1.msra.mxu0 0.0
    %5301 = vmatprep.subr.mxu0 0.0
    %5302 = vmatpush1.msra.mxu0 0.0
    %5303 = vmatprep.subr.mxu0 0.0
    %5304 = vmatpush1.msra.mxu0 0.0
    %5305 = vmatprep.subr.mxu0 0.0
    %5306 = vmatpush1.msra.mxu0 0.0
    %5307 = vmatprep.subr.mxu0 0.0
    %5308 = vmatpush1.msra.mxu0 0.0
    %v5309 = vand.u32 %v3379, 4294901760
    %5310 = vmatprep.subr.mxu0 %v5309
    %v5311 = vand.u32 %v3378, 4294901760
    %5312 = vmatpush1.msra.mxu0 %v5311
    %5313 = vmatprep.subr.mxu0 0.0
    %5314 = vmatpush2.msra.mxu0 0.0
    %5315 = vmatprep.subr.mxu0 0.0
    %5316 = vmatpush2.msra.mxu0 0.0
    %5317 = vmatprep.subr.mxu0 0.0
    %5318 = vmatpush2.msra.mxu0 0.0
    %5319 = vmatprep.subr.mxu0 0.0
    %5320 = vmatpush2.msra.mxu0 0.0
    %5321 = vmatprep.subr.mxu0 0.0
    %5322 = vmatpush2.msra.mxu0 0.0
    %5323 = vmatprep.subr.mxu0 0.0
    %5324 = vmatpush2.msra.mxu0 0.0
    %5325 = vmatprep.subr.mxu0 0.0
    %5326 = vmatpush2.msra.mxu0 0.0
    %5327 = vmatprep.subr.mxu0 0.0
    %5328 = vmatpush2.msra.mxu0 0.0
    %5329 = vmatprep.subr.mxu0 0.0
    %5330 = vmatpush2.msra.mxu0 0.0
    %5331 = vmatprep.subr.mxu0 0.0
    %5332 = vmatpush2.msra.mxu0 0.0
    %5333 = vmatprep.subr.mxu0 0.0
    %5334 = vmatpush2.msra.mxu0 0.0
    %5335 = vmatprep.subr.mxu0 0.0
    %5336 = vmatpush2.msra.mxu0 0.0
    %5337 = vmatprep.subr.mxu0 0.0
    %5338 = vmatpush2.msra.mxu0 0.0
    %5339 = vmatprep.subr.mxu0 0.0
    %5340 = vmatpush2.msra.mxu0 0.0
    %5341 = vmatprep.subr.mxu0 0.0
    %5342 = vmatpush2.msra.mxu0 0.0
    %5343 = vmatprep.subr.mxu0 0.0
    %5344 = vmatpush2.msra.mxu0 0.0
    %5345 = vmatprep.mubr.f32.mxu0 0.0
    %v5346 = vand.u32 %v4421, 4294901760
    %5347 = vmatmul.mubr.f32.gmra.mxu0 %v5346
    %v5348 = vpop.f32.mrf.mxu0
    %v5349 = vadd.f32 %v5275, %v5348
    %v5350 = vpop.f32.mrf.mxu0
    %v5351 = vadd.f32 %v5277, %v5350
    %5352 = vdwg.mxu0
    %v5353 = vld [vmem:[%s12] sm:$0xf]
    %v5355 = vlaneseq
    %v5356 = vshrl.u32 %v5355, 7
    %v5357 = vsub.s32 0, %v5356
    %v5358 = vrot.slane %v5353, %v5357
    %v5359 = vlaneseq
    %v5360 = vshrl.u32 %v5359, 7
    %v5361 = vsub.s32 1, %v5360
    %v5362 = vrot.slane %v5353, %v5361
    %v5363 = vlaneseq
    %v5364 = vshrl.u32 %v5363, 7
    %v5365 = vsub.s32 2, %v5364
    %v5366 = vrot.slane %v5353, %v5365
    %v5367 = vlaneseq
    %v5368 = vshrl.u32 %v5367, 7
    %v5369 = vsub.s32 3, %v5368
    %v5370 = vrot.slane %v5353, %v5369
    %v5375 = vadd.f32 %v4884, %v5358
    %v5376 = vadd.f32 %v4886, %v5362
    %v5377 = vadd.f32 %v5349, %v5366
    %v5378 = vadd.f32 %v5351, %v5370
    %v5379 = vadd.f32 %v5375, 1.0
    %v5380 = vmul.f32 %v3260, %v5379
    %v5381 = vadd.f32 %v5380, %v5376
    %v5382 = vld [vmem:[#allocation13] sm:$0xff]
    %v5383 = vld [vmem:[#allocation13 + $0x8] sm:$0xff]
    %v5384 = vld [vmem:[#allocation13 + $0x10] sm:$0xff]
    %v5385 = vld [vmem:[#allocation13 + $0x18] sm:$0xff]
    %v5386 = vld [vmem:[#allocation13 + $0x20] sm:$0xff]
    %v5387 = vld [vmem:[#allocation13 + $0x28] sm:$0xff]
    %v5388 = vld [vmem:[#allocation13 + $0x30] sm:$0xff]
    %v5389 = vld [vmem:[#allocation13 + $0x38] sm:$0xff]
    %v5390 = vld [vmem:[#allocation13 + $0x40] sm:$0xff]
    %v5391 = vld [vmem:[#allocation13 + $0x48] sm:$0xff]
    %v5392 = vld [vmem:[#allocation13 + $0x50] sm:$0xff]
    %v5393 = vld [vmem:[#allocation13 + $0x58] sm:$0xff]
    %v5394 = vld [vmem:[#allocation13 + $0x60] sm:$0xff]
    %v5395 = vld [vmem:[#allocation13 + $0x68] sm:$0xff]
    %v5396 = vld [vmem:[#allocation13 + $0x70] sm:$0xff]
    %v5397 = vld [vmem:[#allocation13 + $0x78] sm:$0xff]
    %v5398 = vld [vmem:[%s14] sm:$0x7]
    %v5399 = vlaneseq
    %v5400 = vshrl.u32 %v5399, 7
    %v5401 = vsub.s32 0, %v5400
    %v5402 = vrot.slane %v5398, %v5401
    %5403 = vmatprep.subr.mxu0 0.0
    %v5404 = vand.u32 %v5397, 4294901760
    %5405 = vmatpush1.msra.mxu0 %v5404
    %5406 = vmatprep.subr.mxu0 0.0
    %v5407 = vand.u32 %v5396, 4294901760
    %5408 = vmatpush1.msra.mxu0 %v5407
    %5409 = vmatprep.subr.mxu0 0.0
    %v5410 = vand.u32 %v5395, 4294901760
    %5411 = vmatpush1.msra.mxu0 %v5410
    %5412 = vmatprep.subr.mxu0 0.0
    %v5413 = vand.u32 %v5394, 4294901760
    %5414 = vmatpush1.msra.mxu0 %v5413
    %5415 = vmatprep.subr.mxu0 0.0
    %v5416 = vand.u32 %v5393, 4294901760
    %5417 = vmatpush1.msra.mxu0 %v5416
    %5418 = vmatprep.subr.mxu0 0.0
    %v5419 = vand.u32 %v5392, 4294901760
    %5420 = vmatpush1.msra.mxu0 %v5419
    %5421 = vmatprep.subr.mxu0 0.0
    %v5422 = vand.u32 %v5391, 4294901760
    %5423 = vmatpush1.msra.mxu0 %v5422
    %5424 = vmatprep.subr.mxu0 0.0
    %v5425 = vand.u32 %v5390, 4294901760
    %5426 = vmatpush1.msra.mxu0 %v5425
    %5427 = vmatprep.subr.mxu0 0.0
    %v5428 = vand.u32 %v5389, 4294901760
    %5429 = vmatpush1.msra.mxu0 %v5428
    %5430 = vmatprep.subr.mxu0 0.0
    %v5431 = vand.u32 %v5388, 4294901760
    %5432 = vmatpush1.msra.mxu0 %v5431
    %5433 = vmatprep.subr.mxu0 0.0
    %v5434 = vand.u32 %v5387, 4294901760
    %5435 = vmatpush1.msra.mxu0 %v5434
    %5436 = vmatprep.subr.mxu0 0.0
    %v5437 = vand.u32 %v5386, 4294901760
    %5438 = vmatpush1.msra.mxu0 %v5437
    %5439 = vmatprep.subr.mxu0 0.0
    %v5440 = vand.u32 %v5385, 4294901760
    %5441 = vmatpush1.msra.mxu0 %v5440
    %5442 = vmatprep.subr.mxu0 0.0
    %v5443 = vand.u32 %v5384, 4294901760
    %5444 = vmatpush1.msra.mxu0 %v5443
    %5445 = vmatprep.subr.mxu0 0.0
    %v5446 = vand.u32 %v5383, 4294901760
    %5447 = vmatpush1.msra.mxu0 %v5446
    %5448 = vmatprep.subr.mxu0 0.0
    %v5449 = vand.u32 %v5382, 4294901760
    %5450 = vmatpush1.msra.mxu0 %v5449
    %5451 = vmatprep.subr.mxu0 0.0
    %5452 = vmatpush2.msra.mxu0 0.0
    %5453 = vmatprep.subr.mxu0 0.0
    %5454 = vmatpush2.msra.mxu0 0.0
    %5455 = vmatprep.subr.mxu0 0.0
    %5456 = vmatpush2.msra.mxu0 0.0
    %5457 = vmatprep.subr.mxu0 0.0
    %5458 = vmatpush2.msra.mxu0 0.0
    %5459 = vmatprep.subr.mxu0 0.0
    %5460 = vmatpush2.msra.mxu0 0.0
    %5461 = vmatprep.subr.mxu0 0.0
    %5462 = vmatpush2.msra.mxu0 0.0
    %5463 = vmatprep.subr.mxu0 0.0
    %5464 = vmatpush2.msra.mxu0 0.0
    %5465 = vmatprep.subr.mxu0 0.0
    %5466 = vmatpush2.msra.mxu0 0.0
    %5467 = vmatprep.subr.mxu0 0.0
    %5468 = vmatpush2.msra.mxu0 0.0
    %5469 = vmatprep.subr.mxu0 0.0
    %5470 = vmatpush2.msra.mxu0 0.0
    %5471 = vmatprep.subr.mxu0 0.0
    %5472 = vmatpush2.msra.mxu0 0.0
    %5473 = vmatprep.subr.mxu0 0.0
    %5474 = vmatpush2.msra.mxu0 0.0
    %5475 = vmatprep.subr.mxu0 0.0
    %5476 = vmatpush2.msra.mxu0 0.0
    %5477 = vmatprep.subr.mxu0 0.0
    %5478 = vmatpush2.msra.mxu0 0.0
    %5479 = vmatprep.subr.mxu0 0.0
    %5480 = vmatpush2.msra.mxu0 0.0
    %5481 = vmatprep.subr.mxu0 0.0
    %5482 = vmatpush2.msra.mxu0 0.0
    %5483 = vmatprep.mubr.f32.mxu0 0.0
    %v5484 = vand.u32 %v5381, 4294901760
    %v5485 = vsub.f32 %v5381, %v5484
    %v5486 = vand.u32 %v5485, 4294901760
    %v5487 = vsub.f32 %v5485, %v5486
    %v5488 = vand.u32 %v5487, 4294901760
    %5489 = vmatmul.mubr.f32.gmra.mxu0 %v5488
    %v5490 = vpop.f32.mrf.mxu0
    %v5491 = vadd.f32 %v5402, %v5490
    %v5492 = vpop.f32.mrf.mxu0
    %5493 = vdwg.mxu0
    %5494 = vmatprep.subr.mxu0 0.0
    %v5495 = vand.u32 %v5397, 4294901760
    %v5496 = vsub.f32 %v5397, %v5495
    %v5497 = vand.u32 %v5496, 4294901760
    %v5498 = vsub.f32 %v5496, %v5497
    %v5499 = vand.u32 %v5498, 4294901760
    %5500 = vmatpush1.msra.mxu0 %v5499
    %5501 = vmatprep.subr.mxu0 0.0
    %v5502 = vand.u32 %v5396, 4294901760
    %v5503 = vsub.f32 %v5396, %v5502
    %v5504 = vand.u32 %v5503, 4294901760
    %v5505 = vsub.f32 %v5503, %v5504
    %v5506 = vand.u32 %v5505, 4294901760
    %5507 = vmatpush1.msra.mxu0 %v5506
    %5508 = vmatprep.subr.mxu0 0.0
    %v5509 = vand.u32 %v5395, 4294901760
    %v5510 = vsub.f32 %v5395, %v5509
    %v5511 = vand.u32 %v5510, 4294901760
    %v5512 = vsub.f32 %v5510, %v5511
    %v5513 = vand.u32 %v5512, 4294901760
    %5514 = vmatpush1.msra.mxu0 %v5513
    %5515 = vmatprep.subr.mxu0 0.0
    %v5516 = vand.u32 %v5394, 4294901760
    %v5517 = vsub.f32 %v5394, %v5516
    %v5518 = vand.u32 %v5517, 4294901760
    %v5519 = vsub.f32 %v5517, %v5518
    %v5520 = vand.u32 %v5519, 4294901760
    %5521 = vmatpush1.msra.mxu0 %v5520
    %5522 = vmatprep.subr.mxu0 0.0
    %v5523 = vand.u32 %v5393, 4294901760
    %v5524 = vsub.f32 %v5393, %v5523
    %v5525 = vand.u32 %v5524, 4294901760
    %v5526 = vsub.f32 %v5524, %v5525
    %v5527 = vand.u32 %v5526, 4294901760
    %5528 = vmatpush1.msra.mxu0 %v5527
    %5529 = vmatprep.subr.mxu0 0.0
    %v5530 = vand.u32 %v5392, 4294901760
    %v5531 = vsub.f32 %v5392, %v5530
    %v5532 = vand.u32 %v5531, 4294901760
    %v5533 = vsub.f32 %v5531, %v5532
    %v5534 = vand.u32 %v5533, 4294901760
    %5535 = vmatpush1.msra.mxu0 %v5534
    %5536 = vmatprep.subr.mxu0 0.0
    %v5537 = vand.u32 %v5391, 4294901760
    %v5538 = vsub.f32 %v5391, %v5537
    %v5539 = vand.u32 %v5538, 4294901760
    %v5540 = vsub.f32 %v5538, %v5539
    %v5541 = vand.u32 %v5540, 4294901760
    %5542 = vmatpush1.msra.mxu0 %v5541
    %5543 = vmatprep.subr.mxu0 0.0
    %v5544 = vand.u32 %v5390, 4294901760
    %v5545 = vsub.f32 %v5390, %v5544
    %v5546 = vand.u32 %v5545, 4294901760
    %v5547 = vsub.f32 %v5545, %v5546
    %v5548 = vand.u32 %v5547, 4294901760
    %5549 = vmatpush1.msra.mxu0 %v5548
    %5550 = vmatprep.subr.mxu0 0.0
    %v5551 = vand.u32 %v5389, 4294901760
    %v5552 = vsub.f32 %v5389, %v5551
    %v5553 = vand.u32 %v5552, 4294901760
    %v5554 = vsub.f32 %v5552, %v5553
    %v5555 = vand.u32 %v5554, 4294901760
    %5556 = vmatpush1.msra.mxu0 %v5555
    %5557 = vmatprep.subr.mxu0 0.0
    %v5558 = vand.u32 %v5388, 4294901760
    %v5559 = vsub.f32 %v5388, %v5558
    %v5560 = vand.u32 %v5559, 4294901760
    %v5561 = vsub.f32 %v5559, %v5560
    %v5562 = vand.u32 %v5561, 4294901760
    %5563 = vmatpush1.msra.mxu0 %v5562
    %5564 = vmatprep.subr.mxu0 0.0
    %v5565 = vand.u32 %v5387, 4294901760
    %v5566 = vsub.f32 %v5387, %v5565
    %v5567 = vand.u32 %v5566, 4294901760
    %v5568 = vsub.f32 %v5566, %v5567
    %v5569 = vand.u32 %v5568, 4294901760
    %5570 = vmatpush1.msra.mxu0 %v5569
    %5571 = vmatprep.subr.mxu0 0.0
    %v5572 = vand.u32 %v5386, 4294901760
    %v5573 = vsub.f32 %v5386, %v5572
    %v5574 = vand.u32 %v5573, 4294901760
    %v5575 = vsub.f32 %v5573, %v5574
    %v5576 = vand.u32 %v5575, 4294901760
    %5577 = vmatpush1.msra.mxu0 %v5576
    %5578 = vmatprep.subr.mxu0 0.0
    %v5579 = vand.u32 %v5385, 4294901760
    %v5580 = vsub.f32 %v5385, %v5579
    %v5581 = vand.u32 %v5580, 4294901760
    %v5582 = vsub.f32 %v5580, %v5581
    %v5583 = vand.u32 %v5582, 4294901760
    %5584 = vmatpush1.msra.mxu0 %v5583
    %5585 = vmatprep.subr.mxu0 0.0
    %v5586 = vand.u32 %v5384, 4294901760
    %v5587 = vsub.f32 %v5384, %v5586
    %v5588 = vand.u32 %v5587, 4294901760
    %v5589 = vsub.f32 %v5587, %v5588
    %v5590 = vand.u32 %v5589, 4294901760
    %5591 = vmatpush1.msra.mxu0 %v5590
    %5592 = vmatprep.subr.mxu0 0.0
    %v5593 = vand.u32 %v5383, 4294901760
    %v5594 = vsub.f32 %v5383, %v5593
    %v5595 = vand.u32 %v5594, 4294901760
    %v5596 = vsub.f32 %v5594, %v5595
    %v5597 = vand.u32 %v5596, 4294901760
    %5598 = vmatpush1.msra.mxu0 %v5597
    %5599 = vmatprep.subr.mxu0 0.0
    %v5600 = vand.u32 %v5382, 4294901760
    %v5601 = vsub.f32 %v5382, %v5600
    %v5602 = vand.u32 %v5601, 4294901760
    %v5603 = vsub.f32 %v5601, %v5602
    %v5604 = vand.u32 %v5603, 4294901760
    %5605 = vmatpush1.msra.mxu0 %v5604
    %5606 = vmatprep.subr.mxu0 0.0
    %5607 = vmatpush2.msra.mxu0 0.0
    %5608 = vmatprep.subr.mxu0 0.0
    %5609 = vmatpush2.msra.mxu0 0.0
    %5610 = vmatprep.subr.mxu0 0.0
    %5611 = vmatpush2.msra.mxu0 0.0
    %5612 = vmatprep.subr.mxu0 0.0
    %5613 = vmatpush2.msra.mxu0 0.0
    %5614 = vmatprep.subr.mxu0 0.0
    %5615 = vmatpush2.msra.mxu0 0.0
    %5616 = vmatprep.subr.mxu0 0.0
    %5617 = vmatpush2.msra.mxu0 0.0
    %5618 = vmatprep.subr.mxu0 0.0
    %5619 = vmatpush2.msra.mxu0 0.0
    %5620 = vmatprep.subr.mxu0 0.0
    %5621 = vmatpush2.msra.mxu0 0.0
    %5622 = vmatprep.subr.mxu0 0.0
    %5623 = vmatpush2.msra.mxu0 0.0
    %5624 = vmatprep.subr.mxu0 0.0
    %5625 = vmatpush2.msra.mxu0 0.0
    %5626 = vmatprep.subr.mxu0 0.0
    %5627 = vmatpush2.msra.mxu0 0.0
    %5628 = vmatprep.subr.mxu0 0.0
    %5629 = vmatpush2.msra.mxu0 0.0
    %5630 = vmatprep.subr.mxu0 0.0
    %5631 = vmatpush2.msra.mxu0 0.0
    %5632 = vmatprep.subr.mxu0 0.0
    %5633 = vmatpush2.msra.mxu0 0.0
    %5634 = vmatprep.subr.mxu0 0.0
    %5635 = vmatpush2.msra.mxu0 0.0
    %5636 = vmatprep.subr.mxu0 0.0
    %5637 = vmatpush2.msra.mxu0 0.0
    %5638 = vmatprep.mubr.f32.mxu0 0.0
    %v5639 = vand.u32 %v5381, 4294901760
    %5640 = vmatmul.mubr.f32.gmra.mxu0 %v5639
    %v5641 = vpop.f32.mrf.mxu0
    %v5642 = vadd.f32 %v5491, %v5641
    %v5643 = vpop.f32.mrf.mxu0
    %5644 = vdwg.mxu0
    %5645 = vmatprep.subr.mxu0 0.0
    %v5646 = vand.u32 %v5397, 4294901760
    %v5647 = vsub.f32 %v5397, %v5646
    %5648 = vmatpush1.msra.mxu0 %v5647
    %5649 = vmatprep.subr.mxu0 0.0
    %v5650 = vand.u32 %v5396, 4294901760
    %v5651 = vsub.f32 %v5396, %v5650
    %5652 = vmatpush1.msra.mxu0 %v5651
    %5653 = vmatprep.subr.mxu0 0.0
    %v5654 = vand.u32 %v5395, 4294901760
    %v5655 = vsub.f32 %v5395, %v5654
    %5656 = vmatpush1.msra.mxu0 %v5655
    %5657 = vmatprep.subr.mxu0 0.0
    %v5658 = vand.u32 %v5394, 4294901760
    %v5659 = vsub.f32 %v5394, %v5658
    %5660 = vmatpush1.msra.mxu0 %v5659
    %5661 = vmatprep.subr.mxu0 0.0
    %v5662 = vand.u32 %v5393, 4294901760
    %v5663 = vsub.f32 %v5393, %v5662
    %5664 = vmatpush1.msra.mxu0 %v5663
    %5665 = vmatprep.subr.mxu0 0.0
    %v5666 = vand.u32 %v5392, 4294901760
    %v5667 = vsub.f32 %v5392, %v5666
    %5668 = vmatpush1.msra.mxu0 %v5667
    %5669 = vmatprep.subr.mxu0 0.0
    %v5670 = vand.u32 %v5391, 4294901760
    %v5671 = vsub.f32 %v5391, %v5670
    %5672 = vmatpush1.msra.mxu0 %v5671
    %5673 = vmatprep.subr.mxu0 0.0
    %v5674 = vand.u32 %v5390, 4294901760
    %v5675 = vsub.f32 %v5390, %v5674
    %5676 = vmatpush1.msra.mxu0 %v5675
    %5677 = vmatprep.subr.mxu0 0.0
    %v5678 = vand.u32 %v5389, 4294901760
    %v5679 = vsub.f32 %v5389, %v5678
    %5680 = vmatpush1.msra.mxu0 %v5679
    %5681 = vmatprep.subr.mxu0 0.0
    %v5682 = vand.u32 %v5388, 4294901760
    %v5683 = vsub.f32 %v5388, %v5682
    %5684 = vmatpush1.msra.mxu0 %v5683
    %5685 = vmatprep.subr.mxu0 0.0
    %v5686 = vand.u32 %v5387, 4294901760
    %v5687 = vsub.f32 %v5387, %v5686
    %5688 = vmatpush1.msra.mxu0 %v5687
    %5689 = vmatprep.subr.mxu0 0.0
    %v5690 = vand.u32 %v5386, 4294901760
    %v5691 = vsub.f32 %v5386, %v5690
    %5692 = vmatpush1.msra.mxu0 %v5691
    %5693 = vmatprep.subr.mxu0 0.0
    %v5694 = vand.u32 %v5385, 4294901760
    %v5695 = vsub.f32 %v5385, %v5694
    %5696 = vmatpush1.msra.mxu0 %v5695
    %5697 = vmatprep.subr.mxu0 0.0
    %v5698 = vand.u32 %v5384, 4294901760
    %v5699 = vsub.f32 %v5384, %v5698
    %5700 = vmatpush1.msra.mxu0 %v5699
    %5701 = vmatprep.subr.mxu0 0.0
    %v5702 = vand.u32 %v5383, 4294901760
    %v5703 = vsub.f32 %v5383, %v5702
    %5704 = vmatpush1.msra.mxu0 %v5703
    %5705 = vmatprep.subr.mxu0 0.0
    %v5706 = vand.u32 %v5382, 4294901760
    %v5707 = vsub.f32 %v5382, %v5706
    %5708 = vmatpush1.msra.mxu0 %v5707
    %5709 = vmatprep.subr.mxu0 0.0
    %5710 = vmatpush2.msra.mxu0 0.0
    %5711 = vmatprep.subr.mxu0 0.0
    %5712 = vmatpush2.msra.mxu0 0.0
    %5713 = vmatprep.subr.mxu0 0.0
    %5714 = vmatpush2.msra.mxu0 0.0
    %5715 = vmatprep.subr.mxu0 0.0
    %5716 = vmatpush2.msra.mxu0 0.0
    %5717 = vmatprep.subr.mxu0 0.0
    %5718 = vmatpush2.msra.mxu0 0.0
    %5719 = vmatprep.subr.mxu0 0.0
    %5720 = vmatpush2.msra.mxu0 0.0
    %5721 = vmatprep.subr.mxu0 0.0
    %5722 = vmatpush2.msra.mxu0 0.0
    %5723 = vmatprep.subr.mxu0 0.0
    %5724 = vmatpush2.msra.mxu0 0.0
    %5725 = vmatprep.subr.mxu0 0.0
    %5726 = vmatpush2.msra.mxu0 0.0
    %5727 = vmatprep.subr.mxu0 0.0
    %5728 = vmatpush2.msra.mxu0 0.0
    %5729 = vmatprep.subr.mxu0 0.0
    %5730 = vmatpush2.msra.mxu0 0.0
    %5731 = vmatprep.subr.mxu0 0.0
    %5732 = vmatpush2.msra.mxu0 0.0
    %5733 = vmatprep.subr.mxu0 0.0
    %5734 = vmatpush2.msra.mxu0 0.0
    %5735 = vmatprep.subr.mxu0 0.0
    %5736 = vmatpush2.msra.mxu0 0.0
    %5737 = vmatprep.subr.mxu0 0.0
    %5738 = vmatpush2.msra.mxu0 0.0
    %5739 = vmatprep.subr.mxu0 0.0
    %5740 = vmatpush2.msra.mxu0 0.0
    %5741 = vmatprep.mubr.f32.mxu0 0.0
    %v5742 = vand.u32 %v5381, 4294901760
    %v5743 = vsub.f32 %v5381, %v5742
    %5744 = vmatmul.mubr.f32.gmra.mxu0 %v5743
    %v5745 = vpop.f32.mrf.mxu0
    %v5746 = vadd.f32 %v5642, %v5745
    %v5747 = vpop.f32.mrf.mxu0
    %5748 = vdwg.mxu0
    %5749 = vmatprep.subr.mxu0 0.0
    %v5750 = vand.u32 %v5397, 4294901760
    %5751 = vmatpush1.msra.mxu0 %v5750
    %5752 = vmatprep.subr.mxu0 0.0
    %v5753 = vand.u32 %v5396, 4294901760
    %5754 = vmatpush1.msra.mxu0 %v5753
    %5755 = vmatprep.subr.mxu0 0.0
    %v5756 = vand.u32 %v5395, 4294901760
    %5757 = vmatpush1.msra.mxu0 %v5756
    %5758 = vmatprep.subr.mxu0 0.0
    %v5759 = vand.u32 %v5394, 4294901760
    %5760 = vmatpush1.msra.mxu0 %v5759
    %5761 = vmatprep.subr.mxu0 0.0
    %v5762 = vand.u32 %v5393, 4294901760
    %5763 = vmatpush1.msra.mxu0 %v5762
    %5764 = vmatprep.subr.mxu0 0.0
    %v5765 = vand.u32 %v5392, 4294901760
    %5766 = vmatpush1.msra.mxu0 %v5765
    %5767 = vmatprep.subr.mxu0 0.0
    %v5768 = vand.u32 %v5391, 4294901760
    %5769 = vmatpush1.msra.mxu0 %v5768
    %5770 = vmatprep.subr.mxu0 0.0
    %v5771 = vand.u32 %v5390, 4294901760
    %5772 = vmatpush1.msra.mxu0 %v5771
    %5773 = vmatprep.subr.mxu0 0.0
    %v5774 = vand.u32 %v5389, 4294901760
    %5775 = vmatpush1.msra.mxu0 %v5774
    %5776 = vmatprep.subr.mxu0 0.0
    %v5777 = vand.u32 %v5388, 4294901760
    %5778 = vmatpush1.msra.mxu0 %v5777
    %5779 = vmatprep.subr.mxu0 0.0
    %v5780 = vand.u32 %v5387, 4294901760
    %5781 = vmatpush1.msra.mxu0 %v5780
    %5782 = vmatprep.subr.mxu0 0.0
    %v5783 = vand.u32 %v5386, 4294901760
    %5784 = vmatpush1.msra.mxu0 %v5783
    %5785 = vmatprep.subr.mxu0 0.0
    %v5786 = vand.u32 %v5385, 4294901760
    %5787 = vmatpush1.msra.mxu0 %v5786
    %5788 = vmatprep.subr.mxu0 0.0
    %v5789 = vand.u32 %v5384, 4294901760
    %5790 = vmatpush1.msra.mxu0 %v5789
    %5791 = vmatprep.subr.mxu0 0.0
    %v5792 = vand.u32 %v5383, 4294901760
    %5793 = vmatpush1.msra.mxu0 %v5792
    %5794 = vmatprep.subr.mxu0 0.0
    %v5795 = vand.u32 %v5382, 4294901760
    %5796 = vmatpush1.msra.mxu0 %v5795
    %5797 = vmatprep.subr.mxu0 0.0
    %5798 = vmatpush2.msra.mxu0 0.0
    %5799 = vmatprep.subr.mxu0 0.0
    %5800 = vmatpush2.msra.mxu0 0.0
    %5801 = vmatprep.subr.mxu0 0.0
    %5802 = vmatpush2.msra.mxu0 0.0
    %5803 = vmatprep.subr.mxu0 0.0
    %5804 = vmatpush2.msra.mxu0 0.0
    %5805 = vmatprep.subr.mxu0 0.0
    %5806 = vmatpush2.msra.mxu0 0.0
    %5807 = vmatprep.subr.mxu0 0.0
    %5808 = vmatpush2.msra.mxu0 0.0
    %5809 = vmatprep.subr.mxu0 0.0
    %5810 = vmatpush2.msra.mxu0 0.0
    %5811 = vmatprep.subr.mxu0 0.0
    %5812 = vmatpush2.msra.mxu0 0.0
    %5813 = vmatprep.subr.mxu0 0.0
    %5814 = vmatpush2.msra.mxu0 0.0
    %5815 = vmatprep.subr.mxu0 0.0
    %5816 = vmatpush2.msra.mxu0 0.0
    %5817 = vmatprep.subr.mxu0 0.0
    %5818 = vmatpush2.msra.mxu0 0.0
    %5819 = vmatprep.subr.mxu0 0.0
    %5820 = vmatpush2.msra.mxu0 0.0
    %5821 = vmatprep.subr.mxu0 0.0
    %5822 = vmatpush2.msra.mxu0 0.0
    %5823 = vmatprep.subr.mxu0 0.0
    %5824 = vmatpush2.msra.mxu0 0.0
    %5825 = vmatprep.subr.mxu0 0.0
    %5826 = vmatpush2.msra.mxu0 0.0
    %5827 = vmatprep.subr.mxu0 0.0
    %5828 = vmatpush2.msra.mxu0 0.0
    %5829 = vmatprep.mubr.f32.mxu0 0.0
    %v5830 = vand.u32 %v5381, 4294901760
    %v5831 = vsub.f32 %v5381, %v5830
    %v5832 = vand.u32 %v5831, 4294901760
    %5833 = vmatmul.mubr.f32.gmra.mxu0 %v5832
    %v5834 = vpop.f32.mrf.mxu0
    %v5835 = vadd.f32 %v5746, %v5834
    %v5836 = vpop.f32.mrf.mxu0
    %5837 = vdwg.mxu0
    %5838 = vmatprep.subr.mxu0 0.0
    %v5839 = vand.u32 %v5397, 4294901760
    %v5840 = vsub.f32 %v5397, %v5839
    %v5841 = vand.u32 %v5840, 4294901760
    %5842 = vmatpush1.msra.mxu0 %v5841
    %5843 = vmatprep.subr.mxu0 0.0
    %v5844 = vand.u32 %v5396, 4294901760
    %v5845 = vsub.f32 %v5396, %v5844
    %v5846 = vand.u32 %v5845, 4294901760
    %5847 = vmatpush1.msra.mxu0 %v5846
    %5848 = vmatprep.subr.mxu0 0.0
    %v5849 = vand.u32 %v5395, 4294901760
    %v5850 = vsub.f32 %v5395, %v5849
    %v5851 = vand.u32 %v5850, 4294901760
    %5852 = vmatpush1.msra.mxu0 %v5851
    %5853 = vmatprep.subr.mxu0 0.0
    %v5854 = vand.u32 %v5394, 4294901760
    %v5855 = vsub.f32 %v5394, %v5854
    %v5856 = vand.u32 %v5855, 4294901760
    %5857 = vmatpush1.msra.mxu0 %v5856
    %5858 = vmatprep.subr.mxu0 0.0
    %v5859 = vand.u32 %v5393, 4294901760
    %v5860 = vsub.f32 %v5393, %v5859
    %v5861 = vand.u32 %v5860, 4294901760
    %5862 = vmatpush1.msra.mxu0 %v5861
    %5863 = vmatprep.subr.mxu0 0.0
    %v5864 = vand.u32 %v5392, 4294901760
    %v5865 = vsub.f32 %v5392, %v5864
    %v5866 = vand.u32 %v5865, 4294901760
    %5867 = vmatpush1.msra.mxu0 %v5866
    %5868 = vmatprep.subr.mxu0 0.0
    %v5869 = vand.u32 %v5391, 4294901760
    %v5870 = vsub.f32 %v5391, %v5869
    %v5871 = vand.u32 %v5870, 4294901760
    %5872 = vmatpush1.msra.mxu0 %v5871
    %5873 = vmatprep.subr.mxu0 0.0
    %v5874 = vand.u32 %v5390, 4294901760
    %v5875 = vsub.f32 %v5390, %v5874
    %v5876 = vand.u32 %v5875, 4294901760
    %5877 = vmatpush1.msra.mxu0 %v5876
    %5878 = vmatprep.subr.mxu0 0.0
    %v5879 = vand.u32 %v5389, 4294901760
    %v5880 = vsub.f32 %v5389, %v5879
    %v5881 = vand.u32 %v5880, 4294901760
    %5882 = vmatpush1.msra.mxu0 %v5881
    %5883 = vmatprep.subr.mxu0 0.0
    %v5884 = vand.u32 %v5388, 4294901760
    %v5885 = vsub.f32 %v5388, %v5884
    %v5886 = vand.u32 %v5885, 4294901760
    %5887 = vmatpush1.msra.mxu0 %v5886
    %5888 = vmatprep.subr.mxu0 0.0
    %v5889 = vand.u32 %v5387, 4294901760
    %v5890 = vsub.f32 %v5387, %v5889
    %v5891 = vand.u32 %v5890, 4294901760
    %5892 = vmatpush1.msra.mxu0 %v5891
    %5893 = vmatprep.subr.mxu0 0.0
    %v5894 = vand.u32 %v5386, 4294901760
    %v5895 = vsub.f32 %v5386, %v5894
    %v5896 = vand.u32 %v5895, 4294901760
    %5897 = vmatpush1.msra.mxu0 %v5896
    %5898 = vmatprep.subr.mxu0 0.0
    %v5899 = vand.u32 %v5385, 4294901760
    %v5900 = vsub.f32 %v5385, %v5899
    %v5901 = vand.u32 %v5900, 4294901760
    %5902 = vmatpush1.msra.mxu0 %v5901
    %5903 = vmatprep.subr.mxu0 0.0
    %v5904 = vand.u32 %v5384, 4294901760
    %v5905 = vsub.f32 %v5384, %v5904
    %v5906 = vand.u32 %v5905, 4294901760
    %5907 = vmatpush1.msra.mxu0 %v5906
    %5908 = vmatprep.subr.mxu0 0.0
    %v5909 = vand.u32 %v5383, 4294901760
    %v5910 = vsub.f32 %v5383, %v5909
    %v5911 = vand.u32 %v5910, 4294901760
    %5912 = vmatpush1.msra.mxu0 %v5911
    %5913 = vmatprep.subr.mxu0 0.0
    %v5914 = vand.u32 %v5382, 4294901760
    %v5915 = vsub.f32 %v5382, %v5914
    %v5916 = vand.u32 %v5915, 4294901760
    %5917 = vmatpush1.msra.mxu0 %v5916
    %5918 = vmatprep.subr.mxu0 0.0
    %5919 = vmatpush2.msra.mxu0 0.0
    %5920 = vmatprep.subr.mxu0 0.0
    %5921 = vmatpush2.msra.mxu0 0.0
    %5922 = vmatprep.subr.mxu0 0.0
    %5923 = vmatpush2.msra.mxu0 0.0
    %5924 = vmatprep.subr.mxu0 0.0
    %5925 = vmatpush2.msra.mxu0 0.0
    %5926 = vmatprep.subr.mxu0 0.0
    %5927 = vmatpush2.msra.mxu0 0.0
    %5928 = vmatprep.subr.mxu0 0.0
    %5929 = vmatpush2.msra.mxu0 0.0
    %5930 = vmatprep.subr.mxu0 0.0
    %5931 = vmatpush2.msra.mxu0 0.0
    %5932 = vmatprep.subr.mxu0 0.0
    %5933 = vmatpush2.msra.mxu0 0.0
    %5934 = vmatprep.subr.mxu0 0.0
    %5935 = vmatpush2.msra.mxu0 0.0
    %5936 = vmatprep.subr.mxu0 0.0
    %5937 = vmatpush2.msra.mxu0 0.0
    %5938 = vmatprep.subr.mxu0 0.0
    %5939 = vmatpush2.msra.mxu0 0.0
    %5940 = vmatprep.subr.mxu0 0.0
    %5941 = vmatpush2.msra.mxu0 0.0
    %5942 = vmatprep.subr.mxu0 0.0
    %5943 = vmatpush2.msra.mxu0 0.0
    %5944 = vmatprep.subr.mxu0 0.0
    %5945 = vmatpush2.msra.mxu0 0.0
    %5946 = vmatprep.subr.mxu0 0.0
    %5947 = vmatpush2.msra.mxu0 0.0
    %5948 = vmatprep.subr.mxu0 0.0
    %5949 = vmatpush2.msra.mxu0 0.0
    %5950 = vmatprep.mubr.f32.mxu0 0.0
    %v5951 = vand.u32 %v5381, 4294901760
    %5952 = vmatmul.mubr.f32.gmra.mxu0 %v5951
    %v5953 = vpop.f32.mrf.mxu0
    %v5954 = vadd.f32 %v5835, %v5953
    %v5955 = vpop.f32.mrf.mxu0
    %5956 = vdwg.mxu0
    %5957 = vmatprep.subr.mxu0 0.0
    %v5958 = vand.u32 %v5397, 4294901760
    %5959 = vmatpush1.msra.mxu0 %v5958
    %5960 = vmatprep.subr.mxu0 0.0
    %v5961 = vand.u32 %v5396, 4294901760
    %5962 = vmatpush1.msra.mxu0 %v5961
    %5963 = vmatprep.subr.mxu0 0.0
    %v5964 = vand.u32 %v5395, 4294901760
    %5965 = vmatpush1.msra.mxu0 %v5964
    %5966 = vmatprep.subr.mxu0 0.0
    %v5967 = vand.u32 %v5394, 4294901760
    %5968 = vmatpush1.msra.mxu0 %v5967
    %5969 = vmatprep.subr.mxu0 0.0
    %v5970 = vand.u32 %v5393, 4294901760
    %5971 = vmatpush1.msra.mxu0 %v5970
    %5972 = vmatprep.subr.mxu0 0.0
    %v5973 = vand.u32 %v5392, 4294901760
    %5974 = vmatpush1.msra.mxu0 %v5973
    %5975 = vmatprep.subr.mxu0 0.0
    %v5976 = vand.u32 %v5391, 4294901760
    %5977 = vmatpush1.msra.mxu0 %v5976
    %5978 = vmatprep.subr.mxu0 0.0
    %v5979 = vand.u32 %v5390, 4294901760
    %5980 = vmatpush1.msra.mxu0 %v5979
    %5981 = vmatprep.subr.mxu0 0.0
    %v5982 = vand.u32 %v5389, 4294901760
    %5983 = vmatpush1.msra.mxu0 %v5982
    %5984 = vmatprep.subr.mxu0 0.0
    %v5985 = vand.u32 %v5388, 4294901760
    %5986 = vmatpush1.msra.mxu0 %v5985
    %5987 = vmatprep.subr.mxu0 0.0
    %v5988 = vand.u32 %v5387, 4294901760
    %5989 = vmatpush1.msra.mxu0 %v5988
    %5990 = vmatprep.subr.mxu0 0.0
    %v5991 = vand.u32 %v5386, 4294901760
    %5992 = vmatpush1.msra.mxu0 %v5991
    %5993 = vmatprep.subr.mxu0 0.0
    %v5994 = vand.u32 %v5385, 4294901760
    %5995 = vmatpush1.msra.mxu0 %v5994
    %5996 = vmatprep.subr.mxu0 0.0
    %v5997 = vand.u32 %v5384, 4294901760
    %5998 = vmatpush1.msra.mxu0 %v5997
    %5999 = vmatprep.subr.mxu0 0.0
    %v6000 = vand.u32 %v5383, 4294901760
    %6001 = vmatpush1.msra.mxu0 %v6000
    %6002 = vmatprep.subr.mxu0 0.0
    %v6003 = vand.u32 %v5382, 4294901760
    %6004 = vmatpush1.msra.mxu0 %v6003
    %6005 = vmatprep.subr.mxu0 0.0
    %6006 = vmatpush2.msra.mxu0 0.0
    %6007 = vmatprep.subr.mxu0 0.0
    %6008 = vmatpush2.msra.mxu0 0.0
    %6009 = vmatprep.subr.mxu0 0.0
    %6010 = vmatpush2.msra.mxu0 0.0
    %6011 = vmatprep.subr.mxu0 0.0
    %6012 = vmatpush2.msra.mxu0 0.0
    %6013 = vmatprep.subr.mxu0 0.0
    %6014 = vmatpush2.msra.mxu0 0.0
    %6015 = vmatprep.subr.mxu0 0.0
    %6016 = vmatpush2.msra.mxu0 0.0
    %6017 = vmatprep.subr.mxu0 0.0
    %6018 = vmatpush2.msra.mxu0 0.0
    %6019 = vmatprep.subr.mxu0 0.0
    %6020 = vmatpush2.msra.mxu0 0.0
    %6021 = vmatprep.subr.mxu0 0.0
    %6022 = vmatpush2.msra.mxu0 0.0
    %6023 = vmatprep.subr.mxu0 0.0
    %6024 = vmatpush2.msra.mxu0 0.0
    %6025 = vmatprep.subr.mxu0 0.0
    %6026 = vmatpush2.msra.mxu0 0.0
    %6027 = vmatprep.subr.mxu0 0.0
    %6028 = vmatpush2.msra.mxu0 0.0
    %6029 = vmatprep.subr.mxu0 0.0
    %6030 = vmatpush2.msra.mxu0 0.0
    %6031 = vmatprep.subr.mxu0 0.0
    %6032 = vmatpush2.msra.mxu0 0.0
    %6033 = vmatprep.subr.mxu0 0.0
    %6034 = vmatpush2.msra.mxu0 0.0
    %6035 = vmatprep.subr.mxu0 0.0
    %6036 = vmatpush2.msra.mxu0 0.0
    %6037 = vmatprep.mubr.f32.mxu0 0.0
    %v6038 = vand.u32 %v5381, 4294901760
    %6039 = vmatmul.mubr.f32.gmra.mxu0 %v6038
    %v6040 = vpop.f32.mrf.mxu0
    %v6041 = vadd.f32 %v5954, %v6040
    %v6042 = vpop.f32.mrf.mxu0
    %6043 = vdwg.mxu0
    %v6044 = vmul.f32 %v6041, 0.5
    %v6045 = vmul.f32 %v6041, %v1567
    %v6046 = verf.f32.pop %v6045
    %v6047 = vadd.f32 %v6046, 1.0
    %v6048 = vmul.f32 %v6044, %v6047
    %6049 = vadd.xlane.f32.xlu0 %v6048
    %v6050 = vpop.xlane.xlu0 %6049
    %v6051 = vmul.f32 %v6050, 0.03125
    %v6052 = vsub.f32 %v6048, %v6051
    %v6053 = vmul.f32 %v6052, %v2553
    %v6054 = vmul.f32 %v6053, %v6053
    %6055 = vadd.xlane.f32.xlu0 %v6054
    %v6056 = vpop.xlane.xlu0 %6055
    %v6057 = vmul.f32 %v6056, 0.03125
    %v6058 = vadd.f32 %v6057, 1e-05
    %v6059 = vrsqrt.pop %v6058
    %v6060 = vmul.f32 %v6053, %v6059
    %v6061 = vlaneseq
    %v6062 = vshrl.u32 %v6061, 7
    %v6063 = vsub.s32 1, %v6062
    %v6064 = vrot.slane %v5398, %v6063
    %v6065 = vmul.f32 %v6060, %v6064
    %v6066 = vlaneseq
    %v6067 = vshrl.u32 %v6066, 7
    %v6068 = vsub.s32 2, %v6067
    %v6069 = vrot.slane %v5398, %v6068
    %v6070 = vadd.f32 %v6065, %v6069
    %v6071 = vld [vmem:[#allocation15] sm:$0xff]
    %v6072 = vld [vmem:[#allocation15 + $0x8] sm:$0xff]
    %v6073 = vld [vmem:[#allocation15 + $0x10] sm:$0xff]
    %v6074 = vld [vmem:[#allocation15 + $0x18] sm:$0xff]
    %v6075 = vld [vmem:[#allocation15 + $0x20] sm:$0xff]
    %v6076 = vld [vmem:[#allocation15 + $0x28] sm:$0xff]
    %v6077 = vld [vmem:[#allocation15 + $0x30] sm:$0xff]
    %v6078 = vld [vmem:[#allocation15 + $0x38] sm:$0xff]
    %v6079 = vld [vmem:[#allocation15 + $0x40] sm:$0xff]
    %v6080 = vld [vmem:[#allocation15 + $0x48] sm:$0xff]
    %v6081 = vld [vmem:[#allocation15 + $0x50] sm:$0xff]
    %v6082 = vld [vmem:[#allocation15 + $0x58] sm:$0xff]
    %v6083 = vld [vmem:[#allocation15 + $0x60] sm:$0xff]
    %v6084 = vld [vmem:[#allocation15 + $0x68] sm:$0xff]
    %v6085 = vld [vmem:[#allocation15 + $0x70] sm:$0xff]
    %v6086 = vld [vmem:[#allocation15 + $0x78] sm:$0xff]
    %v6087 = vld [vmem:[%s16] sm:$0x7]
    %v6088 = vlaneseq
    %v6089 = vshrl.u32 %v6088, 7
    %v6090 = vsub.s32 0, %v6089
    %v6091 = vrot.slane %v6087, %v6090
    %6092 = vmatprep.subr.mxu0 0.0
    %v6093 = vand.u32 %v6086, 4294901760
    %6094 = vmatpush1.msra.mxu0 %v6093
    %6095 = vmatprep.subr.mxu0 0.0
    %v6096 = vand.u32 %v6085, 4294901760
    %6097 = vmatpush1.msra.mxu0 %v6096
    %6098 = vmatprep.subr.mxu0 0.0
    %v6099 = vand.u32 %v6084, 4294901760
    %6100 = vmatpush1.msra.mxu0 %v6099
    %6101 = vmatprep.subr.mxu0 0.0
    %v6102 = vand.u32 %v6083, 4294901760
    %6103 = vmatpush1.msra.mxu0 %v6102
    %6104 = vmatprep.subr.mxu0 0.0
    %v6105 = vand.u32 %v6082, 4294901760
    %6106 = vmatpush1.msra.mxu0 %v6105
    %6107 = vmatprep.subr.mxu0 0.0
    %v6108 = vand.u32 %v6081, 4294901760
    %6109 = vmatpush1.msra.mxu0 %v6108
    %6110 = vmatprep.subr.mxu0 0.0
    %v6111 = vand.u32 %v6080, 4294901760
    %6112 = vmatpush1.msra.mxu0 %v6111
    %6113 = vmatprep.subr.mxu0 0.0
    %v6114 = vand.u32 %v6079, 4294901760
    %6115 = vmatpush1.msra.mxu0 %v6114
    %6116 = vmatprep.subr.mxu0 0.0
    %v6117 = vand.u32 %v6078, 4294901760
    %6118 = vmatpush1.msra.mxu0 %v6117
    %6119 = vmatprep.subr.mxu0 0.0
    %v6120 = vand.u32 %v6077, 4294901760
    %6121 = vmatpush1.msra.mxu0 %v6120
    %6122 = vmatprep.subr.mxu0 0.0
    %v6123 = vand.u32 %v6076, 4294901760
    %6124 = vmatpush1.msra.mxu0 %v6123
    %6125 = vmatprep.subr.mxu0 0.0
    %v6126 = vand.u32 %v6075, 4294901760
    %6127 = vmatpush1.msra.mxu0 %v6126
    %6128 = vmatprep.subr.mxu0 0.0
    %v6129 = vand.u32 %v6074, 4294901760
    %6130 = vmatpush1.msra.mxu0 %v6129
    %6131 = vmatprep.subr.mxu0 0.0
    %v6132 = vand.u32 %v6073, 4294901760
    %6133 = vmatpush1.msra.mxu0 %v6132
    %6134 = vmatprep.subr.mxu0 0.0
    %v6135 = vand.u32 %v6072, 4294901760
    %6136 = vmatpush1.msra.mxu0 %v6135
    %6137 = vmatprep.subr.mxu0 0.0
    %v6138 = vand.u32 %v6071, 4294901760
    %6139 = vmatpush1.msra.mxu0 %v6138
    %6140 = vmatprep.subr.mxu0 0.0
    %6141 = vmatpush2.msra.mxu0 0.0
    %6142 = vmatprep.subr.mxu0 0.0
    %6143 = vmatpush2.msra.mxu0 0.0
    %6144 = vmatprep.subr.mxu0 0.0
    %6145 = vmatpush2.msra.mxu0 0.0
    %6146 = vmatprep.subr.mxu0 0.0
    %6147 = vmatpush2.msra.mxu0 0.0
    %6148 = vmatprep.subr.mxu0 0.0
    %6149 = vmatpush2.msra.mxu0 0.0
    %6150 = vmatprep.subr.mxu0 0.0
    %6151 = vmatpush2.msra.mxu0 0.0
    %6152 = vmatprep.subr.mxu0 0.0
    %6153 = vmatpush2.msra.mxu0 0.0
    %6154 = vmatprep.subr.mxu0 0.0
    %6155 = vmatpush2.msra.mxu0 0.0
    %6156 = vmatprep.subr.mxu0 0.0
    %6157 = vmatpush2.msra.mxu0 0.0
    %6158 = vmatprep.subr.mxu0 0.0
    %6159 = vmatpush2.msra.mxu0 0.0
    %6160 = vmatprep.subr.mxu0 0.0
    %6161 = vmatpush2.msra.mxu0 0.0
    %6162 = vmatprep.subr.mxu0 0.0
    %6163 = vmatpush2.msra.mxu0 0.0
    %6164 = vmatprep.subr.mxu0 0.0
    %6165 = vmatpush2.msra.mxu0 0.0
    %6166 = vmatprep.subr.mxu0 0.0
    %6167 = vmatpush2.msra.mxu0 0.0
    %6168 = vmatprep.subr.mxu0 0.0
    %6169 = vmatpush2.msra.mxu0 0.0
    %6170 = vmatprep.subr.mxu0 0.0
    %6171 = vmatpush2.msra.mxu0 0.0
    %6172 = vmatprep.mubr.f32.mxu0 0.0
    %v6173 = vand.u32 %v6070, 4294901760
    %v6174 = vsub.f32 %v6070, %v6173
    %v6175 = vand.u32 %v6174, 4294901760
    %v6176 = vsub.f32 %v6174, %v6175
    %v6177 = vand.u32 %v6176, 4294901760
    %6178 = vmatmul.mubr.f32.gmra.mxu0 %v6177
    %v6179 = vpop.f32.mrf.mxu0
    %v6180 = vadd.f32 %v6091, %v6179
    %v6181 = vpop.f32.mrf.mxu0
    %6182 = vdwg.mxu0
    %6183 = vmatprep.subr.mxu0 0.0
    %v6184 = vand.u32 %v6086, 4294901760
    %v6185 = vsub.f32 %v6086, %v6184
    %v6186 = vand.u32 %v6185, 4294901760
    %v6187 = vsub.f32 %v6185, %v6186
    %v6188 = vand.u32 %v6187, 4294901760
    %6189 = vmatpush1.msra.mxu0 %v6188
    %6190 = vmatprep.subr.mxu0 0.0
    %v6191 = vand.u32 %v6085, 4294901760
    %v6192 = vsub.f32 %v6085, %v6191
    %v6193 = vand.u32 %v6192, 4294901760
    %v6194 = vsub.f32 %v6192, %v6193
    %v6195 = vand.u32 %v6194, 4294901760
    %6196 = vmatpush1.msra.mxu0 %v6195
    %6197 = vmatprep.subr.mxu0 0.0
    %v6198 = vand.u32 %v6084, 4294901760
    %v6199 = vsub.f32 %v6084, %v6198
    %v6200 = vand.u32 %v6199, 4294901760
    %v6201 = vsub.f32 %v6199, %v6200
    %v6202 = vand.u32 %v6201, 4294901760
    %6203 = vmatpush1.msra.mxu0 %v6202
    %6204 = vmatprep.subr.mxu0 0.0
    %v6205 = vand.u32 %v6083, 4294901760
    %v6206 = vsub.f32 %v6083, %v6205
    %v6207 = vand.u32 %v6206, 4294901760
    %v6208 = vsub.f32 %v6206, %v6207
    %v6209 = vand.u32 %v6208, 4294901760
    %6210 = vmatpush1.msra.mxu0 %v6209
    %6211 = vmatprep.subr.mxu0 0.0
    %v6212 = vand.u32 %v6082, 4294901760
    %v6213 = vsub.f32 %v6082, %v6212
    %v6214 = vand.u32 %v6213, 4294901760
    %v6215 = vsub.f32 %v6213, %v6214
    %v6216 = vand.u32 %v6215, 4294901760
    %6217 = vmatpush1.msra.mxu0 %v6216
    %6218 = vmatprep.subr.mxu0 0.0
    %v6219 = vand.u32 %v6081, 4294901760
    %v6220 = vsub.f32 %v6081, %v6219
    %v6221 = vand.u32 %v6220, 4294901760
    %v6222 = vsub.f32 %v6220, %v6221
    %v6223 = vand.u32 %v6222, 4294901760
    %6224 = vmatpush1.msra.mxu0 %v6223
    %6225 = vmatprep.subr.mxu0 0.0
    %v6226 = vand.u32 %v6080, 4294901760
    %v6227 = vsub.f32 %v6080, %v6226
    %v6228 = vand.u32 %v6227, 4294901760
    %v6229 = vsub.f32 %v6227, %v6228
    %v6230 = vand.u32 %v6229, 4294901760
    %6231 = vmatpush1.msra.mxu0 %v6230
    %6232 = vmatprep.subr.mxu0 0.0
    %v6233 = vand.u32 %v6079, 4294901760
    %v6234 = vsub.f32 %v6079, %v6233
    %v6235 = vand.u32 %v6234, 4294901760
    %v6236 = vsub.f32 %v6234, %v6235
    %v6237 = vand.u32 %v6236, 4294901760
    %6238 = vmatpush1.msra.mxu0 %v6237
    %6239 = vmatprep.subr.mxu0 0.0
    %v6240 = vand.u32 %v6078, 4294901760
    %v6241 = vsub.f32 %v6078, %v6240
    %v6242 = vand.u32 %v6241, 4294901760
    %v6243 = vsub.f32 %v6241, %v6242
    %v6244 = vand.u32 %v6243, 4294901760
    %6245 = vmatpush1.msra.mxu0 %v6244
    %6246 = vmatprep.subr.mxu0 0.0
    %v6247 = vand.u32 %v6077, 4294901760
    %v6248 = vsub.f32 %v6077, %v6247
    %v6249 = vand.u32 %v6248, 4294901760
    %v6250 = vsub.f32 %v6248, %v6249
    %v6251 = vand.u32 %v6250, 4294901760
    %6252 = vmatpush1.msra.mxu0 %v6251
    %6253 = vmatprep.subr.mxu0 0.0
    %v6254 = vand.u32 %v6076, 4294901760
    %v6255 = vsub.f32 %v6076, %v6254
    %v6256 = vand.u32 %v6255, 4294901760
    %v6257 = vsub.f32 %v6255, %v6256
    %v6258 = vand.u32 %v6257, 4294901760
    %6259 = vmatpush1.msra.mxu0 %v6258
    %6260 = vmatprep.subr.mxu0 0.0
    %v6261 = vand.u32 %v6075, 4294901760
    %v6262 = vsub.f32 %v6075, %v6261
    %v6263 = vand.u32 %v6262, 4294901760
    %v6264 = vsub.f32 %v6262, %v6263
    %v6265 = vand.u32 %v6264, 4294901760
    %6266 = vmatpush1.msra.mxu0 %v6265
    %6267 = vmatprep.subr.mxu0 0.0
    %v6268 = vand.u32 %v6074, 4294901760
    %v6269 = vsub.f32 %v6074, %v6268
    %v6270 = vand.u32 %v6269, 4294901760
    %v6271 = vsub.f32 %v6269, %v6270
    %v6272 = vand.u32 %v6271, 4294901760
    %6273 = vmatpush1.msra.mxu0 %v6272
    %6274 = vmatprep.subr.mxu0 0.0
    %v6275 = vand.u32 %v6073, 4294901760
    %v6276 = vsub.f32 %v6073, %v6275
    %v6277 = vand.u32 %v6276, 4294901760
    %v6278 = vsub.f32 %v6276, %v6277
    %v6279 = vand.u32 %v6278, 4294901760
    %6280 = vmatpush1.msra.mxu0 %v6279
    %6281 = vmatprep.subr.mxu0 0.0
    %v6282 = vand.u32 %v6072, 4294901760
    %v6283 = vsub.f32 %v6072, %v6282
    %v6284 = vand.u32 %v6283, 4294901760
    %v6285 = vsub.f32 %v6283, %v6284
    %v6286 = vand.u32 %v6285, 4294901760
    %6287 = vmatpush1.msra.mxu0 %v6286
    %6288 = vmatprep.subr.mxu0 0.0
    %v6289 = vand.u32 %v6071, 4294901760
    %v6290 = vsub.f32 %v6071, %v6289
    %v6291 = vand.u32 %v6290, 4294901760
    %v6292 = vsub.f32 %v6290, %v6291
    %v6293 = vand.u32 %v6292, 4294901760
    %6294 = vmatpush1.msra.mxu0 %v6293
    %6295 = vmatprep.subr.mxu0 0.0
    %6296 = vmatpush2.msra.mxu0 0.0
    %6297 = vmatprep.subr.mxu0 0.0
    %6298 = vmatpush2.msra.mxu0 0.0
    %6299 = vmatprep.subr.mxu0 0.0
    %6300 = vmatpush2.msra.mxu0 0.0
    %6301 = vmatprep.subr.mxu0 0.0
    %6302 = vmatpush2.msra.mxu0 0.0
    %6303 = vmatprep.subr.mxu0 0.0
    %6304 = vmatpush2.msra.mxu0 0.0
    %6305 = vmatprep.subr.mxu0 0.0
    %6306 = vmatpush2.msra.mxu0 0.0
    %6307 = vmatprep.subr.mxu0 0.0
    %6308 = vmatpush2.msra.mxu0 0.0
    %6309 = vmatprep.subr.mxu0 0.0
    %6310 = vmatpush2.msra.mxu0 0.0
    %6311 = vmatprep.subr.mxu0 0.0
    %6312 = vmatpush2.msra.mxu0 0.0
    %6313 = vmatprep.subr.mxu0 0.0
    %6314 = vmatpush2.msra.mxu0 0.0
    %6315 = vmatprep.subr.mxu0 0.0
    %6316 = vmatpush2.msra.mxu0 0.0
    %6317 = vmatprep.subr.mxu0 0.0
    %6318 = vmatpush2.msra.mxu0 0.0
    %6319 = vmatprep.subr.mxu0 0.0
    %6320 = vmatpush2.msra.mxu0 0.0
    %6321 = vmatprep.subr.mxu0 0.0
    %6322 = vmatpush2.msra.mxu0 0.0
    %6323 = vmatprep.subr.mxu0 0.0
    %6324 = vmatpush2.msra.mxu0 0.0
    %6325 = vmatprep.subr.mxu0 0.0
    %6326 = vmatpush2.msra.mxu0 0.0
    %6327 = vmatprep.mubr.f32.mxu0 0.0
    %v6328 = vand.u32 %v6070, 4294901760
    %6329 = vmatmul.mubr.f32.gmra.mxu0 %v6328
    %v6330 = vpop.f32.mrf.mxu0
    %v6331 = vadd.f32 %v6180, %v6330
    %v6332 = vpop.f32.mrf.mxu0
    %6333 = vdwg.mxu0
    %6334 = vmatprep.subr.mxu0 0.0
    %v6335 = vand.u32 %v6086, 4294901760
    %v6336 = vsub.f32 %v6086, %v6335
    %6337 = vmatpush1.msra.mxu0 %v6336
    %6338 = vmatprep.subr.mxu0 0.0
    %v6339 = vand.u32 %v6085, 4294901760
    %v6340 = vsub.f32 %v6085, %v6339
    %6341 = vmatpush1.msra.mxu0 %v6340
    %6342 = vmatprep.subr.mxu0 0.0
    %v6343 = vand.u32 %v6084, 4294901760
    %v6344 = vsub.f32 %v6084, %v6343
    %6345 = vmatpush1.msra.mxu0 %v6344
    %6346 = vmatprep.subr.mxu0 0.0
    %v6347 = vand.u32 %v6083, 4294901760
    %v6348 = vsub.f32 %v6083, %v6347
    %6349 = vmatpush1.msra.mxu0 %v6348
    %6350 = vmatprep.subr.mxu0 0.0
    %v6351 = vand.u32 %v6082, 4294901760
    %v6352 = vsub.f32 %v6082, %v6351
    %6353 = vmatpush1.msra.mxu0 %v6352
    %6354 = vmatprep.subr.mxu0 0.0
    %v6355 = vand.u32 %v6081, 4294901760
    %v6356 = vsub.f32 %v6081, %v6355
    %6357 = vmatpush1.msra.mxu0 %v6356
    %6358 = vmatprep.subr.mxu0 0.0
    %v6359 = vand.u32 %v6080, 4294901760
    %v6360 = vsub.f32 %v6080, %v6359
    %6361 = vmatpush1.msra.mxu0 %v6360
    %6362 = vmatprep.subr.mxu0 0.0
    %v6363 = vand.u32 %v6079, 4294901760
    %v6364 = vsub.f32 %v6079, %v6363
    %6365 = vmatpush1.msra.mxu0 %v6364
    %6366 = vmatprep.subr.mxu0 0.0
    %v6367 = vand.u32 %v6078, 4294901760
    %v6368 = vsub.f32 %v6078, %v6367
    %6369 = vmatpush1.msra.mxu0 %v6368
    %6370 = vmatprep.subr.mxu0 0.0
    %v6371 = vand.u32 %v6077, 4294901760
    %v6372 = vsub.f32 %v6077, %v6371
    %6373 = vmatpush1.msra.mxu0 %v6372
    %6374 = vmatprep.subr.mxu0 0.0
    %v6375 = vand.u32 %v6076, 4294901760
    %v6376 = vsub.f32 %v6076, %v6375
    %6377 = vmatpush1.msra.mxu0 %v6376
    %6378 = vmatprep.subr.mxu0 0.0
    %v6379 = vand.u32 %v6075, 4294901760
    %v6380 = vsub.f32 %v6075, %v6379
    %6381 = vmatpush1.msra.mxu0 %v6380
    %6382 = vmatprep.subr.mxu0 0.0
    %v6383 = vand.u32 %v6074, 4294901760
    %v6384 = vsub.f32 %v6074, %v6383
    %6385 = vmatpush1.msra.mxu0 %v6384
    %6386 = vmatprep.subr.mxu0 0.0
    %v6387 = vand.u32 %v6073, 4294901760
    %v6388 = vsub.f32 %v6073, %v6387
    %6389 = vmatpush1.msra.mxu0 %v6388
    %6390 = vmatprep.subr.mxu0 0.0
    %v6391 = vand.u32 %v6072, 4294901760
    %v6392 = vsub.f32 %v6072, %v6391
    %6393 = vmatpush1.msra.mxu0 %v6392
    %6394 = vmatprep.subr.mxu0 0.0
    %v6395 = vand.u32 %v6071, 4294901760
    %v6396 = vsub.f32 %v6071, %v6395
    %6397 = vmatpush1.msra.mxu0 %v6396
    %6398 = vmatprep.subr.mxu0 0.0
    %6399 = vmatpush2.msra.mxu0 0.0
    %6400 = vmatprep.subr.mxu0 0.0
    %6401 = vmatpush2.msra.mxu0 0.0
    %6402 = vmatprep.subr.mxu0 0.0
    %6403 = vmatpush2.msra.mxu0 0.0
    %6404 = vmatprep.subr.mxu0 0.0
    %6405 = vmatpush2.msra.mxu0 0.0
    %6406 = vmatprep.subr.mxu0 0.0
    %6407 = vmatpush2.msra.mxu0 0.0
    %6408 = vmatprep.subr.mxu0 0.0
    %6409 = vmatpush2.msra.mxu0 0.0
    %6410 = vmatprep.subr.mxu0 0.0
    %6411 = vmatpush2.msra.mxu0 0.0
    %6412 = vmatprep.subr.mxu0 0.0
    %6413 = vmatpush2.msra.mxu0 0.0
    %6414 = vmatprep.subr.mxu0 0.0
    %6415 = vmatpush2.msra.mxu0 0.0
    %6416 = vmatprep.subr.mxu0 0.0
    %6417 = vmatpush2.msra.mxu0 0.0
    %6418 = vmatprep.subr.mxu0 0.0
    %6419 = vmatpush2.msra.mxu0 0.0
    %6420 = vmatprep.subr.mxu0 0.0
    %6421 = vmatpush2.msra.mxu0 0.0
    %6422 = vmatprep.subr.mxu0 0.0
    %6423 = vmatpush2.msra.mxu0 0.0
    %6424 = vmatprep.subr.mxu0 0.0
    %6425 = vmatpush2.msra.mxu0 0.0
    %6426 = vmatprep.subr.mxu0 0.0
    %6427 = vmatpush2.msra.mxu0 0.0
    %6428 = vmatprep.subr.mxu0 0.0
    %6429 = vmatpush2.msra.mxu0 0.0
    %6430 = vmatprep.mubr.f32.mxu0 0.0
    %v6431 = vand.u32 %v6070, 4294901760
    %v6432 = vsub.f32 %v6070, %v6431
    %6433 = vmatmul.mubr.f32.gmra.mxu0 %v6432
    %v6434 = vpop.f32.mrf.mxu0
    %v6435 = vadd.f32 %v6331, %v6434
    %v6436 = vpop.f32.mrf.mxu0
    %6437 = vdwg.mxu0
    %6438 = vmatprep.subr.mxu0 0.0
    %v6439 = vand.u32 %v6086, 4294901760
    %6440 = vmatpush1.msra.mxu0 %v6439
    %6441 = vmatprep.subr.mxu0 0.0
    %v6442 = vand.u32 %v6085, 4294901760
    %6443 = vmatpush1.msra.mxu0 %v6442
    %6444 = vmatprep.subr.mxu0 0.0
    %v6445 = vand.u32 %v6084, 4294901760
    %6446 = vmatpush1.msra.mxu0 %v6445
    %6447 = vmatprep.subr.mxu0 0.0
    %v6448 = vand.u32 %v6083, 4294901760
    %6449 = vmatpush1.msra.mxu0 %v6448
    %6450 = vmatprep.subr.mxu0 0.0
    %v6451 = vand.u32 %v6082, 4294901760
    %6452 = vmatpush1.msra.mxu0 %v6451
    %6453 = vmatprep.subr.mxu0 0.0
    %v6454 = vand.u32 %v6081, 4294901760
    %6455 = vmatpush1.msra.mxu0 %v6454
    %6456 = vmatprep.subr.mxu0 0.0
    %v6457 = vand.u32 %v6080, 4294901760
    %6458 = vmatpush1.msra.mxu0 %v6457
    %6459 = vmatprep.subr.mxu0 0.0
    %v6460 = vand.u32 %v6079, 4294901760
    %6461 = vmatpush1.msra.mxu0 %v6460
    %6462 = vmatprep.subr.mxu0 0.0
    %v6463 = vand.u32 %v6078, 4294901760
    %6464 = vmatpush1.msra.mxu0 %v6463
    %6465 = vmatprep.subr.mxu0 0.0
    %v6466 = vand.u32 %v6077, 4294901760
    %6467 = vmatpush1.msra.mxu0 %v6466
    %6468 = vmatprep.subr.mxu0 0.0
    %v6469 = vand.u32 %v6076, 4294901760
    %6470 = vmatpush1.msra.mxu0 %v6469
    %6471 = vmatprep.subr.mxu0 0.0
    %v6472 = vand.u32 %v6075, 4294901760
    %6473 = vmatpush1.msra.mxu0 %v6472
    %6474 = vmatprep.subr.mxu0 0.0
    %v6475 = vand.u32 %v6074, 4294901760
    %6476 = vmatpush1.msra.mxu0 %v6475
    %6477 = vmatprep.subr.mxu0 0.0
    %v6478 = vand.u32 %v6073, 4294901760
    %6479 = vmatpush1.msra.mxu0 %v6478
    %6480 = vmatprep.subr.mxu0 0.0
    %v6481 = vand.u32 %v6072, 4294901760
    %6482 = vmatpush1.msra.mxu0 %v6481
    %6483 = vmatprep.subr.mxu0 0.0
    %v6484 = vand.u32 %v6071, 4294901760
    %6485 = vmatpush1.msra.mxu0 %v6484
    %6486 = vmatprep.subr.mxu0 0.0
    %6487 = vmatpush2.msra.mxu0 0.0
    %6488 = vmatprep.subr.mxu0 0.0
    %6489 = vmatpush2.msra.mxu0 0.0
    %6490 = vmatprep.subr.mxu0 0.0
    %6491 = vmatpush2.msra.mxu0 0.0
    %6492 = vmatprep.subr.mxu0 0.0
    %6493 = vmatpush2.msra.mxu0 0.0
    %6494 = vmatprep.subr.mxu0 0.0
    %6495 = vmatpush2.msra.mxu0 0.0
    %6496 = vmatprep.subr.mxu0 0.0
    %6497 = vmatpush2.msra.mxu0 0.0
    %6498 = vmatprep.subr.mxu0 0.0
    %6499 = vmatpush2.msra.mxu0 0.0
    %6500 = vmatprep.subr.mxu0 0.0
    %6501 = vmatpush2.msra.mxu0 0.0
    %6502 = vmatprep.subr.mxu0 0.0
    %6503 = vmatpush2.msra.mxu0 0.0
    %6504 = vmatprep.subr.mxu0 0.0
    %6505 = vmatpush2.msra.mxu0 0.0
    %6506 = vmatprep.subr.mxu0 0.0
    %6507 = vmatpush2.msra.mxu0 0.0
    %6508 = vmatprep.subr.mxu0 0.0
    %6509 = vmatpush2.msra.mxu0 0.0
    %6510 = vmatprep.subr.mxu0 0.0
    %6511 = vmatpush2.msra.mxu0 0.0
    %6512 = vmatprep.subr.mxu0 0.0
    %6513 = vmatpush2.msra.mxu0 0.0
    %6514 = vmatprep.subr.mxu0 0.0
    %6515 = vmatpush2.msra.mxu0 0.0
    %6516 = vmatprep.subr.mxu0 0.0
    %6517 = vmatpush2.msra.mxu0 0.0
    %6518 = vmatprep.mubr.f32.mxu0 0.0
    %v6519 = vand.u32 %v6070, 4294901760
    %v6520 = vsub.f32 %v6070, %v6519
    %v6521 = vand.u32 %v6520, 4294901760
    %6522 = vmatmul.mubr.f32.gmra.mxu0 %v6521
    %v6523 = vpop.f32.mrf.mxu0
    %v6524 = vadd.f32 %v6435, %v6523
    %v6525 = vpop.f32.mrf.mxu0
    %6526 = vdwg.mxu0
    %6527 = vmatprep.subr.mxu0 0.0
    %v6528 = vand.u32 %v6086, 4294901760
    %v6529 = vsub.f32 %v6086, %v6528
    %v6530 = vand.u32 %v6529, 4294901760
    %6531 = vmatpush1.msra.mxu0 %v6530
    %6532 = vmatprep.subr.mxu0 0.0
    %v6533 = vand.u32 %v6085, 4294901760
    %v6534 = vsub.f32 %v6085, %v6533
    %v6535 = vand.u32 %v6534, 4294901760
    %6536 = vmatpush1.msra.mxu0 %v6535
    %6537 = vmatprep.subr.mxu0 0.0
    %v6538 = vand.u32 %v6084, 4294901760
    %v6539 = vsub.f32 %v6084, %v6538
    %v6540 = vand.u32 %v6539, 4294901760
    %6541 = vmatpush1.msra.mxu0 %v6540
    %6542 = vmatprep.subr.mxu0 0.0
    %v6543 = vand.u32 %v6083, 4294901760
    %v6544 = vsub.f32 %v6083, %v6543
    %v6545 = vand.u32 %v6544, 4294901760
    %6546 = vmatpush1.msra.mxu0 %v6545
    %6547 = vmatprep.subr.mxu0 0.0
    %v6548 = vand.u32 %v6082, 4294901760
    %v6549 = vsub.f32 %v6082, %v6548
    %v6550 = vand.u32 %v6549, 4294901760
    %6551 = vmatpush1.msra.mxu0 %v6550
    %6552 = vmatprep.subr.mxu0 0.0
    %v6553 = vand.u32 %v6081, 4294901760
    %v6554 = vsub.f32 %v6081, %v6553
    %v6555 = vand.u32 %v6554, 4294901760
    %6556 = vmatpush1.msra.mxu0 %v6555
    %6557 = vmatprep.subr.mxu0 0.0
    %v6558 = vand.u32 %v6080, 4294901760
    %v6559 = vsub.f32 %v6080, %v6558
    %v6560 = vand.u32 %v6559, 4294901760
    %6561 = vmatpush1.msra.mxu0 %v6560
    %6562 = vmatprep.subr.mxu0 0.0
    %v6563 = vand.u32 %v6079, 4294901760
    %v6564 = vsub.f32 %v6079, %v6563
    %v6565 = vand.u32 %v6564, 4294901760
    %6566 = vmatpush1.msra.mxu0 %v6565
    %6567 = vmatprep.subr.mxu0 0.0
    %v6568 = vand.u32 %v6078, 4294901760
    %v6569 = vsub.f32 %v6078, %v6568
    %v6570 = vand.u32 %v6569, 4294901760
    %6571 = vmatpush1.msra.mxu0 %v6570
    %6572 = vmatprep.subr.mxu0 0.0
    %v6573 = vand.u32 %v6077, 4294901760
    %v6574 = vsub.f32 %v6077, %v6573
    %v6575 = vand.u32 %v6574, 4294901760
    %6576 = vmatpush1.msra.mxu0 %v6575
    %6577 = vmatprep.subr.mxu0 0.0
    %v6578 = vand.u32 %v6076, 4294901760
    %v6579 = vsub.f32 %v6076, %v6578
    %v6580 = vand.u32 %v6579, 4294901760
    %6581 = vmatpush1.msra.mxu0 %v6580
    %6582 = vmatprep.subr.mxu0 0.0
    %v6583 = vand.u32 %v6075, 4294901760
    %v6584 = vsub.f32 %v6075, %v6583
    %v6585 = vand.u32 %v6584, 4294901760
    %6586 = vmatpush1.msra.mxu0 %v6585
    %6587 = vmatprep.subr.mxu0 0.0
    %v6588 = vand.u32 %v6074, 4294901760
    %v6589 = vsub.f32 %v6074, %v6588
    %v6590 = vand.u32 %v6589, 4294901760
    %6591 = vmatpush1.msra.mxu0 %v6590
    %6592 = vmatprep.subr.mxu0 0.0
    %v6593 = vand.u32 %v6073, 4294901760
    %v6594 = vsub.f32 %v6073, %v6593
    %v6595 = vand.u32 %v6594, 4294901760
    %6596 = vmatpush1.msra.mxu0 %v6595
    %6597 = vmatprep.subr.mxu0 0.0
    %v6598 = vand.u32 %v6072, 4294901760
    %v6599 = vsub.f32 %v6072, %v6598
    %v6600 = vand.u32 %v6599, 4294901760
    %6601 = vmatpush1.msra.mxu0 %v6600
    %6602 = vmatprep.subr.mxu0 0.0
    %v6603 = vand.u32 %v6071, 4294901760
    %v6604 = vsub.f32 %v6071, %v6603
    %v6605 = vand.u32 %v6604, 4294901760
    %6606 = vmatpush1.msra.mxu0 %v6605
    %6607 = vmatprep.subr.mxu0 0.0
    %6608 = vmatpush2.msra.mxu0 0.0
    %6609 = vmatprep.subr.mxu0 0.0
    %6610 = vmatpush2.msra.mxu0 0.0
    %6611 = vmatprep.subr.mxu0 0.0
    %6612 = vmatpush2.msra.mxu0 0.0
    %6613 = vmatprep.subr.mxu0 0.0
    %6614 = vmatpush2.msra.mxu0 0.0
    %6615 = vmatprep.subr.mxu0 0.0
    %6616 = vmatpush2.msra.mxu0 0.0
    %6617 = vmatprep.subr.mxu0 0.0
    %6618 = vmatpush2.msra.mxu0 0.0
    %6619 = vmatprep.subr.mxu0 0.0
    %6620 = vmatpush2.msra.mxu0 0.0
    %6621 = vmatprep.subr.mxu0 0.0
    %6622 = vmatpush2.msra.mxu0 0.0
    %6623 = vmatprep.subr.mxu0 0.0
    %6624 = vmatpush2.msra.mxu0 0.0
    %6625 = vmatprep.subr.mxu0 0.0
    %6626 = vmatpush2.msra.mxu0 0.0
    %6627 = vmatprep.subr.mxu0 0.0
    %6628 = vmatpush2.msra.mxu0 0.0
    %6629 = vmatprep.subr.mxu0 0.0
    %6630 = vmatpush2.msra.mxu0 0.0
    %6631 = vmatprep.subr.mxu0 0.0
    %6632 = vmatpush2.msra.mxu0 0.0
    %6633 = vmatprep.subr.mxu0 0.0
    %6634 = vmatpush2.msra.mxu0 0.0
    %6635 = vmatprep.subr.mxu0 0.0
    %6636 = vmatpush2.msra.mxu0 0.0
    %6637 = vmatprep.subr.mxu0 0.0
    %6638 = vmatpush2.msra.mxu0 0.0
    %6639 = vmatprep.mubr.f32.mxu0 0.0
    %v6640 = vand.u32 %v6070, 4294901760
    %6641 = vmatmul.mubr.f32.gmra.mxu0 %v6640
    %v6642 = vpop.f32.mrf.mxu0
    %v6643 = vadd.f32 %v6524, %v6642
    %v6644 = vpop.f32.mrf.mxu0
    %6645 = vdwg.mxu0
    %6646 = vmatprep.subr.mxu0 0.0
    %v6647 = vand.u32 %v6086, 4294901760
    %6648 = vmatpush1.msra.mxu0 %v6647
    %6649 = vmatprep.subr.mxu0 0.0
    %v6650 = vand.u32 %v6085, 4294901760
    %6651 = vmatpush1.msra.mxu0 %v6650
    %6652 = vmatprep.subr.mxu0 0.0
    %v6653 = vand.u32 %v6084, 4294901760
    %6654 = vmatpush1.msra.mxu0 %v6653
    %6655 = vmatprep.subr.mxu0 0.0
    %v6656 = vand.u32 %v6083, 4294901760
    %6657 = vmatpush1.msra.mxu0 %v6656
    %6658 = vmatprep.subr.mxu0 0.0
    %v6659 = vand.u32 %v6082, 4294901760
    %6660 = vmatpush1.msra.mxu0 %v6659
    %6661 = vmatprep.subr.mxu0 0.0
    %v6662 = vand.u32 %v6081, 4294901760
    %6663 = vmatpush1.msra.mxu0 %v6662
    %6664 = vmatprep.subr.mxu0 0.0
    %v6665 = vand.u32 %v6080, 4294901760
    %6666 = vmatpush1.msra.mxu0 %v6665
    %6667 = vmatprep.subr.mxu0 0.0
    %v6668 = vand.u32 %v6079, 4294901760
    %6669 = vmatpush1.msra.mxu0 %v6668
    %6670 = vmatprep.subr.mxu0 0.0
    %v6671 = vand.u32 %v6078, 4294901760
    %6672 = vmatpush1.msra.mxu0 %v6671
    %6673 = vmatprep.subr.mxu0 0.0
    %v6674 = vand.u32 %v6077, 4294901760
    %6675 = vmatpush1.msra.mxu0 %v6674
    %6676 = vmatprep.subr.mxu0 0.0
    %v6677 = vand.u32 %v6076, 4294901760
    %6678 = vmatpush1.msra.mxu0 %v6677
    %6679 = vmatprep.subr.mxu0 0.0
    %v6680 = vand.u32 %v6075, 4294901760
    %6681 = vmatpush1.msra.mxu0 %v6680
    %6682 = vmatprep.subr.mxu0 0.0
    %v6683 = vand.u32 %v6074, 4294901760
    %6684 = vmatpush1.msra.mxu0 %v6683
    %6685 = vmatprep.subr.mxu0 0.0
    %v6686 = vand.u32 %v6073, 4294901760
    %6687 = vmatpush1.msra.mxu0 %v6686
    %6688 = vmatprep.subr.mxu0 0.0
    %v6689 = vand.u32 %v6072, 4294901760
    %6690 = vmatpush1.msra.mxu0 %v6689
    %6691 = vmatprep.subr.mxu0 0.0
    %v6692 = vand.u32 %v6071, 4294901760
    %6693 = vmatpush1.msra.mxu0 %v6692
    %6694 = vmatprep.subr.mxu0 0.0
    %6695 = vmatpush2.msra.mxu0 0.0
    %6696 = vmatprep.subr.mxu0 0.0
    %6697 = vmatpush2.msra.mxu0 0.0
    %6698 = vmatprep.subr.mxu0 0.0
    %6699 = vmatpush2.msra.mxu0 0.0
    %6700 = vmatprep.subr.mxu0 0.0
    %6701 = vmatpush2.msra.mxu0 0.0
    %6702 = vmatprep.subr.mxu0 0.0
    %6703 = vmatpush2.msra.mxu0 0.0
    %6704 = vmatprep.subr.mxu0 0.0
    %6705 = vmatpush2.msra.mxu0 0.0
    %6706 = vmatprep.subr.mxu0 0.0
    %6707 = vmatpush2.msra.mxu0 0.0
    %6708 = vmatprep.subr.mxu0 0.0
    %6709 = vmatpush2.msra.mxu0 0.0
    %6710 = vmatprep.subr.mxu0 0.0
    %6711 = vmatpush2.msra.mxu0 0.0
    %6712 = vmatprep.subr.mxu0 0.0
    %6713 = vmatpush2.msra.mxu0 0.0
    %6714 = vmatprep.subr.mxu0 0.0
    %6715 = vmatpush2.msra.mxu0 0.0
    %6716 = vmatprep.subr.mxu0 0.0
    %6717 = vmatpush2.msra.mxu0 0.0
    %6718 = vmatprep.subr.mxu0 0.0
    %6719 = vmatpush2.msra.mxu0 0.0
    %6720 = vmatprep.subr.mxu0 0.0
    %6721 = vmatpush2.msra.mxu0 0.0
    %6722 = vmatprep.subr.mxu0 0.0
    %6723 = vmatpush2.msra.mxu0 0.0
    %6724 = vmatprep.subr.mxu0 0.0
    %6725 = vmatpush2.msra.mxu0 0.0
    %6726 = vmatprep.mubr.f32.mxu0 0.0
    %v6727 = vand.u32 %v6070, 4294901760
    %6728 = vmatmul.mubr.f32.gmra.mxu0 %v6727
    %v6729 = vpop.f32.mrf.mxu0
    %v6730 = vadd.f32 %v6643, %v6729
    %v6731 = vpop.f32.mrf.mxu0
    %6732 = vdwg.mxu0
    %v6733 = vmul.f32 %v6730, 0.5
    %v6734 = vmul.f32 %v6730, %v1567
    %v6735 = verf.f32.pop %v6734
    %v6736 = vadd.f32 %v6735, 1.0
    %v6737 = vmul.f32 %v6733, %v6736
    %6738 = vadd.xlane.f32.xlu0 %v6737
    %v6739 = vpop.xlane.xlu0 %6738
    %v6740 = vmul.f32 %v6739, 0.03125
    %v6741 = vsub.f32 %v6737, %v6740
    %v6742 = vmul.f32 %v6741, %v2553
    %v6743 = vmul.f32 %v6742, %v6742
    %6744 = vadd.xlane.f32.xlu0 %v6743
    %v6745 = vpop.xlane.xlu0 %6744
    %v6746 = vmul.f32 %v6745, 0.03125
    %v6747 = vadd.f32 %v6746, 1e-05
    %v6748 = vrsqrt.pop %v6747
    %v6749 = vmul.f32 %v6742, %v6748
    %v6750 = vlaneseq
    %v6751 = vshrl.u32 %v6750, 7
    %v6752 = vsub.s32 1, %v6751
    %v6753 = vrot.slane %v6087, %v6752
    %v6754 = vmul.f32 %v6749, %v6753
    %v6755 = vlaneseq
    %v6756 = vshrl.u32 %v6755, 7
    %v6757 = vsub.s32 2, %v6756
    %v6758 = vrot.slane %v6087, %v6757
    %v6759 = vadd.f32 %v6754, %v6758
    %v6760 = vadd.f32 %v6759, %v3260
    %v6761 = vadd.f32 %v5377, 1.0
    %v6762 = vmul.f32 %v6760, %v6761
    %v6763 = vadd.f32 %v6762, %v5378
    %s6764 = scalar_lea.vmem [#allocation13], 128
    %v6765 = vld [vmem:[%s6764] sm:$0xff]
    %v6766 = vld [vmem:[%s6764 + $0x8] sm:$0xff]
    %v6767 = vld [vmem:[%s6764 + $0x10] sm:$0xff]
    %v6768 = vld [vmem:[%s6764 + $0x18] sm:$0xff]
    %v6769 = vld [vmem:[%s6764 + $0x20] sm:$0xff]
    %v6770 = vld [vmem:[%s6764 + $0x28] sm:$0xff]
    %v6771 = vld [vmem:[%s6764 + $0x30] sm:$0xff]
    %v6772 = vld [vmem:[%s6764 + $0x38] sm:$0xff]
    %v6773 = vld [vmem:[%s6764 + $0x40] sm:$0xff]
    %v6774 = vld [vmem:[%s6764 + $0x48] sm:$0xff]
    %v6775 = vld [vmem:[%s6764 + $0x50] sm:$0xff]
    %v6776 = vld [vmem:[%s6764 + $0x58] sm:$0xff]
    %v6777 = vld [vmem:[%s6764 + $0x60] sm:$0xff]
    %v6778 = vld [vmem:[%s6764 + $0x68] sm:$0xff]
    %v6779 = vld [vmem:[%s6764 + $0x70] sm:$0xff]
    %v6780 = vld [vmem:[%s6764 + $0x78] sm:$0xff]
    %s6781 = scalar_lea.vmem %s14, 4
    %v6782 = vld [vmem:[%s6781] sm:$0x7]
    %v6783 = vlaneseq
    %v6784 = vshrl.u32 %v6783, 7
    %v6785 = vsub.s32 0, %v6784
    %v6786 = vrot.slane %v6782, %v6785
    %6787 = vmatprep.subr.mxu0 0.0
    %v6788 = vand.u32 %v6780, 4294901760
    %6789 = vmatpush1.msra.mxu0 %v6788
    %6790 = vmatprep.subr.mxu0 0.0
    %v6791 = vand.u32 %v6779, 4294901760
    %6792 = vmatpush1.msra.mxu0 %v6791
    %6793 = vmatprep.subr.mxu0 0.0
    %v6794 = vand.u32 %v6778, 4294901760
    %6795 = vmatpush1.msra.mxu0 %v6794
    %6796 = vmatprep.subr.mxu0 0.0
    %v6797 = vand.u32 %v6777, 4294901760
    %6798 = vmatpush1.msra.mxu0 %v6797
    %6799 = vmatprep.subr.mxu0 0.0
    %v6800 = vand.u32 %v6776, 4294901760
    %6801 = vmatpush1.msra.mxu0 %v6800
    %6802 = vmatprep.subr.mxu0 0.0
    %v6803 = vand.u32 %v6775, 4294901760
    %6804 = vmatpush1.msra.mxu0 %v6803
    %6805 = vmatprep.subr.mxu0 0.0
    %v6806 = vand.u32 %v6774, 4294901760
    %6807 = vmatpush1.msra.mxu0 %v6806
    %6808 = vmatprep.subr.mxu0 0.0
    %v6809 = vand.u32 %v6773, 4294901760
    %6810 = vmatpush1.msra.mxu0 %v6809
    %6811 = vmatprep.subr.mxu0 0.0
    %v6812 = vand.u32 %v6772, 4294901760
    %6813 = vmatpush1.msra.mxu0 %v6812
    %6814 = vmatprep.subr.mxu0 0.0
    %v6815 = vand.u32 %v6771, 4294901760
    %6816 = vmatpush1.msra.mxu0 %v6815
    %6817 = vmatprep.subr.mxu0 0.0
    %v6818 = vand.u32 %v6770, 4294901760
    %6819 = vmatpush1.msra.mxu0 %v6818
    %6820 = vmatprep.subr.mxu0 0.0
    %v6821 = vand.u32 %v6769, 4294901760
    %6822 = vmatpush1.msra.mxu0 %v6821
    %6823 = vmatprep.subr.mxu0 0.0
    %v6824 = vand.u32 %v6768, 4294901760
    %6825 = vmatpush1.msra.mxu0 %v6824
    %6826 = vmatprep.subr.mxu0 0.0
    %v6827 = vand.u32 %v6767, 4294901760
    %6828 = vmatpush1.msra.mxu0 %v6827
    %6829 = vmatprep.subr.mxu0 0.0
    %v6830 = vand.u32 %v6766, 4294901760
    %6831 = vmatpush1.msra.mxu0 %v6830
    %6832 = vmatprep.subr.mxu0 0.0
    %v6833 = vand.u32 %v6765, 4294901760
    %6834 = vmatpush1.msra.mxu0 %v6833
    %6835 = vmatprep.subr.mxu0 0.0
    %6836 = vmatpush2.msra.mxu0 0.0
    %6837 = vmatprep.subr.mxu0 0.0
    %6838 = vmatpush2.msra.mxu0 0.0
    %6839 = vmatprep.subr.mxu0 0.0
    %6840 = vmatpush2.msra.mxu0 0.0
    %6841 = vmatprep.subr.mxu0 0.0
    %6842 = vmatpush2.msra.mxu0 0.0
    %6843 = vmatprep.subr.mxu0 0.0
    %6844 = vmatpush2.msra.mxu0 0.0
    %6845 = vmatprep.subr.mxu0 0.0
    %6846 = vmatpush2.msra.mxu0 0.0
    %6847 = vmatprep.subr.mxu0 0.0
    %6848 = vmatpush2.msra.mxu0 0.0
    %6849 = vmatprep.subr.mxu0 0.0
    %6850 = vmatpush2.msra.mxu0 0.0
    %6851 = vmatprep.subr.mxu0 0.0
    %6852 = vmatpush2.msra.mxu0 0.0
    %6853 = vmatprep.subr.mxu0 0.0
    %6854 = vmatpush2.msra.mxu0 0.0
    %6855 = vmatprep.subr.mxu0 0.0
    %6856 = vmatpush2.msra.mxu0 0.0
    %6857 = vmatprep.subr.mxu0 0.0
    %6858 = vmatpush2.msra.mxu0 0.0
    %6859 = vmatprep.subr.mxu0 0.0
    %6860 = vmatpush2.msra.mxu0 0.0
    %6861 = vmatprep.subr.mxu0 0.0
    %6862 = vmatpush2.msra.mxu0 0.0
    %6863 = vmatprep.subr.mxu0 0.0
    %6864 = vmatpush2.msra.mxu0 0.0
    %6865 = vmatprep.subr.mxu0 0.0
    %6866 = vmatpush2.msra.mxu0 0.0
    %6867 = vmatprep.mubr.f32.mxu0 0.0
    %v6868 = vand.u32 %v6763, 4294901760
    %v6869 = vsub.f32 %v6763, %v6868
    %v6870 = vand.u32 %v6869, 4294901760
    %v6871 = vsub.f32 %v6869, %v6870
    %v6872 = vand.u32 %v6871, 4294901760
    %6873 = vmatmul.mubr.f32.gmra.mxu0 %v6872
    %v6874 = vpop.f32.mrf.mxu0
    %v6875 = vadd.f32 %v6786, %v6874
    %v6876 = vpop.f32.mrf.mxu0
    %6877 = vdwg.mxu0
    %6878 = vmatprep.subr.mxu0 0.0
    %v6879 = vand.u32 %v6780, 4294901760
    %v6880 = vsub.f32 %v6780, %v6879
    %v6881 = vand.u32 %v6880, 4294901760
    %v6882 = vsub.f32 %v6880, %v6881
    %v6883 = vand.u32 %v6882, 4294901760
    %6884 = vmatpush1.msra.mxu0 %v6883
    %6885 = vmatprep.subr.mxu0 0.0
    %v6886 = vand.u32 %v6779, 4294901760
    %v6887 = vsub.f32 %v6779, %v6886
    %v6888 = vand.u32 %v6887, 4294901760
    %v6889 = vsub.f32 %v6887, %v6888
    %v6890 = vand.u32 %v6889, 4294901760
    %6891 = vmatpush1.msra.mxu0 %v6890
    %6892 = vmatprep.subr.mxu0 0.0
    %v6893 = vand.u32 %v6778, 4294901760
    %v6894 = vsub.f32 %v6778, %v6893
    %v6895 = vand.u32 %v6894, 4294901760
    %v6896 = vsub.f32 %v6894, %v6895
    %v6897 = vand.u32 %v6896, 4294901760
    %6898 = vmatpush1.msra.mxu0 %v6897
    %6899 = vmatprep.subr.mxu0 0.0
    %v6900 = vand.u32 %v6777, 4294901760
    %v6901 = vsub.f32 %v6777, %v6900
    %v6902 = vand.u32 %v6901, 4294901760
    %v6903 = vsub.f32 %v6901, %v6902
    %v6904 = vand.u32 %v6903, 4294901760
    %6905 = vmatpush1.msra.mxu0 %v6904
    %6906 = vmatprep.subr.mxu0 0.0
    %v6907 = vand.u32 %v6776, 4294901760
    %v6908 = vsub.f32 %v6776, %v6907
    %v6909 = vand.u32 %v6908, 4294901760
    %v6910 = vsub.f32 %v6908, %v6909
    %v6911 = vand.u32 %v6910, 4294901760
    %6912 = vmatpush1.msra.mxu0 %v6911
    %6913 = vmatprep.subr.mxu0 0.0
    %v6914 = vand.u32 %v6775, 4294901760
    %v6915 = vsub.f32 %v6775, %v6914
    %v6916 = vand.u32 %v6915, 4294901760
    %v6917 = vsub.f32 %v6915, %v6916
    %v6918 = vand.u32 %v6917, 4294901760
    %6919 = vmatpush1.msra.mxu0 %v6918
    %6920 = vmatprep.subr.mxu0 0.0
    %v6921 = vand.u32 %v6774, 4294901760
    %v6922 = vsub.f32 %v6774, %v6921
    %v6923 = vand.u32 %v6922, 4294901760
    %v6924 = vsub.f32 %v6922, %v6923
    %v6925 = vand.u32 %v6924, 4294901760
    %6926 = vmatpush1.msra.mxu0 %v6925
    %6927 = vmatprep.subr.mxu0 0.0
    %v6928 = vand.u32 %v6773, 4294901760
    %v6929 = vsub.f32 %v6773, %v6928
    %v6930 = vand.u32 %v6929, 4294901760
    %v6931 = vsub.f32 %v6929, %v6930
    %v6932 = vand.u32 %v6931, 4294901760
    %6933 = vmatpush1.msra.mxu0 %v6932
    %6934 = vmatprep.subr.mxu0 0.0
    %v6935 = vand.u32 %v6772, 4294901760
    %v6936 = vsub.f32 %v6772, %v6935
    %v6937 = vand.u32 %v6936, 4294901760
    %v6938 = vsub.f32 %v6936, %v6937
    %v6939 = vand.u32 %v6938, 4294901760
    %6940 = vmatpush1.msra.mxu0 %v6939
    %6941 = vmatprep.subr.mxu0 0.0
    %v6942 = vand.u32 %v6771, 4294901760
    %v6943 = vsub.f32 %v6771, %v6942
    %v6944 = vand.u32 %v6943, 4294901760
    %v6945 = vsub.f32 %v6943, %v6944
    %v6946 = vand.u32 %v6945, 4294901760
    %6947 = vmatpush1.msra.mxu0 %v6946
    %6948 = vmatprep.subr.mxu0 0.0
    %v6949 = vand.u32 %v6770, 4294901760
    %v6950 = vsub.f32 %v6770, %v6949
    %v6951 = vand.u32 %v6950, 4294901760
    %v6952 = vsub.f32 %v6950, %v6951
    %v6953 = vand.u32 %v6952, 4294901760
    %6954 = vmatpush1.msra.mxu0 %v6953
    %6955 = vmatprep.subr.mxu0 0.0
    %v6956 = vand.u32 %v6769, 4294901760
    %v6957 = vsub.f32 %v6769, %v6956
    %v6958 = vand.u32 %v6957, 4294901760
    %v6959 = vsub.f32 %v6957, %v6958
    %v6960 = vand.u32 %v6959, 4294901760
    %6961 = vmatpush1.msra.mxu0 %v6960
    %6962 = vmatprep.subr.mxu0 0.0
    %v6963 = vand.u32 %v6768, 4294901760
    %v6964 = vsub.f32 %v6768, %v6963
    %v6965 = vand.u32 %v6964, 4294901760
    %v6966 = vsub.f32 %v6964, %v6965
    %v6967 = vand.u32 %v6966, 4294901760
    %6968 = vmatpush1.msra.mxu0 %v6967
    %6969 = vmatprep.subr.mxu0 0.0
    %v6970 = vand.u32 %v6767, 4294901760
    %v6971 = vsub.f32 %v6767, %v6970
    %v6972 = vand.u32 %v6971, 4294901760
    %v6973 = vsub.f32 %v6971, %v6972
    %v6974 = vand.u32 %v6973, 4294901760
    %6975 = vmatpush1.msra.mxu0 %v6974
    %6976 = vmatprep.subr.mxu0 0.0
    %v6977 = vand.u32 %v6766, 4294901760
    %v6978 = vsub.f32 %v6766, %v6977
    %v6979 = vand.u32 %v6978, 4294901760
    %v6980 = vsub.f32 %v6978, %v6979
    %v6981 = vand.u32 %v6980, 4294901760
    %6982 = vmatpush1.msra.mxu0 %v6981
    %6983 = vmatprep.subr.mxu0 0.0
    %v6984 = vand.u32 %v6765, 4294901760
    %v6985 = vsub.f32 %v6765, %v6984
    %v6986 = vand.u32 %v6985, 4294901760
    %v6987 = vsub.f32 %v6985, %v6986
    %v6988 = vand.u32 %v6987, 4294901760
    %6989 = vmatpush1.msra.mxu0 %v6988
    %6990 = vmatprep.subr.mxu0 0.0
    %6991 = vmatpush2.msra.mxu0 0.0
    %6992 = vmatprep.subr.mxu0 0.0
    %6993 = vmatpush2.msra.mxu0 0.0
    %6994 = vmatprep.subr.mxu0 0.0
    %6995 = vmatpush2.msra.mxu0 0.0
    %6996 = vmatprep.subr.mxu0 0.0
    %6997 = vmatpush2.msra.mxu0 0.0
    %6998 = vmatprep.subr.mxu0 0.0
    %6999 = vmatpush2.msra.mxu0 0.0
    %7000 = vmatprep.subr.mxu0 0.0
    %7001 = vmatpush2.msra.mxu0 0.0
    %7002 = vmatprep.subr.mxu0 0.0
    %7003 = vmatpush2.msra.mxu0 0.0
    %7004 = vmatprep.subr.mxu0 0.0
    %7005 = vmatpush2.msra.mxu0 0.0
    %7006 = vmatprep.subr.mxu0 0.0
    %7007 = vmatpush2.msra.mxu0 0.0
    %7008 = vmatprep.subr.mxu0 0.0
    %7009 = vmatpush2.msra.mxu0 0.0
    %7010 = vmatprep.subr.mxu0 0.0
    %7011 = vmatpush2.msra.mxu0 0.0
    %7012 = vmatprep.subr.mxu0 0.0
    %7013 = vmatpush2.msra.mxu0 0.0
    %7014 = vmatprep.subr.mxu0 0.0
    %7015 = vmatpush2.msra.mxu0 0.0
    %7016 = vmatprep.subr.mxu0 0.0
    %7017 = vmatpush2.msra.mxu0 0.0
    %7018 = vmatprep.subr.mxu0 0.0
    %7019 = vmatpush2.msra.mxu0 0.0
    %7020 = vmatprep.subr.mxu0 0.0
    %7021 = vmatpush2.msra.mxu0 0.0
    %7022 = vmatprep.mubr.f32.mxu0 0.0
    %v7023 = vand.u32 %v6763, 4294901760
    %7024 = vmatmul.mubr.f32.gmra.mxu0 %v7023
    %v7025 = vpop.f32.mrf.mxu0
    %v7026 = vadd.f32 %v6875, %v7025
    %v7027 = vpop.f32.mrf.mxu0
    %7028 = vdwg.mxu0
    %7029 = vmatprep.subr.mxu0 0.0
    %v7030 = vand.u32 %v6780, 4294901760
    %v7031 = vsub.f32 %v6780, %v7030
    %7032 = vmatpush1.msra.mxu0 %v7031
    %7033 = vmatprep.subr.mxu0 0.0
    %v7034 = vand.u32 %v6779, 4294901760
    %v7035 = vsub.f32 %v6779, %v7034
    %7036 = vmatpush1.msra.mxu0 %v7035
    %7037 = vmatprep.subr.mxu0 0.0
    %v7038 = vand.u32 %v6778, 4294901760
    %v7039 = vsub.f32 %v6778, %v7038
    %7040 = vmatpush1.msra.mxu0 %v7039
    %7041 = vmatprep.subr.mxu0 0.0
    %v7042 = vand.u32 %v6777, 4294901760
    %v7043 = vsub.f32 %v6777, %v7042
    %7044 = vmatpush1.msra.mxu0 %v7043
    %7045 = vmatprep.subr.mxu0 0.0
    %v7046 = vand.u32 %v6776, 4294901760
    %v7047 = vsub.f32 %v6776, %v7046
    %7048 = vmatpush1.msra.mxu0 %v7047
    %7049 = vmatprep.subr.mxu0 0.0
    %v7050 = vand.u32 %v6775, 4294901760
    %v7051 = vsub.f32 %v6775, %v7050
    %7052 = vmatpush1.msra.mxu0 %v7051
    %7053 = vmatprep.subr.mxu0 0.0
    %v7054 = vand.u32 %v6774, 4294901760
    %v7055 = vsub.f32 %v6774, %v7054
    %7056 = vmatpush1.msra.mxu0 %v7055
    %7057 = vmatprep.subr.mxu0 0.0
    %v7058 = vand.u32 %v6773, 4294901760
    %v7059 = vsub.f32 %v6773, %v7058
    %7060 = vmatpush1.msra.mxu0 %v7059
    %7061 = vmatprep.subr.mxu0 0.0
    %v7062 = vand.u32 %v6772, 4294901760
    %v7063 = vsub.f32 %v6772, %v7062
    %7064 = vmatpush1.msra.mxu0 %v7063
    %7065 = vmatprep.subr.mxu0 0.0
    %v7066 = vand.u32 %v6771, 4294901760
    %v7067 = vsub.f32 %v6771, %v7066
    %7068 = vmatpush1.msra.mxu0 %v7067
    %7069 = vmatprep.subr.mxu0 0.0
    %v7070 = vand.u32 %v6770, 4294901760
    %v7071 = vsub.f32 %v6770, %v7070
    %7072 = vmatpush1.msra.mxu0 %v7071
    %7073 = vmatprep.subr.mxu0 0.0
    %v7074 = vand.u32 %v6769, 4294901760
    %v7075 = vsub.f32 %v6769, %v7074
    %7076 = vmatpush1.msra.mxu0 %v7075
    %7077 = vmatprep.subr.mxu0 0.0
    %v7078 = vand.u32 %v6768, 4294901760
    %v7079 = vsub.f32 %v6768, %v7078
    %7080 = vmatpush1.msra.mxu0 %v7079
    %7081 = vmatprep.subr.mxu0 0.0
    %v7082 = vand.u32 %v6767, 4294901760
    %v7083 = vsub.f32 %v6767, %v7082
    %7084 = vmatpush1.msra.mxu0 %v7083
    %7085 = vmatprep.subr.mxu0 0.0
    %v7086 = vand.u32 %v6766, 4294901760
    %v7087 = vsub.f32 %v6766, %v7086
    %7088 = vmatpush1.msra.mxu0 %v7087
    %7089 = vmatprep.subr.mxu0 0.0
    %v7090 = vand.u32 %v6765, 4294901760
    %v7091 = vsub.f32 %v6765, %v7090
    %7092 = vmatpush1.msra.mxu0 %v7091
    %7093 = vmatprep.subr.mxu0 0.0
    %7094 = vmatpush2.msra.mxu0 0.0
    %7095 = vmatprep.subr.mxu0 0.0
    %7096 = vmatpush2.msra.mxu0 0.0
    %7097 = vmatprep.subr.mxu0 0.0
    %7098 = vmatpush2.msra.mxu0 0.0
    %7099 = vmatprep.subr.mxu0 0.0
    %7100 = vmatpush2.msra.mxu0 0.0
    %7101 = vmatprep.subr.mxu0 0.0
    %7102 = vmatpush2.msra.mxu0 0.0
    %7103 = vmatprep.subr.mxu0 0.0
    %7104 = vmatpush2.msra.mxu0 0.0
    %7105 = vmatprep.subr.mxu0 0.0
    %7106 = vmatpush2.msra.mxu0 0.0
    %7107 = vmatprep.subr.mxu0 0.0
    %7108 = vmatpush2.msra.mxu0 0.0
    %7109 = vmatprep.subr.mxu0 0.0
    %7110 = vmatpush2.msra.mxu0 0.0
    %7111 = vmatprep.subr.mxu0 0.0
    %7112 = vmatpush2.msra.mxu0 0.0
    %7113 = vmatprep.subr.mxu0 0.0
    %7114 = vmatpush2.msra.mxu0 0.0
    %7115 = vmatprep.subr.mxu0 0.0
    %7116 = vmatpush2.msra.mxu0 0.0
    %7117 = vmatprep.subr.mxu0 0.0
    %7118 = vmatpush2.msra.mxu0 0.0
    %7119 = vmatprep.subr.mxu0 0.0
    %7120 = vmatpush2.msra.mxu0 0.0
    %7121 = vmatprep.subr.mxu0 0.0
    %7122 = vmatpush2.msra.mxu0 0.0
    %7123 = vmatprep.subr.mxu0 0.0
    %7124 = vmatpush2.msra.mxu0 0.0
    %7125 = vmatprep.mubr.f32.mxu0 0.0
    %v7126 = vand.u32 %v6763, 4294901760
    %v7127 = vsub.f32 %v6763, %v7126
    %7128 = vmatmul.mubr.f32.gmra.mxu0 %v7127
    %v7129 = vpop.f32.mrf.mxu0
    %v7130 = vadd.f32 %v7026, %v7129
    %v7131 = vpop.f32.mrf.mxu0
    %7132 = vdwg.mxu0
    %7133 = vmatprep.subr.mxu0 0.0
    %v7134 = vand.u32 %v6780, 4294901760
    %7135 = vmatpush1.msra.mxu0 %v7134
    %7136 = vmatprep.subr.mxu0 0.0
    %v7137 = vand.u32 %v6779, 4294901760
    %7138 = vmatpush1.msra.mxu0 %v7137
    %7139 = vmatprep.subr.mxu0 0.0
    %v7140 = vand.u32 %v6778, 4294901760
    %7141 = vmatpush1.msra.mxu0 %v7140
    %7142 = vmatprep.subr.mxu0 0.0
    %v7143 = vand.u32 %v6777, 4294901760
    %7144 = vmatpush1.msra.mxu0 %v7143
    %7145 = vmatprep.subr.mxu0 0.0
    %v7146 = vand.u32 %v6776, 4294901760
    %7147 = vmatpush1.msra.mxu0 %v7146
    %7148 = vmatprep.subr.mxu0 0.0
    %v7149 = vand.u32 %v6775, 4294901760
    %7150 = vmatpush1.msra.mxu0 %v7149
    %7151 = vmatprep.subr.mxu0 0.0
    %v7152 = vand.u32 %v6774, 4294901760
    %7153 = vmatpush1.msra.mxu0 %v7152
    %7154 = vmatprep.subr.mxu0 0.0
    %v7155 = vand.u32 %v6773, 4294901760
    %7156 = vmatpush1.msra.mxu0 %v7155
    %7157 = vmatprep.subr.mxu0 0.0
    %v7158 = vand.u32 %v6772, 4294901760
    %7159 = vmatpush1.msra.mxu0 %v7158
    %7160 = vmatprep.subr.mxu0 0.0
    %v7161 = vand.u32 %v6771, 4294901760
    %7162 = vmatpush1.msra.mxu0 %v7161
    %7163 = vmatprep.subr.mxu0 0.0
    %v7164 = vand.u32 %v6770, 4294901760
    %7165 = vmatpush1.msra.mxu0 %v7164
    %7166 = vmatprep.subr.mxu0 0.0
    %v7167 = vand.u32 %v6769, 4294901760
    %7168 = vmatpush1.msra.mxu0 %v7167
    %7169 = vmatprep.subr.mxu0 0.0
    %v7170 = vand.u32 %v6768, 4294901760
    %7171 = vmatpush1.msra.mxu0 %v7170
    %7172 = vmatprep.subr.mxu0 0.0
    %v7173 = vand.u32 %v6767, 4294901760
    %7174 = vmatpush1.msra.mxu0 %v7173
    %7175 = vmatprep.subr.mxu0 0.0
    %v7176 = vand.u32 %v6766, 4294901760
    %7177 = vmatpush1.msra.mxu0 %v7176
    %7178 = vmatprep.subr.mxu0 0.0
    %v7179 = vand.u32 %v6765, 4294901760
    %7180 = vmatpush1.msra.mxu0 %v7179
    %7181 = vmatprep.subr.mxu0 0.0
    %7182 = vmatpush2.msra.mxu0 0.0
    %7183 = vmatprep.subr.mxu0 0.0
    %7184 = vmatpush2.msra.mxu0 0.0
    %7185 = vmatprep.subr.mxu0 0.0
    %7186 = vmatpush2.msra.mxu0 0.0
    %7187 = vmatprep.subr.mxu0 0.0
    %7188 = vmatpush2.msra.mxu0 0.0
    %7189 = vmatprep.subr.mxu0 0.0
    %7190 = vmatpush2.msra.mxu0 0.0
    %7191 = vmatprep.subr.mxu0 0.0
    %7192 = vmatpush2.msra.mxu0 0.0
    %7193 = vmatprep.subr.mxu0 0.0
    %7194 = vmatpush2.msra.mxu0 0.0
    %7195 = vmatprep.subr.mxu0 0.0
    %7196 = vmatpush2.msra.mxu0 0.0
    %7197 = vmatprep.subr.mxu0 0.0
    %7198 = vmatpush2.msra.mxu0 0.0
    %7199 = vmatprep.subr.mxu0 0.0
    %7200 = vmatpush2.msra.mxu0 0.0
    %7201 = vmatprep.subr.mxu0 0.0
    %7202 = vmatpush2.msra.mxu0 0.0
    %7203 = vmatprep.subr.mxu0 0.0
    %7204 = vmatpush2.msra.mxu0 0.0
    %7205 = vmatprep.subr.mxu0 0.0
    %7206 = vmatpush2.msra.mxu0 0.0
    %7207 = vmatprep.subr.mxu0 0.0
    %7208 = vmatpush2.msra.mxu0 0.0
    %7209 = vmatprep.subr.mxu0 0.0
    %7210 = vmatpush2.msra.mxu0 0.0
    %7211 = vmatprep.subr.mxu0 0.0
    %7212 = vmatpush2.msra.mxu0 0.0
    %7213 = vmatprep.mubr.f32.mxu0 0.0
    %v7214 = vand.u32 %v6763, 4294901760
    %v7215 = vsub.f32 %v6763, %v7214
    %v7216 = vand.u32 %v7215, 4294901760
    %7217 = vmatmul.mubr.f32.gmra.mxu0 %v7216
    %v7218 = vpop.f32.mrf.mxu0
    %v7219 = vadd.f32 %v7130, %v7218
    %v7220 = vpop.f32.mrf.mxu0
    %7221 = vdwg.mxu0
    %7222 = vmatprep.subr.mxu0 0.0
    %v7223 = vand.u32 %v6780, 4294901760
    %v7224 = vsub.f32 %v6780, %v7223
    %v7225 = vand.u32 %v7224, 4294901760
    %7226 = vmatpush1.msra.mxu0 %v7225
    %7227 = vmatprep.subr.mxu0 0.0
    %v7228 = vand.u32 %v6779, 4294901760
    %v7229 = vsub.f32 %v6779, %v7228
    %v7230 = vand.u32 %v7229, 4294901760
    %7231 = vmatpush1.msra.mxu0 %v7230
    %7232 = vmatprep.subr.mxu0 0.0
    %v7233 = vand.u32 %v6778, 4294901760
    %v7234 = vsub.f32 %v6778, %v7233
    %v7235 = vand.u32 %v7234, 4294901760
    %7236 = vmatpush1.msra.mxu0 %v7235
    %7237 = vmatprep.subr.mxu0 0.0
    %v7238 = vand.u32 %v6777, 4294901760
    %v7239 = vsub.f32 %v6777, %v7238
    %v7240 = vand.u32 %v7239, 4294901760
    %7241 = vmatpush1.msra.mxu0 %v7240
    %7242 = vmatprep.subr.mxu0 0.0
    %v7243 = vand.u32 %v6776, 4294901760
    %v7244 = vsub.f32 %v6776, %v7243
    %v7245 = vand.u32 %v7244, 4294901760
    %7246 = vmatpush1.msra.mxu0 %v7245
    %7247 = vmatprep.subr.mxu0 0.0
    %v7248 = vand.u32 %v6775, 4294901760
    %v7249 = vsub.f32 %v6775, %v7248
    %v7250 = vand.u32 %v7249, 4294901760
    %7251 = vmatpush1.msra.mxu0 %v7250
    %7252 = vmatprep.subr.mxu0 0.0
    %v7253 = vand.u32 %v6774, 4294901760
    %v7254 = vsub.f32 %v6774, %v7253
    %v7255 = vand.u32 %v7254, 4294901760
    %7256 = vmatpush1.msra.mxu0 %v7255
    %7257 = vmatprep.subr.mxu0 0.0
    %v7258 = vand.u32 %v6773, 4294901760
    %v7259 = vsub.f32 %v6773, %v7258
    %v7260 = vand.u32 %v7259, 4294901760
    %7261 = vmatpush1.msra.mxu0 %v7260
    %7262 = vmatprep.subr.mxu0 0.0
    %v7263 = vand.u32 %v6772, 4294901760
    %v7264 = vsub.f32 %v6772, %v7263
    %v7265 = vand.u32 %v7264, 4294901760
    %7266 = vmatpush1.msra.mxu0 %v7265
    %7267 = vmatprep.subr.mxu0 0.0
    %v7268 = vand.u32 %v6771, 4294901760
    %v7269 = vsub.f32 %v6771, %v7268
    %v7270 = vand.u32 %v7269, 4294901760
    %7271 = vmatpush1.msra.mxu0 %v7270
    %7272 = vmatprep.subr.mxu0 0.0
    %v7273 = vand.u32 %v6770, 4294901760
    %v7274 = vsub.f32 %v6770, %v7273
    %v7275 = vand.u32 %v7274, 4294901760
    %7276 = vmatpush1.msra.mxu0 %v7275
    %7277 = vmatprep.subr.mxu0 0.0
    %v7278 = vand.u32 %v6769, 4294901760
    %v7279 = vsub.f32 %v6769, %v7278
    %v7280 = vand.u32 %v7279, 4294901760
    %7281 = vmatpush1.msra.mxu0 %v7280
    %7282 = vmatprep.subr.mxu0 0.0
    %v7283 = vand.u32 %v6768, 4294901760
    %v7284 = vsub.f32 %v6768, %v7283
    %v7285 = vand.u32 %v7284, 4294901760
    %7286 = vmatpush1.msra.mxu0 %v7285
    %7287 = vmatprep.subr.mxu0 0.0
    %v7288 = vand.u32 %v6767, 4294901760
    %v7289 = vsub.f32 %v6767, %v7288
    %v7290 = vand.u32 %v7289, 4294901760
    %7291 = vmatpush1.msra.mxu0 %v7290
    %7292 = vmatprep.subr.mxu0 0.0
    %v7293 = vand.u32 %v6766, 4294901760
    %v7294 = vsub.f32 %v6766, %v7293
    %v7295 = vand.u32 %v7294, 4294901760
    %7296 = vmatpush1.msra.mxu0 %v7295
    %7297 = vmatprep.subr.mxu0 0.0
    %v7298 = vand.u32 %v6765, 4294901760
    %v7299 = vsub.f32 %v6765, %v7298
    %v7300 = vand.u32 %v7299, 4294901760
    %7301 = vmatpush1.msra.mxu0 %v7300
    %7302 = vmatprep.subr.mxu0 0.0
    %7303 = vmatpush2.msra.mxu0 0.0
    %7304 = vmatprep.subr.mxu0 0.0
    %7305 = vmatpush2.msra.mxu0 0.0
    %7306 = vmatprep.subr.mxu0 0.0
    %7307 = vmatpush2.msra.mxu0 0.0
    %7308 = vmatprep.subr.mxu0 0.0
    %7309 = vmatpush2.msra.mxu0 0.0
    %7310 = vmatprep.subr.mxu0 0.0
    %7311 = vmatpush2.msra.mxu0 0.0
    %7312 = vmatprep.subr.mxu0 0.0
    %7313 = vmatpush2.msra.mxu0 0.0
    %7314 = vmatprep.subr.mxu0 0.0
    %7315 = vmatpush2.msra.mxu0 0.0
    %7316 = vmatprep.subr.mxu0 0.0
    %7317 = vmatpush2.msra.mxu0 0.0
    %7318 = vmatprep.subr.mxu0 0.0
    %7319 = vmatpush2.msra.mxu0 0.0
    %7320 = vmatprep.subr.mxu0 0.0
    %7321 = vmatpush2.msra.mxu0 0.0
    %7322 = vmatprep.subr.mxu0 0.0
    %7323 = vmatpush2.msra.mxu0 0.0
    %7324 = vmatprep.subr.mxu0 0.0
    %7325 = vmatpush2.msra.mxu0 0.0
    %7326 = vmatprep.subr.mxu0 0.0
    %7327 = vmatpush2.msra.mxu0 0.0
    %7328 = vmatprep.subr.mxu0 0.0
    %7329 = vmatpush2.msra.mxu0 0.0
    %7330 = vmatprep.subr.mxu0 0.0
    %7331 = vmatpush2.msra.mxu0 0.0
    %7332 = vmatprep.subr.mxu0 0.0
    %7333 = vmatpush2.msra.mxu0 0.0
    %7334 = vmatprep.mubr.f32.mxu0 0.0
    %v7335 = vand.u32 %v6763, 4294901760
    %7336 = vmatmul.mubr.f32.gmra.mxu0 %v7335
    %v7337 = vpop.f32.mrf.mxu0
    %v7338 = vadd.f32 %v7219, %v7337
    %v7339 = vpop.f32.mrf.mxu0
    %7340 = vdwg.mxu0
    %7341 = vmatprep.subr.mxu0 0.0
    %v7342 = vand.u32 %v6780, 4294901760
    %7343 = vmatpush1.msra.mxu0 %v7342
    %7344 = vmatprep.subr.mxu0 0.0
    %v7345 = vand.u32 %v6779, 4294901760
    %7346 = vmatpush1.msra.mxu0 %v7345
    %7347 = vmatprep.subr.mxu0 0.0
    %v7348 = vand.u32 %v6778, 4294901760
    %7349 = vmatpush1.msra.mxu0 %v7348
    %7350 = vmatprep.subr.mxu0 0.0
    %v7351 = vand.u32 %v6777, 4294901760
    %7352 = vmatpush1.msra.mxu0 %v7351
    %7353 = vmatprep.subr.mxu0 0.0
    %v7354 = vand.u32 %v6776, 4294901760
    %7355 = vmatpush1.msra.mxu0 %v7354
    %7356 = vmatprep.subr.mxu0 0.0
    %v7357 = vand.u32 %v6775, 4294901760
    %7358 = vmatpush1.msra.mxu0 %v7357
    %7359 = vmatprep.subr.mxu0 0.0
    %v7360 = vand.u32 %v6774, 4294901760
    %7361 = vmatpush1.msra.mxu0 %v7360
    %7362 = vmatprep.subr.mxu0 0.0
    %v7363 = vand.u32 %v6773, 4294901760
    %7364 = vmatpush1.msra.mxu0 %v7363
    %7365 = vmatprep.subr.mxu0 0.0
    %v7366 = vand.u32 %v6772, 4294901760
    %7367 = vmatpush1.msra.mxu0 %v7366
    %7368 = vmatprep.subr.mxu0 0.0
    %v7369 = vand.u32 %v6771, 4294901760
    %7370 = vmatpush1.msra.mxu0 %v7369
    %7371 = vmatprep.subr.mxu0 0.0
    %v7372 = vand.u32 %v6770, 4294901760
    %7373 = vmatpush1.msra.mxu0 %v7372
    %7374 = vmatprep.subr.mxu0 0.0
    %v7375 = vand.u32 %v6769, 4294901760
    %7376 = vmatpush1.msra.mxu0 %v7375
    %7377 = vmatprep.subr.mxu0 0.0
    %v7378 = vand.u32 %v6768, 4294901760
    %7379 = vmatpush1.msra.mxu0 %v7378
    %7380 = vmatprep.subr.mxu0 0.0
    %v7381 = vand.u32 %v6767, 4294901760
    %7382 = vmatpush1.msra.mxu0 %v7381
    %7383 = vmatprep.subr.mxu0 0.0
    %v7384 = vand.u32 %v6766, 4294901760
    %7385 = vmatpush1.msra.mxu0 %v7384
    %7386 = vmatprep.subr.mxu0 0.0
    %v7387 = vand.u32 %v6765, 4294901760
    %7388 = vmatpush1.msra.mxu0 %v7387
    %7389 = vmatprep.subr.mxu0 0.0
    %7390 = vmatpush2.msra.mxu0 0.0
    %7391 = vmatprep.subr.mxu0 0.0
    %7392 = vmatpush2.msra.mxu0 0.0
    %7393 = vmatprep.subr.mxu0 0.0
    %7394 = vmatpush2.msra.mxu0 0.0
    %7395 = vmatprep.subr.mxu0 0.0
    %7396 = vmatpush2.msra.mxu0 0.0
    %7397 = vmatprep.subr.mxu0 0.0
    %7398 = vmatpush2.msra.mxu0 0.0
    %7399 = vmatprep.subr.mxu0 0.0
    %7400 = vmatpush2.msra.mxu0 0.0
    %7401 = vmatprep.subr.mxu0 0.0
    %7402 = vmatpush2.msra.mxu0 0.0
    %7403 = vmatprep.subr.mxu0 0.0
    %7404 = vmatpush2.msra.mxu0 0.0
    %7405 = vmatprep.subr.mxu0 0.0
    %7406 = vmatpush2.msra.mxu0 0.0
    %7407 = vmatprep.subr.mxu0 0.0
    %7408 = vmatpush2.msra.mxu0 0.0
    %7409 = vmatprep.subr.mxu0 0.0
    %7410 = vmatpush2.msra.mxu0 0.0
    %7411 = vmatprep.subr.mxu0 0.0
    %7412 = vmatpush2.msra.mxu0 0.0
    %7413 = vmatprep.subr.mxu0 0.0
    %7414 = vmatpush2.msra.mxu0 0.0
    %7415 = vmatprep.subr.mxu0 0.0
    %7416 = vmatpush2.msra.mxu0 0.0
    %7417 = vmatprep.subr.mxu0 0.0
    %7418 = vmatpush2.msra.mxu0 0.0
    %7419 = vmatprep.subr.mxu0 0.0
    %7420 = vmatpush2.msra.mxu0 0.0
    %7421 = vmatprep.mubr.f32.mxu0 0.0
    %v7422 = vand.u32 %v6763, 4294901760
    %7423 = vmatmul.mubr.f32.gmra.mxu0 %v7422
    %v7424 = vpop.f32.mrf.mxu0
    %v7425 = vadd.f32 %v7338, %v7424
    %v7426 = vpop.f32.mrf.mxu0
    %7427 = vdwg.mxu0
    %v7428 = vmul.f32 %v7425, 0.5
    %v7429 = vmul.f32 %v7425, %v1567
    %v7430 = verf.f32.pop %v7429
    %v7431 = vadd.f32 %v7430, 1.0
    %v7432 = vmul.f32 %v7428, %v7431
    %7433 = vadd.xlane.f32.xlu0 %v7432
    %v7434 = vpop.xlane.xlu0 %7433
    %v7435 = vmul.f32 %v7434, 0.03125
    %v7436 = vsub.f32 %v7432, %v7435
    %v7437 = vmul.f32 %v7436, %v2553
    %v7438 = vmul.f32 %v7437, %v7437
    %7439 = vadd.xlane.f32.xlu0 %v7438
    %v7440 = vpop.xlane.xlu0 %7439
    %v7441 = vmul.f32 %v7440, 0.03125
    %v7442 = vadd.f32 %v7441, 1e-05
    %v7443 = vrsqrt.pop %v7442
    %v7444 = vmul.f32 %v7437, %v7443
    %v7445 = vlaneseq
    %v7446 = vshrl.u32 %v7445, 7
    %v7447 = vsub.s32 1, %v7446
    %v7448 = vrot.slane %v6782, %v7447
    %v7449 = vmul.f32 %v7444, %v7448
    %v7450 = vlaneseq
    %v7451 = vshrl.u32 %v7450, 7
    %v7452 = vsub.s32 2, %v7451
    %v7453 = vrot.slane %v6782, %v7452
    %v7454 = vadd.f32 %v7449, %v7453
    %s7455 = scalar_lea.vmem [#allocation15], 128
    %v7456 = vld [vmem:[%s7455] sm:$0xff]
    %v7457 = vld [vmem:[%s7455 + $0x8] sm:$0xff]
    %v7458 = vld [vmem:[%s7455 + $0x10] sm:$0xff]
    %v7459 = vld [vmem:[%s7455 + $0x18] sm:$0xff]
    %v7460 = vld [vmem:[%s7455 + $0x20] sm:$0xff]
    %v7461 = vld [vmem:[%s7455 + $0x28] sm:$0xff]
    %v7462 = vld [vmem:[%s7455 + $0x30] sm:$0xff]
    %v7463 = vld [vmem:[%s7455 + $0x38] sm:$0xff]
    %v7464 = vld [vmem:[%s7455 + $0x40] sm:$0xff]
    %v7465 = vld [vmem:[%s7455 + $0x48] sm:$0xff]
    %v7466 = vld [vmem:[%s7455 + $0x50] sm:$0xff]
    %v7467 = vld [vmem:[%s7455 + $0x58] sm:$0xff]
    %v7468 = vld [vmem:[%s7455 + $0x60] sm:$0xff]
    %v7469 = vld [vmem:[%s7455 + $0x68] sm:$0xff]
    %v7470 = vld [vmem:[%s7455 + $0x70] sm:$0xff]
    %v7471 = vld [vmem:[%s7455 + $0x78] sm:$0xff]
    %s7472 = scalar_lea.vmem %s16, 4
    %v7473 = vld [vmem:[%s7472] sm:$0x7]
    %v7474 = vlaneseq
    %v7475 = vshrl.u32 %v7474, 7
    %v7476 = vsub.s32 0, %v7475
    %v7477 = vrot.slane %v7473, %v7476
    %7478 = vmatprep.subr.mxu0 0.0
    %v7479 = vand.u32 %v7471, 4294901760
    %7480 = vmatpush1.msra.mxu0 %v7479
    %7481 = vmatprep.subr.mxu0 0.0
    %v7482 = vand.u32 %v7470, 4294901760
    %7483 = vmatpush1.msra.mxu0 %v7482
    %7484 = vmatprep.subr.mxu0 0.0
    %v7485 = vand.u32 %v7469, 4294901760
    %7486 = vmatpush1.msra.mxu0 %v7485
    %7487 = vmatprep.subr.mxu0 0.0
    %v7488 = vand.u32 %v7468, 4294901760
    %7489 = vmatpush1.msra.mxu0 %v7488
    %7490 = vmatprep.subr.mxu0 0.0
    %v7491 = vand.u32 %v7467, 4294901760
    %7492 = vmatpush1.msra.mxu0 %v7491
    %7493 = vmatprep.subr.mxu0 0.0
    %v7494 = vand.u32 %v7466, 4294901760
    %7495 = vmatpush1.msra.mxu0 %v7494
    %7496 = vmatprep.subr.mxu0 0.0
    %v7497 = vand.u32 %v7465, 4294901760
    %7498 = vmatpush1.msra.mxu0 %v7497
    %7499 = vmatprep.subr.mxu0 0.0
    %v7500 = vand.u32 %v7464, 4294901760
    %7501 = vmatpush1.msra.mxu0 %v7500
    %7502 = vmatprep.subr.mxu0 0.0
    %v7503 = vand.u32 %v7463, 4294901760
    %7504 = vmatpush1.msra.mxu0 %v7503
    %7505 = vmatprep.subr.mxu0 0.0
    %v7506 = vand.u32 %v7462, 4294901760
    %7507 = vmatpush1.msra.mxu0 %v7506
    %7508 = vmatprep.subr.mxu0 0.0
    %v7509 = vand.u32 %v7461, 4294901760
    %7510 = vmatpush1.msra.mxu0 %v7509
    %7511 = vmatprep.subr.mxu0 0.0
    %v7512 = vand.u32 %v7460, 4294901760
    %7513 = vmatpush1.msra.mxu0 %v7512
    %7514 = vmatprep.subr.mxu0 0.0
    %v7515 = vand.u32 %v7459, 4294901760
    %7516 = vmatpush1.msra.mxu0 %v7515
    %7517 = vmatprep.subr.mxu0 0.0
    %v7518 = vand.u32 %v7458, 4294901760
    %7519 = vmatpush1.msra.mxu0 %v7518
    %7520 = vmatprep.subr.mxu0 0.0
    %v7521 = vand.u32 %v7457, 4294901760
    %7522 = vmatpush1.msra.mxu0 %v7521
    %7523 = vmatprep.subr.mxu0 0.0
    %v7524 = vand.u32 %v7456, 4294901760
    %7525 = vmatpush1.msra.mxu0 %v7524
    %7526 = vmatprep.subr.mxu0 0.0
    %7527 = vmatpush2.msra.mxu0 0.0
    %7528 = vmatprep.subr.mxu0 0.0
    %7529 = vmatpush2.msra.mxu0 0.0
    %7530 = vmatprep.subr.mxu0 0.0
    %7531 = vmatpush2.msra.mxu0 0.0
    %7532 = vmatprep.subr.mxu0 0.0
    %7533 = vmatpush2.msra.mxu0 0.0
    %7534 = vmatprep.subr.mxu0 0.0
    %7535 = vmatpush2.msra.mxu0 0.0
    %7536 = vmatprep.subr.mxu0 0.0
    %7537 = vmatpush2.msra.mxu0 0.0
    %7538 = vmatprep.subr.mxu0 0.0
    %7539 = vmatpush2.msra.mxu0 0.0
    %7540 = vmatprep.subr.mxu0 0.0
    %7541 = vmatpush2.msra.mxu0 0.0
    %7542 = vmatprep.subr.mxu0 0.0
    %7543 = vmatpush2.msra.mxu0 0.0
    %7544 = vmatprep.subr.mxu0 0.0
    %7545 = vmatpush2.msra.mxu0 0.0
    %7546 = vmatprep.subr.mxu0 0.0
    %7547 = vmatpush2.msra.mxu0 0.0
    %7548 = vmatprep.subr.mxu0 0.0
    %7549 = vmatpush2.msra.mxu0 0.0
    %7550 = vmatprep.subr.mxu0 0.0
    %7551 = vmatpush2.msra.mxu0 0.0
    %7552 = vmatprep.subr.mxu0 0.0
    %7553 = vmatpush2.msra.mxu0 0.0
    %7554 = vmatprep.subr.mxu0 0.0
    %7555 = vmatpush2.msra.mxu0 0.0
    %7556 = vmatprep.subr.mxu0 0.0
    %7557 = vmatpush2.msra.mxu0 0.0
    %7558 = vmatprep.mubr.f32.mxu0 0.0
    %v7559 = vand.u32 %v7454, 4294901760
    %v7560 = vsub.f32 %v7454, %v7559
    %v7561 = vand.u32 %v7560, 4294901760
    %v7562 = vsub.f32 %v7560, %v7561
    %v7563 = vand.u32 %v7562, 4294901760
    %7564 = vmatmul.mubr.f32.gmra.mxu0 %v7563
    %v7565 = vpop.f32.mrf.mxu0
    %v7566 = vadd.f32 %v7477, %v7565
    %v7567 = vpop.f32.mrf.mxu0
    %7568 = vdwg.mxu0
    %7569 = vmatprep.subr.mxu0 0.0
    %v7570 = vand.u32 %v7471, 4294901760
    %v7571 = vsub.f32 %v7471, %v7570
    %v7572 = vand.u32 %v7571, 4294901760
    %v7573 = vsub.f32 %v7571, %v7572
    %v7574 = vand.u32 %v7573, 4294901760
    %7575 = vmatpush1.msra.mxu0 %v7574
    %7576 = vmatprep.subr.mxu0 0.0
    %v7577 = vand.u32 %v7470, 4294901760
    %v7578 = vsub.f32 %v7470, %v7577
    %v7579 = vand.u32 %v7578, 4294901760
    %v7580 = vsub.f32 %v7578, %v7579
    %v7581 = vand.u32 %v7580, 4294901760
    %7582 = vmatpush1.msra.mxu0 %v7581
    %7583 = vmatprep.subr.mxu0 0.0
    %v7584 = vand.u32 %v7469, 4294901760
    %v7585 = vsub.f32 %v7469, %v7584
    %v7586 = vand.u32 %v7585, 4294901760
    %v7587 = vsub.f32 %v7585, %v7586
    %v7588 = vand.u32 %v7587, 4294901760
    %7589 = vmatpush1.msra.mxu0 %v7588
    %7590 = vmatprep.subr.mxu0 0.0
    %v7591 = vand.u32 %v7468, 4294901760
    %v7592 = vsub.f32 %v7468, %v7591
    %v7593 = vand.u32 %v7592, 4294901760
    %v7594 = vsub.f32 %v7592, %v7593
    %v7595 = vand.u32 %v7594, 4294901760
    %7596 = vmatpush1.msra.mxu0 %v7595
    %7597 = vmatprep.subr.mxu0 0.0
    %v7598 = vand.u32 %v7467, 4294901760
    %v7599 = vsub.f32 %v7467, %v7598
    %v7600 = vand.u32 %v7599, 4294901760
    %v7601 = vsub.f32 %v7599, %v7600
    %v7602 = vand.u32 %v7601, 4294901760
    %7603 = vmatpush1.msra.mxu0 %v7602
    %7604 = vmatprep.subr.mxu0 0.0
    %v7605 = vand.u32 %v7466, 4294901760
    %v7606 = vsub.f32 %v7466, %v7605
    %v7607 = vand.u32 %v7606, 4294901760
    %v7608 = vsub.f32 %v7606, %v7607
    %v7609 = vand.u32 %v7608, 4294901760
    %7610 = vmatpush1.msra.mxu0 %v7609
    %7611 = vmatprep.subr.mxu0 0.0
    %v7612 = vand.u32 %v7465, 4294901760
    %v7613 = vsub.f32 %v7465, %v7612
    %v7614 = vand.u32 %v7613, 4294901760
    %v7615 = vsub.f32 %v7613, %v7614
    %v7616 = vand.u32 %v7615, 4294901760
    %7617 = vmatpush1.msra.mxu0 %v7616
    %7618 = vmatprep.subr.mxu0 0.0
    %v7619 = vand.u32 %v7464, 4294901760
    %v7620 = vsub.f32 %v7464, %v7619
    %v7621 = vand.u32 %v7620, 4294901760
    %v7622 = vsub.f32 %v7620, %v7621
    %v7623 = vand.u32 %v7622, 4294901760
    %7624 = vmatpush1.msra.mxu0 %v7623
    %7625 = vmatprep.subr.mxu0 0.0
    %v7626 = vand.u32 %v7463, 4294901760
    %v7627 = vsub.f32 %v7463, %v7626
    %v7628 = vand.u32 %v7627, 4294901760
    %v7629 = vsub.f32 %v7627, %v7628
    %v7630 = vand.u32 %v7629, 4294901760
    %7631 = vmatpush1.msra.mxu0 %v7630
    %7632 = vmatprep.subr.mxu0 0.0
    %v7633 = vand.u32 %v7462, 4294901760
    %v7634 = vsub.f32 %v7462, %v7633
    %v7635 = vand.u32 %v7634, 4294901760
    %v7636 = vsub.f32 %v7634, %v7635
    %v7637 = vand.u32 %v7636, 4294901760
    %7638 = vmatpush1.msra.mxu0 %v7637
    %7639 = vmatprep.subr.mxu0 0.0
    %v7640 = vand.u32 %v7461, 4294901760
    %v7641 = vsub.f32 %v7461, %v7640
    %v7642 = vand.u32 %v7641, 4294901760
    %v7643 = vsub.f32 %v7641, %v7642
    %v7644 = vand.u32 %v7643, 4294901760
    %7645 = vmatpush1.msra.mxu0 %v7644
    %7646 = vmatprep.subr.mxu0 0.0
    %v7647 = vand.u32 %v7460, 4294901760
    %v7648 = vsub.f32 %v7460, %v7647
    %v7649 = vand.u32 %v7648, 4294901760
    %v7650 = vsub.f32 %v7648, %v7649
    %v7651 = vand.u32 %v7650, 4294901760
    %7652 = vmatpush1.msra.mxu0 %v7651
    %7653 = vmatprep.subr.mxu0 0.0
    %v7654 = vand.u32 %v7459, 4294901760
    %v7655 = vsub.f32 %v7459, %v7654
    %v7656 = vand.u32 %v7655, 4294901760
    %v7657 = vsub.f32 %v7655, %v7656
    %v7658 = vand.u32 %v7657, 4294901760
    %7659 = vmatpush1.msra.mxu0 %v7658
    %7660 = vmatprep.subr.mxu0 0.0
    %v7661 = vand.u32 %v7458, 4294901760
    %v7662 = vsub.f32 %v7458, %v7661
    %v7663 = vand.u32 %v7662, 4294901760
    %v7664 = vsub.f32 %v7662, %v7663
    %v7665 = vand.u32 %v7664, 4294901760
    %7666 = vmatpush1.msra.mxu0 %v7665
    %7667 = vmatprep.subr.mxu0 0.0
    %v7668 = vand.u32 %v7457, 4294901760
    %v7669 = vsub.f32 %v7457, %v7668
    %v7670 = vand.u32 %v7669, 4294901760
    %v7671 = vsub.f32 %v7669, %v7670
    %v7672 = vand.u32 %v7671, 4294901760
    %7673 = vmatpush1.msra.mxu0 %v7672
    %7674 = vmatprep.subr.mxu0 0.0
    %v7675 = vand.u32 %v7456, 4294901760
    %v7676 = vsub.f32 %v7456, %v7675
    %v7677 = vand.u32 %v7676, 4294901760
    %v7678 = vsub.f32 %v7676, %v7677
    %v7679 = vand.u32 %v7678, 4294901760
    %7680 = vmatpush1.msra.mxu0 %v7679
    %7681 = vmatprep.subr.mxu0 0.0
    %7682 = vmatpush2.msra.mxu0 0.0
    %7683 = vmatprep.subr.mxu0 0.0
    %7684 = vmatpush2.msra.mxu0 0.0
    %7685 = vmatprep.subr.mxu0 0.0
    %7686 = vmatpush2.msra.mxu0 0.0
    %7687 = vmatprep.subr.mxu0 0.0
    %7688 = vmatpush2.msra.mxu0 0.0
    %7689 = vmatprep.subr.mxu0 0.0
    %7690 = vmatpush2.msra.mxu0 0.0
    %7691 = vmatprep.subr.mxu0 0.0
    %7692 = vmatpush2.msra.mxu0 0.0
    %7693 = vmatprep.subr.mxu0 0.0
    %7694 = vmatpush2.msra.mxu0 0.0
    %7695 = vmatprep.subr.mxu0 0.0
    %7696 = vmatpush2.msra.mxu0 0.0
    %7697 = vmatprep.subr.mxu0 0.0
    %7698 = vmatpush2.msra.mxu0 0.0
    %7699 = vmatprep.subr.mxu0 0.0
    %7700 = vmatpush2.msra.mxu0 0.0
    %7701 = vmatprep.subr.mxu0 0.0
    %7702 = vmatpush2.msra.mxu0 0.0
    %7703 = vmatprep.subr.mxu0 0.0
    %7704 = vmatpush2.msra.mxu0 0.0
    %7705 = vmatprep.subr.mxu0 0.0
    %7706 = vmatpush2.msra.mxu0 0.0
    %7707 = vmatprep.subr.mxu0 0.0
    %7708 = vmatpush2.msra.mxu0 0.0
    %7709 = vmatprep.subr.mxu0 0.0
    %7710 = vmatpush2.msra.mxu0 0.0
    %7711 = vmatprep.subr.mxu0 0.0
    %7712 = vmatpush2.msra.mxu0 0.0
    %7713 = vmatprep.mubr.f32.mxu0 0.0
    %v7714 = vand.u32 %v7454, 4294901760
    %7715 = vmatmul.mubr.f32.gmra.mxu0 %v7714
    %v7716 = vpop.f32.mrf.mxu0
    %v7717 = vadd.f32 %v7566, %v7716
    %v7718 = vpop.f32.mrf.mxu0
    %7719 = vdwg.mxu0
    %7720 = vmatprep.subr.mxu0 0.0
    %v7721 = vand.u32 %v7471, 4294901760
    %v7722 = vsub.f32 %v7471, %v7721
    %7723 = vmatpush1.msra.mxu0 %v7722
    %7724 = vmatprep.subr.mxu0 0.0
    %v7725 = vand.u32 %v7470, 4294901760
    %v7726 = vsub.f32 %v7470, %v7725
    %7727 = vmatpush1.msra.mxu0 %v7726
    %7728 = vmatprep.subr.mxu0 0.0
    %v7729 = vand.u32 %v7469, 4294901760
    %v7730 = vsub.f32 %v7469, %v7729
    %7731 = vmatpush1.msra.mxu0 %v7730
    %7732 = vmatprep.subr.mxu0 0.0
    %v7733 = vand.u32 %v7468, 4294901760
    %v7734 = vsub.f32 %v7468, %v7733
    %7735 = vmatpush1.msra.mxu0 %v7734
    %7736 = vmatprep.subr.mxu0 0.0
    %v7737 = vand.u32 %v7467, 4294901760
    %v7738 = vsub.f32 %v7467, %v7737
    %7739 = vmatpush1.msra.mxu0 %v7738
    %7740 = vmatprep.subr.mxu0 0.0
    %v7741 = vand.u32 %v7466, 4294901760
    %v7742 = vsub.f32 %v7466, %v7741
    %7743 = vmatpush1.msra.mxu0 %v7742
    %7744 = vmatprep.subr.mxu0 0.0
    %v7745 = vand.u32 %v7465, 4294901760
    %v7746 = vsub.f32 %v7465, %v7745
    %7747 = vmatpush1.msra.mxu0 %v7746
    %7748 = vmatprep.subr.mxu0 0.0
    %v7749 = vand.u32 %v7464, 4294901760
    %v7750 = vsub.f32 %v7464, %v7749
    %7751 = vmatpush1.msra.mxu0 %v7750
    %7752 = vmatprep.subr.mxu0 0.0
    %v7753 = vand.u32 %v7463, 4294901760
    %v7754 = vsub.f32 %v7463, %v7753
    %7755 = vmatpush1.msra.mxu0 %v7754
    %7756 = vmatprep.subr.mxu0 0.0
    %v7757 = vand.u32 %v7462, 4294901760
    %v7758 = vsub.f32 %v7462, %v7757
    %7759 = vmatpush1.msra.mxu0 %v7758
    %7760 = vmatprep.subr.mxu0 0.0
    %v7761 = vand.u32 %v7461, 4294901760
    %v7762 = vsub.f32 %v7461, %v7761
    %7763 = vmatpush1.msra.mxu0 %v7762
    %7764 = vmatprep.subr.mxu0 0.0
    %v7765 = vand.u32 %v7460, 4294901760
    %v7766 = vsub.f32 %v7460, %v7765
    %7767 = vmatpush1.msra.mxu0 %v7766
    %7768 = vmatprep.subr.mxu0 0.0
    %v7769 = vand.u32 %v7459, 4294901760
    %v7770 = vsub.f32 %v7459, %v7769
    %7771 = vmatpush1.msra.mxu0 %v7770
    %7772 = vmatprep.subr.mxu0 0.0
    %v7773 = vand.u32 %v7458, 4294901760
    %v7774 = vsub.f32 %v7458, %v7773
    %7775 = vmatpush1.msra.mxu0 %v7774
    %7776 = vmatprep.subr.mxu0 0.0
    %v7777 = vand.u32 %v7457, 4294901760
    %v7778 = vsub.f32 %v7457, %v7777
    %7779 = vmatpush1.msra.mxu0 %v7778
    %7780 = vmatprep.subr.mxu0 0.0
    %v7781 = vand.u32 %v7456, 4294901760
    %v7782 = vsub.f32 %v7456, %v7781
    %7783 = vmatpush1.msra.mxu0 %v7782
    %7784 = vmatprep.subr.mxu0 0.0
    %7785 = vmatpush2.msra.mxu0 0.0
    %7786 = vmatprep.subr.mxu0 0.0
    %7787 = vmatpush2.msra.mxu0 0.0
    %7788 = vmatprep.subr.mxu0 0.0
    %7789 = vmatpush2.msra.mxu0 0.0
    %7790 = vmatprep.subr.mxu0 0.0
    %7791 = vmatpush2.msra.mxu0 0.0
    %7792 = vmatprep.subr.mxu0 0.0
    %7793 = vmatpush2.msra.mxu0 0.0
    %7794 = vmatprep.subr.mxu0 0.0
    %7795 = vmatpush2.msra.mxu0 0.0
    %7796 = vmatprep.subr.mxu0 0.0
    %7797 = vmatpush2.msra.mxu0 0.0
    %7798 = vmatprep.subr.mxu0 0.0
    %7799 = vmatpush2.msra.mxu0 0.0
    %7800 = vmatprep.subr.mxu0 0.0
    %7801 = vmatpush2.msra.mxu0 0.0
    %7802 = vmatprep.subr.mxu0 0.0
    %7803 = vmatpush2.msra.mxu0 0.0
    %7804 = vmatprep.subr.mxu0 0.0
    %7805 = vmatpush2.msra.mxu0 0.0
    %7806 = vmatprep.subr.mxu0 0.0
    %7807 = vmatpush2.msra.mxu0 0.0
    %7808 = vmatprep.subr.mxu0 0.0
    %7809 = vmatpush2.msra.mxu0 0.0
    %7810 = vmatprep.subr.mxu0 0.0
    %7811 = vmatpush2.msra.mxu0 0.0
    %7812 = vmatprep.subr.mxu0 0.0
    %7813 = vmatpush2.msra.mxu0 0.0
    %7814 = vmatprep.subr.mxu0 0.0
    %7815 = vmatpush2.msra.mxu0 0.0
    %7816 = vmatprep.mubr.f32.mxu0 0.0
    %v7817 = vand.u32 %v7454, 4294901760
    %v7818 = vsub.f32 %v7454, %v7817
    %7819 = vmatmul.mubr.f32.gmra.mxu0 %v7818
    %v7820 = vpop.f32.mrf.mxu0
    %v7821 = vadd.f32 %v7717, %v7820
    %v7822 = vpop.f32.mrf.mxu0
    %7823 = vdwg.mxu0
    %7824 = vmatprep.subr.mxu0 0.0
    %v7825 = vand.u32 %v7471, 4294901760
    %7826 = vmatpush1.msra.mxu0 %v7825
    %7827 = vmatprep.subr.mxu0 0.0
    %v7828 = vand.u32 %v7470, 4294901760
    %7829 = vmatpush1.msra.mxu0 %v7828
    %7830 = vmatprep.subr.mxu0 0.0
    %v7831 = vand.u32 %v7469, 4294901760
    %7832 = vmatpush1.msra.mxu0 %v7831
    %7833 = vmatprep.subr.mxu0 0.0
    %v7834 = vand.u32 %v7468, 4294901760
    %7835 = vmatpush1.msra.mxu0 %v7834
    %7836 = vmatprep.subr.mxu0 0.0
    %v7837 = vand.u32 %v7467, 4294901760
    %7838 = vmatpush1.msra.mxu0 %v7837
    %7839 = vmatprep.subr.mxu0 0.0
    %v7840 = vand.u32 %v7466, 4294901760
    %7841 = vmatpush1.msra.mxu0 %v7840
    %7842 = vmatprep.subr.mxu0 0.0
    %v7843 = vand.u32 %v7465, 4294901760
    %7844 = vmatpush1.msra.mxu0 %v7843
    %7845 = vmatprep.subr.mxu0 0.0
    %v7846 = vand.u32 %v7464, 4294901760
    %7847 = vmatpush1.msra.mxu0 %v7846
    %7848 = vmatprep.subr.mxu0 0.0
    %v7849 = vand.u32 %v7463, 4294901760
    %7850 = vmatpush1.msra.mxu0 %v7849
    %7851 = vmatprep.subr.mxu0 0.0
    %v7852 = vand.u32 %v7462, 4294901760
    %7853 = vmatpush1.msra.mxu0 %v7852
    %7854 = vmatprep.subr.mxu0 0.0
    %v7855 = vand.u32 %v7461, 4294901760
    %7856 = vmatpush1.msra.mxu0 %v7855
    %7857 = vmatprep.subr.mxu0 0.0
    %v7858 = vand.u32 %v7460, 4294901760
    %7859 = vmatpush1.msra.mxu0 %v7858
    %7860 = vmatprep.subr.mxu0 0.0
    %v7861 = vand.u32 %v7459, 4294901760
    %7862 = vmatpush1.msra.mxu0 %v7861
    %7863 = vmatprep.subr.mxu0 0.0
    %v7864 = vand.u32 %v7458, 4294901760
    %7865 = vmatpush1.msra.mxu0 %v7864
    %7866 = vmatprep.subr.mxu0 0.0
    %v7867 = vand.u32 %v7457, 4294901760
    %7868 = vmatpush1.msra.mxu0 %v7867
    %7869 = vmatprep.subr.mxu0 0.0
    %v7870 = vand.u32 %v7456, 4294901760
    %7871 = vmatpush1.msra.mxu0 %v7870
    %7872 = vmatprep.subr.mxu0 0.0
    %7873 = vmatpush2.msra.mxu0 0.0
    %7874 = vmatprep.subr.mxu0 0.0
    %7875 = vmatpush2.msra.mxu0 0.0
    %7876 = vmatprep.subr.mxu0 0.0
    %7877 = vmatpush2.msra.mxu0 0.0
    %7878 = vmatprep.subr.mxu0 0.0
    %7879 = vmatpush2.msra.mxu0 0.0
    %7880 = vmatprep.subr.mxu0 0.0
    %7881 = vmatpush2.msra.mxu0 0.0
    %7882 = vmatprep.subr.mxu0 0.0
    %7883 = vmatpush2.msra.mxu0 0.0
    %7884 = vmatprep.subr.mxu0 0.0
    %7885 = vmatpush2.msra.mxu0 0.0
    %7886 = vmatprep.subr.mxu0 0.0
    %7887 = vmatpush2.msra.mxu0 0.0
    %7888 = vmatprep.subr.mxu0 0.0
    %7889 = vmatpush2.msra.mxu0 0.0
    %7890 = vmatprep.subr.mxu0 0.0
    %7891 = vmatpush2.msra.mxu0 0.0
    %7892 = vmatprep.subr.mxu0 0.0
    %7893 = vmatpush2.msra.mxu0 0.0
    %7894 = vmatprep.subr.mxu0 0.0
    %7895 = vmatpush2.msra.mxu0 0.0
    %7896 = vmatprep.subr.mxu0 0.0
    %7897 = vmatpush2.msra.mxu0 0.0
    %7898 = vmatprep.subr.mxu0 0.0
    %7899 = vmatpush2.msra.mxu0 0.0
    %7900 = vmatprep.subr.mxu0 0.0
    %7901 = vmatpush2.msra.mxu0 0.0
    %7902 = vmatprep.subr.mxu0 0.0
    %7903 = vmatpush2.msra.mxu0 0.0
    %7904 = vmatprep.mubr.f32.mxu0 0.0
    %v7905 = vand.u32 %v7454, 4294901760
    %v7906 = vsub.f32 %v7454, %v7905
    %v7907 = vand.u32 %v7906, 4294901760
    %7908 = vmatmul.mubr.f32.gmra.mxu0 %v7907
    %v7909 = vpop.f32.mrf.mxu0
    %v7910 = vadd.f32 %v7821, %v7909
    %v7911 = vpop.f32.mrf.mxu0
    %7912 = vdwg.mxu0
    %7913 = vmatprep.subr.mxu0 0.0
    %v7914 = vand.u32 %v7471, 4294901760
    %v7915 = vsub.f32 %v7471, %v7914
    %v7916 = vand.u32 %v7915, 4294901760
    %7917 = vmatpush1.msra.mxu0 %v7916
    %7918 = vmatprep.subr.mxu0 0.0
    %v7919 = vand.u32 %v7470, 4294901760
    %v7920 = vsub.f32 %v7470, %v7919
    %v7921 = vand.u32 %v7920, 4294901760
    %7922 = vmatpush1.msra.mxu0 %v7921
    %7923 = vmatprep.subr.mxu0 0.0
    %v7924 = vand.u32 %v7469, 4294901760
    %v7925 = vsub.f32 %v7469, %v7924
    %v7926 = vand.u32 %v7925, 4294901760
    %7927 = vmatpush1.msra.mxu0 %v7926
    %7928 = vmatprep.subr.mxu0 0.0
    %v7929 = vand.u32 %v7468, 4294901760
    %v7930 = vsub.f32 %v7468, %v7929
    %v7931 = vand.u32 %v7930, 4294901760
    %7932 = vmatpush1.msra.mxu0 %v7931
    %7933 = vmatprep.subr.mxu0 0.0
    %v7934 = vand.u32 %v7467, 4294901760
    %v7935 = vsub.f32 %v7467, %v7934
    %v7936 = vand.u32 %v7935, 4294901760
    %7937 = vmatpush1.msra.mxu0 %v7936
    %7938 = vmatprep.subr.mxu0 0.0
    %v7939 = vand.u32 %v7466, 4294901760
    %v7940 = vsub.f32 %v7466, %v7939
    %v7941 = vand.u32 %v7940, 4294901760
    %7942 = vmatpush1.msra.mxu0 %v7941
    %7943 = vmatprep.subr.mxu0 0.0
    %v7944 = vand.u32 %v7465, 4294901760
    %v7945 = vsub.f32 %v7465, %v7944
    %v7946 = vand.u32 %v7945, 4294901760
    %7947 = vmatpush1.msra.mxu0 %v7946
    %7948 = vmatprep.subr.mxu0 0.0
    %v7949 = vand.u32 %v7464, 4294901760
    %v7950 = vsub.f32 %v7464, %v7949
    %v7951 = vand.u32 %v7950, 4294901760
    %7952 = vmatpush1.msra.mxu0 %v7951
    %7953 = vmatprep.subr.mxu0 0.0
    %v7954 = vand.u32 %v7463, 4294901760
    %v7955 = vsub.f32 %v7463, %v7954
    %v7956 = vand.u32 %v7955, 4294901760
    %7957 = vmatpush1.msra.mxu0 %v7956
    %7958 = vmatprep.subr.mxu0 0.0
    %v7959 = vand.u32 %v7462, 4294901760
    %v7960 = vsub.f32 %v7462, %v7959
    %v7961 = vand.u32 %v7960, 4294901760
    %7962 = vmatpush1.msra.mxu0 %v7961
    %7963 = vmatprep.subr.mxu0 0.0
    %v7964 = vand.u32 %v7461, 4294901760
    %v7965 = vsub.f32 %v7461, %v7964
    %v7966 = vand.u32 %v7965, 4294901760
    %7967 = vmatpush1.msra.mxu0 %v7966
    %7968 = vmatprep.subr.mxu0 0.0
    %v7969 = vand.u32 %v7460, 4294901760
    %v7970 = vsub.f32 %v7460, %v7969
    %v7971 = vand.u32 %v7970, 4294901760
    %7972 = vmatpush1.msra.mxu0 %v7971
    %7973 = vmatprep.subr.mxu0 0.0
    %v7974 = vand.u32 %v7459, 4294901760
    %v7975 = vsub.f32 %v7459, %v7974
    %v7976 = vand.u32 %v7975, 4294901760
    %7977 = vmatpush1.msra.mxu0 %v7976
    %7978 = vmatprep.subr.mxu0 0.0
    %v7979 = vand.u32 %v7458, 4294901760
    %v7980 = vsub.f32 %v7458, %v7979
    %v7981 = vand.u32 %v7980, 4294901760
    %7982 = vmatpush1.msra.mxu0 %v7981
    %7983 = vmatprep.subr.mxu0 0.0
    %v7984 = vand.u32 %v7457, 4294901760
    %v7985 = vsub.f32 %v7457, %v7984
    %v7986 = vand.u32 %v7985, 4294901760
    %7987 = vmatpush1.msra.mxu0 %v7986
    %7988 = vmatprep.subr.mxu0 0.0
    %v7989 = vand.u32 %v7456, 4294901760
    %v7990 = vsub.f32 %v7456, %v7989
    %v7991 = vand.u32 %v7990, 4294901760
    %7992 = vmatpush1.msra.mxu0 %v7991
    %7993 = vmatprep.subr.mxu0 0.0
    %7994 = vmatpush2.msra.mxu0 0.0
    %7995 = vmatprep.subr.mxu0 0.0
    %7996 = vmatpush2.msra.mxu0 0.0
    %7997 = vmatprep.subr.mxu0 0.0
    %7998 = vmatpush2.msra.mxu0 0.0
    %7999 = vmatprep.subr.mxu0 0.0
    %8000 = vmatpush2.msra.mxu0 0.0
    %8001 = vmatprep.subr.mxu0 0.0
    %8002 = vmatpush2.msra.mxu0 0.0
    %8003 = vmatprep.subr.mxu0 0.0
    %8004 = vmatpush2.msra.mxu0 0.0
    %8005 = vmatprep.subr.mxu0 0.0
    %8006 = vmatpush2.msra.mxu0 0.0
    %8007 = vmatprep.subr.mxu0 0.0
    %8008 = vmatpush2.msra.mxu0 0.0
    %8009 = vmatprep.subr.mxu0 0.0
    %8010 = vmatpush2.msra.mxu0 0.0
    %8011 = vmatprep.subr.mxu0 0.0
    %8012 = vmatpush2.msra.mxu0 0.0
    %8013 = vmatprep.subr.mxu0 0.0
    %8014 = vmatpush2.msra.mxu0 0.0
    %8015 = vmatprep.subr.mxu0 0.0
    %8016 = vmatpush2.msra.mxu0 0.0
    %8017 = vmatprep.subr.mxu0 0.0
    %8018 = vmatpush2.msra.mxu0 0.0
    %8019 = vmatprep.subr.mxu0 0.0
    %8020 = vmatpush2.msra.mxu0 0.0
    %8021 = vmatprep.subr.mxu0 0.0
    %8022 = vmatpush2.msra.mxu0 0.0
    %8023 = vmatprep.subr.mxu0 0.0
    %8024 = vmatpush2.msra.mxu0 0.0
    %8025 = vmatprep.mubr.f32.mxu0 0.0
    %v8026 = vand.u32 %v7454, 4294901760
    %8027 = vmatmul.mubr.f32.gmra.mxu0 %v8026
    %v8028 = vpop.f32.mrf.mxu0
    %v8029 = vadd.f32 %v7910, %v8028
    %v8030 = vpop.f32.mrf.mxu0
    %8031 = vdwg.mxu0
    %8032 = vmatprep.subr.mxu0 0.0
    %v8033 = vand.u32 %v7471, 4294901760
    %8034 = vmatpush1.msra.mxu0 %v8033
    %8035 = vmatprep.subr.mxu0 0.0
    %v8036 = vand.u32 %v7470, 4294901760
    %8037 = vmatpush1.msra.mxu0 %v8036
    %8038 = vmatprep.subr.mxu0 0.0
    %v8039 = vand.u32 %v7469, 4294901760
    %8040 = vmatpush1.msra.mxu0 %v8039
    %8041 = vmatprep.subr.mxu0 0.0
    %v8042 = vand.u32 %v7468, 4294901760
    %8043 = vmatpush1.msra.mxu0 %v8042
    %8044 = vmatprep.subr.mxu0 0.0
    %v8045 = vand.u32 %v7467, 4294901760
    %8046 = vmatpush1.msra.mxu0 %v8045
    %8047 = vmatprep.subr.mxu0 0.0
    %v8048 = vand.u32 %v7466, 4294901760
    %8049 = vmatpush1.msra.mxu0 %v8048
    %8050 = vmatprep.subr.mxu0 0.0
    %v8051 = vand.u32 %v7465, 4294901760
    %8052 = vmatpush1.msra.mxu0 %v8051
    %8053 = vmatprep.subr.mxu0 0.0
    %v8054 = vand.u32 %v7464, 4294901760
    %8055 = vmatpush1.msra.mxu0 %v8054
    %8056 = vmatprep.subr.mxu0 0.0
    %v8057 = vand.u32 %v7463, 4294901760
    %8058 = vmatpush1.msra.mxu0 %v8057
    %8059 = vmatprep.subr.mxu0 0.0
    %v8060 = vand.u32 %v7462, 4294901760
    %8061 = vmatpush1.msra.mxu0 %v8060
    %8062 = vmatprep.subr.mxu0 0.0
    %v8063 = vand.u32 %v7461, 4294901760
    %8064 = vmatpush1.msra.mxu0 %v8063
    %8065 = vmatprep.subr.mxu0 0.0
    %v8066 = vand.u32 %v7460, 4294901760
    %8067 = vmatpush1.msra.mxu0 %v8066
    %8068 = vmatprep.subr.mxu0 0.0
    %v8069 = vand.u32 %v7459, 4294901760
    %8070 = vmatpush1.msra.mxu0 %v8069
    %8071 = vmatprep.subr.mxu0 0.0
    %v8072 = vand.u32 %v7458, 4294901760
    %8073 = vmatpush1.msra.mxu0 %v8072
    %8074 = vmatprep.subr.mxu0 0.0
    %v8075 = vand.u32 %v7457, 4294901760
    %8076 = vmatpush1.msra.mxu0 %v8075
    %8077 = vmatprep.subr.mxu0 0.0
    %v8078 = vand.u32 %v7456, 4294901760
    %8079 = vmatpush1.msra.mxu0 %v8078
    %8080 = vmatprep.subr.mxu0 0.0
    %8081 = vmatpush2.msra.mxu0 0.0
    %8082 = vmatprep.subr.mxu0 0.0
    %8083 = vmatpush2.msra.mxu0 0.0
    %8084 = vmatprep.subr.mxu0 0.0
    %8085 = vmatpush2.msra.mxu0 0.0
    %8086 = vmatprep.subr.mxu0 0.0
    %8087 = vmatpush2.msra.mxu0 0.0
    %8088 = vmatprep.subr.mxu0 0.0
    %8089 = vmatpush2.msra.mxu0 0.0
    %8090 = vmatprep.subr.mxu0 0.0
    %8091 = vmatpush2.msra.mxu0 0.0
    %8092 = vmatprep.subr.mxu0 0.0
    %8093 = vmatpush2.msra.mxu0 0.0
    %8094 = vmatprep.subr.mxu0 0.0
    %8095 = vmatpush2.msra.mxu0 0.0
    %8096 = vmatprep.subr.mxu0 0.0
    %8097 = vmatpush2.msra.mxu0 0.0
    %8098 = vmatprep.subr.mxu0 0.0
    %8099 = vmatpush2.msra.mxu0 0.0
    %8100 = vmatprep.subr.mxu0 0.0
    %8101 = vmatpush2.msra.mxu0 0.0
    %8102 = vmatprep.subr.mxu0 0.0
    %8103 = vmatpush2.msra.mxu0 0.0
    %8104 = vmatprep.subr.mxu0 0.0
    %8105 = vmatpush2.msra.mxu0 0.0
    %8106 = vmatprep.subr.mxu0 0.0
    %8107 = vmatpush2.msra.mxu0 0.0
    %8108 = vmatprep.subr.mxu0 0.0
    %8109 = vmatpush2.msra.mxu0 0.0
    %8110 = vmatprep.subr.mxu0 0.0
    %8111 = vmatpush2.msra.mxu0 0.0
    %8112 = vmatprep.mubr.f32.mxu0 0.0
    %v8113 = vand.u32 %v7454, 4294901760
    %8114 = vmatmul.mubr.f32.gmra.mxu0 %v8113
    %v8115 = vpop.f32.mrf.mxu0
    %v8116 = vadd.f32 %v8029, %v8115
    %v8117 = vpop.f32.mrf.mxu0
    %8118 = vdwg.mxu0
    %v8119 = vmul.f32 %v8116, 0.5
    %v8120 = vmul.f32 %v8116, %v1567
    %v8121 = verf.f32.pop %v8120
    %v8122 = vadd.f32 %v8121, 1.0
    %v8123 = vmul.f32 %v8119, %v8122
    %8124 = vadd.xlane.f32.xlu0 %v8123
    %v8125 = vpop.xlane.xlu0 %8124
    %v8126 = vmul.f32 %v8125, 0.03125
    %v8127 = vsub.f32 %v8123, %v8126
    %v8128 = vmul.f32 %v8127, %v2553
    %v8129 = vmul.f32 %v8128, %v8128
    %8130 = vadd.xlane.f32.xlu0 %v8129
    %v8131 = vpop.xlane.xlu0 %8130
    %v8132 = vmul.f32 %v8131, 0.03125
    %v8133 = vadd.f32 %v8132, 1e-05
    %v8134 = vrsqrt.pop %v8133
    %v8135 = vmul.f32 %v8128, %v8134
    %v8136 = vlaneseq
    %v8137 = vshrl.u32 %v8136, 7
    %v8138 = vsub.s32 1, %v8137
    %v8139 = vrot.slane %v7473, %v8138
    %v8140 = vmul.f32 %v8135, %v8139
    %v8141 = vlaneseq
    %v8142 = vshrl.u32 %v8141, 7
    %v8143 = vsub.s32 2, %v8142
    %v8144 = vrot.slane %v7473, %v8143
    %v8145 = vadd.f32 %v8140, %v8144
    %v8146 = vadd.f32 %v8145, %v6760
    %v8147 = vld [vmem:[#allocation16] sm:$0xff]
    %v8148 = vld [vmem:[#allocation16 + $0x8] sm:$0xff]
    %v8149 = vld [vmem:[#allocation16 + $0x10] sm:$0xff]
    %v8150 = vld [vmem:[#allocation16 + $0x18] sm:$0xff]
    %v8151 = vld [vmem:[#allocation16 + $0x20] sm:$0xff]
    %v8152 = vld [vmem:[#allocation16 + $0x28] sm:$0xff]
    %v8153 = vld [vmem:[#allocation16 + $0x30] sm:$0xff]
    %v8154 = vld [vmem:[#allocation16 + $0x38] sm:$0xff]
    %v8155 = vld [vmem:[#allocation16 + $0x40] sm:$0xff]
    %v8156 = vld [vmem:[#allocation16 + $0x48] sm:$0xff]
    %v8157 = vld [vmem:[#allocation16 + $0x50] sm:$0xff]
    %v8158 = vld [vmem:[#allocation16 + $0x58] sm:$0xff]
    %v8159 = vld [vmem:[#allocation16 + $0x60] sm:$0xff]
    %v8160 = vld [vmem:[#allocation16 + $0x68] sm:$0xff]
    %v8161 = vld [vmem:[#allocation16 + $0x70] sm:$0xff]
    %v8162 = vld [vmem:[#allocation16 + $0x78] sm:$0xff]
    %v8163 = vld [vmem:[#allocation18] sm:$0x1]
    %v8165 = vlaneseq
    %v8166 = vshrl.u32 %v8165, 7
    %v8167 = vsub.s32 0, %v8166
    %v8168 = vrot.slane %v8163, %v8167
    %8170 = vmatprep.subr.mxu0 0.0
    %v8171 = vand.u32 %v8162, 4294901760
    %8172 = vmatpush1.msra.mxu0 %v8171
    %8173 = vmatprep.subr.mxu0 0.0
    %v8174 = vand.u32 %v8161, 4294901760
    %8175 = vmatpush1.msra.mxu0 %v8174
    %8176 = vmatprep.subr.mxu0 0.0
    %v8177 = vand.u32 %v8160, 4294901760
    %8178 = vmatpush1.msra.mxu0 %v8177
    %8179 = vmatprep.subr.mxu0 0.0
    %v8180 = vand.u32 %v8159, 4294901760
    %8181 = vmatpush1.msra.mxu0 %v8180
    %8182 = vmatprep.subr.mxu0 0.0
    %v8183 = vand.u32 %v8158, 4294901760
    %8184 = vmatpush1.msra.mxu0 %v8183
    %8185 = vmatprep.subr.mxu0 0.0
    %v8186 = vand.u32 %v8157, 4294901760
    %8187 = vmatpush1.msra.mxu0 %v8186
    %8188 = vmatprep.subr.mxu0 0.0
    %v8189 = vand.u32 %v8156, 4294901760
    %8190 = vmatpush1.msra.mxu0 %v8189
    %8191 = vmatprep.subr.mxu0 0.0
    %v8192 = vand.u32 %v8155, 4294901760
    %8193 = vmatpush1.msra.mxu0 %v8192
    %8194 = vmatprep.subr.mxu0 0.0
    %v8195 = vand.u32 %v8154, 4294901760
    %8196 = vmatpush1.msra.mxu0 %v8195
    %8197 = vmatprep.subr.mxu0 0.0
    %v8198 = vand.u32 %v8153, 4294901760
    %8199 = vmatpush1.msra.mxu0 %v8198
    %8200 = vmatprep.subr.mxu0 0.0
    %v8201 = vand.u32 %v8152, 4294901760
    %8202 = vmatpush1.msra.mxu0 %v8201
    %8203 = vmatprep.subr.mxu0 0.0
    %v8204 = vand.u32 %v8151, 4294901760
    %8205 = vmatpush1.msra.mxu0 %v8204
    %8206 = vmatprep.subr.mxu0 0.0
    %v8207 = vand.u32 %v8150, 4294901760
    %8208 = vmatpush1.msra.mxu0 %v8207
    %8209 = vmatprep.subr.mxu0 0.0
    %v8210 = vand.u32 %v8149, 4294901760
    %8211 = vmatpush1.msra.mxu0 %v8210
    %8212 = vmatprep.subr.mxu0 0.0
    %v8213 = vand.u32 %v8148, 4294901760
    %8214 = vmatpush1.msra.mxu0 %v8213
    %8215 = vmatprep.subr.mxu0 0.0
    %v8216 = vand.u32 %v8147, 4294901760
    %8217 = vmatpush1.msra.mxu0 %v8216
    %8218 = vmatprep.subr.mxu0 0.0
    %8219 = vmatpush2.msra.mxu0 0.0
    %8220 = vmatprep.subr.mxu0 0.0
    %8221 = vmatpush2.msra.mxu0 0.0
    %8222 = vmatprep.subr.mxu0 0.0
    %8223 = vmatpush2.msra.mxu0 0.0
    %8224 = vmatprep.subr.mxu0 0.0
    %8225 = vmatpush2.msra.mxu0 0.0
    %8226 = vmatprep.subr.mxu0 0.0
    %8227 = vmatpush2.msra.mxu0 0.0
    %8228 = vmatprep.subr.mxu0 0.0
    %8229 = vmatpush2.msra.mxu0 0.0
    %8230 = vmatprep.subr.mxu0 0.0
    %8231 = vmatpush2.msra.mxu0 0.0
    %8232 = vmatprep.subr.mxu0 0.0
    %8233 = vmatpush2.msra.mxu0 0.0
    %8234 = vmatprep.subr.mxu0 0.0
    %8235 = vmatpush2.msra.mxu0 0.0
    %8236 = vmatprep.subr.mxu0 0.0
    %8237 = vmatpush2.msra.mxu0 0.0
    %8238 = vmatprep.subr.mxu0 0.0
    %8239 = vmatpush2.msra.mxu0 0.0
    %8240 = vmatprep.subr.mxu0 0.0
    %8241 = vmatpush2.msra.mxu0 0.0
    %8242 = vmatprep.subr.mxu0 0.0
    %8243 = vmatpush2.msra.mxu0 0.0
    %8244 = vmatprep.subr.mxu0 0.0
    %8245 = vmatpush2.msra.mxu0 0.0
    %8246 = vmatprep.subr.mxu0 0.0
    %8247 = vmatpush2.msra.mxu0 0.0
    %8248 = vmatprep.subr.mxu0 0.0
    %8249 = vmatpush2.msra.mxu0 0.0
    %8250 = vmatprep.mubr.f32.mxu0 0.0
    %v8251 = vand.u32 %v8146, 4294901760
    %v8252 = vsub.f32 %v8146, %v8251
    %v8253 = vand.u32 %v8252, 4294901760
    %v8254 = vsub.f32 %v8252, %v8253
    %v8255 = vand.u32 %v8254, 4294901760
    %8256 = vmatmul.mubr.f32.gmra.mxu0 %v8255
    %v8257 = vpop.f32.mrf.mxu0
    %v8258 = vadd.f32 %v8168, %v8257
    %v8259 = vpop.f32.mrf.mxu0
    %8260 = vdwg.mxu0
    %8261 = vmatprep.subr.mxu0 0.0
    %v8262 = vand.u32 %v8162, 4294901760
    %v8263 = vsub.f32 %v8162, %v8262
    %v8264 = vand.u32 %v8263, 4294901760
    %v8265 = vsub.f32 %v8263, %v8264
    %v8266 = vand.u32 %v8265, 4294901760
    %8267 = vmatpush1.msra.mxu0 %v8266
    %8268 = vmatprep.subr.mxu0 0.0
    %v8269 = vand.u32 %v8161, 4294901760
    %v8270 = vsub.f32 %v8161, %v8269
    %v8271 = vand.u32 %v8270, 4294901760
    %v8272 = vsub.f32 %v8270, %v8271
    %v8273 = vand.u32 %v8272, 4294901760
    %8274 = vmatpush1.msra.mxu0 %v8273
    %8275 = vmatprep.subr.mxu0 0.0
    %v8276 = vand.u32 %v8160, 4294901760
    %v8277 = vsub.f32 %v8160, %v8276
    %v8278 = vand.u32 %v8277, 4294901760
    %v8279 = vsub.f32 %v8277, %v8278
    %v8280 = vand.u32 %v8279, 4294901760
    %8281 = vmatpush1.msra.mxu0 %v8280
    %8282 = vmatprep.subr.mxu0 0.0
    %v8283 = vand.u32 %v8159, 4294901760
    %v8284 = vsub.f32 %v8159, %v8283
    %v8285 = vand.u32 %v8284, 4294901760
    %v8286 = vsub.f32 %v8284, %v8285
    %v8287 = vand.u32 %v8286, 4294901760
    %8288 = vmatpush1.msra.mxu0 %v8287
    %8289 = vmatprep.subr.mxu0 0.0
    %v8290 = vand.u32 %v8158, 4294901760
    %v8291 = vsub.f32 %v8158, %v8290
    %v8292 = vand.u32 %v8291, 4294901760
    %v8293 = vsub.f32 %v8291, %v8292
    %v8294 = vand.u32 %v8293, 4294901760
    %8295 = vmatpush1.msra.mxu0 %v8294
    %8296 = vmatprep.subr.mxu0 0.0
    %v8297 = vand.u32 %v8157, 4294901760
    %v8298 = vsub.f32 %v8157, %v8297
    %v8299 = vand.u32 %v8298, 4294901760
    %v8300 = vsub.f32 %v8298, %v8299
    %v8301 = vand.u32 %v8300, 4294901760
    %8302 = vmatpush1.msra.mxu0 %v8301
    %8303 = vmatprep.subr.mxu0 0.0
    %v8304 = vand.u32 %v8156, 4294901760
    %v8305 = vsub.f32 %v8156, %v8304
    %v8306 = vand.u32 %v8305, 4294901760
    %v8307 = vsub.f32 %v8305, %v8306
    %v8308 = vand.u32 %v8307, 4294901760
    %8309 = vmatpush1.msra.mxu0 %v8308
    %8310 = vmatprep.subr.mxu0 0.0
    %v8311 = vand.u32 %v8155, 4294901760
    %v8312 = vsub.f32 %v8155, %v8311
    %v8313 = vand.u32 %v8312, 4294901760
    %v8314 = vsub.f32 %v8312, %v8313
    %v8315 = vand.u32 %v8314, 4294901760
    %8316 = vmatpush1.msra.mxu0 %v8315
    %8317 = vmatprep.subr.mxu0 0.0
    %v8318 = vand.u32 %v8154, 4294901760
    %v8319 = vsub.f32 %v8154, %v8318
    %v8320 = vand.u32 %v8319, 4294901760
    %v8321 = vsub.f32 %v8319, %v8320
    %v8322 = vand.u32 %v8321, 4294901760
    %8323 = vmatpush1.msra.mxu0 %v8322
    %8324 = vmatprep.subr.mxu0 0.0
    %v8325 = vand.u32 %v8153, 4294901760
    %v8326 = vsub.f32 %v8153, %v8325
    %v8327 = vand.u32 %v8326, 4294901760
    %v8328 = vsub.f32 %v8326, %v8327
    %v8329 = vand.u32 %v8328, 4294901760
    %8330 = vmatpush1.msra.mxu0 %v8329
    %8331 = vmatprep.subr.mxu0 0.0
    %v8332 = vand.u32 %v8152, 4294901760
    %v8333 = vsub.f32 %v8152, %v8332
    %v8334 = vand.u32 %v8333, 4294901760
    %v8335 = vsub.f32 %v8333, %v8334
    %v8336 = vand.u32 %v8335, 4294901760
    %8337 = vmatpush1.msra.mxu0 %v8336
    %8338 = vmatprep.subr.mxu0 0.0
    %v8339 = vand.u32 %v8151, 4294901760
    %v8340 = vsub.f32 %v8151, %v8339
    %v8341 = vand.u32 %v8340, 4294901760
    %v8342 = vsub.f32 %v8340, %v8341
    %v8343 = vand.u32 %v8342, 4294901760
    %8344 = vmatpush1.msra.mxu0 %v8343
    %8345 = vmatprep.subr.mxu0 0.0
    %v8346 = vand.u32 %v8150, 4294901760
    %v8347 = vsub.f32 %v8150, %v8346
    %v8348 = vand.u32 %v8347, 4294901760
    %v8349 = vsub.f32 %v8347, %v8348
    %v8350 = vand.u32 %v8349, 4294901760
    %8351 = vmatpush1.msra.mxu0 %v8350
    %8352 = vmatprep.subr.mxu0 0.0
    %v8353 = vand.u32 %v8149, 4294901760
    %v8354 = vsub.f32 %v8149, %v8353
    %v8355 = vand.u32 %v8354, 4294901760
    %v8356 = vsub.f32 %v8354, %v8355
    %v8357 = vand.u32 %v8356, 4294901760
    %8358 = vmatpush1.msra.mxu0 %v8357
    %8359 = vmatprep.subr.mxu0 0.0
    %v8360 = vand.u32 %v8148, 4294901760
    %v8361 = vsub.f32 %v8148, %v8360
    %v8362 = vand.u32 %v8361, 4294901760
    %v8363 = vsub.f32 %v8361, %v8362
    %v8364 = vand.u32 %v8363, 4294901760
    %8365 = vmatpush1.msra.mxu0 %v8364
    %8366 = vmatprep.subr.mxu0 0.0
    %v8367 = vand.u32 %v8147, 4294901760
    %v8368 = vsub.f32 %v8147, %v8367
    %v8369 = vand.u32 %v8368, 4294901760
    %v8370 = vsub.f32 %v8368, %v8369
    %v8371 = vand.u32 %v8370, 4294901760
    %8372 = vmatpush1.msra.mxu0 %v8371
    %8373 = vmatprep.subr.mxu0 0.0
    %8374 = vmatpush2.msra.mxu0 0.0
    %8375 = vmatprep.subr.mxu0 0.0
    %8376 = vmatpush2.msra.mxu0 0.0
    %8377 = vmatprep.subr.mxu0 0.0
    %8378 = vmatpush2.msra.mxu0 0.0
    %8379 = vmatprep.subr.mxu0 0.0
    %8380 = vmatpush2.msra.mxu0 0.0
    %8381 = vmatprep.subr.mxu0 0.0
    %8382 = vmatpush2.msra.mxu0 0.0
    %8383 = vmatprep.subr.mxu0 0.0
    %8384 = vmatpush2.msra.mxu0 0.0
    %8385 = vmatprep.subr.mxu0 0.0
    %8386 = vmatpush2.msra.mxu0 0.0
    %8387 = vmatprep.subr.mxu0 0.0
    %8388 = vmatpush2.msra.mxu0 0.0
    %8389 = vmatprep.subr.mxu0 0.0
    %8390 = vmatpush2.msra.mxu0 0.0
    %8391 = vmatprep.subr.mxu0 0.0
    %8392 = vmatpush2.msra.mxu0 0.0
    %8393 = vmatprep.subr.mxu0 0.0
    %8394 = vmatpush2.msra.mxu0 0.0
    %8395 = vmatprep.subr.mxu0 0.0
    %8396 = vmatpush2.msra.mxu0 0.0
    %8397 = vmatprep.subr.mxu0 0.0
    %8398 = vmatpush2.msra.mxu0 0.0
    %8399 = vmatprep.subr.mxu0 0.0
    %8400 = vmatpush2.msra.mxu0 0.0
    %8401 = vmatprep.subr.mxu0 0.0
    %8402 = vmatpush2.msra.mxu0 0.0
    %8403 = vmatprep.subr.mxu0 0.0
    %8404 = vmatpush2.msra.mxu0 0.0
    %8405 = vmatprep.mubr.f32.mxu0 0.0
    %v8406 = vand.u32 %v8146, 4294901760
    %8407 = vmatmul.mubr.f32.gmra.mxu0 %v8406
    %v8408 = vpop.f32.mrf.mxu0
    %v8409 = vadd.f32 %v8258, %v8408
    %v8410 = vpop.f32.mrf.mxu0
    %8411 = vdwg.mxu0
    %8412 = vmatprep.subr.mxu0 0.0
    %v8413 = vand.u32 %v8162, 4294901760
    %v8414 = vsub.f32 %v8162, %v8413
    %8415 = vmatpush1.msra.mxu0 %v8414
    %8416 = vmatprep.subr.mxu0 0.0
    %v8417 = vand.u32 %v8161, 4294901760
    %v8418 = vsub.f32 %v8161, %v8417
    %8419 = vmatpush1.msra.mxu0 %v8418
    %8420 = vmatprep.subr.mxu0 0.0
    %v8421 = vand.u32 %v8160, 4294901760
    %v8422 = vsub.f32 %v8160, %v8421
    %8423 = vmatpush1.msra.mxu0 %v8422
    %8424 = vmatprep.subr.mxu0 0.0
    %v8425 = vand.u32 %v8159, 4294901760
    %v8426 = vsub.f32 %v8159, %v8425
    %8427 = vmatpush1.msra.mxu0 %v8426
    %8428 = vmatprep.subr.mxu0 0.0
    %v8429 = vand.u32 %v8158, 4294901760
    %v8430 = vsub.f32 %v8158, %v8429
    %8431 = vmatpush1.msra.mxu0 %v8430
    %8432 = vmatprep.subr.mxu0 0.0
    %v8433 = vand.u32 %v8157, 4294901760
    %v8434 = vsub.f32 %v8157, %v8433
    %8435 = vmatpush1.msra.mxu0 %v8434
    %8436 = vmatprep.subr.mxu0 0.0
    %v8437 = vand.u32 %v8156, 4294901760
    %v8438 = vsub.f32 %v8156, %v8437
    %8439 = vmatpush1.msra.mxu0 %v8438
    %8440 = vmatprep.subr.mxu0 0.0
    %v8441 = vand.u32 %v8155, 4294901760
    %v8442 = vsub.f32 %v8155, %v8441
    %8443 = vmatpush1.msra.mxu0 %v8442
    %8444 = vmatprep.subr.mxu0 0.0
    %v8445 = vand.u32 %v8154, 4294901760
    %v8446 = vsub.f32 %v8154, %v8445
    %8447 = vmatpush1.msra.mxu0 %v8446
    %8448 = vmatprep.subr.mxu0 0.0
    %v8449 = vand.u32 %v8153, 4294901760
    %v8450 = vsub.f32 %v8153, %v8449
    %8451 = vmatpush1.msra.mxu0 %v8450
    %8452 = vmatprep.subr.mxu0 0.0
    %v8453 = vand.u32 %v8152, 4294901760
    %v8454 = vsub.f32 %v8152, %v8453
    %8455 = vmatpush1.msra.mxu0 %v8454
    %8456 = vmatprep.subr.mxu0 0.0
    %v8457 = vand.u32 %v8151, 4294901760
    %v8458 = vsub.f32 %v8151, %v8457
    %8459 = vmatpush1.msra.mxu0 %v8458
    %8460 = vmatprep.subr.mxu0 0.0
    %v8461 = vand.u32 %v8150, 4294901760
    %v8462 = vsub.f32 %v8150, %v8461
    %8463 = vmatpush1.msra.mxu0 %v8462
    %8464 = vmatprep.subr.mxu0 0.0
    %v8465 = vand.u32 %v8149, 4294901760
    %v8466 = vsub.f32 %v8149, %v8465
    %8467 = vmatpush1.msra.mxu0 %v8466
    %8468 = vmatprep.subr.mxu0 0.0
    %v8469 = vand.u32 %v8148, 4294901760
    %v8470 = vsub.f32 %v8148, %v8469
    %8471 = vmatpush1.msra.mxu0 %v8470
    %8472 = vmatprep.subr.mxu0 0.0
    %v8473 = vand.u32 %v8147, 4294901760
    %v8474 = vsub.f32 %v8147, %v8473
    %8475 = vmatpush1.msra.mxu0 %v8474
    %8476 = vmatprep.subr.mxu0 0.0
    %8477 = vmatpush2.msra.mxu0 0.0
    %8478 = vmatprep.subr.mxu0 0.0
    %8479 = vmatpush2.msra.mxu0 0.0
    %8480 = vmatprep.subr.mxu0 0.0
    %8481 = vmatpush2.msra.mxu0 0.0
    %8482 = vmatprep.subr.mxu0 0.0
    %8483 = vmatpush2.msra.mxu0 0.0
    %8484 = vmatprep.subr.mxu0 0.0
    %8485 = vmatpush2.msra.mxu0 0.0
    %8486 = vmatprep.subr.mxu0 0.0
    %8487 = vmatpush2.msra.mxu0 0.0
    %8488 = vmatprep.subr.mxu0 0.0
    %8489 = vmatpush2.msra.mxu0 0.0
    %8490 = vmatprep.subr.mxu0 0.0
    %8491 = vmatpush2.msra.mxu0 0.0
    %8492 = vmatprep.subr.mxu0 0.0
    %8493 = vmatpush2.msra.mxu0 0.0
    %8494 = vmatprep.subr.mxu0 0.0
    %8495 = vmatpush2.msra.mxu0 0.0
    %8496 = vmatprep.subr.mxu0 0.0
    %8497 = vmatpush2.msra.mxu0 0.0
    %8498 = vmatprep.subr.mxu0 0.0
    %8499 = vmatpush2.msra.mxu0 0.0
    %8500 = vmatprep.subr.mxu0 0.0
    %8501 = vmatpush2.msra.mxu0 0.0
    %8502 = vmatprep.subr.mxu0 0.0
    %8503 = vmatpush2.msra.mxu0 0.0
    %8504 = vmatprep.subr.mxu0 0.0
    %8505 = vmatpush2.msra.mxu0 0.0
    %8506 = vmatprep.subr.mxu0 0.0
    %8507 = vmatpush2.msra.mxu0 0.0
    %8508 = vmatprep.mubr.f32.mxu0 0.0
    %v8509 = vand.u32 %v8146, 4294901760
    %v8510 = vsub.f32 %v8146, %v8509
    %8511 = vmatmul.mubr.f32.gmra.mxu0 %v8510
    %v8512 = vpop.f32.mrf.mxu0
    %v8513 = vadd.f32 %v8409, %v8512
    %v8514 = vpop.f32.mrf.mxu0
    %8515 = vdwg.mxu0
    %8516 = vmatprep.subr.mxu0 0.0
    %v8517 = vand.u32 %v8162, 4294901760
    %8518 = vmatpush1.msra.mxu0 %v8517
    %8519 = vmatprep.subr.mxu0 0.0
    %v8520 = vand.u32 %v8161, 4294901760
    %8521 = vmatpush1.msra.mxu0 %v8520
    %8522 = vmatprep.subr.mxu0 0.0
    %v8523 = vand.u32 %v8160, 4294901760
    %8524 = vmatpush1.msra.mxu0 %v8523
    %8525 = vmatprep.subr.mxu0 0.0
    %v8526 = vand.u32 %v8159, 4294901760
    %8527 = vmatpush1.msra.mxu0 %v8526
    %8528 = vmatprep.subr.mxu0 0.0
    %v8529 = vand.u32 %v8158, 4294901760
    %8530 = vmatpush1.msra.mxu0 %v8529
    %8531 = vmatprep.subr.mxu0 0.0
    %v8532 = vand.u32 %v8157, 4294901760
    %8533 = vmatpush1.msra.mxu0 %v8532
    %8534 = vmatprep.subr.mxu0 0.0
    %v8535 = vand.u32 %v8156, 4294901760
    %8536 = vmatpush1.msra.mxu0 %v8535
    %8537 = vmatprep.subr.mxu0 0.0
    %v8538 = vand.u32 %v8155, 4294901760
    %8539 = vmatpush1.msra.mxu0 %v8538
    %8540 = vmatprep.subr.mxu0 0.0
    %v8541 = vand.u32 %v8154, 4294901760
    %8542 = vmatpush1.msra.mxu0 %v8541
    %8543 = vmatprep.subr.mxu0 0.0
    %v8544 = vand.u32 %v8153, 4294901760
    %8545 = vmatpush1.msra.mxu0 %v8544
    %8546 = vmatprep.subr.mxu0 0.0
    %v8547 = vand.u32 %v8152, 4294901760
    %8548 = vmatpush1.msra.mxu0 %v8547
    %8549 = vmatprep.subr.mxu0 0.0
    %v8550 = vand.u32 %v8151, 4294901760
    %8551 = vmatpush1.msra.mxu0 %v8550
    %8552 = vmatprep.subr.mxu0 0.0
    %v8553 = vand.u32 %v8150, 4294901760
    %8554 = vmatpush1.msra.mxu0 %v8553
    %8555 = vmatprep.subr.mxu0 0.0
    %v8556 = vand.u32 %v8149, 4294901760
    %8557 = vmatpush1.msra.mxu0 %v8556
    %8558 = vmatprep.subr.mxu0 0.0
    %v8559 = vand.u32 %v8148, 4294901760
    %8560 = vmatpush1.msra.mxu0 %v8559
    %8561 = vmatprep.subr.mxu0 0.0
    %v8562 = vand.u32 %v8147, 4294901760
    %8563 = vmatpush1.msra.mxu0 %v8562
    %8564 = vmatprep.subr.mxu0 0.0
    %8565 = vmatpush2.msra.mxu0 0.0
    %8566 = vmatprep.subr.mxu0 0.0
    %8567 = vmatpush2.msra.mxu0 0.0
    %8568 = vmatprep.subr.mxu0 0.0
    %8569 = vmatpush2.msra.mxu0 0.0
    %8570 = vmatprep.subr.mxu0 0.0
    %8571 = vmatpush2.msra.mxu0 0.0
    %8572 = vmatprep.subr.mxu0 0.0
    %8573 = vmatpush2.msra.mxu0 0.0
    %8574 = vmatprep.subr.mxu0 0.0
    %8575 = vmatpush2.msra.mxu0 0.0
    %8576 = vmatprep.subr.mxu0 0.0
    %8577 = vmatpush2.msra.mxu0 0.0
    %8578 = vmatprep.subr.mxu0 0.0
    %8579 = vmatpush2.msra.mxu0 0.0
    %8580 = vmatprep.subr.mxu0 0.0
    %8581 = vmatpush2.msra.mxu0 0.0
    %8582 = vmatprep.subr.mxu0 0.0
    %8583 = vmatpush2.msra.mxu0 0.0
    %8584 = vmatprep.subr.mxu0 0.0
    %8585 = vmatpush2.msra.mxu0 0.0
    %8586 = vmatprep.subr.mxu0 0.0
    %8587 = vmatpush2.msra.mxu0 0.0
    %8588 = vmatprep.subr.mxu0 0.0
    %8589 = vmatpush2.msra.mxu0 0.0
    %8590 = vmatprep.subr.mxu0 0.0
    %8591 = vmatpush2.msra.mxu0 0.0
    %8592 = vmatprep.subr.mxu0 0.0
    %8593 = vmatpush2.msra.mxu0 0.0
    %8594 = vmatprep.subr.mxu0 0.0
    %8595 = vmatpush2.msra.mxu0 0.0
    %8596 = vmatprep.mubr.f32.mxu0 0.0
    %v8597 = vand.u32 %v8146, 4294901760
    %v8598 = vsub.f32 %v8146, %v8597
    %v8599 = vand.u32 %v8598, 4294901760
    %8600 = vmatmul.mubr.f32.gmra.mxu0 %v8599
    %v8601 = vpop.f32.mrf.mxu0
    %v8602 = vadd.f32 %v8513, %v8601
    %v8603 = vpop.f32.mrf.mxu0
    %8604 = vdwg.mxu0
    %8605 = vmatprep.subr.mxu0 0.0
    %v8606 = vand.u32 %v8162, 4294901760
    %v8607 = vsub.f32 %v8162, %v8606
    %v8608 = vand.u32 %v8607, 4294901760
    %8609 = vmatpush1.msra.mxu0 %v8608
    %8610 = vmatprep.subr.mxu0 0.0
    %v8611 = vand.u32 %v8161, 4294901760
    %v8612 = vsub.f32 %v8161, %v8611
    %v8613 = vand.u32 %v8612, 4294901760
    %8614 = vmatpush1.msra.mxu0 %v8613
    %8615 = vmatprep.subr.mxu0 0.0
    %v8616 = vand.u32 %v8160, 4294901760
    %v8617 = vsub.f32 %v8160, %v8616
    %v8618 = vand.u32 %v8617, 4294901760
    %8619 = vmatpush1.msra.mxu0 %v8618
    %8620 = vmatprep.subr.mxu0 0.0
    %v8621 = vand.u32 %v8159, 4294901760
    %v8622 = vsub.f32 %v8159, %v8621
    %v8623 = vand.u32 %v8622, 4294901760
    %8624 = vmatpush1.msra.mxu0 %v8623
    %8625 = vmatprep.subr.mxu0 0.0
    %v8626 = vand.u32 %v8158, 4294901760
    %v8627 = vsub.f32 %v8158, %v8626
    %v8628 = vand.u32 %v8627, 4294901760
    %8629 = vmatpush1.msra.mxu0 %v8628
    %8630 = vmatprep.subr.mxu0 0.0
    %v8631 = vand.u32 %v8157, 4294901760
    %v8632 = vsub.f32 %v8157, %v8631
    %v8633 = vand.u32 %v8632, 4294901760
    %8634 = vmatpush1.msra.mxu0 %v8633
    %8635 = vmatprep.subr.mxu0 0.0
    %v8636 = vand.u32 %v8156, 4294901760
    %v8637 = vsub.f32 %v8156, %v8636
    %v8638 = vand.u32 %v8637, 4294901760
    %8639 = vmatpush1.msra.mxu0 %v8638
    %8640 = vmatprep.subr.mxu0 0.0
    %v8641 = vand.u32 %v8155, 4294901760
    %v8642 = vsub.f32 %v8155, %v8641
    %v8643 = vand.u32 %v8642, 4294901760
    %8644 = vmatpush1.msra.mxu0 %v8643
    %8645 = vmatprep.subr.mxu0 0.0
    %v8646 = vand.u32 %v8154, 4294901760
    %v8647 = vsub.f32 %v8154, %v8646
    %v8648 = vand.u32 %v8647, 4294901760
    %8649 = vmatpush1.msra.mxu0 %v8648
    %8650 = vmatprep.subr.mxu0 0.0
    %v8651 = vand.u32 %v8153, 4294901760
    %v8652 = vsub.f32 %v8153, %v8651
    %v8653 = vand.u32 %v8652, 4294901760
    %8654 = vmatpush1.msra.mxu0 %v8653
    %8655 = vmatprep.subr.mxu0 0.0
    %v8656 = vand.u32 %v8152, 4294901760
    %v8657 = vsub.f32 %v8152, %v8656
    %v8658 = vand.u32 %v8657, 4294901760
    %8659 = vmatpush1.msra.mxu0 %v8658
    %8660 = vmatprep.subr.mxu0 0.0
    %v8661 = vand.u32 %v8151, 4294901760
    %v8662 = vsub.f32 %v8151, %v8661
    %v8663 = vand.u32 %v8662, 4294901760
    %8664 = vmatpush1.msra.mxu0 %v8663
    %8665 = vmatprep.subr.mxu0 0.0
    %v8666 = vand.u32 %v8150, 4294901760
    %v8667 = vsub.f32 %v8150, %v8666
    %v8668 = vand.u32 %v8667, 4294901760
    %8669 = vmatpush1.msra.mxu0 %v8668
    %8670 = vmatprep.subr.mxu0 0.0
    %v8671 = vand.u32 %v8149, 4294901760
    %v8672 = vsub.f32 %v8149, %v8671
    %v8673 = vand.u32 %v8672, 4294901760
    %8674 = vmatpush1.msra.mxu0 %v8673
    %8675 = vmatprep.subr.mxu0 0.0
    %v8676 = vand.u32 %v8148, 4294901760
    %v8677 = vsub.f32 %v8148, %v8676
    %v8678 = vand.u32 %v8677, 4294901760
    %8679 = vmatpush1.msra.mxu0 %v8678
    %8680 = vmatprep.subr.mxu0 0.0
    %v8681 = vand.u32 %v8147, 4294901760
    %v8682 = vsub.f32 %v8147, %v8681
    %v8683 = vand.u32 %v8682, 4294901760
    %8684 = vmatpush1.msra.mxu0 %v8683
    %8685 = vmatprep.subr.mxu0 0.0
    %8686 = vmatpush2.msra.mxu0 0.0
    %8687 = vmatprep.subr.mxu0 0.0
    %8688 = vmatpush2.msra.mxu0 0.0
    %8689 = vmatprep.subr.mxu0 0.0
    %8690 = vmatpush2.msra.mxu0 0.0
    %8691 = vmatprep.subr.mxu0 0.0
    %8692 = vmatpush2.msra.mxu0 0.0
    %8693 = vmatprep.subr.mxu0 0.0
    %8694 = vmatpush2.msra.mxu0 0.0
    %8695 = vmatprep.subr.mxu0 0.0
    %8696 = vmatpush2.msra.mxu0 0.0
    %8697 = vmatprep.subr.mxu0 0.0
    %8698 = vmatpush2.msra.mxu0 0.0
    %8699 = vmatprep.subr.mxu0 0.0
    %8700 = vmatpush2.msra.mxu0 0.0
    %8701 = vmatprep.subr.mxu0 0.0
    %8702 = vmatpush2.msra.mxu0 0.0
    %8703 = vmatprep.subr.mxu0 0.0
    %8704 = vmatpush2.msra.mxu0 0.0
    %8705 = vmatprep.subr.mxu0 0.0
    %8706 = vmatpush2.msra.mxu0 0.0
    %8707 = vmatprep.subr.mxu0 0.0
    %8708 = vmatpush2.msra.mxu0 0.0
    %8709 = vmatprep.subr.mxu0 0.0
    %8710 = vmatpush2.msra.mxu0 0.0
    %8711 = vmatprep.subr.mxu0 0.0
    %8712 = vmatpush2.msra.mxu0 0.0
    %8713 = vmatprep.subr.mxu0 0.0
    %8714 = vmatpush2.msra.mxu0 0.0
    %8715 = vmatprep.subr.mxu0 0.0
    %8716 = vmatpush2.msra.mxu0 0.0
    %8717 = vmatprep.mubr.f32.mxu0 0.0
    %v8718 = vand.u32 %v8146, 4294901760
    %8719 = vmatmul.mubr.f32.gmra.mxu0 %v8718
    %v8720 = vpop.f32.mrf.mxu0
    %v8721 = vadd.f32 %v8602, %v8720
    %v8722 = vpop.f32.mrf.mxu0
    %8723 = vdwg.mxu0
    %8724 = vmatprep.subr.mxu0 0.0
    %v8725 = vand.u32 %v8162, 4294901760
    %8726 = vmatpush1.msra.mxu0 %v8725
    %8727 = vmatprep.subr.mxu0 0.0
    %v8728 = vand.u32 %v8161, 4294901760
    %8729 = vmatpush1.msra.mxu0 %v8728
    %8730 = vmatprep.subr.mxu0 0.0
    %v8731 = vand.u32 %v8160, 4294901760
    %8732 = vmatpush1.msra.mxu0 %v8731
    %8733 = vmatprep.subr.mxu0 0.0
    %v8734 = vand.u32 %v8159, 4294901760
    %8735 = vmatpush1.msra.mxu0 %v8734
    %8736 = vmatprep.subr.mxu0 0.0
    %v8737 = vand.u32 %v8158, 4294901760
    %8738 = vmatpush1.msra.mxu0 %v8737
    %8739 = vmatprep.subr.mxu0 0.0
    %v8740 = vand.u32 %v8157, 4294901760
    %8741 = vmatpush1.msra.mxu0 %v8740
    %8742 = vmatprep.subr.mxu0 0.0
    %v8743 = vand.u32 %v8156, 4294901760
    %8744 = vmatpush1.msra.mxu0 %v8743
    %8745 = vmatprep.subr.mxu0 0.0
    %v8746 = vand.u32 %v8155, 4294901760
    %8747 = vmatpush1.msra.mxu0 %v8746
    %8748 = vmatprep.subr.mxu0 0.0
    %v8749 = vand.u32 %v8154, 4294901760
    %8750 = vmatpush1.msra.mxu0 %v8749
    %8751 = vmatprep.subr.mxu0 0.0
    %v8752 = vand.u32 %v8153, 4294901760
    %8753 = vmatpush1.msra.mxu0 %v8752
    %8754 = vmatprep.subr.mxu0 0.0
    %v8755 = vand.u32 %v8152, 4294901760
    %8756 = vmatpush1.msra.mxu0 %v8755
    %8757 = vmatprep.subr.mxu0 0.0
    %v8758 = vand.u32 %v8151, 4294901760
    %8759 = vmatpush1.msra.mxu0 %v8758
    %8760 = vmatprep.subr.mxu0 0.0
    %v8761 = vand.u32 %v8150, 4294901760
    %8762 = vmatpush1.msra.mxu0 %v8761
    %8763 = vmatprep.subr.mxu0 0.0
    %v8764 = vand.u32 %v8149, 4294901760
    %8765 = vmatpush1.msra.mxu0 %v8764
    %8766 = vmatprep.subr.mxu0 0.0
    %v8767 = vand.u32 %v8148, 4294901760
    %8768 = vmatpush1.msra.mxu0 %v8767
    %8769 = vmatprep.subr.mxu0 0.0
    %v8770 = vand.u32 %v8147, 4294901760
    %8771 = vmatpush1.msra.mxu0 %v8770
    %8772 = vmatprep.subr.mxu0 0.0
    %8773 = vmatpush2.msra.mxu0 0.0
    %8774 = vmatprep.subr.mxu0 0.0
    %8775 = vmatpush2.msra.mxu0 0.0
    %8776 = vmatprep.subr.mxu0 0.0
    %8777 = vmatpush2.msra.mxu0 0.0
    %8778 = vmatprep.subr.mxu0 0.0
    %8779 = vmatpush2.msra.mxu0 0.0
    %8780 = vmatprep.subr.mxu0 0.0
    %8781 = vmatpush2.msra.mxu0 0.0
    %8782 = vmatprep.subr.mxu0 0.0
    %8783 = vmatpush2.msra.mxu0 0.0
    %8784 = vmatprep.subr.mxu0 0.0
    %8785 = vmatpush2.msra.mxu0 0.0
    %8786 = vmatprep.subr.mxu0 0.0
    %8787 = vmatpush2.msra.mxu0 0.0
    %8788 = vmatprep.subr.mxu0 0.0
    %8789 = vmatpush2.msra.mxu0 0.0
    %8790 = vmatprep.subr.mxu0 0.0
    %8791 = vmatpush2.msra.mxu0 0.0
    %8792 = vmatprep.subr.mxu0 0.0
    %8793 = vmatpush2.msra.mxu0 0.0
    %8794 = vmatprep.subr.mxu0 0.0
    %8795 = vmatpush2.msra.mxu0 0.0
    %8796 = vmatprep.subr.mxu0 0.0
    %8797 = vmatpush2.msra.mxu0 0.0
    %8798 = vmatprep.subr.mxu0 0.0
    %8799 = vmatpush2.msra.mxu0 0.0
    %8800 = vmatprep.subr.mxu0 0.0
    %8801 = vmatpush2.msra.mxu0 0.0
    %8802 = vmatprep.subr.mxu0 0.0
    %8803 = vmatpush2.msra.mxu0 0.0
    %8804 = vmatprep.mubr.f32.mxu0 0.0
    %v8805 = vand.u32 %v8146, 4294901760
    %8806 = vmatmul.mubr.f32.gmra.mxu0 %v8805
    %v8807 = vpop.f32.mrf.mxu0
    %v8808 = vadd.f32 %v8721, %v8807
    %v8809 = vpop.f32.mrf.mxu0
    %8810 = vdwg.mxu0
    %v8811 = vmul.f32 %v8808, 0.2
    %v8812 = vtanh.pop %v8811
    %v8813 = vmul.f32 %v8812, 5.0
    %v8814 = vmul.f32 %v8813, 1.442695
    %v8815 = vpow.pop %v8814
    %8816 = vst [vmem:[%s19] sm:$0xff] %v8815
    // Predicated region
    $region122: #{fused_model_ac.1} parent=1 // pred_check
      _
    $region123: #{fused_model_ac.1} parent=1 // pred_check_branch
      %8818 = sbr.rel (0) target = $region125
    $region124: #{fused_model_ac.1} parent=1 // pred_region
      _
    $region125: #{fused_model_ac.1} parent=1 // pred_fallthru
      _
    // Predicated region
    $region126: #{fused_model_ac.1} parent=1 // pred_check
      _
    $region127: #{fused_model_ac.1} parent=1 // pred_check_branch
      %8820 = sbr.rel (0) target = $region129
    $region128: #{fused_model_ac.1} parent=1 // pred_region
      _
    $region129: #{fused_model_ac.1} parent=1 // pred_fallthru
      _
    %8821 = vsyncpa [#allocation3], 1
    %8822 = vsyncpa [#allocation5], 1
    %8823 = vsyncpa [#allocation8], 1
    %8824 = vsyncpa [#allocation11], 1
    %8825 = vsyncpa [#allocation14], 1
    %8826 = vsyncpa [#allocation17], 1

</llo_original>
